<compile_context>
chip_gen: v5e
topology: v5e:2x2
jax: 0.10.0
libtpu: 0.0.40
codegen_flags: <defaults>
</compile_context>

<pallas_src>
import functools

import jax
import jax.numpy as jnp
from jax.experimental import pallas as pl
from jax.experimental.pallas import tpu as pltpu

EPS = 1e-5      # nn.InstanceNorm2d default eps
_LANE = 128     # TPU lane width


def _vmem_limit_bytes():
    """Generation-aware scoped-VMEM limit (~80% of physical VMEM)."""
    cap = None
    try:
        cap = getattr(pltpu.get_tpu_info(), "vmem_capacity_bytes", None)
    except Exception:
        cap = None
    if not cap:
        cap = 64 * 1024 * 1024  # conservative fallback (v7x per-core VMEM)
    return max(32 * 1024 * 1024, int(cap * 0.8))


def _conv3x3_instance_norm(xb, pad_ref, w_ref, *, H, W, C, relu, out_dtype):
    """ReflectionPad2d(1) + Conv3x3 + InstanceNorm2d(affine=False) (+ReLU).

    xb:      (H, W, C) activation already in the matmul dtype.
    pad_ref: (H+2, W+2, C) VMEM scratch (same dtype as xb), reused across convs.
    w_ref:   (9*C, C) weights, rows ordered (dy, dx, cin).
    Returns (H, W, C) in `out_dtype`. Conv bias omitted: cancels under IN.
    """
    # ---- ReflectionPad2d(1): write once into the persistent VMEM scratch ----
    pad_ref[pl.ds(1, H), pl.ds(1, W), :] = xb                          # interior
    pad_ref[pl.ds(1, H), pl.ds(0, 1), :] = xb[:, 1:2, :]               # left  col = col 1
    pad_ref[pl.ds(1, H), pl.ds(W + 1, 1), :] = xb[:, W - 2:W - 1, :]   # right col = col W-2
    top = pad_ref[pl.ds(2, 1), :, :]       # padded row 2 == original row 1 (incl. corners)
    pad_ref[pl.ds(0, 1), :, :] = top
    bot = pad_ref[pl.ds(H - 1, 1), :, :]   # padded row H-1 == original row H-2
    pad_ref[pl.ds(H + 1, 1), :, :] = bot

    # ---- dx-shifted slab (H+2, W, 3C); channel order (dx, cin) matches w rows ----
    xw = jnp.concatenate([pad_ref[:, pl.ds(dx, W), :] for dx in range(3)], axis=-1)

    # ---- 3 accumulating dy-tap matmuls (K = 3C); no (H, W, 9C) patch slab ----
    acc = None
    for dy in range(3):
        m = xw[dy:dy + H].reshape(H * W, 3 * C)
        part = jnp.dot(m, w_ref[dy * 3 * C:(dy + 1) * 3 * C, :],
                       preferred_element_type=jnp.float32)
        acc = part if acc is None else acc + part                      # (H*W, C) f32

    # ---- fused InstanceNorm epilogue: one-pass stats, no 'centered' temp ----
    inv_n = jnp.float32(1.0 / (H * W))
    mean = jnp.sum(acc, axis=0, keepdims=True) * inv_n                 # (1, C) f32
    ex2 = jnp.sum(acc * acc, axis=0, keepdims=True) * inv_n            # (1, C) f32
    var = jnp.maximum(ex2 - mean * mean, 0.0)
    scale = jax.lax.rsqrt(var + EPS)
    y = (acc - mean) * scale
    if relu:
        y = jnp.maximum(y, 0.0)
    return y.astype(out_dtype).reshape(H, W, C)


def _residual_block_kernel(x_ref, w1_ref, w2_ref, out_ref, pad_ref,
                           *, H, W, C, matmul_dtype):
    """Whole residual block for one batch element; `h` never leaves VMEM."""
    x = x_ref[0]                                # (H, W, C) f32 — residual uses this
    xb = x.astype(matmul_dtype)                 # cast BEFORE pad / im2col
    h = _conv3x3_instance_norm(xb, pad_ref, w1_ref, H=H, W=W, C=C,
                               relu=True, out_dtype=matmul_dtype)
    y = _conv3x3_instance_norm(h, pad_ref, w2_ref, H=H, W=W, C=C,
                               relu=False, out_dtype=jnp.float32)
    out_ref[0] = (x + y).astype(out_ref.dtype)


def residual_block_forward(x_nhwc, weights, *, matmul_dtype=jnp.bfloat16):
    """x_nhwc: (N, H, W, C) float32; weights = (w1, w2), each (3, 3, Cin, Cout)
    (PyTorch Conv2d weight (Cout, Cin, 3, 3) -> transpose(2, 3, 1, 0))."""
    w1, w2 = weights
    N, H, W, C = x_nhwc.shape

    # Lane-dense channels: zero-pad C to a multiple of 128. Exact: padded
    # channels stay identically zero through conv/IN/ReLU/residual.
    Cp = max(_LANE, ((C + _LANE - 1) // _LANE) * _LANE)
    if Cp != C:
        x_p = jnp.pad(x_nhwc, ((0, 0), (0, 0), (0, 0), (0, Cp - C)))
        w1 = jnp.pad(w1, ((0, 0), (0, 0), (0, Cp - C), (0, Cp - C)))
        w2 = jnp.pad(w2, ((0, 0), (0, 0), (0, Cp - C), (0, Cp - C)))
    else:
        x_p = x_nhwc
    w1f = w1.reshape(9 * Cp, Cp).astype(matmul_dtype)
    w2f = w2.reshape(9 * Cp, Cp).astype(matmul_dtype)

    kernel = functools.partial(_residual_block_kernel, H=H, W=W, C=Cp,
                               matmul_dtype=matmul_dtype)

    def call(weight_pipeline_mode):
        wkw = ({} if weight_pipeline_mode is None
               else {"pipeline_mode": weight_pipeline_mode})
        return pl.pallas_call(
            kernel,
            out_shape=jax.ShapeDtypeStruct((N, H, W, Cp), x_nhwc.dtype),
            grid=(N,),
            in_specs=[
                pl.BlockSpec((1, H, W, Cp), lambda n: (n, 0, 0, 0)),
                # Constant index_map -> weights stay resident across the grid.
                pl.BlockSpec((9 * Cp, Cp), lambda n: (0, 0), **wkw),
                pl.BlockSpec((9 * Cp, Cp), lambda n: (0, 0), **wkw),
            ],
            out_specs=pl.BlockSpec((1, H, W, Cp), lambda n: (n, 0, 0, 0)),
            # Persistent padded-activation scratch, shared by both convs.
            scratch_shapes=[pltpu.VMEM((H + 2, W + 2, Cp), matmul_dtype)],
            compiler_params=pltpu.CompilerParams(
                dimension_semantics=("parallel",),
                vmem_limit_bytes=_vmem_limit_bytes()),
        )(x_p, w1f, w2f)

    buffered = getattr(pl, "Buffered", None)
    try:
        out = call(buffered(1) if buffered is not None else None)
    except Exception:
        out = call(None)   # fallback: default double-buffered weights

    return out[..., :C] if Cp != C else out


def _reference_forward(x_nhwc, weights, biases):
    """Pure-JAX reference, faithful to the PyTorch module (including conv bias)."""
    w1, w2 = weights
    b1, b2 = biases

    def conv_in(x, w, b, relu):
        xp = jnp.pad(x, ((0, 0), (1, 1), (1, 1), (0, 0)), mode="reflect")
        y = jax.lax.conv_general_dilated(
            xp, w, window_strides=(1, 1), padding="VALID",
            dimension_numbers=("NHWC", "HWIO", "NHWC"))
        y = y + b
        mean = jnp.mean(y, axis=(1, 2), keepdims=True)
        var = jnp.mean((y - mean) ** 2, axis=(1, 2), keepdims=True)
        y = (y - mean) * jax.lax.rsqrt(var + EPS)
        return jnp.maximum(y, 0.0) if relu else y

    h = conv_in(x_nhwc, w1, b1, relu=True)
    return x_nhwc + conv_in(h, w2, b2, relu=False)


def init_params(key, C):
    """Deterministic synthetic parameters (shapes follow nn.Conv2d(C, C, 3))."""
    k1, k2, k3, k4 = jax.random.split(key, 4)
    w1 = jax.random.normal(k1, (3, 3, C, C), jnp.float32) * 0.1
    b1 = jax.random.normal(k2, (C,), jnp.float32) * 0.1
    w2 = jax.random.normal(k3, (3, 3, C, C), jnp.float32) * 0.1
    b2 = jax.random.normal(k4, (C,), jnp.float32) * 0.1
    return (w1, w2), (b1, b2)


if __name__ == "__main__":
    N, C, H, W = 2, 4, 16, 16
    key = jax.random.PRNGKey(0)
    kx, kp = jax.random.split(key)

    # PyTorch-style NCHW input -> NHWC for the kernel.
    x_nchw = jax.random.normal(kx, (N, C, H, W), jnp.float32)
    x_nhwc = jnp.transpose(x_nchw, (0, 2, 3, 1))

    weights, biases = init_params(kp, C)
    ref = jax.block_until_ready(_reference_forward(x_nhwc, weights, biases))

    # f32 matmul path: tight tolerance (omitted conv bias cancels exactly under
    # InstanceNorm; one-pass E[x^2]-mean^2 variance stays in f32).
    out_f32 = jax.block_until_ready(
        residual_block_forward(x_nhwc, weights, matmul_dtype=jnp.float32))
    assert out_f32.shape == (N, H, W, C)
    assert jnp.allclose(out_f32, ref, atol=1e-4, rtol=1e-4), \
        f"f32 path max abs err {jnp.max(jnp.abs(out_f32 - ref))}"

    # Default bf16-MXU path (f32 accumulation, f32 InstanceNorm): looser tol.
    out_bf16 = jax.block_until_ready(residual_block_forward(x_nhwc, weights))
    assert out_bf16.shape == (N, H, W, C)
    assert jnp.allclose(out_bf16, ref, atol=5e-2, rtol=5e-2), \
        f"bf16 path max abs err {jnp.max(jnp.abs(out_bf16 - ref))}"

    print("KERNEL_OK")
</pallas_src>

<mosaic_0001>
module attributes {stable_mosaic.version = 11 : i64} {
  func.func @_residual_block_kernel(%arg0: i32, %arg1: memref<1x16x16x128xf32, #tpu.memory_space<vmem>>, %arg2: memref<1152x128xf32, #tpu.memory_space<vmem>>, %arg3: memref<1152x128xf32, #tpu.memory_space<vmem>>, %arg4: memref<1x16x16x128xf32, #tpu.memory_space<vmem>>, %arg5: memref<18x18x128xf32, #tpu.memory_space<vmem>>) attributes {dimension_semantics = [#tpu.dimension_semantics<parallel>], iteration_bounds = array<i64: 2>, scalar_prefetch = 0 : i64, scratch_operands = 1 : i64, tpu.core_type = #tpu.core_type<tc>, window_params = [{transform_indices = @transform_0, window_bounds = array<i64: 1, 16, 16, 128>}, {pipeline_mode = #tpu.pipeline_mode<synchronous>, transform_indices = @transform_1, window_bounds = array<i64: 1152, 128>}, {pipeline_mode = #tpu.pipeline_mode<synchronous>, transform_indices = @transform_2, window_bounds = array<i64: 1152, 128>}, {transform_indices = @transform_3, window_bounds = array<i64: 1, 16, 16, 128>}]} {
    %c0 = arith.constant 0 : index
    %c0_0 = arith.constant 0 : index
    %c0_1 = arith.constant 0 : index
    %c0_2 = arith.constant 0 : index
    %0 = vector.load %arg1[%c0, %c0_0, %c0_1, %c0_2] : memref<1x16x16x128xf32, #tpu.memory_space<vmem>>, vector<1x16x16x128xf32>
    %1 = vector.shape_cast %0 : vector<1x16x16x128xf32> to vector<16x16x128xf32>
    %c1 = arith.constant 1 : index
    %c1_3 = arith.constant 1 : index
    %c0_4 = arith.constant 0 : index
    %2 = vector.load %arg5[%c1, %c1_3, %c0_4] : memref<18x18x128xf32, #tpu.memory_space<vmem>>, vector<16x16x128xf32>
    tpu.vector_store %arg5[%c1, %c1_3, %c0_4], %1 {strides = array<i32>} : memref<18x18x128xf32, #tpu.memory_space<vmem>>, vector<16x16x128xf32>,
    %3 = vector.extract_strided_slice %1 {offsets = [0, 1, 0], sizes = [16, 1, 128], strides = [1, 1, 1]} : vector<16x16x128xf32> to vector<16x1x128xf32>
    %c1_5 = arith.constant 1 : index
    %c0_6 = arith.constant 0 : index
    %c0_7 = arith.constant 0 : index
    %4 = vector.load %arg5[%c1_5, %c0_6, %c0_7] : memref<18x18x128xf32, #tpu.memory_space<vmem>>, vector<16x1x128xf32>
    tpu.vector_store %arg5[%c1_5, %c0_6, %c0_7], %3 {strides = array<i32>} : memref<18x18x128xf32, #tpu.memory_space<vmem>>, vector<16x1x128xf32>,
    %5 = vector.extract_strided_slice %1 {offsets = [0, 14, 0], sizes = [16, 1, 128], strides = [1, 1, 1]} : vector<16x16x128xf32> to vector<16x1x128xf32>
    %c1_8 = arith.constant 1 : index
    %c17 = arith.constant 17 : index
    %c0_9 = arith.constant 0 : index
    %6 = vector.load %arg5[%c1_8, %c17, %c0_9] : memref<18x18x128xf32, #tpu.memory_space<vmem>>, vector<16x1x128xf32>
    tpu.vector_store %arg5[%c1_8, %c17, %c0_9], %5 {strides = array<i32>} : memref<18x18x128xf32, #tpu.memory_space<vmem>>, vector<16x1x128xf32>,
    %c2 = arith.constant 2 : index
    %c0_10 = arith.constant 0 : index
    %c0_11 = arith.constant 0 : index
    %7 = vector.load %arg5[%c2, %c0_10, %c0_11] : memref<18x18x128xf32, #tpu.memory_space<vmem>>, vector<1x18x128xf32>
    %c0_12 = arith.constant 0 : index
    %c0_13 = arith.constant 0 : index
    %c0_14 = arith.constant 0 : index
    %8 = vector.load %arg5[%c0_12, %c0_13, %c0_14] : memref<18x18x128xf32, #tpu.memory_space<vmem>>, vector<1x18x128xf32>
    tpu.vector_store %arg5[%c0_12, %c0_13, %c0_14], %7 {strides = array<i32>} : memref<18x18x128xf32, #tpu.memory_space<vmem>>, vector<1x18x128xf32>,
    %c15 = arith.constant 15 : index
    %c0_15 = arith.constant 0 : index
    %c0_16 = arith.constant 0 : index
    %9 = vector.load %arg5[%c15, %c0_15, %c0_16] : memref<18x18x128xf32, #tpu.memory_space<vmem>>, vector<1x18x128xf32>
    %c17_17 = arith.constant 17 : index
    %c0_18 = arith.constant 0 : index
    %c0_19 = arith.constant 0 : index
    %10 = vector.load %arg5[%c17_17, %c0_18, %c0_19] : memref<18x18x128xf32, #tpu.memory_space<vmem>>, vector<1x18x128xf32>
    tpu.vector_store %arg5[%c17_17, %c0_18, %c0_19], %9 {strides = array<i32>} : memref<18x18x128xf32, #tpu.memory_space<vmem>>, vector<1x18x128xf32>,
    %c0_20 = arith.constant 0 : index
    %c0_21 = arith.constant 0 : index
    %c0_22 = arith.constant 0 : index
    %11 = vector.load %arg5[%c0_20, %c0_21, %c0_22] : memref<18x18x128xf32, #tpu.memory_space<vmem>>, vector<18x16x128xf32>
    %c0_23 = arith.constant 0 : index
    %c1_24 = arith.constant 1 : index
    %c0_25 = arith.constant 0 : index
    %12 = vector.load %arg5[%c0_23, %c1_24, %c0_25] : memref<18x18x128xf32, #tpu.memory_space<vmem>>, vector<18x16x128xf32>
    %c0_26 = arith.constant 0 : index
    %c2_27 = arith.constant 2 : index
    %c0_28 = arith.constant 0 : index
    %13 = vector.load %arg5[%c0_26, %c2_27, %c0_28] : memref<18x18x128xf32, #tpu.memory_space<vmem>>, vector<18x16x128xf32>
    %14 = tpu.concatenate %11, %12, %13 in 2 : vector<18x16x128xf32>, vector<18x16x128xf32>, vector<18x16x128xf32> -> vector<18x16x384xf32>
    %15 = vector.extract_strided_slice %14 {offsets = [0, 0, 0], sizes = [16, 16, 384], strides = [1, 1, 1]} : vector<18x16x384xf32> to vector<16x16x384xf32>
    %16 = vector.shape_cast %15 : vector<16x16x384xf32> to vector<256x384xf32>
    %c0_29 = arith.constant 0 : index
    %c0_30 = arith.constant 0 : index
    %17 = vector.load %arg2[%c0_29, %c0_30] : memref<1152x128xf32, #tpu.memory_space<vmem>>, vector<384x128xf32>
    %cst = arith.constant dense<0.000000e+00> : vector<256x128xf32>
    %18 = tpu.matmul %16, %17, %cst {dimension_numbers = #tpu.dot_dimension_numbers<[1], [0], [0], [1], [0, 0, 1, 1], [], []>} : vector<256x384xf32>, vector<384x128xf32>, vector<256x128xf32> -> vector<256x128xf32>
    %19 = vector.extract_strided_slice %14 {offsets = [1, 0, 0], sizes = [16, 16, 384], strides = [1, 1, 1]} : vector<18x16x384xf32> to vector<16x16x384xf32>
    %20 = vector.shape_cast %19 : vector<16x16x384xf32> to vector<256x384xf32>
    %c384 = arith.constant 384 : index
    %c0_31 = arith.constant 0 : index
    %21 = vector.load %arg2[%c384, %c0_31] : memref<1152x128xf32, #tpu.memory_space<vmem>>, vector<384x128xf32>
    %cst_32 = arith.constant dense<0.000000e+00> : vector<256x128xf32>
    %22 = tpu.matmul %20, %21, %cst_32 {dimension_numbers = #tpu.dot_dimension_numbers<[1], [0], [0], [1], [0, 0, 1, 1], [], []>} : vector<256x384xf32>, vector<384x128xf32>, vector<256x128xf32> -> vector<256x128xf32>
    %23 = arith.addf %18, %22 : vector<256x128xf32>
    %24 = vector.extract_strided_slice %14 {offsets = [2, 0, 0], sizes = [16, 16, 384], strides = [1, 1, 1]} : vector<18x16x384xf32> to vector<16x16x384xf32>
    %25 = vector.shape_cast %24 : vector<16x16x384xf32> to vector<256x384xf32>
    %c768 = arith.constant 768 : index
    %c0_33 = arith.constant 0 : index
    %26 = vector.load %arg2[%c768, %c0_33] : memref<1152x128xf32, #tpu.memory_space<vmem>>, vector<384x128xf32>
    %cst_34 = arith.constant dense<0.000000e+00> : vector<256x128xf32>
    %27 = tpu.matmul %25, %26, %cst_34 {dimension_numbers = #tpu.dot_dimension_numbers<[1], [0], [0], [1], [0, 0, 1, 1], [], []>} : vector<256x384xf32>, vector<384x128xf32>, vector<256x128xf32> -> vector<256x128xf32>
    %28 = arith.addf %23, %27 : vector<256x128xf32>
    %cst_35 = arith.constant dense<0.000000e+00> : vector<128xf32>
    %29 = vector.multi_reduction <add>, %28, %cst_35 [0] : vector<256x128xf32> to vector<128xf32>
    %30 = vector.shape_cast %29 : vector<128xf32> to vector<1x128xf32>
    %cst_36 = arith.constant 3.906250e-03 : f32
    %31 = vector.broadcast %cst_36 : f32 to vector<1x128xf32>
    %32 = arith.mulf %30, %31 : vector<1x128xf32>
    %33 = arith.mulf %28, %28 : vector<256x128xf32>
    %cst_37 = arith.constant dense<0.000000e+00> : vector<128xf32>
    %34 = vector.multi_reduction <add>, %33, %cst_37 [0] : vector<256x128xf32> to vector<128xf32>
    %35 = vector.shape_cast %34 : vector<128xf32> to vector<1x128xf32>
    %cst_38 = arith.constant 3.906250e-03 : f32
    %36 = vector.broadcast %cst_38 : f32 to vector<1x128xf32>
    %37 = arith.mulf %35, %36 : vector<1x128xf32>
    %38 = arith.mulf %32, %32 : vector<1x128xf32>
    %39 = arith.subf %37, %38 : vector<1x128xf32>
    %cst_39 = arith.constant 0.000000e+00 : f32
    %40 = vector.broadcast %cst_39 : f32 to vector<1x128xf32>
    %41 = arith.maximumf %39, %40 : vector<1x128xf32>
    %cst_40 = arith.constant 9.99999974E-6 : f32
    %42 = vector.broadcast %cst_40 : f32 to vector<1x128xf32>
    %43 = arith.addf %41, %42 : vector<1x128xf32>
    %44 = math.rsqrt %43 : vector<1x128xf32>
    %45 = vector.broadcast %32 : vector<1x128xf32> to vector<256x128xf32>
    %46 = arith.subf %28, %45 : vector<256x128xf32>
    %47 = vector.broadcast %44 : vector<1x128xf32> to vector<256x128xf32>
    %48 = arith.mulf %46, %47 : vector<256x128xf32>
    %cst_41 = arith.constant 0.000000e+00 : f32
    %49 = vector.broadcast %cst_41 : f32 to vector<256x128xf32>
    %50 = arith.maximumf %48, %49 : vector<256x128xf32>
    %51 = vector.shape_cast %50 : vector<256x128xf32> to vector<16x16x128xf32>
    %c1_42 = arith.constant 1 : index
    %c1_43 = arith.constant 1 : index
    %c0_44 = arith.constant 0 : index
    %52 = vector.load %arg5[%c1_42, %c1_43, %c0_44] : memref<18x18x128xf32, #tpu.memory_space<vmem>>, vector<16x16x128xf32>
    tpu.vector_store %arg5[%c1_42, %c1_43, %c0_44], %51 {strides = array<i32>} : memref<18x18x128xf32, #tpu.memory_space<vmem>>, vector<16x16x128xf32>,
    %53 = vector.extract_strided_slice %51 {offsets = [0, 1, 0], sizes = [16, 1, 128], strides = [1, 1, 1]} : vector<16x16x128xf32> to vector<16x1x128xf32>
    %c1_45 = arith.constant 1 : index
    %c0_46 = arith.constant 0 : index
    %c0_47 = arith.constant 0 : index
    %54 = vector.load %arg5[%c1_45, %c0_46, %c0_47] : memref<18x18x128xf32, #tpu.memory_space<vmem>>, vector<16x1x128xf32>
    tpu.vector_store %arg5[%c1_45, %c0_46, %c0_47], %53 {strides = array<i32>} : memref<18x18x128xf32, #tpu.memory_space<vmem>>, vector<16x1x128xf32>,
    %55 = vector.extract_strided_slice %51 {offsets = [0, 14, 0], sizes = [16, 1, 128], strides = [1, 1, 1]} : vector<16x16x128xf32> to vector<16x1x128xf32>
    %c1_48 = arith.constant 1 : index
    %c17_49 = arith.constant 17 : index
    %c0_50 = arith.constant 0 : index
    %56 = vector.load %arg5[%c1_48, %c17_49, %c0_50] : memref<18x18x128xf32, #tpu.memory_space<vmem>>, vector<16x1x128xf32>
    tpu.vector_store %arg5[%c1_48, %c17_49, %c0_50], %55 {strides = array<i32>} : memref<18x18x128xf32, #tpu.memory_space<vmem>>, vector<16x1x128xf32>,
    %c2_51 = arith.constant 2 : index
    %c0_52 = arith.constant 0 : index
    %c0_53 = arith.constant 0 : index
    %57 = vector.load %arg5[%c2_51, %c0_52, %c0_53] : memref<18x18x128xf32, #tpu.memory_space<vmem>>, vector<1x18x128xf32>
    %c0_54 = arith.constant 0 : index
    %c0_55 = arith.constant 0 : index
    %c0_56 = arith.constant 0 : index
    %58 = vector.load %arg5[%c0_54, %c0_55, %c0_56] : memref<18x18x128xf32, #tpu.memory_space<vmem>>, vector<1x18x128xf32>
    tpu.vector_store %arg5[%c0_54, %c0_55, %c0_56], %57 {strides = array<i32>} : memref<18x18x128xf32, #tpu.memory_space<vmem>>, vector<1x18x128xf32>,
    %c15_57 = arith.constant 15 : index
    %c0_58 = arith.constant 0 : index
    %c0_59 = arith.constant 0 : index
    %59 = vector.load %arg5[%c15_57, %c0_58, %c0_59] : memref<18x18x128xf32, #tpu.memory_space<vmem>>, vector<1x18x128xf32>
    %c17_60 = arith.constant 17 : index
    %c0_61 = arith.constant 0 : index
    %c0_62 = arith.constant 0 : index
    %60 = vector.load %arg5[%c17_60, %c0_61, %c0_62] : memref<18x18x128xf32, #tpu.memory_space<vmem>>, vector<1x18x128xf32>
    tpu.vector_store %arg5[%c17_60, %c0_61, %c0_62], %59 {strides = array<i32>} : memref<18x18x128xf32, #tpu.memory_space<vmem>>, vector<1x18x128xf32>,
    %c0_63 = arith.constant 0 : index
    %c0_64 = arith.constant 0 : index
    %c0_65 = arith.constant 0 : index
    %61 = vector.load %arg5[%c0_63, %c0_64, %c0_65] : memref<18x18x128xf32, #tpu.memory_space<vmem>>, vector<18x16x128xf32>
    %c0_66 = arith.constant 0 : index
    %c1_67 = arith.constant 1 : index
    %c0_68 = arith.constant 0 : index
    %62 = vector.load %arg5[%c0_66, %c1_67, %c0_68] : memref<18x18x128xf32, #tpu.memory_space<vmem>>, vector<18x16x128xf32>
    %c0_69 = arith.constant 0 : index
    %c2_70 = arith.constant 2 : index
    %c0_71 = arith.constant 0 : index
    %63 = vector.load %arg5[%c0_69, %c2_70, %c0_71] : memref<18x18x128xf32, #tpu.memory_space<vmem>>, vector<18x16x128xf32>
    %64 = tpu.concatenate %61, %62, %63 in 2 : vector<18x16x128xf32>, vector<18x16x128xf32>, vector<18x16x128xf32> -> vector<18x16x384xf32>
    %65 = vector.extract_strided_slice %64 {offsets = [0, 0, 0], sizes = [16, 16, 384], strides = [1, 1, 1]} : vector<18x16x384xf32> to vector<16x16x384xf32>
    %66 = vector.shape_cast %65 : vector<16x16x384xf32> to vector<256x384xf32>
    %c0_72 = arith.constant 0 : index
    %c0_73 = arith.constant 0 : index
    %67 = vector.load %arg3[%c0_72, %c0_73] : memref<1152x128xf32, #tpu.memory_space<vmem>>, vector<384x128xf32>
    %cst_74 = arith.constant dense<0.000000e+00> : vector<256x128xf32>
    %68 = tpu.matmul %66, %67, %cst_74 {dimension_numbers = #tpu.dot_dimension_numbers<[1], [0], [0], [1], [0, 0, 1, 1], [], []>} : vector<256x384xf32>, vector<384x128xf32>, vector<256x128xf32> -> vector<256x128xf32>
    %69 = vector.extract_strided_slice %64 {offsets = [1, 0, 0], sizes = [16, 16, 384], strides = [1, 1, 1]} : vector<18x16x384xf32> to vector<16x16x384xf32>
    %70 = vector.shape_cast %69 : vector<16x16x384xf32> to vector<256x384xf32>
    %c384_75 = arith.constant 384 : index
    %c0_76 = arith.constant 0 : index
    %71 = vector.load %arg3[%c384_75, %c0_76] : memref<1152x128xf32, #tpu.memory_space<vmem>>, vector<384x128xf32>
    %cst_77 = arith.constant dense<0.000000e+00> : vector<256x128xf32>
    %72 = tpu.matmul %70, %71, %cst_77 {dimension_numbers = #tpu.dot_dimension_numbers<[1], [0], [0], [1], [0, 0, 1, 1], [], []>} : vector<256x384xf32>, vector<384x128xf32>, vector<256x128xf32> -> vector<256x128xf32>
    %73 = arith.addf %68, %72 : vector<256x128xf32>
    %74 = vector.extract_strided_slice %64 {offsets = [2, 0, 0], sizes = [16, 16, 384], strides = [1, 1, 1]} : vector<18x16x384xf32> to vector<16x16x384xf32>
    %75 = vector.shape_cast %74 : vector<16x16x384xf32> to vector<256x384xf32>
    %c768_78 = arith.constant 768 : index
    %c0_79 = arith.constant 0 : index
    %76 = vector.load %arg3[%c768_78, %c0_79] : memref<1152x128xf32, #tpu.memory_space<vmem>>, vector<384x128xf32>
    %cst_80 = arith.constant dense<0.000000e+00> : vector<256x128xf32>
    %77 = tpu.matmul %75, %76, %cst_80 {dimension_numbers = #tpu.dot_dimension_numbers<[1], [0], [0], [1], [0, 0, 1, 1], [], []>} : vector<256x384xf32>, vector<384x128xf32>, vector<256x128xf32> -> vector<256x128xf32>
    %78 = arith.addf %73, %77 : vector<256x128xf32>
    %cst_81 = arith.constant dense<0.000000e+00> : vector<128xf32>
    %79 = vector.multi_reduction <add>, %78, %cst_81 [0] : vector<256x128xf32> to vector<128xf32>
    %80 = vector.shape_cast %79 : vector<128xf32> to vector<1x128xf32>
    %cst_82 = arith.constant 3.906250e-03 : f32
    %81 = vector.broadcast %cst_82 : f32 to vector<1x128xf32>
    %82 = arith.mulf %80, %81 : vector<1x128xf32>
    %83 = arith.mulf %78, %78 : vector<256x128xf32>
    %cst_83 = arith.constant dense<0.000000e+00> : vector<128xf32>
    %84 = vector.multi_reduction <add>, %83, %cst_83 [0] : vector<256x128xf32> to vector<128xf32>
    %85 = vector.shape_cast %84 : vector<128xf32> to vector<1x128xf32>
    %cst_84 = arith.constant 3.906250e-03 : f32
    %86 = vector.broadcast %cst_84 : f32 to vector<1x128xf32>
    %87 = arith.mulf %85, %86 : vector<1x128xf32>
    %88 = arith.mulf %82, %82 : vector<1x128xf32>
    %89 = arith.subf %87, %88 : vector<1x128xf32>
    %cst_85 = arith.constant 0.000000e+00 : f32
    %90 = vector.broadcast %cst_85 : f32 to vector<1x128xf32>
    %91 = arith.maximumf %89, %90 : vector<1x128xf32>
    %cst_86 = arith.constant 9.99999974E-6 : f32
    %92 = vector.broadcast %cst_86 : f32 to vector<1x128xf32>
    %93 = arith.addf %91, %92 : vector<1x128xf32>
    %94 = math.rsqrt %93 : vector<1x128xf32>
    %95 = vector.broadcast %82 : vector<1x128xf32> to vector<256x128xf32>
    %96 = arith.subf %78, %95 : vector<256x128xf32>
    %97 = vector.broadcast %94 : vector<1x128xf32> to vector<256x128xf32>
    %98 = arith.mulf %96, %97 : vector<256x128xf32>
    %99 = vector.shape_cast %98 : vector<256x128xf32> to vector<16x16x128xf32>
    %100 = arith.addf %1, %99 : vector<16x16x128xf32>
    %c0_87 = arith.constant 0 : index
    %c0_88 = arith.constant 0 : index
    %c0_89 = arith.constant 0 : index
    %c0_90 = arith.constant 0 : index
    %101 = vector.load %arg4[%c0_87, %c0_88, %c0_89, %c0_90] : memref<1x16x16x128xf32, #tpu.memory_space<vmem>>, vector<1x16x16x128xf32>
    %102 = vector.shape_cast %101 : vector<1x16x16x128xf32> to vector<16x16x128xf32>
    %103 = vector.shape_cast %100 : vector<16x16x128xf32> to vector<1x16x16x128xf32>
    tpu.vector_store %arg4[%c0_87, %c0_88, %c0_89, %c0_90], %103 {strides = array<i32>} : memref<1x16x16x128xf32, #tpu.memory_space<vmem>>, vector<1x16x16x128xf32>,
    return
  }
  func.func @transform_0(%arg0: i32) -> (i32, i32, i32, i32) {
    %c0_i32 = arith.constant 0 : i32
    %c0_i32_0 = arith.constant 0 : i32
    %c0_i32_1 = arith.constant 0 : i32
    %c0_i32_2 = arith.constant 0 : i32
    return %arg0, %c0_i32, %c0_i32_0, %c0_i32_1 : i32, i32, i32, i32
  }
  func.func @transform_1(%arg0: i32) -> (i32, i32) {
    %c0_i32 = arith.constant 0 : i32
    %c0_i32_0 = arith.constant 0 : i32
    %c0_i32_1 = arith.constant 0 : i32
    return %c0_i32, %c0_i32_0 : i32, i32
  }
  func.func @transform_2(%arg0: i32) -> (i32, i32) {
    %c0_i32 = arith.constant 0 : i32
    %c0_i32_0 = arith.constant 0 : i32
    %c0_i32_1 = arith.constant 0 : i32
    return %c0_i32, %c0_i32_0 : i32, i32
  }
  func.func @transform_3(%arg0: i32) -> (i32, i32, i32, i32) {
    %c0_i32 = arith.constant 0 : i32
    %c0_i32_0 = arith.constant 0 : i32
    %c0_i32_1 = arith.constant 0 : i32
    %c0_i32_2 = arith.constant 0 : i32
    return %arg0, %c0_i32, %c0_i32_0, %c0_i32_1 : i32, i32, i32, i32
  }
}

module attributes {stable_mosaic.version = 11 : i64} {
  func.func @_residual_block_kernel(%arg0: i32, %arg1: memref<1x16x16x128xf32, #tpu.memory_space<vmem>>, %arg2: memref<1152x128xf32, #tpu.memory_space<vmem>>, %arg3: memref<1152x128xf32, #tpu.memory_space<vmem>>, %arg4: memref<1x16x16x128xf32, #tpu.memory_space<vmem>>, %arg5: memref<18x18x128xf32, #tpu.memory_space<vmem>>) attributes {dimension_semantics = [#tpu.dimension_semantics<parallel>], iteration_bounds = array<i64: 2>, scalar_prefetch = 0 : i64, scratch_operands = 1 : i64, tpu.core_type = #tpu.core_type<tc>, window_params = [{transform_indices = @transform_0, window_bounds = array<i64: 1, 16, 16, 128>}, {pipeline_mode = #tpu.pipeline_mode<synchronous>, transform_indices = @transform_1, window_bounds = array<i64: 1152, 128>}, {pipeline_mode = #tpu.pipeline_mode<synchronous>, transform_indices = @transform_2, window_bounds = array<i64: 1152, 128>}, {transform_indices = @transform_3, window_bounds = array<i64: 1, 16, 16, 128>}]} {
    %c0 = arith.constant 0 : index
    %c0_0 = arith.constant 0 : index
    %c0_1 = arith.constant 0 : index
    %c0_2 = arith.constant 0 : index
    %0 = vector.load %arg1[%c0, %c0_0, %c0_1, %c0_2] : memref<1x16x16x128xf32, #tpu.memory_space<vmem>>, vector<1x16x16x128xf32>
    %1 = vector.shape_cast %0 : vector<1x16x16x128xf32> to vector<16x16x128xf32>
    %c1 = arith.constant 1 : index
    %c1_3 = arith.constant 1 : index
    %c0_4 = arith.constant 0 : index
    %2 = vector.load %arg5[%c1, %c1_3, %c0_4] : memref<18x18x128xf32, #tpu.memory_space<vmem>>, vector<16x16x128xf32>
    tpu.vector_store %arg5[%c1, %c1_3, %c0_4], %1 {strides = array<i32>} : memref<18x18x128xf32, #tpu.memory_space<vmem>>, vector<16x16x128xf32>,
    %3 = vector.extract_strided_slice %1 {offsets = [0, 1, 0], sizes = [16, 1, 128], strides = [1, 1, 1]} : vector<16x16x128xf32> to vector<16x1x128xf32>
    %c1_5 = arith.constant 1 : index
    %c0_6 = arith.constant 0 : index
    %c0_7 = arith.constant 0 : index
    %4 = vector.load %arg5[%c1_5, %c0_6, %c0_7] : memref<18x18x128xf32, #tpu.memory_space<vmem>>, vector<16x1x128xf32>
    tpu.vector_store %arg5[%c1_5, %c0_6, %c0_7], %3 {strides = array<i32>} : memref<18x18x128xf32, #tpu.memory_space<vmem>>, vector<16x1x128xf32>,
    %5 = vector.extract_strided_slice %1 {offsets = [0, 14, 0], sizes = [16, 1, 128], strides = [1, 1, 1]} : vector<16x16x128xf32> to vector<16x1x128xf32>
    %c1_8 = arith.constant 1 : index
    %c17 = arith.constant 17 : index
    %c0_9 = arith.constant 0 : index
    %6 = vector.load %arg5[%c1_8, %c17, %c0_9] : memref<18x18x128xf32, #tpu.memory_space<vmem>>, vector<16x1x128xf32>
    tpu.vector_store %arg5[%c1_8, %c17, %c0_9], %5 {strides = array<i32>} : memref<18x18x128xf32, #tpu.memory_space<vmem>>, vector<16x1x128xf32>,
    %c2 = arith.constant 2 : index
    %c0_10 = arith.constant 0 : index
    %c0_11 = arith.constant 0 : index
    %7 = vector.load %arg5[%c2, %c0_10, %c0_11] : memref<18x18x128xf32, #tpu.memory_space<vmem>>, vector<1x18x128xf32>
    %c0_12 = arith.constant 0 : index
    %c0_13 = arith.constant 0 : index
    %c0_14 = arith.constant 0 : index
    %8 = vector.load %arg5[%c0_12, %c0_13, %c0_14] : memref<18x18x128xf32, #tpu.memory_space<vmem>>, vector<1x18x128xf32>
    tpu.vector_store %arg5[%c0_12, %c0_13, %c0_14], %7 {strides = array<i32>} : memref<18x18x128xf32, #tpu.memory_space<vmem>>, vector<1x18x128xf32>,
    %c15 = arith.constant 15 : index
    %c0_15 = arith.constant 0 : index
    %c0_16 = arith.constant 0 : index
    %9 = vector.load %arg5[%c15, %c0_15, %c0_16] : memref<18x18x128xf32, #tpu.memory_space<vmem>>, vector<1x18x128xf32>
    %c17_17 = arith.constant 17 : index
    %c0_18 = arith.constant 0 : index
    %c0_19 = arith.constant 0 : index
    %10 = vector.load %arg5[%c17_17, %c0_18, %c0_19] : memref<18x18x128xf32, #tpu.memory_space<vmem>>, vector<1x18x128xf32>
    tpu.vector_store %arg5[%c17_17, %c0_18, %c0_19], %9 {strides = array<i32>} : memref<18x18x128xf32, #tpu.memory_space<vmem>>, vector<1x18x128xf32>,
    %c0_20 = arith.constant 0 : index
    %c0_21 = arith.constant 0 : index
    %c0_22 = arith.constant 0 : index
    %11 = vector.load %arg5[%c0_20, %c0_21, %c0_22] : memref<18x18x128xf32, #tpu.memory_space<vmem>>, vector<18x16x128xf32>
    %c0_23 = arith.constant 0 : index
    %c1_24 = arith.constant 1 : index
    %c0_25 = arith.constant 0 : index
    %12 = vector.load %arg5[%c0_23, %c1_24, %c0_25] : memref<18x18x128xf32, #tpu.memory_space<vmem>>, vector<18x16x128xf32>
    %c0_26 = arith.constant 0 : index
    %c2_27 = arith.constant 2 : index
    %c0_28 = arith.constant 0 : index
    %13 = vector.load %arg5[%c0_26, %c2_27, %c0_28] : memref<18x18x128xf32, #tpu.memory_space<vmem>>, vector<18x16x128xf32>
    %14 = tpu.concatenate %11, %12, %13 in 2 : vector<18x16x128xf32>, vector<18x16x128xf32>, vector<18x16x128xf32> -> vector<18x16x384xf32>
    %15 = vector.extract_strided_slice %14 {offsets = [0, 0, 0], sizes = [16, 16, 384], strides = [1, 1, 1]} : vector<18x16x384xf32> to vector<16x16x384xf32>
    %16 = vector.shape_cast %15 : vector<16x16x384xf32> to vector<256x384xf32>
    %c0_29 = arith.constant 0 : index
    %c0_30 = arith.constant 0 : index
    %17 = vector.load %arg2[%c0_29, %c0_30] : memref<1152x128xf32, #tpu.memory_space<vmem>>, vector<384x128xf32>
    %cst = arith.constant dense<0.000000e+00> : vector<256x128xf32>
    %18 = tpu.matmul %16, %17, %cst {dimension_numbers = #tpu.dot_dimension_numbers<[1], [0], [0], [1], [0, 0, 1, 1], [], []>} : vector<256x384xf32>, vector<384x128xf32>, vector<256x128xf32> -> vector<256x128xf32>
    %19 = vector.extract_strided_slice %14 {offsets = [1, 0, 0], sizes = [16, 16, 384], strides = [1, 1, 1]} : vector<18x16x384xf32> to vector<16x16x384xf32>
    %20 = vector.shape_cast %19 : vector<16x16x384xf32> to vector<256x384xf32>
    %c384 = arith.constant 384 : index
    %c0_31 = arith.constant 0 : index
    %21 = vector.load %arg2[%c384, %c0_31] : memref<1152x128xf32, #tpu.memory_space<vmem>>, vector<384x128xf32>
    %cst_32 = arith.constant dense<0.000000e+00> : vector<256x128xf32>
    %22 = tpu.matmul %20, %21, %cst_32 {dimension_numbers = #tpu.dot_dimension_numbers<[1], [0], [0], [1], [0, 0, 1, 1], [], []>} : vector<256x384xf32>, vector<384x128xf32>, vector<256x128xf32> -> vector<256x128xf32>
    %23 = arith.addf %18, %22 : vector<256x128xf32>
    %24 = vector.extract_strided_slice %14 {offsets = [2, 0, 0], sizes = [16, 16, 384], strides = [1, 1, 1]} : vector<18x16x384xf32> to vector<16x16x384xf32>
    %25 = vector.shape_cast %24 : vector<16x16x384xf32> to vector<256x384xf32>
    %c768 = arith.constant 768 : index
    %c0_33 = arith.constant 0 : index
    %26 = vector.load %arg2[%c768, %c0_33] : memref<1152x128xf32, #tpu.memory_space<vmem>>, vector<384x128xf32>
    %cst_34 = arith.constant dense<0.000000e+00> : vector<256x128xf32>
    %27 = tpu.matmul %25, %26, %cst_34 {dimension_numbers = #tpu.dot_dimension_numbers<[1], [0], [0], [1], [0, 0, 1, 1], [], []>} : vector<256x384xf32>, vector<384x128xf32>, vector<256x128xf32> -> vector<256x128xf32>
    %28 = arith.addf %23, %27 : vector<256x128xf32>
    %cst_35 = arith.constant dense<0.000000e+00> : vector<128xf32>
    %29 = vector.multi_reduction <add>, %28, %cst_35 [0] : vector<256x128xf32> to vector<128xf32>
    %30 = vector.shape_cast %29 : vector<128xf32> to vector<1x128xf32>
    %cst_36 = arith.constant 3.906250e-03 : f32
    %31 = vector.broadcast %cst_36 : f32 to vector<1x128xf32>
    %32 = arith.mulf %30, %31 : vector<1x128xf32>
    %33 = arith.mulf %28, %28 : vector<256x128xf32>
    %cst_37 = arith.constant dense<0.000000e+00> : vector<128xf32>
    %34 = vector.multi_reduction <add>, %33, %cst_37 [0] : vector<256x128xf32> to vector<128xf32>
    %35 = vector.shape_cast %34 : vector<128xf32> to vector<1x128xf32>
    %cst_38 = arith.constant 3.906250e-03 : f32
    %36 = vector.broadcast %cst_38 : f32 to vector<1x128xf32>
    %37 = arith.mulf %35, %36 : vector<1x128xf32>
    %38 = arith.mulf %32, %32 : vector<1x128xf32>
    %39 = arith.subf %37, %38 : vector<1x128xf32>
    %cst_39 = arith.constant 0.000000e+00 : f32
    %40 = vector.broadcast %cst_39 : f32 to vector<1x128xf32>
    %41 = arith.maximumf %39, %40 : vector<1x128xf32>
    %cst_40 = arith.constant 9.99999974E-6 : f32
    %42 = vector.broadcast %cst_40 : f32 to vector<1x128xf32>
    %43 = arith.addf %41, %42 : vector<1x128xf32>
    %44 = math.rsqrt %43 : vector<1x128xf32>
    %45 = vector.broadcast %32 : vector<1x128xf32> to vector<256x128xf32>
    %46 = arith.subf %28, %45 : vector<256x128xf32>
    %47 = vector.broadcast %44 : vector<1x128xf32> to vector<256x128xf32>
    %48 = arith.mulf %46, %47 : vector<256x128xf32>
    %cst_41 = arith.constant 0.000000e+00 : f32
    %49 = vector.broadcast %cst_41 : f32 to vector<256x128xf32>
    %50 = arith.maximumf %48, %49 : vector<256x128xf32>
    %51 = vector.shape_cast %50 : vector<256x128xf32> to vector<16x16x128xf32>
    %c1_42 = arith.constant 1 : index
    %c1_43 = arith.constant 1 : index
    %c0_44 = arith.constant 0 : index
    %52 = vector.load %arg5[%c1_42, %c1_43, %c0_44] : memref<18x18x128xf32, #tpu.memory_space<vmem>>, vector<16x16x128xf32>
    tpu.vector_store %arg5[%c1_42, %c1_43, %c0_44], %51 {strides = array<i32>} : memref<18x18x128xf32, #tpu.memory_space<vmem>>, vector<16x16x128xf32>,
    %53 = vector.extract_strided_slice %51 {offsets = [0, 1, 0], sizes = [16, 1, 128], strides = [1, 1, 1]} : vector<16x16x128xf32> to vector<16x1x128xf32>
    %c1_45 = arith.constant 1 : index
    %c0_46 = arith.constant 0 : index
    %c0_47 = arith.constant 0 : index
    %54 = vector.load %arg5[%c1_45, %c0_46, %c0_47] : memref<18x18x128xf32, #tpu.memory_space<vmem>>, vector<16x1x128xf32>
    tpu.vector_store %arg5[%c1_45, %c0_46, %c0_47], %53 {strides = array<i32>} : memref<18x18x128xf32, #tpu.memory_space<vmem>>, vector<16x1x128xf32>,
    %55 = vector.extract_strided_slice %51 {offsets = [0, 14, 0], sizes = [16, 1, 128], strides = [1, 1, 1]} : vector<16x16x128xf32> to vector<16x1x128xf32>
    %c1_48 = arith.constant 1 : index
    %c17_49 = arith.constant 17 : index
    %c0_50 = arith.constant 0 : index
    %56 = vector.load %arg5[%c1_48, %c17_49, %c0_50] : memref<18x18x128xf32, #tpu.memory_space<vmem>>, vector<16x1x128xf32>
    tpu.vector_store %arg5[%c1_48, %c17_49, %c0_50], %55 {strides = array<i32>} : memref<18x18x128xf32, #tpu.memory_space<vmem>>, vector<16x1x128xf32>,
    %c2_51 = arith.constant 2 : index
    %c0_52 = arith.constant 0 : index
    %c0_53 = arith.constant 0 : index
    %57 = vector.load %arg5[%c2_51, %c0_52, %c0_53] : memref<18x18x128xf32, #tpu.memory_space<vmem>>, vector<1x18x128xf32>
    %c0_54 = arith.constant 0 : index
    %c0_55 = arith.constant 0 : index
    %c0_56 = arith.constant 0 : index
    %58 = vector.load %arg5[%c0_54, %c0_55, %c0_56] : memref<18x18x128xf32, #tpu.memory_space<vmem>>, vector<1x18x128xf32>
    tpu.vector_store %arg5[%c0_54, %c0_55, %c0_56], %57 {strides = array<i32>} : memref<18x18x128xf32, #tpu.memory_space<vmem>>, vector<1x18x128xf32>,
    %c15_57 = arith.constant 15 : index
    %c0_58 = arith.constant 0 : index
    %c0_59 = arith.constant 0 : index
    %59 = vector.load %arg5[%c15_57, %c0_58, %c0_59] : memref<18x18x128xf32, #tpu.memory_space<vmem>>, vector<1x18x128xf32>
    %c17_60 = arith.constant 17 : index
    %c0_61 = arith.constant 0 : index
    %c0_62 = arith.constant 0 : index
    %60 = vector.load %arg5[%c17_60, %c0_61, %c0_62] : memref<18x18x128xf32, #tpu.memory_space<vmem>>, vector<1x18x128xf32>
    tpu.vector_store %arg5[%c17_60, %c0_61, %c0_62], %59 {strides = array<i32>} : memref<18x18x128xf32, #tpu.memory_space<vmem>>, vector<1x18x128xf32>,
    %c0_63 = arith.constant 0 : index
    %c0_64 = arith.constant 0 : index
    %c0_65 = arith.constant 0 : index
    %61 = vector.load %arg5[%c0_63, %c0_64, %c0_65] : memref<18x18x128xf32, #tpu.memory_space<vmem>>, vector<18x16x128xf32>
    %c0_66 = arith.constant 0 : index
    %c1_67 = arith.constant 1 : index
    %c0_68 = arith.constant 0 : index
    %62 = vector.load %arg5[%c0_66, %c1_67, %c0_68] : memref<18x18x128xf32, #tpu.memory_space<vmem>>, vector<18x16x128xf32>
    %c0_69 = arith.constant 0 : index
    %c2_70 = arith.constant 2 : index
    %c0_71 = arith.constant 0 : index
    %63 = vector.load %arg5[%c0_69, %c2_70, %c0_71] : memref<18x18x128xf32, #tpu.memory_space<vmem>>, vector<18x16x128xf32>
    %64 = tpu.concatenate %61, %62, %63 in 2 : vector<18x16x128xf32>, vector<18x16x128xf32>, vector<18x16x128xf32> -> vector<18x16x384xf32>
    %65 = vector.extract_strided_slice %64 {offsets = [0, 0, 0], sizes = [16, 16, 384], strides = [1, 1, 1]} : vector<18x16x384xf32> to vector<16x16x384xf32>
    %66 = vector.shape_cast %65 : vector<16x16x384xf32> to vector<256x384xf32>
    %c0_72 = arith.constant 0 : index
    %c0_73 = arith.constant 0 : index
    %67 = vector.load %arg3[%c0_72, %c0_73] : memref<1152x128xf32, #tpu.memory_space<vmem>>, vector<384x128xf32>
    %cst_74 = arith.constant dense<0.000000e+00> : vector<256x128xf32>
    %68 = tpu.matmul %66, %67, %cst_74 {dimension_numbers = #tpu.dot_dimension_numbers<[1], [0], [0], [1], [0, 0, 1, 1], [], []>} : vector<256x384xf32>, vector<384x128xf32>, vector<256x128xf32> -> vector<256x128xf32>
    %69 = vector.extract_strided_slice %64 {offsets = [1, 0, 0], sizes = [16, 16, 384], strides = [1, 1, 1]} : vector<18x16x384xf32> to vector<16x16x384xf32>
    %70 = vector.shape_cast %69 : vector<16x16x384xf32> to vector<256x384xf32>
    %c384_75 = arith.constant 384 : index
    %c0_76 = arith.constant 0 : index
    %71 = vector.load %arg3[%c384_75, %c0_76] : memref<1152x128xf32, #tpu.memory_space<vmem>>, vector<384x128xf32>
    %cst_77 = arith.constant dense<0.000000e+00> : vector<256x128xf32>
    %72 = tpu.matmul %70, %71, %cst_77 {dimension_numbers = #tpu.dot_dimension_numbers<[1], [0], [0], [1], [0, 0, 1, 1], [], []>} : vector<256x384xf32>, vector<384x128xf32>, vector<256x128xf32> -> vector<256x128xf32>
    %73 = arith.addf %68, %72 : vector<256x128xf32>
    %74 = vector.extract_strided_slice %64 {offsets = [2, 0, 0], sizes = [16, 16, 384], strides = [1, 1, 1]} : vector<18x16x384xf32> to vector<16x16x384xf32>
    %75 = vector.shape_cast %74 : vector<16x16x384xf32> to vector<256x384xf32>
    %c768_78 = arith.constant 768 : index
    %c0_79 = arith.constant 0 : index
    %76 = vector.load %arg3[%c768_78, %c0_79] : memref<1152x128xf32, #tpu.memory_space<vmem>>, vector<384x128xf32>
    %cst_80 = arith.constant dense<0.000000e+00> : vector<256x128xf32>
    %77 = tpu.matmul %75, %76, %cst_80 {dimension_numbers = #tpu.dot_dimension_numbers<[1], [0], [0], [1], [0, 0, 1, 1], [], []>} : vector<256x384xf32>, vector<384x128xf32>, vector<256x128xf32> -> vector<256x128xf32>
    %78 = arith.addf %73, %77 : vector<256x128xf32>
    %cst_81 = arith.constant dense<0.000000e+00> : vector<128xf32>
    %79 = vector.multi_reduction <add>, %78, %cst_81 [0] : vector<256x128xf32> to vector<128xf32>
    %80 = vector.shape_cast %79 : vector<128xf32> to vector<1x128xf32>
    %cst_82 = arith.constant 3.906250e-03 : f32
    %81 = vector.broadcast %cst_82 : f32 to vector<1x128xf32>
    %82 = arith.mulf %80, %81 : vector<1x128xf32>
    %83 = arith.mulf %78, %78 : vector<256x128xf32>
    %cst_83 = arith.constant dense<0.000000e+00> : vector<128xf32>
    %84 = vector.multi_reduction <add>, %83, %cst_83 [0] : vector<256x128xf32> to vector<128xf32>
    %85 = vector.shape_cast %84 : vector<128xf32> to vector<1x128xf32>
    %cst_84 = arith.constant 3.906250e-03 : f32
    %86 = vector.broadcast %cst_84 : f32 to vector<1x128xf32>
    %87 = arith.mulf %85, %86 : vector<1x128xf32>
    %88 = arith.mulf %82, %82 : vector<1x128xf32>
    %89 = arith.subf %87, %88 : vector<1x128xf32>
    %cst_85 = arith.constant 0.000000e+00 : f32
    %90 = vector.broadcast %cst_85 : f32 to vector<1x128xf32>
    %91 = arith.maximumf %89, %90 : vector<1x128xf32>
    %cst_86 = arith.constant 9.99999974E-6 : f32
    %92 = vector.broadcast %cst_86 : f32 to vector<1x128xf32>
    %93 = arith.addf %91, %92 : vector<1x128xf32>
    %94 = math.rsqrt %93 : vector<1x128xf32>
    %95 = vector.broadcast %82 : vector<1x128xf32> to vector<256x128xf32>
    %96 = arith.subf %78, %95 : vector<256x128xf32>
    %97 = vector.broadcast %94 : vector<1x128xf32> to vector<256x128xf32>
    %98 = arith.mulf %96, %97 : vector<256x128xf32>
    %99 = vector.shape_cast %98 : vector<256x128xf32> to vector<16x16x128xf32>
    %100 = arith.addf %1, %99 : vector<16x16x128xf32>
    %c0_87 = arith.constant 0 : index
    %c0_88 = arith.constant 0 : index
    %c0_89 = arith.constant 0 : index
    %c0_90 = arith.constant 0 : index
    %101 = vector.load %arg4[%c0_87, %c0_88, %c0_89, %c0_90] : memref<1x16x16x128xf32, #tpu.memory_space<vmem>>, vector<1x16x16x128xf32>
    %102 = vector.shape_cast %101 : vector<1x16x16x128xf32> to vector<16x16x128xf32>
    %103 = vector.shape_cast %100 : vector<16x16x128xf32> to vector<1x16x16x128xf32>
    tpu.vector_store %arg4[%c0_87, %c0_88, %c0_89, %c0_90], %103 {strides = array<i32>} : memref<1x16x16x128xf32, #tpu.memory_space<vmem>>, vector<1x16x16x128xf32>,
    return
  }
  func.func @transform_0(%arg0: i32) -> (i32, i32, i32, i32) {
    %c0_i32 = arith.constant 0 : i32
    %c0_i32_0 = arith.constant 0 : i32
    %c0_i32_1 = arith.constant 0 : i32
    %c0_i32_2 = arith.constant 0 : i32
    return %arg0, %c0_i32, %c0_i32_0, %c0_i32_1 : i32, i32, i32, i32
  }
  func.func @transform_1(%arg0: i32) -> (i32, i32) {
    %c0_i32 = arith.constant 0 : i32
    %c0_i32_0 = arith.constant 0 : i32
    %c0_i32_1 = arith.constant 0 : i32
    return %c0_i32, %c0_i32_0 : i32, i32
  }
  func.func @transform_2(%arg0: i32) -> (i32, i32) {
    %c0_i32 = arith.constant 0 : i32
    %c0_i32_0 = arith.constant 0 : i32
    %c0_i32_1 = arith.constant 0 : i32
    return %c0_i32, %c0_i32_0 : i32, i32
  }
  func.func @transform_3(%arg0: i32) -> (i32, i32, i32, i32) {
    %c0_i32 = arith.constant 0 : i32
    %c0_i32_0 = arith.constant 0 : i32
    %c0_i32_1 = arith.constant 0 : i32
    %c0_i32_2 = arith.constant 0 : i32
    return %arg0, %c0_i32, %c0_i32_0, %c0_i32_1 : i32, i32, i32, i32
  }
}

</mosaic_0001>

<llo_original>
// kernel: tpu_custom_call.1
$region0: #{tpu_custom_call.1}
  #allocation0 [shape = 'u32[]', space=smem, size = 0x4, offset = 0x4, fixed_abs, tag = 'smem constant byte address 0x4 - core index']
  #allocation1 [shape = 'u32[72,128]{1,0:T(1,128)}', space=vmem, size = 0x9000, scoped, tag = 'internal scratch']
  #allocation2 [shape = 'f32[18,18,128]{2,1,0:T(8,128)}', space=vmem, size = 0x36000, scoped, tag = 'scratch operand']
  %s0 = inlined_call_operand.hbm [shape: f32[2,16,16,128], index: 0, kind: input, shape index: {}]
  %s1 = inlined_call_operand.hbm [shape: f32[1152,128], index: 1, kind: input, shape index: {}]
  %s2 = inlined_call_operand.hbm [shape: f32[1152,128], index: 2, kind: input, shape index: {}]
  %s3 = inlined_call_operand.hbm [shape: f32[2,16,16,128], index: 3, kind: output, shape index: {}]
  %s4 = sld [smem:[#allocation0]]
  $region57: #{tpu_custom_call.1} parent=0
    _
  %s6 = ssub.s32 1, %s4
  %s7 = scalar_select 0, %s6, %s4
  $region1: #{tpu_custom_call.1} parent=0
    #allocation3 [shape = 'u8[262144]{0}', space=vmem, size = 0x40000, scoped, tag = 'input window, operand 0']
    #allocation4 [shape = 's32[2]{0}', space=sflag, size = 0x8, scoped, tag = 'scoped memory for tpu_custom_call.1']
    #allocation5 [shape = 's32[2]{0}', space=sflag, size = 0x8, scoped, tag = 'scoped memory for tpu_custom_call.1']
    #allocation6 [shape = 'u8[589824]{0}', space=vmem, size = 0x90000, scoped, tag = 'input window, operand 1, single buffered']
    #allocation7 [shape = 's32[1]{0}', space=sflag, size = 0x4, scoped, tag = 'scoped memory for tpu_custom_call.1']
    #allocation8 [shape = 'u8[589824]{0}', space=vmem, size = 0x90000, scoped, tag = 'input window, operand 2, single buffered']
    #allocation9 [shape = 'u8[262144]{0}', space=vmem, size = 0x40000, scoped, tag = 'output window, operand 0']
    %8 = vsyncpa [#allocation4], 0
    %s9 = scalar_lea.sflag [#allocation4], 1
    %10 = vsyncpa %s9, 0
    %11 = vsyncpa [#allocation7], 0
    %12 = vsyncpa [#allocation5], 0
    %s13 = scalar_lea.sflag [#allocation5], 1
    %14 = vsyncpa %s13, 0
    loop: start=0, step=1, limit=4
    $region2: #{tpu_custom_call.1} parent=1 // loop_pre_header
      _
    $region3: #{tpu_custom_call.1} parent=1 // loop_header
      %s16 = sphi 0, %s20
      %p17 = scmp.ge.s32.totalorder %s16, 4
      %s26 = sphi 0, %s28
      %s29 = sphi 0, %s26
      %s30 = sphi 0, %s29
      %s46 = sphi 0, %s30
      %s50 = sphi 0, %s50
      %s52 = sphi 0, %s50
      %s53 = sphi 0, %s52
      %s67 = sphi 0, %s53
      %s71 = sphi 0, %s71
      %s73 = sphi 0, %s71
      %s74 = sphi 0, %s73
      %s88 = sphi 0, %s74
      %s94 = sphi 0, %s96
      %s97 = sphi 0, %s94
      %s98 = sphi 0, %s97
      %s114 = sphi 0, %s98
    $region4: #{tpu_custom_call.1} parent=1 // loop_header_branch
      %19 = sbr.rel (%p17) target = $region8
    $region5: #{tpu_custom_call.1} parent=1 // loop_body
      %s21 = ssub.s32 %s16, 1
      %s22 = ssub.s32 %s16, 2
      %s23 = sadd.s32 %s16, 1
      %s24 = ssub.s32 %s16, %s23
      %p25 = scmp.eq.s32.totalorder %s24, 0
      %s27 = sadd.s32 %s26, 1
      %s28 = scalar_select %p25, %s26, %s27
      %p31 = pneg %p25
      %p32 = scmp.eq.s32.totalorder %s16, 1
      %p33 = por %p31, %p32
      %p34 = scmp.ne.s32.totalorder %s26, %s29
      %p35 = scmp.eq.s32.totalorder %s16, 0
      %p36 = por %p34, %p35
      %p37 = scmp.ne.s32.totalorder %s26, %s29
      %p38 = scmp.eq.s32.totalorder %s21, 1
      %p39 = por %p37, %p38
      %p40 = scmp.ne.s32.totalorder %s29, %s30
      %p41 = scmp.eq.s32.totalorder %s21, 0
      %p42 = por %p40, %p41
      %p43 = scmp.ne.s32.totalorder %s29, %s30
      %p44 = scmp.eq.s32.totalorder %s22, 1
      %p45 = por %p43, %p44
      %p47 = scmp.ne.s32.totalorder %s30, %s46
      %p48 = scmp.eq.s32.totalorder %s22, 0
      %p49 = por %p47, %p48
      %s51 = sadd.s32 %s50, 1
      %p54 = scmp.eq.s32.totalorder %s16, 1
      %p55 = scmp.ne.s32.totalorder %s50, %s52
      %p56 = scmp.eq.s32.totalorder %s16, 0
      %p57 = por %p55, %p56
      %p58 = scmp.ne.s32.totalorder %s50, %s52
      %p59 = scmp.eq.s32.totalorder %s21, 1
      %p60 = por %p58, %p59
      %p61 = scmp.ne.s32.totalorder %s52, %s53
      %p62 = scmp.eq.s32.totalorder %s21, 0
      %p63 = por %p61, %p62
      %p64 = scmp.ne.s32.totalorder %s52, %s53
      %p65 = scmp.eq.s32.totalorder %s22, 1
      %p66 = por %p64, %p65
      %p68 = scmp.ne.s32.totalorder %s53, %s67
      %p69 = scmp.eq.s32.totalorder %s22, 0
      %p70 = por %p68, %p69
      %s72 = sadd.s32 %s71, 1
      %p75 = scmp.eq.s32.totalorder %s16, 1
      %p76 = scmp.ne.s32.totalorder %s71, %s73
      %p77 = scmp.eq.s32.totalorder %s16, 0
      %p78 = por %p76, %p77
      %p79 = scmp.ne.s32.totalorder %s71, %s73
      %p80 = scmp.eq.s32.totalorder %s21, 1
      %p81 = por %p79, %p80
      %p82 = scmp.ne.s32.totalorder %s73, %s74
      %p83 = scmp.eq.s32.totalorder %s21, 0
      %p84 = por %p82, %p83
      %p85 = scmp.ne.s32.totalorder %s73, %s74
      %p86 = scmp.eq.s32.totalorder %s22, 1
      %p87 = por %p85, %p86
      %p89 = scmp.ne.s32.totalorder %s74, %s88
      %p90 = scmp.eq.s32.totalorder %s22, 0
      %p91 = por %p89, %p90
      %s92 = ssub.s32 %s16, %s23
      %p93 = scmp.eq.s32.totalorder %s92, 0
      %s95 = sadd.s32 %s94, 1
      %s96 = scalar_select %p93, %s94, %s95
      %p99 = pneg %p93
      %p100 = scmp.eq.s32.totalorder %s16, 1
      %p101 = por %p99, %p100
      %p102 = scmp.ne.s32.totalorder %s94, %s97
      %p103 = scmp.eq.s32.totalorder %s16, 0
      %p104 = por %p102, %p103
      %p105 = scmp.ne.s32.totalorder %s94, %s97
      %p106 = scmp.eq.s32.totalorder %s21, 1
      %p107 = por %p105, %p106
      %p108 = scmp.ne.s32.totalorder %s97, %s98
      %p109 = scmp.eq.s32.totalorder %s21, 0
      %p110 = por %p108, %p109
      %p111 = scmp.ne.s32.totalorder %s97, %s98
      %p112 = scmp.eq.s32.totalorder %s22, 1
      %p113 = por %p111, %p112
      %p115 = scmp.ne.s32.totalorder %s98, %s114
      %p116 = scmp.eq.s32.totalorder %s22, 0
      %p117 = por %p115, %p116
      %p118 = scmp.le.s32.totalorder 1, %s16
      %p119 = scmp.lt.s32.totalorder %s16, 3
      %p120 = pnand %p118, %p119
      %p121 = pneg %p120
      // Predicated region
      $region9: #{tpu_custom_call.1} parent=5 // pred_check
        _
      $region10: #{tpu_custom_call.1} parent=5 // pred_check_branch
        %123 = sbr.rel (%p120) target = $region12
      $region11: #{tpu_custom_call.1} parent=5 // pred_region
        %s124 = ssub.s32 %s16, 1
        // Predicated region
        $region13: #{tpu_custom_call.1} parent=11 // pred_check
          %p125 = pneg %p63
        $region14: #{tpu_custom_call.1} parent=11 // pred_check_branch
          %127 = sbr.rel (%p125) target = $region16
        $region15: #{tpu_custom_call.1} parent=11 // pred_region
          %129 = vsyncadd [#allocation7], 0
          %s130 = sshll.u32 %s1, 4
          %s131 = int_to_ptr.hbm [resolvable:$true] %s130
          %s132 = sshll.u32 [#allocation6], 4
          %s133 = int_to_ptr.vmem [resolvable:$true] %s132
          %138 = dma.hbm_to_vmem [thread:$0]  %s131, 18432, %s133, [#allocation7], 128, 128, 8
        $region16: #{tpu_custom_call.1} parent=11 // pred_fallthru
          _
        // Predicated region
        $region17: #{tpu_custom_call.1} parent=11 // pred_check
          %p139 = pneg %p84
        $region18: #{tpu_custom_call.1} parent=11 // pred_check_branch
          %141 = sbr.rel (%p139) target = $region20
        $region19: #{tpu_custom_call.1} parent=11 // pred_region
          %143 = vsyncadd [#allocation7], 0
          %s144 = sshll.u32 %s2, 4
          %s145 = int_to_ptr.hbm [resolvable:$true] %s144
          %s146 = sshll.u32 [#allocation8], 4
          %s147 = int_to_ptr.vmem [resolvable:$true] %s146
          %152 = dma.hbm_to_vmem [thread:$0]  %s145, 18432, %s147, [#allocation7], 128, 128, 8
        $region20: #{tpu_custom_call.1} parent=11 // pred_fallthru
          _
      $region12: #{tpu_custom_call.1} parent=5 // pred_fallthru
        _
      %p153 = scmp.lt.s32.totalorder %s16, 2
      // Predicated region
      $region21: #{tpu_custom_call.1} parent=5 // pred_check
        %p154 = pneg %p153
      $region22: #{tpu_custom_call.1} parent=5 // pred_check_branch
        %156 = sbr.rel (%p154) target = $region24
      $region23: #{tpu_custom_call.1} parent=5 // pred_region
        // Predicated region
        $region25: #{tpu_custom_call.1} parent=23 // pred_check
          %p157 = pneg %p36
        $region26: #{tpu_custom_call.1} parent=23 // pred_check_branch
          %159 = sbr.rel (%p157) target = $region28
        $region27: #{tpu_custom_call.1} parent=23 // pred_region
          %s160 = sand.u32 %s26, 1
          %s161 = scalar_lea.sflag [#allocation4], %s160
          %s162 = sand.u32 %s26, 1
          %s163 = smul.addr %s162, 256
          %s164 = scalar_lea.vmem [#allocation3], %s163
          %166 = vsyncadd %s161, 0
          %s167 = smul.addr %s16, 32
          %s168 = smul.addr %s167, 8
          %s169 = scalar_lea.hbm %s0, %s168
          %s170 = sshll.u32 %s169, 4
          %s171 = int_to_ptr.hbm [resolvable:$true] %s170
          %s172 = sshll.u32 %s164, 4
          %s173 = int_to_ptr.vmem [resolvable:$true] %s172
          %178 = dma.hbm_to_vmem [thread:$0]  %s171, 4096, %s173, %s161, 128, 128, 8
        $region28: #{tpu_custom_call.1} parent=23 // pred_fallthru
          _
      $region24: #{tpu_custom_call.1} parent=5 // pred_fallthru
        _
      %p179 = scmp.le.s32.totalorder 1, %s16
      %p180 = scmp.lt.s32.totalorder %s16, 3
      %p181 = pnand %p179, %p180
      %p182 = pneg %p181
      // Predicated region
      $region29: #{tpu_custom_call.1} parent=5 // pred_check
        _
      $region30: #{tpu_custom_call.1} parent=5 // pred_check_branch
        %184 = sbr.rel (%p181) target = $region32
      $region31: #{tpu_custom_call.1} parent=5 // pred_region
        %s185 = ssub.s32 %s16, 1
        %s186 = sand.u32 %s29, 1
        %s187 = scalar_lea.sflag [#allocation4], %s186
        %s188 = sand.u32 %s29, 1
        %s189 = smul.addr %s188, 256
        %s190 = scalar_lea.vmem [#allocation3], %s189
        // Predicated region
        $region33: #{tpu_custom_call.1} parent=31 // pred_check
          %p191 = pneg %p42
        $region34: #{tpu_custom_call.1} parent=31 // pred_check_branch
          %193 = sbr.rel (%p191) target = $region36
        $region35: #{tpu_custom_call.1} parent=31 // pred_region
          %195 = dma.done %s187, 4096
        $region36: #{tpu_custom_call.1} parent=31 // pred_fallthru
          _
        // Predicated region
        $region37: #{tpu_custom_call.1} parent=31 // pred_check
          %p196 = pneg %p63
        $region38: #{tpu_custom_call.1} parent=31 // pred_check_branch
          %198 = sbr.rel (%p196) target = $region40
        $region39: #{tpu_custom_call.1} parent=31 // pred_region
          %200 = dma.done [#allocation7], 18432
        $region40: #{tpu_custom_call.1} parent=31 // pred_fallthru
          _
        // Predicated region
        $region41: #{tpu_custom_call.1} parent=31 // pred_check
          %p201 = pneg %p84
        $region42: #{tpu_custom_call.1} parent=31 // pred_check_branch
          %203 = sbr.rel (%p201) target = $region44
        $region43: #{tpu_custom_call.1} parent=31 // pred_region
          %205 = dma.done [#allocation7], 18432
        $region44: #{tpu_custom_call.1} parent=31 // pred_fallthru
          _
        %s206 = sand.u32 %s29, 1
        %s207 = scalar_lea.sflag [#allocation4], %s206
        %s208 = sand.u32 %s29, 1
        %s209 = smul.addr %s208, 256
        %s210 = scalar_lea.vmem [#allocation3], %s209
        %p211 = pneg %p42
        %p212 = pneg %p39
        %p213 = pneg %p63
        %p214 = pneg %p60
        %p215 = pneg %p84
        %p216 = pneg %p81
        %p217 = pneg %p110
        %p218 = pneg %p107
        %s219 = sand.u32 %s97, 1
        %s220 = scalar_lea.sflag [#allocation5], %s219
        %s221 = sand.u32 %s97, 1
        %s222 = smul.addr %s221, 256
        %s223 = scalar_lea.vmem [#allocation9], %s222
        %v224 = vld [vmem:[%s190] sm:$0xff]
        %v225 = vld [vmem:[%s190 + $0x8] sm:$0xff]
        %v226 = vld [vmem:[%s190 + $0x10] sm:$0xff]
        %v227 = vld [vmem:[%s190 + $0x18] sm:$0xff]
        %v228 = vld [vmem:[%s190 + $0x20] sm:$0xff]
        %v229 = vld [vmem:[%s190 + $0x28] sm:$0xff]
        %v230 = vld [vmem:[%s190 + $0x30] sm:$0xff]
        %v231 = vld [vmem:[%s190 + $0x38] sm:$0xff]
        %v232 = vld [vmem:[%s190 + $0x40] sm:$0xff]
        %v233 = vld [vmem:[%s190 + $0x48] sm:$0xff]
        %v234 = vld [vmem:[%s190 + $0x50] sm:$0xff]
        %v235 = vld [vmem:[%s190 + $0x58] sm:$0xff]
        %v236 = vld [vmem:[%s190 + $0x60] sm:$0xff]
        %v237 = vld [vmem:[%s190 + $0x68] sm:$0xff]
        %v238 = vld [vmem:[%s190 + $0x70] sm:$0xff]
        %v239 = vld [vmem:[%s190 + $0x78] sm:$0xff]
        %v240 = vld [vmem:[%s190 + $0x80] sm:$0xff]
        %v241 = vld [vmem:[%s190 + $0x88] sm:$0xff]
        %v242 = vld [vmem:[%s190 + $0x90] sm:$0xff]
        %v243 = vld [vmem:[%s190 + $0x98] sm:$0xff]
        %v244 = vld [vmem:[%s190 + $0xa0] sm:$0xff]
        %v245 = vld [vmem:[%s190 + $0xa8] sm:$0xff]
        %v246 = vld [vmem:[%s190 + $0xb0] sm:$0xff]
        %v247 = vld [vmem:[%s190 + $0xb8] sm:$0xff]
        %v248 = vld [vmem:[%s190 + $0xc0] sm:$0xff]
        %v249 = vld [vmem:[%s190 + $0xc8] sm:$0xff]
        %v250 = vld [vmem:[%s190 + $0xd0] sm:$0xff]
        %v251 = vld [vmem:[%s190 + $0xd8] sm:$0xff]
        %v252 = vld [vmem:[%s190 + $0xe0] sm:$0xff]
        %v253 = vld [vmem:[%s190 + $0xe8] sm:$0xff]
        %v254 = vld [vmem:[%s190 + $0xf0] sm:$0xff]
        %v255 = vld [vmem:[%s190 + $0xf8] sm:$0xff]
        %s256 = scalar_lea.vmem [#allocation2], 24
        %257 = vst [vmem:[%s256 + $0x1] sm:$0xff] %v224
        %258 = vst [vmem:[%s256 + $0x9] sm:$0xff] %v225
        %259 = vst [vmem:[%s256 + $0x19] sm:$0xff] %v226
        %260 = vst [vmem:[%s256 + $0x21] sm:$0xff] %v227
        %261 = vst [vmem:[%s256 + $0x31] sm:$0xff] %v228
        %262 = vst [vmem:[%s256 + $0x39] sm:$0xff] %v229
        %263 = vst [vmem:[%s256 + $0x49] sm:$0xff] %v230
        %264 = vst [vmem:[%s256 + $0x51] sm:$0xff] %v231
        %265 = vst [vmem:[%s256 + $0x61] sm:$0xff] %v232
        %266 = vst [vmem:[%s256 + $0x69] sm:$0xff] %v233
        %267 = vst [vmem:[%s256 + $0x79] sm:$0xff] %v234
        %268 = vst [vmem:[%s256 + $0x81] sm:$0xff] %v235
        %269 = vst [vmem:[%s256 + $0x91] sm:$0xff] %v236
        %270 = vst [vmem:[%s256 + $0x99] sm:$0xff] %v237
        %271 = vst [vmem:[%s256 + $0xa9] sm:$0xff] %v238
        %272 = vst [vmem:[%s256 + $0xb1] sm:$0xff] %v239
        %273 = vst [vmem:[%s256 + $0xc1] sm:$0xff] %v240
        %274 = vst [vmem:[%s256 + $0xc9] sm:$0xff] %v241
        %275 = vst [vmem:[%s256 + $0xd9] sm:$0xff] %v242
        %276 = vst [vmem:[%s256 + $0xe1] sm:$0xff] %v243
        %277 = vst [vmem:[%s256 + $0xf1] sm:$0xff] %v244
        %278 = vst [vmem:[%s256 + $0xf9] sm:$0xff] %v245
        %279 = vst [vmem:[%s256 + $0x109] sm:$0xff] %v246
        %280 = vst [vmem:[%s256 + $0x111] sm:$0xff] %v247
        %281 = vst [vmem:[%s256 + $0x121] sm:$0xff] %v248
        %282 = vst [vmem:[%s256 + $0x129] sm:$0xff] %v249
        %283 = vst [vmem:[%s256 + $0x139] sm:$0xff] %v250
        %284 = vst [vmem:[%s256 + $0x141] sm:$0xff] %v251
        %285 = vst [vmem:[%s256 + $0x151] sm:$0xff] %v252
        %286 = vst [vmem:[%s256 + $0x159] sm:$0xff] %v253
        %287 = vst [vmem:[%s256 + $0x169] sm:$0xff] %v254
        %288 = vst [vmem:[%s256 + $0x171] sm:$0xff] %v255
        %289 = vst [vmem:[%s256 - $0x1] sm:$0x2] %v224
        %290 = vst [vmem:[%s256 + $0x17] sm:$0x2] %v226
        %291 = vst [vmem:[%s256 + $0x2f] sm:$0x2] %v228
        %292 = vst [vmem:[%s256 + $0x47] sm:$0x2] %v230
        %293 = vst [vmem:[%s256 + $0x5f] sm:$0x2] %v232
        %294 = vst [vmem:[%s256 + $0x77] sm:$0x2] %v234
        %295 = vst [vmem:[%s256 + $0x8f] sm:$0x2] %v236
        %296 = vst [vmem:[%s256 + $0xa7] sm:$0x2] %v238
        %297 = vst [vmem:[%s256 + $0xbf] sm:$0x2] %v240
        %298 = vst [vmem:[%s256 + $0xd7] sm:$0x2] %v242
        %299 = vst [vmem:[%s256 + $0xef] sm:$0x2] %v244
        %300 = vst [vmem:[%s256 + $0x107] sm:$0x2] %v246
        %301 = vst [vmem:[%s256 + $0x11f] sm:$0x2] %v248
        %302 = vst [vmem:[%s256 + $0x137] sm:$0x2] %v250
        %303 = vst [vmem:[%s256 + $0x14f] sm:$0x2] %v252
        %304 = vst [vmem:[%s256 + $0x167] sm:$0x2] %v254
        %305 = vst [vmem:[%s256 + $0xb] sm:$0x40] %v225
        %306 = vst [vmem:[%s256 + $0x23] sm:$0x40] %v227
        %307 = vst [vmem:[%s256 + $0x3b] sm:$0x40] %v229
        %308 = vst [vmem:[%s256 + $0x53] sm:$0x40] %v231
        %309 = vst [vmem:[%s256 + $0x6b] sm:$0x40] %v233
        %310 = vst [vmem:[%s256 + $0x83] sm:$0x40] %v235
        %311 = vst [vmem:[%s256 + $0x9b] sm:$0x40] %v237
        %312 = vst [vmem:[%s256 + $0xb3] sm:$0x40] %v239
        %313 = vst [vmem:[%s256 + $0xcb] sm:$0x40] %v241
        %314 = vst [vmem:[%s256 + $0xe3] sm:$0x40] %v243
        %315 = vst [vmem:[%s256 + $0xfb] sm:$0x40] %v245
        %316 = vst [vmem:[%s256 + $0x113] sm:$0x40] %v247
        %317 = vst [vmem:[%s256 + $0x12b] sm:$0x40] %v249
        %318 = vst [vmem:[%s256 + $0x143] sm:$0x40] %v251
        %319 = vst [vmem:[%s256 + $0x15b] sm:$0x40] %v253
        %320 = vst [vmem:[%s256 + $0x173] sm:$0x40] %v255
        %s321 = scalar_lea.vmem [#allocation2], 48
        %v322 = vld [vmem:[%s321] sm:$0xff]
        %v323 = vld [vmem:[%s321 + $0x8] sm:$0xff]
        %v324 = vld [vmem:[%s321 + $0x10] sm:$0x3]
        %325 = vst [vmem:[#allocation2] sm:$0xff] %v322
        %326 = vst [vmem:[#allocation2 + $0x8] sm:$0xff] %v323
        %327 = vst [vmem:[#allocation2 + $0x10] sm:$0x3] %v324
        %s328 = scalar_lea.vmem [#allocation2], 360
        %v329 = vld [vmem:[%s328] sm:$0xff]
        %v330 = vld [vmem:[%s328 + $0x8] sm:$0xff]
        %v331 = vld [vmem:[%s328 + $0x10] sm:$0x3]
        %s332 = scalar_lea.vmem [#allocation2], 408
        %333 = vst [vmem:[%s332] sm:$0xff] %v329
        %334 = vst [vmem:[%s332 + $0x8] sm:$0xff] %v330
        %335 = vst [vmem:[%s332 + $0x10] sm:$0x3] %v331
        %v336 = vld [vmem:[#allocation2] sm:$0xff]
        %v337 = vld [vmem:[#allocation2 + $0x8] sm:$0xff]
        %v338 = vld [vmem:[#allocation2 + $0x18] sm:$0xff]
        %v339 = vld [vmem:[#allocation2 + $0x20] sm:$0xff]
        %v340 = vld [vmem:[#allocation2 + $0x30] sm:$0xff]
        %v341 = vld [vmem:[#allocation2 + $0x38] sm:$0xff]
        %v342 = vld [vmem:[#allocation2 + $0x48] sm:$0xff]
        %v343 = vld [vmem:[#allocation2 + $0x50] sm:$0xff]
        %v344 = vld [vmem:[#allocation2 + $0x60] sm:$0xff]
        %v345 = vld [vmem:[#allocation2 + $0x68] sm:$0xff]
        %v346 = vld [vmem:[#allocation2 + $0x78] sm:$0xff]
        %v347 = vld [vmem:[#allocation2 + $0x80] sm:$0xff]
        %v348 = vld [vmem:[#allocation2 + $0x90] sm:$0xff]
        %v349 = vld [vmem:[#allocation2 + $0x98] sm:$0xff]
        %v350 = vld [vmem:[#allocation2 + $0xa8] sm:$0xff]
        %v351 = vld [vmem:[#allocation2 + $0xb0] sm:$0xff]
        %v352 = vld [vmem:[#allocation2 + $0xc0] sm:$0xff]
        %v353 = vld [vmem:[#allocation2 + $0xc8] sm:$0xff]
        %v354 = vld [vmem:[#allocation2 + $0xd8] sm:$0xff]
        %v355 = vld [vmem:[#allocation2 + $0xe0] sm:$0xff]
        %v356 = vld [vmem:[#allocation2 + $0xf0] sm:$0xff]
        %v357 = vld [vmem:[#allocation2 + $0xf8] sm:$0xff]
        %v358 = vld [vmem:[#allocation2 + $0x108] sm:$0xff]
        %v359 = vld [vmem:[#allocation2 + $0x110] sm:$0xff]
        %v360 = vld [vmem:[#allocation2 + $0x120] sm:$0xff]
        %v361 = vld [vmem:[#allocation2 + $0x128] sm:$0xff]
        %v362 = vld [vmem:[#allocation2 + $0x138] sm:$0xff]
        %v363 = vld [vmem:[#allocation2 + $0x140] sm:$0xff]
        %v364 = vld [vmem:[#allocation2 + $0x150] sm:$0xff]
        %v365 = vld [vmem:[#allocation2 + $0x158] sm:$0xff]
        %v366 = vld [vmem:[#allocation2 + $0x168] sm:$0xff]
        %v367 = vld [vmem:[#allocation2 + $0x170] sm:$0xff]
        %v368 = vld [vmem:[#allocation2 + $0x180] sm:$0xff]
        %v369 = vld [vmem:[#allocation2 + $0x188] sm:$0xff]
        %v370 = vld [vmem:[#allocation2 + $0x198] sm:$0xff]
        %v371 = vld [vmem:[#allocation2 + $0x1a0] sm:$0xff]
        %v372 = vld [vmem:[#allocation2 + $0x1] sm:$0xff]
        %v373 = vld [vmem:[#allocation2 + $0x9] sm:$0xff]
        %v374 = vld [vmem:[#allocation2 + $0x19] sm:$0xff]
        %v375 = vld [vmem:[#allocation2 + $0x21] sm:$0xff]
        %v376 = vld [vmem:[#allocation2 + $0x31] sm:$0xff]
        %v377 = vld [vmem:[#allocation2 + $0x39] sm:$0xff]
        %v378 = vld [vmem:[#allocation2 + $0x49] sm:$0xff]
        %v379 = vld [vmem:[#allocation2 + $0x51] sm:$0xff]
        %v380 = vld [vmem:[#allocation2 + $0x61] sm:$0xff]
        %v381 = vld [vmem:[#allocation2 + $0x69] sm:$0xff]
        %v382 = vld [vmem:[#allocation2 + $0x79] sm:$0xff]
        %v383 = vld [vmem:[#allocation2 + $0x81] sm:$0xff]
        %v384 = vld [vmem:[#allocation2 + $0x91] sm:$0xff]
        %v385 = vld [vmem:[#allocation2 + $0x99] sm:$0xff]
        %v386 = vld [vmem:[#allocation2 + $0xa9] sm:$0xff]
        %v387 = vld [vmem:[#allocation2 + $0xb1] sm:$0xff]
        %v388 = vld [vmem:[#allocation2 + $0xc1] sm:$0xff]
        %v389 = vld [vmem:[#allocation2 + $0xc9] sm:$0xff]
        %v390 = vld [vmem:[#allocation2 + $0xd9] sm:$0xff]
        %v391 = vld [vmem:[#allocation2 + $0xe1] sm:$0xff]
        %v392 = vld [vmem:[#allocation2 + $0xf1] sm:$0xff]
        %v393 = vld [vmem:[#allocation2 + $0xf9] sm:$0xff]
        %v394 = vld [vmem:[#allocation2 + $0x109] sm:$0xff]
        %v395 = vld [vmem:[#allocation2 + $0x111] sm:$0xff]
        %v396 = vld [vmem:[#allocation2 + $0x121] sm:$0xff]
        %v397 = vld [vmem:[#allocation2 + $0x129] sm:$0xff]
        %v398 = vld [vmem:[#allocation2 + $0x139] sm:$0xff]
        %v399 = vld [vmem:[#allocation2 + $0x141] sm:$0xff]
        %v400 = vld [vmem:[#allocation2 + $0x151] sm:$0xff]
        %v401 = vld [vmem:[#allocation2 + $0x159] sm:$0xff]
        %v402 = vld [vmem:[#allocation2 + $0x169] sm:$0xff]
        %v403 = vld [vmem:[#allocation2 + $0x171] sm:$0xff]
        %v404 = vld [vmem:[#allocation2 + $0x181] sm:$0xff]
        %v405 = vld [vmem:[#allocation2 + $0x189] sm:$0xff]
        %v406 = vld [vmem:[#allocation2 + $0x199] sm:$0xff]
        %v407 = vld [vmem:[#allocation2 + $0x1a1] sm:$0xff]
        %v408 = vld [vmem:[#allocation2 + $0x2] sm:$0xff]
        %v409 = vld [vmem:[#allocation2 + $0xa] sm:$0xff]
        %v410 = vld [vmem:[#allocation2 + $0x1a] sm:$0xff]
        %v411 = vld [vmem:[#allocation2 + $0x22] sm:$0xff]
        %v412 = vld [vmem:[#allocation2 + $0x32] sm:$0xff]
        %v413 = vld [vmem:[#allocation2 + $0x3a] sm:$0xff]
        %v414 = vld [vmem:[#allocation2 + $0x4a] sm:$0xff]
        %v415 = vld [vmem:[#allocation2 + $0x52] sm:$0xff]
        %v416 = vld [vmem:[#allocation2 + $0x62] sm:$0xff]
        %v417 = vld [vmem:[#allocation2 + $0x6a] sm:$0xff]
        %v418 = vld [vmem:[#allocation2 + $0x7a] sm:$0xff]
        %v419 = vld [vmem:[#allocation2 + $0x82] sm:$0xff]
        %v420 = vld [vmem:[#allocation2 + $0x92] sm:$0xff]
        %v421 = vld [vmem:[#allocation2 + $0x9a] sm:$0xff]
        %v422 = vld [vmem:[#allocation2 + $0xaa] sm:$0xff]
        %v423 = vld [vmem:[#allocation2 + $0xb2] sm:$0xff]
        %v424 = vld [vmem:[#allocation2 + $0xc2] sm:$0xff]
        %v425 = vld [vmem:[#allocation2 + $0xca] sm:$0xff]
        %v426 = vld [vmem:[#allocation2 + $0xda] sm:$0xff]
        %v427 = vld [vmem:[#allocation2 + $0xe2] sm:$0xff]
        %v428 = vld [vmem:[#allocation2 + $0xf2] sm:$0xff]
        %v429 = vld [vmem:[#allocation2 + $0xfa] sm:$0xff]
        %v430 = vld [vmem:[#allocation2 + $0x10a] sm:$0xff]
        %v431 = vld [vmem:[#allocation2 + $0x112] sm:$0xff]
        %v432 = vld [vmem:[#allocation2 + $0x122] sm:$0xff]
        %v433 = vld [vmem:[#allocation2 + $0x12a] sm:$0xff]
        %v434 = vld [vmem:[#allocation2 + $0x13a] sm:$0xff]
        %v435 = vld [vmem:[#allocation2 + $0x142] sm:$0xff]
        %v436 = vld [vmem:[#allocation2 + $0x152] sm:$0xff]
        %v437 = vld [vmem:[#allocation2 + $0x15a] sm:$0xff]
        %v438 = vld [vmem:[#allocation2 + $0x16a] sm:$0xff]
        %v439 = vld [vmem:[#allocation2 + $0x172] sm:$0xff]
        %v440 = vld [vmem:[#allocation2 + $0x182] sm:$0xff]
        %v441 = vld [vmem:[#allocation2 + $0x18a] sm:$0xff]
        %v442 = vld [vmem:[#allocation2 + $0x19a] sm:$0xff]
        %v443 = vld [vmem:[#allocation2 + $0x1a2] sm:$0xff]
        %v444 = vld [vmem:[#allocation6] sm:$0xff]
        %v445 = vld [vmem:[#allocation6 + $0x8] sm:$0xff]
        %v446 = vld [vmem:[#allocation6 + $0x10] sm:$0xff]
        %v447 = vld [vmem:[#allocation6 + $0x18] sm:$0xff]
        %v448 = vld [vmem:[#allocation6 + $0x20] sm:$0xff]
        %v449 = vld [vmem:[#allocation6 + $0x28] sm:$0xff]
        %v450 = vld [vmem:[#allocation6 + $0x30] sm:$0xff]
        %v451 = vld [vmem:[#allocation6 + $0x38] sm:$0xff]
        %v452 = vld [vmem:[#allocation6 + $0x40] sm:$0xff]
        %v453 = vld [vmem:[#allocation6 + $0x48] sm:$0xff]
        %v454 = vld [vmem:[#allocation6 + $0x50] sm:$0xff]
        %v455 = vld [vmem:[#allocation6 + $0x58] sm:$0xff]
        %v456 = vld [vmem:[#allocation6 + $0x60] sm:$0xff]
        %v457 = vld [vmem:[#allocation6 + $0x68] sm:$0xff]
        %v458 = vld [vmem:[#allocation6 + $0x70] sm:$0xff]
        %v459 = vld [vmem:[#allocation6 + $0x78] sm:$0xff]
        %v460 = vld [vmem:[#allocation6 + $0x80] sm:$0xff]
        %v461 = vld [vmem:[#allocation6 + $0x88] sm:$0xff]
        %v462 = vld [vmem:[#allocation6 + $0x90] sm:$0xff]
        %v463 = vld [vmem:[#allocation6 + $0x98] sm:$0xff]
        %v464 = vld [vmem:[#allocation6 + $0xa0] sm:$0xff]
        %v465 = vld [vmem:[#allocation6 + $0xa8] sm:$0xff]
        %v466 = vld [vmem:[#allocation6 + $0xb0] sm:$0xff]
        %v467 = vld [vmem:[#allocation6 + $0xb8] sm:$0xff]
        %v468 = vld [vmem:[#allocation6 + $0xc0] sm:$0xff]
        %v469 = vld [vmem:[#allocation6 + $0xc8] sm:$0xff]
        %v470 = vld [vmem:[#allocation6 + $0xd0] sm:$0xff]
        %v471 = vld [vmem:[#allocation6 + $0xd8] sm:$0xff]
        %v472 = vld [vmem:[#allocation6 + $0xe0] sm:$0xff]
        %v473 = vld [vmem:[#allocation6 + $0xe8] sm:$0xff]
        %v474 = vld [vmem:[#allocation6 + $0xf0] sm:$0xff]
        %v475 = vld [vmem:[#allocation6 + $0xf8] sm:$0xff]
        %v476 = vld [vmem:[#allocation6 + $0x100] sm:$0xff]
        %v477 = vld [vmem:[#allocation6 + $0x108] sm:$0xff]
        %v478 = vld [vmem:[#allocation6 + $0x110] sm:$0xff]
        %v479 = vld [vmem:[#allocation6 + $0x118] sm:$0xff]
        %v480 = vld [vmem:[#allocation6 + $0x120] sm:$0xff]
        %v481 = vld [vmem:[#allocation6 + $0x128] sm:$0xff]
        %v482 = vld [vmem:[#allocation6 + $0x130] sm:$0xff]
        %v483 = vld [vmem:[#allocation6 + $0x138] sm:$0xff]
        %v484 = vld [vmem:[#allocation6 + $0x140] sm:$0xff]
        %v485 = vld [vmem:[#allocation6 + $0x148] sm:$0xff]
        %v486 = vld [vmem:[#allocation6 + $0x150] sm:$0xff]
        %v487 = vld [vmem:[#allocation6 + $0x158] sm:$0xff]
        %v488 = vld [vmem:[#allocation6 + $0x160] sm:$0xff]
        %v489 = vld [vmem:[#allocation6 + $0x168] sm:$0xff]
        %v490 = vld [vmem:[#allocation6 + $0x170] sm:$0xff]
        %v491 = vld [vmem:[#allocation6 + $0x178] sm:$0xff]
        %v492 = vld [vmem:[#allocation6 + $0x180] sm:$0xff]
        %v493 = vld [vmem:[#allocation6 + $0x188] sm:$0xff]
        %v494 = vld [vmem:[#allocation6 + $0x190] sm:$0xff]
        %v495 = vld [vmem:[#allocation6 + $0x198] sm:$0xff]
        %v496 = vld [vmem:[#allocation6 + $0x1a0] sm:$0xff]
        %v497 = vld [vmem:[#allocation6 + $0x1a8] sm:$0xff]
        %v498 = vld [vmem:[#allocation6 + $0x1b0] sm:$0xff]
        %v499 = vld [vmem:[#allocation6 + $0x1b8] sm:$0xff]
        %v500 = vld [vmem:[#allocation6 + $0x1c0] sm:$0xff]
        %v501 = vld [vmem:[#allocation6 + $0x1c8] sm:$0xff]
        %v502 = vld [vmem:[#allocation6 + $0x1d0] sm:$0xff]
        %v503 = vld [vmem:[#allocation6 + $0x1d8] sm:$0xff]
        %v504 = vld [vmem:[#allocation6 + $0x1e0] sm:$0xff]
        %v505 = vld [vmem:[#allocation6 + $0x1e8] sm:$0xff]
        %v506 = vld [vmem:[#allocation6 + $0x1f0] sm:$0xff]
        %v507 = vld [vmem:[#allocation6 + $0x1f8] sm:$0xff]
        %v508 = vld [vmem:[#allocation6 + $0x200] sm:$0xff]
        %v509 = vld [vmem:[#allocation6 + $0x208] sm:$0xff]
        %v510 = vld [vmem:[#allocation6 + $0x210] sm:$0xff]
        %v511 = vld [vmem:[#allocation6 + $0x218] sm:$0xff]
        %v512 = vld [vmem:[#allocation6 + $0x220] sm:$0xff]
        %v513 = vld [vmem:[#allocation6 + $0x228] sm:$0xff]
        %v514 = vld [vmem:[#allocation6 + $0x230] sm:$0xff]
        %v515 = vld [vmem:[#allocation6 + $0x238] sm:$0xff]
        %v516 = vld [vmem:[#allocation6 + $0x240] sm:$0xff]
        %v517 = vld [vmem:[#allocation6 + $0x248] sm:$0xff]
        %v518 = vld [vmem:[#allocation6 + $0x250] sm:$0xff]
        %v519 = vld [vmem:[#allocation6 + $0x258] sm:$0xff]
        %v520 = vld [vmem:[#allocation6 + $0x260] sm:$0xff]
        %v521 = vld [vmem:[#allocation6 + $0x268] sm:$0xff]
        %v522 = vld [vmem:[#allocation6 + $0x270] sm:$0xff]
        %v523 = vld [vmem:[#allocation6 + $0x278] sm:$0xff]
        %v524 = vld [vmem:[#allocation6 + $0x280] sm:$0xff]
        %v525 = vld [vmem:[#allocation6 + $0x288] sm:$0xff]
        %v526 = vld [vmem:[#allocation6 + $0x290] sm:$0xff]
        %v527 = vld [vmem:[#allocation6 + $0x298] sm:$0xff]
        %v528 = vld [vmem:[#allocation6 + $0x2a0] sm:$0xff]
        %v529 = vld [vmem:[#allocation6 + $0x2a8] sm:$0xff]
        %v530 = vld [vmem:[#allocation6 + $0x2b0] sm:$0xff]
        %v531 = vld [vmem:[#allocation6 + $0x2b8] sm:$0xff]
        %v532 = vld [vmem:[#allocation6 + $0x2c0] sm:$0xff]
        %v533 = vld [vmem:[#allocation6 + $0x2c8] sm:$0xff]
        %v534 = vld [vmem:[#allocation6 + $0x2d0] sm:$0xff]
        %v535 = vld [vmem:[#allocation6 + $0x2d8] sm:$0xff]
        %v536 = vld [vmem:[#allocation6 + $0x2e0] sm:$0xff]
        %v537 = vld [vmem:[#allocation6 + $0x2e8] sm:$0xff]
        %v538 = vld [vmem:[#allocation6 + $0x2f0] sm:$0xff]
        %v539 = vld [vmem:[#allocation6 + $0x2f8] sm:$0xff]
        %540 = vmatpush.msra.mxu0 %v507
        %541 = vmatpush.msra.mxu0 %v506
        %542 = vmatpush.msra.mxu0 %v505
        %543 = vmatpush.msra.mxu0 %v504
        %544 = vmatpush.msra.mxu0 %v503
        %545 = vmatpush.msra.mxu0 %v502
        %546 = vmatpush.msra.mxu0 %v501
        %547 = vmatpush.msra.mxu0 %v500
        %548 = vmatpush.msra.mxu0 %v499
        %549 = vmatpush.msra.mxu0 %v498
        %550 = vmatpush.msra.mxu0 %v497
        %551 = vmatpush.msra.mxu0 %v496
        %552 = vmatpush.msra.mxu0 %v495
        %553 = vmatpush.msra.mxu0 %v494
        %554 = vmatpush.msra.mxu0 %v493
        %555 = vmatpush.msra.mxu0 %v492
        %556 = vmatmul.f32.gmra.mxu0 %v338
        %v557 = vpop.f32.mrf.mxu0
        %v558 = vadd.f32 0.0, %v557
        %559 = vmatmul.f32.gmra.mxu0 %v339
        %v560 = vpop.f32.mrf.mxu0
        %v561 = vadd.f32 0.0, %v560
        %562 = vmatmul.f32.gmra.mxu0 %v340
        %v563 = vpop.f32.mrf.mxu0
        %v564 = vadd.f32 0.0, %v563
        %565 = vmatmul.f32.gmra.mxu0 %v341
        %v566 = vpop.f32.mrf.mxu0
        %v567 = vadd.f32 0.0, %v566
        %568 = vmatmul.f32.gmra.mxu0 %v342
        %v569 = vpop.f32.mrf.mxu0
        %v570 = vadd.f32 0.0, %v569
        %571 = vmatmul.f32.gmra.mxu0 %v343
        %v572 = vpop.f32.mrf.mxu0
        %v573 = vadd.f32 0.0, %v572
        %574 = vmatmul.f32.gmra.mxu0 %v344
        %v575 = vpop.f32.mrf.mxu0
        %v576 = vadd.f32 0.0, %v575
        %577 = vmatmul.f32.gmra.mxu0 %v345
        %v578 = vpop.f32.mrf.mxu0
        %v579 = vadd.f32 0.0, %v578
        %580 = vmatmul.f32.gmra.mxu0 %v346
        %v581 = vpop.f32.mrf.mxu0
        %v582 = vadd.f32 0.0, %v581
        %583 = vmatmul.f32.gmra.mxu0 %v347
        %v584 = vpop.f32.mrf.mxu0
        %v585 = vadd.f32 0.0, %v584
        %586 = vmatmul.f32.gmra.mxu0 %v348
        %v587 = vpop.f32.mrf.mxu0
        %v588 = vadd.f32 0.0, %v587
        %589 = vmatmul.f32.gmra.mxu0 %v349
        %v590 = vpop.f32.mrf.mxu0
        %v591 = vadd.f32 0.0, %v590
        %592 = vmatmul.f32.gmra.mxu0 %v350
        %v593 = vpop.f32.mrf.mxu0
        %v594 = vadd.f32 0.0, %v593
        %595 = vmatmul.f32.gmra.mxu0 %v351
        %v596 = vpop.f32.mrf.mxu0
        %v597 = vadd.f32 0.0, %v596
        %598 = vmatmul.f32.gmra.mxu0 %v352
        %v599 = vpop.f32.mrf.mxu0
        %v600 = vadd.f32 0.0, %v599
        %601 = vmatmul.f32.gmra.mxu0 %v353
        %v602 = vpop.f32.mrf.mxu0
        %v603 = vadd.f32 0.0, %v602
        %604 = vmatmul.f32.gmra.mxu0 %v354
        %v605 = vpop.f32.mrf.mxu0
        %v606 = vadd.f32 0.0, %v605
        %607 = vmatmul.f32.gmra.mxu0 %v355
        %v608 = vpop.f32.mrf.mxu0
        %v609 = vadd.f32 0.0, %v608
        %610 = vmatmul.f32.gmra.mxu0 %v356
        %v611 = vpop.f32.mrf.mxu0
        %v612 = vadd.f32 0.0, %v611
        %613 = vmatmul.f32.gmra.mxu0 %v357
        %v614 = vpop.f32.mrf.mxu0
        %v615 = vadd.f32 0.0, %v614
        %616 = vmatmul.f32.gmra.mxu0 %v358
        %v617 = vpop.f32.mrf.mxu0
        %v618 = vadd.f32 0.0, %v617
        %619 = vmatmul.f32.gmra.mxu0 %v359
        %v620 = vpop.f32.mrf.mxu0
        %v621 = vadd.f32 0.0, %v620
        %622 = vmatmul.f32.gmra.mxu0 %v360
        %v623 = vpop.f32.mrf.mxu0
        %v624 = vadd.f32 0.0, %v623
        %625 = vmatmul.f32.gmra.mxu0 %v361
        %v626 = vpop.f32.mrf.mxu0
        %v627 = vadd.f32 0.0, %v626
        %628 = vmatmul.f32.gmra.mxu0 %v362
        %v629 = vpop.f32.mrf.mxu0
        %v630 = vadd.f32 0.0, %v629
        %631 = vmatmul.f32.gmra.mxu0 %v363
        %v632 = vpop.f32.mrf.mxu0
        %v633 = vadd.f32 0.0, %v632
        %634 = vmatmul.f32.gmra.mxu0 %v364
        %v635 = vpop.f32.mrf.mxu0
        %v636 = vadd.f32 0.0, %v635
        %637 = vmatmul.f32.gmra.mxu0 %v365
        %v638 = vpop.f32.mrf.mxu0
        %v639 = vadd.f32 0.0, %v638
        %640 = vmatmul.f32.gmra.mxu0 %v366
        %v641 = vpop.f32.mrf.mxu0
        %v642 = vadd.f32 0.0, %v641
        %643 = vmatmul.f32.gmra.mxu0 %v367
        %v644 = vpop.f32.mrf.mxu0
        %v645 = vadd.f32 0.0, %v644
        %646 = vmatmul.f32.gmra.mxu0 %v368
        %v647 = vpop.f32.mrf.mxu0
        %v648 = vadd.f32 0.0, %v647
        %649 = vmatmul.f32.gmra.mxu0 %v369
        %v650 = vpop.f32.mrf.mxu0
        %v651 = vadd.f32 0.0, %v650
        %652 = vdwg.mxu0
        %653 = vmatpush.msra.mxu0 %v523
        %654 = vmatpush.msra.mxu0 %v522
        %655 = vmatpush.msra.mxu0 %v521
        %656 = vmatpush.msra.mxu0 %v520
        %657 = vmatpush.msra.mxu0 %v519
        %658 = vmatpush.msra.mxu0 %v518
        %659 = vmatpush.msra.mxu0 %v517
        %660 = vmatpush.msra.mxu0 %v516
        %661 = vmatpush.msra.mxu0 %v515
        %662 = vmatpush.msra.mxu0 %v514
        %663 = vmatpush.msra.mxu0 %v513
        %664 = vmatpush.msra.mxu0 %v512
        %665 = vmatpush.msra.mxu0 %v511
        %666 = vmatpush.msra.mxu0 %v510
        %667 = vmatpush.msra.mxu0 %v509
        %668 = vmatpush.msra.mxu0 %v508
        %669 = vmatmul.f32.gmra.mxu0 %v374
        %v670 = vpop.f32.mrf.mxu0
        %v671 = vadd.f32 %v558, %v670
        %672 = vmatmul.f32.gmra.mxu0 %v375
        %v673 = vpop.f32.mrf.mxu0
        %v674 = vadd.f32 %v561, %v673
        %675 = vmatmul.f32.gmra.mxu0 %v376
        %v676 = vpop.f32.mrf.mxu0
        %v677 = vadd.f32 %v564, %v676
        %678 = vmatmul.f32.gmra.mxu0 %v377
        %v679 = vpop.f32.mrf.mxu0
        %v680 = vadd.f32 %v567, %v679
        %681 = vmatmul.f32.gmra.mxu0 %v378
        %v682 = vpop.f32.mrf.mxu0
        %v683 = vadd.f32 %v570, %v682
        %684 = vmatmul.f32.gmra.mxu0 %v379
        %v685 = vpop.f32.mrf.mxu0
        %v686 = vadd.f32 %v573, %v685
        %687 = vmatmul.f32.gmra.mxu0 %v380
        %v688 = vpop.f32.mrf.mxu0
        %v689 = vadd.f32 %v576, %v688
        %690 = vmatmul.f32.gmra.mxu0 %v381
        %v691 = vpop.f32.mrf.mxu0
        %v692 = vadd.f32 %v579, %v691
        %693 = vmatmul.f32.gmra.mxu0 %v382
        %v694 = vpop.f32.mrf.mxu0
        %v695 = vadd.f32 %v582, %v694
        %696 = vmatmul.f32.gmra.mxu0 %v383
        %v697 = vpop.f32.mrf.mxu0
        %v698 = vadd.f32 %v585, %v697
        %699 = vmatmul.f32.gmra.mxu0 %v384
        %v700 = vpop.f32.mrf.mxu0
        %v701 = vadd.f32 %v588, %v700
        %702 = vmatmul.f32.gmra.mxu0 %v385
        %v703 = vpop.f32.mrf.mxu0
        %v704 = vadd.f32 %v591, %v703
        %705 = vmatmul.f32.gmra.mxu0 %v386
        %v706 = vpop.f32.mrf.mxu0
        %v707 = vadd.f32 %v594, %v706
        %708 = vmatmul.f32.gmra.mxu0 %v387
        %v709 = vpop.f32.mrf.mxu0
        %v710 = vadd.f32 %v597, %v709
        %711 = vmatmul.f32.gmra.mxu0 %v388
        %v712 = vpop.f32.mrf.mxu0
        %v713 = vadd.f32 %v600, %v712
        %714 = vmatmul.f32.gmra.mxu0 %v389
        %v715 = vpop.f32.mrf.mxu0
        %v716 = vadd.f32 %v603, %v715
        %717 = vmatmul.f32.gmra.mxu0 %v390
        %v718 = vpop.f32.mrf.mxu0
        %v719 = vadd.f32 %v606, %v718
        %720 = vmatmul.f32.gmra.mxu0 %v391
        %v721 = vpop.f32.mrf.mxu0
        %v722 = vadd.f32 %v609, %v721
        %723 = vmatmul.f32.gmra.mxu0 %v392
        %v724 = vpop.f32.mrf.mxu0
        %v725 = vadd.f32 %v612, %v724
        %726 = vmatmul.f32.gmra.mxu0 %v393
        %v727 = vpop.f32.mrf.mxu0
        %v728 = vadd.f32 %v615, %v727
        %729 = vmatmul.f32.gmra.mxu0 %v394
        %v730 = vpop.f32.mrf.mxu0
        %v731 = vadd.f32 %v618, %v730
        %732 = vmatmul.f32.gmra.mxu0 %v395
        %v733 = vpop.f32.mrf.mxu0
        %v734 = vadd.f32 %v621, %v733
        %735 = vmatmul.f32.gmra.mxu0 %v396
        %v736 = vpop.f32.mrf.mxu0
        %v737 = vadd.f32 %v624, %v736
        %738 = vmatmul.f32.gmra.mxu0 %v397
        %v739 = vpop.f32.mrf.mxu0
        %v740 = vadd.f32 %v627, %v739
        %741 = vmatmul.f32.gmra.mxu0 %v398
        %v742 = vpop.f32.mrf.mxu0
        %v743 = vadd.f32 %v630, %v742
        %744 = vmatmul.f32.gmra.mxu0 %v399
        %v745 = vpop.f32.mrf.mxu0
        %v746 = vadd.f32 %v633, %v745
        %747 = vmatmul.f32.gmra.mxu0 %v400
        %v748 = vpop.f32.mrf.mxu0
        %v749 = vadd.f32 %v636, %v748
        %750 = vmatmul.f32.gmra.mxu0 %v401
        %v751 = vpop.f32.mrf.mxu0
        %v752 = vadd.f32 %v639, %v751
        %753 = vmatmul.f32.gmra.mxu0 %v402
        %v754 = vpop.f32.mrf.mxu0
        %v755 = vadd.f32 %v642, %v754
        %756 = vmatmul.f32.gmra.mxu0 %v403
        %v757 = vpop.f32.mrf.mxu0
        %v758 = vadd.f32 %v645, %v757
        %759 = vmatmul.f32.gmra.mxu0 %v404
        %v760 = vpop.f32.mrf.mxu0
        %v761 = vadd.f32 %v648, %v760
        %762 = vmatmul.f32.gmra.mxu0 %v405
        %v763 = vpop.f32.mrf.mxu0
        %v764 = vadd.f32 %v651, %v763
        %765 = vdwg.mxu0
        %766 = vmatpush.msra.mxu0 %v539
        %767 = vmatpush.msra.mxu0 %v538
        %768 = vmatpush.msra.mxu0 %v537
        %769 = vmatpush.msra.mxu0 %v536
        %770 = vmatpush.msra.mxu0 %v535
        %771 = vmatpush.msra.mxu0 %v534
        %772 = vmatpush.msra.mxu0 %v533
        %773 = vmatpush.msra.mxu0 %v532
        %774 = vmatpush.msra.mxu0 %v531
        %775 = vmatpush.msra.mxu0 %v530
        %776 = vmatpush.msra.mxu0 %v529
        %777 = vmatpush.msra.mxu0 %v528
        %778 = vmatpush.msra.mxu0 %v527
        %779 = vmatpush.msra.mxu0 %v526
        %780 = vmatpush.msra.mxu0 %v525
        %781 = vmatpush.msra.mxu0 %v524
        %782 = vmatmul.f32.gmra.mxu0 %v410
        %v783 = vpop.f32.mrf.mxu0
        %v784 = vadd.f32 %v671, %v783
        %785 = vmatmul.f32.gmra.mxu0 %v411
        %v786 = vpop.f32.mrf.mxu0
        %v787 = vadd.f32 %v674, %v786
        %788 = vmatmul.f32.gmra.mxu0 %v412
        %v789 = vpop.f32.mrf.mxu0
        %v790 = vadd.f32 %v677, %v789
        %791 = vmatmul.f32.gmra.mxu0 %v413
        %v792 = vpop.f32.mrf.mxu0
        %v793 = vadd.f32 %v680, %v792
        %794 = vmatmul.f32.gmra.mxu0 %v414
        %v795 = vpop.f32.mrf.mxu0
        %v796 = vadd.f32 %v683, %v795
        %797 = vmatmul.f32.gmra.mxu0 %v415
        %v798 = vpop.f32.mrf.mxu0
        %v799 = vadd.f32 %v686, %v798
        %800 = vmatmul.f32.gmra.mxu0 %v416
        %v801 = vpop.f32.mrf.mxu0
        %v802 = vadd.f32 %v689, %v801
        %803 = vmatmul.f32.gmra.mxu0 %v417
        %v804 = vpop.f32.mrf.mxu0
        %v805 = vadd.f32 %v692, %v804
        %806 = vmatmul.f32.gmra.mxu0 %v418
        %v807 = vpop.f32.mrf.mxu0
        %v808 = vadd.f32 %v695, %v807
        %809 = vmatmul.f32.gmra.mxu0 %v419
        %v810 = vpop.f32.mrf.mxu0
        %v811 = vadd.f32 %v698, %v810
        %812 = vmatmul.f32.gmra.mxu0 %v420
        %v813 = vpop.f32.mrf.mxu0
        %v814 = vadd.f32 %v701, %v813
        %815 = vmatmul.f32.gmra.mxu0 %v421
        %v816 = vpop.f32.mrf.mxu0
        %v817 = vadd.f32 %v704, %v816
        %818 = vmatmul.f32.gmra.mxu0 %v422
        %v819 = vpop.f32.mrf.mxu0
        %v820 = vadd.f32 %v707, %v819
        %821 = vmatmul.f32.gmra.mxu0 %v423
        %v822 = vpop.f32.mrf.mxu0
        %v823 = vadd.f32 %v710, %v822
        %824 = vmatmul.f32.gmra.mxu0 %v424
        %v825 = vpop.f32.mrf.mxu0
        %v826 = vadd.f32 %v713, %v825
        %827 = vmatmul.f32.gmra.mxu0 %v425
        %v828 = vpop.f32.mrf.mxu0
        %v829 = vadd.f32 %v716, %v828
        %830 = vmatmul.f32.gmra.mxu0 %v426
        %v831 = vpop.f32.mrf.mxu0
        %v832 = vadd.f32 %v719, %v831
        %833 = vmatmul.f32.gmra.mxu0 %v427
        %v834 = vpop.f32.mrf.mxu0
        %v835 = vadd.f32 %v722, %v834
        %836 = vmatmul.f32.gmra.mxu0 %v428
        %v837 = vpop.f32.mrf.mxu0
        %v838 = vadd.f32 %v725, %v837
        %839 = vmatmul.f32.gmra.mxu0 %v429
        %v840 = vpop.f32.mrf.mxu0
        %v841 = vadd.f32 %v728, %v840
        %842 = vmatmul.f32.gmra.mxu0 %v430
        %v843 = vpop.f32.mrf.mxu0
        %v844 = vadd.f32 %v731, %v843
        %845 = vmatmul.f32.gmra.mxu0 %v431
        %v846 = vpop.f32.mrf.mxu0
        %v847 = vadd.f32 %v734, %v846
        %848 = vmatmul.f32.gmra.mxu0 %v432
        %v849 = vpop.f32.mrf.mxu0
        %v850 = vadd.f32 %v737, %v849
        %851 = vmatmul.f32.gmra.mxu0 %v433
        %v852 = vpop.f32.mrf.mxu0
        %v853 = vadd.f32 %v740, %v852
        %854 = vmatmul.f32.gmra.mxu0 %v434
        %v855 = vpop.f32.mrf.mxu0
        %v856 = vadd.f32 %v743, %v855
        %857 = vmatmul.f32.gmra.mxu0 %v435
        %v858 = vpop.f32.mrf.mxu0
        %v859 = vadd.f32 %v746, %v858
        %860 = vmatmul.f32.gmra.mxu0 %v436
        %v861 = vpop.f32.mrf.mxu0
        %v862 = vadd.f32 %v749, %v861
        %863 = vmatmul.f32.gmra.mxu0 %v437
        %v864 = vpop.f32.mrf.mxu0
        %v865 = vadd.f32 %v752, %v864
        %866 = vmatmul.f32.gmra.mxu0 %v438
        %v867 = vpop.f32.mrf.mxu0
        %v868 = vadd.f32 %v755, %v867
        %869 = vmatmul.f32.gmra.mxu0 %v439
        %v870 = vpop.f32.mrf.mxu0
        %v871 = vadd.f32 %v758, %v870
        %872 = vmatmul.f32.gmra.mxu0 %v440
        %v873 = vpop.f32.mrf.mxu0
        %v874 = vadd.f32 %v761, %v873
        %875 = vmatmul.f32.gmra.mxu0 %v441
        %v876 = vpop.f32.mrf.mxu0
        %v877 = vadd.f32 %v764, %v876
        %878 = vdwg.mxu0
        %879 = vmatpush.msra.mxu0 %v459
        %880 = vmatpush.msra.mxu0 %v458
        %881 = vmatpush.msra.mxu0 %v457
        %882 = vmatpush.msra.mxu0 %v456
        %883 = vmatpush.msra.mxu0 %v455
        %884 = vmatpush.msra.mxu0 %v454
        %885 = vmatpush.msra.mxu0 %v453
        %886 = vmatpush.msra.mxu0 %v452
        %887 = vmatpush.msra.mxu0 %v451
        %888 = vmatpush.msra.mxu0 %v450
        %889 = vmatpush.msra.mxu0 %v449
        %890 = vmatpush.msra.mxu0 %v448
        %891 = vmatpush.msra.mxu0 %v447
        %892 = vmatpush.msra.mxu0 %v446
        %893 = vmatpush.msra.mxu0 %v445
        %894 = vmatpush.msra.mxu0 %v444
        %895 = vmatmul.f32.gmra.mxu0 %v336
        %v896 = vpop.f32.mrf.mxu0
        %v897 = vadd.f32 %v784, %v896
        %898 = vmatmul.f32.gmra.mxu0 %v337
        %v899 = vpop.f32.mrf.mxu0
        %v900 = vadd.f32 %v787, %v899
        %901 = vmatmul.f32.gmra.mxu0 %v338
        %v902 = vpop.f32.mrf.mxu0
        %v903 = vadd.f32 %v790, %v902
        %904 = vmatmul.f32.gmra.mxu0 %v339
        %v905 = vpop.f32.mrf.mxu0
        %v906 = vadd.f32 %v793, %v905
        %907 = vmatmul.f32.gmra.mxu0 %v340
        %v908 = vpop.f32.mrf.mxu0
        %v909 = vadd.f32 %v796, %v908
        %910 = vmatmul.f32.gmra.mxu0 %v341
        %v911 = vpop.f32.mrf.mxu0
        %v912 = vadd.f32 %v799, %v911
        %913 = vmatmul.f32.gmra.mxu0 %v342
        %v914 = vpop.f32.mrf.mxu0
        %v915 = vadd.f32 %v802, %v914
        %916 = vmatmul.f32.gmra.mxu0 %v343
        %v917 = vpop.f32.mrf.mxu0
        %v918 = vadd.f32 %v805, %v917
        %919 = vmatmul.f32.gmra.mxu0 %v344
        %v920 = vpop.f32.mrf.mxu0
        %v921 = vadd.f32 %v808, %v920
        %922 = vmatmul.f32.gmra.mxu0 %v345
        %v923 = vpop.f32.mrf.mxu0
        %v924 = vadd.f32 %v811, %v923
        %925 = vmatmul.f32.gmra.mxu0 %v346
        %v926 = vpop.f32.mrf.mxu0
        %v927 = vadd.f32 %v814, %v926
        %928 = vmatmul.f32.gmra.mxu0 %v347
        %v929 = vpop.f32.mrf.mxu0
        %v930 = vadd.f32 %v817, %v929
        %931 = vmatmul.f32.gmra.mxu0 %v348
        %v932 = vpop.f32.mrf.mxu0
        %v933 = vadd.f32 %v820, %v932
        %934 = vmatmul.f32.gmra.mxu0 %v349
        %v935 = vpop.f32.mrf.mxu0
        %v936 = vadd.f32 %v823, %v935
        %937 = vmatmul.f32.gmra.mxu0 %v350
        %v938 = vpop.f32.mrf.mxu0
        %v939 = vadd.f32 %v826, %v938
        %940 = vmatmul.f32.gmra.mxu0 %v351
        %v941 = vpop.f32.mrf.mxu0
        %v942 = vadd.f32 %v829, %v941
        %943 = vmatmul.f32.gmra.mxu0 %v352
        %v944 = vpop.f32.mrf.mxu0
        %v945 = vadd.f32 %v832, %v944
        %946 = vmatmul.f32.gmra.mxu0 %v353
        %v947 = vpop.f32.mrf.mxu0
        %v948 = vadd.f32 %v835, %v947
        %949 = vmatmul.f32.gmra.mxu0 %v354
        %v950 = vpop.f32.mrf.mxu0
        %v951 = vadd.f32 %v838, %v950
        %952 = vmatmul.f32.gmra.mxu0 %v355
        %v953 = vpop.f32.mrf.mxu0
        %v954 = vadd.f32 %v841, %v953
        %955 = vmatmul.f32.gmra.mxu0 %v356
        %v956 = vpop.f32.mrf.mxu0
        %v957 = vadd.f32 %v844, %v956
        %958 = vmatmul.f32.gmra.mxu0 %v357
        %v959 = vpop.f32.mrf.mxu0
        %v960 = vadd.f32 %v847, %v959
        %961 = vmatmul.f32.gmra.mxu0 %v358
        %v962 = vpop.f32.mrf.mxu0
        %v963 = vadd.f32 %v850, %v962
        %964 = vmatmul.f32.gmra.mxu0 %v359
        %v965 = vpop.f32.mrf.mxu0
        %v966 = vadd.f32 %v853, %v965
        %967 = vmatmul.f32.gmra.mxu0 %v360
        %v968 = vpop.f32.mrf.mxu0
        %v969 = vadd.f32 %v856, %v968
        %970 = vmatmul.f32.gmra.mxu0 %v361
        %v971 = vpop.f32.mrf.mxu0
        %v972 = vadd.f32 %v859, %v971
        %973 = vmatmul.f32.gmra.mxu0 %v362
        %v974 = vpop.f32.mrf.mxu0
        %v975 = vadd.f32 %v862, %v974
        %976 = vmatmul.f32.gmra.mxu0 %v363
        %v977 = vpop.f32.mrf.mxu0
        %v978 = vadd.f32 %v865, %v977
        %979 = vmatmul.f32.gmra.mxu0 %v364
        %v980 = vpop.f32.mrf.mxu0
        %v981 = vadd.f32 %v868, %v980
        %982 = vmatmul.f32.gmra.mxu0 %v365
        %v983 = vpop.f32.mrf.mxu0
        %v984 = vadd.f32 %v871, %v983
        %985 = vmatmul.f32.gmra.mxu0 %v366
        %v986 = vpop.f32.mrf.mxu0
        %v987 = vadd.f32 %v874, %v986
        %988 = vmatmul.f32.gmra.mxu0 %v367
        %v989 = vpop.f32.mrf.mxu0
        %v990 = vadd.f32 %v877, %v989
        %991 = vdwg.mxu0
        %992 = vmatpush.msra.mxu0 %v475
        %993 = vmatpush.msra.mxu0 %v474
        %994 = vmatpush.msra.mxu0 %v473
        %995 = vmatpush.msra.mxu0 %v472
        %996 = vmatpush.msra.mxu0 %v471
        %997 = vmatpush.msra.mxu0 %v470
        %998 = vmatpush.msra.mxu0 %v469
        %999 = vmatpush.msra.mxu0 %v468
        %1000 = vmatpush.msra.mxu0 %v467
        %1001 = vmatpush.msra.mxu0 %v466
        %1002 = vmatpush.msra.mxu0 %v465
        %1003 = vmatpush.msra.mxu0 %v464
        %1004 = vmatpush.msra.mxu0 %v463
        %1005 = vmatpush.msra.mxu0 %v462
        %1006 = vmatpush.msra.mxu0 %v461
        %1007 = vmatpush.msra.mxu0 %v460
        %1008 = vmatmul.f32.gmra.mxu0 %v372
        %v1009 = vpop.f32.mrf.mxu0
        %v1010 = vadd.f32 %v897, %v1009
        %1011 = vmatmul.f32.gmra.mxu0 %v373
        %v1012 = vpop.f32.mrf.mxu0
        %v1013 = vadd.f32 %v900, %v1012
        %1014 = vmatmul.f32.gmra.mxu0 %v374
        %v1015 = vpop.f32.mrf.mxu0
        %v1016 = vadd.f32 %v903, %v1015
        %1017 = vmatmul.f32.gmra.mxu0 %v375
        %v1018 = vpop.f32.mrf.mxu0
        %v1019 = vadd.f32 %v906, %v1018
        %1020 = vmatmul.f32.gmra.mxu0 %v376
        %v1021 = vpop.f32.mrf.mxu0
        %v1022 = vadd.f32 %v909, %v1021
        %1023 = vmatmul.f32.gmra.mxu0 %v377
        %v1024 = vpop.f32.mrf.mxu0
        %v1025 = vadd.f32 %v912, %v1024
        %1026 = vmatmul.f32.gmra.mxu0 %v378
        %v1027 = vpop.f32.mrf.mxu0
        %v1028 = vadd.f32 %v915, %v1027
        %1029 = vmatmul.f32.gmra.mxu0 %v379
        %v1030 = vpop.f32.mrf.mxu0
        %v1031 = vadd.f32 %v918, %v1030
        %1032 = vmatmul.f32.gmra.mxu0 %v380
        %v1033 = vpop.f32.mrf.mxu0
        %v1034 = vadd.f32 %v921, %v1033
        %1035 = vmatmul.f32.gmra.mxu0 %v381
        %v1036 = vpop.f32.mrf.mxu0
        %v1037 = vadd.f32 %v924, %v1036
        %1038 = vmatmul.f32.gmra.mxu0 %v382
        %v1039 = vpop.f32.mrf.mxu0
        %v1040 = vadd.f32 %v927, %v1039
        %1041 = vmatmul.f32.gmra.mxu0 %v383
        %v1042 = vpop.f32.mrf.mxu0
        %v1043 = vadd.f32 %v930, %v1042
        %1044 = vmatmul.f32.gmra.mxu0 %v384
        %v1045 = vpop.f32.mrf.mxu0
        %v1046 = vadd.f32 %v933, %v1045
        %1047 = vmatmul.f32.gmra.mxu0 %v385
        %v1048 = vpop.f32.mrf.mxu0
        %v1049 = vadd.f32 %v936, %v1048
        %1050 = vmatmul.f32.gmra.mxu0 %v386
        %v1051 = vpop.f32.mrf.mxu0
        %v1052 = vadd.f32 %v939, %v1051
        %1053 = vmatmul.f32.gmra.mxu0 %v387
        %v1054 = vpop.f32.mrf.mxu0
        %v1055 = vadd.f32 %v942, %v1054
        %1056 = vmatmul.f32.gmra.mxu0 %v388
        %v1057 = vpop.f32.mrf.mxu0
        %v1058 = vadd.f32 %v945, %v1057
        %1059 = vmatmul.f32.gmra.mxu0 %v389
        %v1060 = vpop.f32.mrf.mxu0
        %v1061 = vadd.f32 %v948, %v1060
        %1062 = vmatmul.f32.gmra.mxu0 %v390
        %v1063 = vpop.f32.mrf.mxu0
        %v1064 = vadd.f32 %v951, %v1063
        %1065 = vmatmul.f32.gmra.mxu0 %v391
        %v1066 = vpop.f32.mrf.mxu0
        %v1067 = vadd.f32 %v954, %v1066
        %1068 = vmatmul.f32.gmra.mxu0 %v392
        %v1069 = vpop.f32.mrf.mxu0
        %v1070 = vadd.f32 %v957, %v1069
        %1071 = vmatmul.f32.gmra.mxu0 %v393
        %v1072 = vpop.f32.mrf.mxu0
        %v1073 = vadd.f32 %v960, %v1072
        %1074 = vmatmul.f32.gmra.mxu0 %v394
        %v1075 = vpop.f32.mrf.mxu0
        %v1076 = vadd.f32 %v963, %v1075
        %1077 = vmatmul.f32.gmra.mxu0 %v395
        %v1078 = vpop.f32.mrf.mxu0
        %v1079 = vadd.f32 %v966, %v1078
        %1080 = vmatmul.f32.gmra.mxu0 %v396
        %v1081 = vpop.f32.mrf.mxu0
        %v1082 = vadd.f32 %v969, %v1081
        %1083 = vmatmul.f32.gmra.mxu0 %v397
        %v1084 = vpop.f32.mrf.mxu0
        %v1085 = vadd.f32 %v972, %v1084
        %1086 = vmatmul.f32.gmra.mxu0 %v398
        %v1087 = vpop.f32.mrf.mxu0
        %v1088 = vadd.f32 %v975, %v1087
        %1089 = vmatmul.f32.gmra.mxu0 %v399
        %v1090 = vpop.f32.mrf.mxu0
        %v1091 = vadd.f32 %v978, %v1090
        %1092 = vmatmul.f32.gmra.mxu0 %v400
        %v1093 = vpop.f32.mrf.mxu0
        %v1094 = vadd.f32 %v981, %v1093
        %1095 = vmatmul.f32.gmra.mxu0 %v401
        %v1096 = vpop.f32.mrf.mxu0
        %v1097 = vadd.f32 %v984, %v1096
        %1098 = vmatmul.f32.gmra.mxu0 %v402
        %v1099 = vpop.f32.mrf.mxu0
        %v1100 = vadd.f32 %v987, %v1099
        %1101 = vmatmul.f32.gmra.mxu0 %v403
        %v1102 = vpop.f32.mrf.mxu0
        %v1103 = vadd.f32 %v990, %v1102
        %1104 = vdwg.mxu0
        %1105 = vmatpush.msra.mxu0 %v491
        %1106 = vmatpush.msra.mxu0 %v490
        %1107 = vmatpush.msra.mxu0 %v489
        %1108 = vmatpush.msra.mxu0 %v488
        %1109 = vmatpush.msra.mxu0 %v487
        %1110 = vmatpush.msra.mxu0 %v486
        %1111 = vmatpush.msra.mxu0 %v485
        %1112 = vmatpush.msra.mxu0 %v484
        %1113 = vmatpush.msra.mxu0 %v483
        %1114 = vmatpush.msra.mxu0 %v482
        %1115 = vmatpush.msra.mxu0 %v481
        %1116 = vmatpush.msra.mxu0 %v480
        %1117 = vmatpush.msra.mxu0 %v479
        %1118 = vmatpush.msra.mxu0 %v478
        %1119 = vmatpush.msra.mxu0 %v477
        %1120 = vmatpush.msra.mxu0 %v476
        %1121 = vmatmul.f32.gmra.mxu0 %v408
        %v1122 = vpop.f32.mrf.mxu0
        %v1123 = vadd.f32 %v1010, %v1122
        %1124 = vmatmul.f32.gmra.mxu0 %v409
        %v1125 = vpop.f32.mrf.mxu0
        %v1126 = vadd.f32 %v1013, %v1125
        %1127 = vmatmul.f32.gmra.mxu0 %v410
        %v1128 = vpop.f32.mrf.mxu0
        %v1129 = vadd.f32 %v1016, %v1128
        %1130 = vmatmul.f32.gmra.mxu0 %v411
        %v1131 = vpop.f32.mrf.mxu0
        %v1132 = vadd.f32 %v1019, %v1131
        %1133 = vmatmul.f32.gmra.mxu0 %v412
        %v1134 = vpop.f32.mrf.mxu0
        %v1135 = vadd.f32 %v1022, %v1134
        %1136 = vmatmul.f32.gmra.mxu0 %v413
        %v1137 = vpop.f32.mrf.mxu0
        %v1138 = vadd.f32 %v1025, %v1137
        %1139 = vmatmul.f32.gmra.mxu0 %v414
        %v1140 = vpop.f32.mrf.mxu0
        %v1141 = vadd.f32 %v1028, %v1140
        %1142 = vmatmul.f32.gmra.mxu0 %v415
        %v1143 = vpop.f32.mrf.mxu0
        %v1144 = vadd.f32 %v1031, %v1143
        %1145 = vmatmul.f32.gmra.mxu0 %v416
        %v1146 = vpop.f32.mrf.mxu0
        %v1147 = vadd.f32 %v1034, %v1146
        %1148 = vmatmul.f32.gmra.mxu0 %v417
        %v1149 = vpop.f32.mrf.mxu0
        %v1150 = vadd.f32 %v1037, %v1149
        %1151 = vmatmul.f32.gmra.mxu0 %v418
        %v1152 = vpop.f32.mrf.mxu0
        %v1153 = vadd.f32 %v1040, %v1152
        %1154 = vmatmul.f32.gmra.mxu0 %v419
        %v1155 = vpop.f32.mrf.mxu0
        %v1156 = vadd.f32 %v1043, %v1155
        %1157 = vmatmul.f32.gmra.mxu0 %v420
        %v1158 = vpop.f32.mrf.mxu0
        %v1159 = vadd.f32 %v1046, %v1158
        %1160 = vmatmul.f32.gmra.mxu0 %v421
        %v1161 = vpop.f32.mrf.mxu0
        %v1162 = vadd.f32 %v1049, %v1161
        %1163 = vmatmul.f32.gmra.mxu0 %v422
        %v1164 = vpop.f32.mrf.mxu0
        %v1165 = vadd.f32 %v1052, %v1164
        %1166 = vmatmul.f32.gmra.mxu0 %v423
        %v1167 = vpop.f32.mrf.mxu0
        %v1168 = vadd.f32 %v1055, %v1167
        %1169 = vmatmul.f32.gmra.mxu0 %v424
        %v1170 = vpop.f32.mrf.mxu0
        %v1171 = vadd.f32 %v1058, %v1170
        %1172 = vmatmul.f32.gmra.mxu0 %v425
        %v1173 = vpop.f32.mrf.mxu0
        %v1174 = vadd.f32 %v1061, %v1173
        %1175 = vmatmul.f32.gmra.mxu0 %v426
        %v1176 = vpop.f32.mrf.mxu0
        %v1177 = vadd.f32 %v1064, %v1176
        %1178 = vmatmul.f32.gmra.mxu0 %v427
        %v1179 = vpop.f32.mrf.mxu0
        %v1180 = vadd.f32 %v1067, %v1179
        %1181 = vmatmul.f32.gmra.mxu0 %v428
        %v1182 = vpop.f32.mrf.mxu0
        %v1183 = vadd.f32 %v1070, %v1182
        %1184 = vmatmul.f32.gmra.mxu0 %v429
        %v1185 = vpop.f32.mrf.mxu0
        %v1186 = vadd.f32 %v1073, %v1185
        %1187 = vmatmul.f32.gmra.mxu0 %v430
        %v1188 = vpop.f32.mrf.mxu0
        %v1189 = vadd.f32 %v1076, %v1188
        %1190 = vmatmul.f32.gmra.mxu0 %v431
        %v1191 = vpop.f32.mrf.mxu0
        %v1192 = vadd.f32 %v1079, %v1191
        %1193 = vmatmul.f32.gmra.mxu0 %v432
        %v1194 = vpop.f32.mrf.mxu0
        %v1195 = vadd.f32 %v1082, %v1194
        %1196 = vmatmul.f32.gmra.mxu0 %v433
        %v1197 = vpop.f32.mrf.mxu0
        %v1198 = vadd.f32 %v1085, %v1197
        %1199 = vmatmul.f32.gmra.mxu0 %v434
        %v1200 = vpop.f32.mrf.mxu0
        %v1201 = vadd.f32 %v1088, %v1200
        %1202 = vmatmul.f32.gmra.mxu0 %v435
        %v1203 = vpop.f32.mrf.mxu0
        %v1204 = vadd.f32 %v1091, %v1203
        %1205 = vmatmul.f32.gmra.mxu0 %v436
        %v1206 = vpop.f32.mrf.mxu0
        %v1207 = vadd.f32 %v1094, %v1206
        %1208 = vmatmul.f32.gmra.mxu0 %v437
        %v1209 = vpop.f32.mrf.mxu0
        %v1210 = vadd.f32 %v1097, %v1209
        %1211 = vmatmul.f32.gmra.mxu0 %v438
        %v1212 = vpop.f32.mrf.mxu0
        %v1213 = vadd.f32 %v1100, %v1212
        %1214 = vmatmul.f32.gmra.mxu0 %v439
        %v1215 = vpop.f32.mrf.mxu0
        %v1216 = vadd.f32 %v1103, %v1215
        %1217 = vdwg.mxu0
        %v1218 = vld [vmem:[#allocation6 + $0x300] sm:$0xff]
        %v1219 = vld [vmem:[#allocation6 + $0x308] sm:$0xff]
        %v1220 = vld [vmem:[#allocation6 + $0x310] sm:$0xff]
        %v1221 = vld [vmem:[#allocation6 + $0x318] sm:$0xff]
        %v1222 = vld [vmem:[#allocation6 + $0x320] sm:$0xff]
        %v1223 = vld [vmem:[#allocation6 + $0x328] sm:$0xff]
        %v1224 = vld [vmem:[#allocation6 + $0x330] sm:$0xff]
        %v1225 = vld [vmem:[#allocation6 + $0x338] sm:$0xff]
        %v1226 = vld [vmem:[#allocation6 + $0x340] sm:$0xff]
        %v1227 = vld [vmem:[#allocation6 + $0x348] sm:$0xff]
        %v1228 = vld [vmem:[#allocation6 + $0x350] sm:$0xff]
        %v1229 = vld [vmem:[#allocation6 + $0x358] sm:$0xff]
        %v1230 = vld [vmem:[#allocation6 + $0x360] sm:$0xff]
        %v1231 = vld [vmem:[#allocation6 + $0x368] sm:$0xff]
        %v1232 = vld [vmem:[#allocation6 + $0x370] sm:$0xff]
        %v1233 = vld [vmem:[#allocation6 + $0x378] sm:$0xff]
        %v1234 = vld [vmem:[#allocation6 + $0x380] sm:$0xff]
        %v1235 = vld [vmem:[#allocation6 + $0x388] sm:$0xff]
        %v1236 = vld [vmem:[#allocation6 + $0x390] sm:$0xff]
        %v1237 = vld [vmem:[#allocation6 + $0x398] sm:$0xff]
        %v1238 = vld [vmem:[#allocation6 + $0x3a0] sm:$0xff]
        %v1239 = vld [vmem:[#allocation6 + $0x3a8] sm:$0xff]
        %v1240 = vld [vmem:[#allocation6 + $0x3b0] sm:$0xff]
        %v1241 = vld [vmem:[#allocation6 + $0x3b8] sm:$0xff]
        %v1242 = vld [vmem:[#allocation6 + $0x3c0] sm:$0xff]
        %v1243 = vld [vmem:[#allocation6 + $0x3c8] sm:$0xff]
        %v1244 = vld [vmem:[#allocation6 + $0x3d0] sm:$0xff]
        %v1245 = vld [vmem:[#allocation6 + $0x3d8] sm:$0xff]
        %v1246 = vld [vmem:[#allocation6 + $0x3e0] sm:$0xff]
        %v1247 = vld [vmem:[#allocation6 + $0x3e8] sm:$0xff]
        %v1248 = vld [vmem:[#allocation6 + $0x3f0] sm:$0xff]
        %v1249 = vld [vmem:[#allocation6 + $0x3f8] sm:$0xff]
        %v1250 = vld [vmem:[#allocation6 + $0x400] sm:$0xff]
        %v1251 = vld [vmem:[#allocation6 + $0x408] sm:$0xff]
        %v1252 = vld [vmem:[#allocation6 + $0x410] sm:$0xff]
        %v1253 = vld [vmem:[#allocation6 + $0x418] sm:$0xff]
        %v1254 = vld [vmem:[#allocation6 + $0x420] sm:$0xff]
        %v1255 = vld [vmem:[#allocation6 + $0x428] sm:$0xff]
        %v1256 = vld [vmem:[#allocation6 + $0x430] sm:$0xff]
        %v1257 = vld [vmem:[#allocation6 + $0x438] sm:$0xff]
        %v1258 = vld [vmem:[#allocation6 + $0x440] sm:$0xff]
        %v1259 = vld [vmem:[#allocation6 + $0x448] sm:$0xff]
        %v1260 = vld [vmem:[#allocation6 + $0x450] sm:$0xff]
        %v1261 = vld [vmem:[#allocation6 + $0x458] sm:$0xff]
        %v1262 = vld [vmem:[#allocation6 + $0x460] sm:$0xff]
        %v1263 = vld [vmem:[#allocation6 + $0x468] sm:$0xff]
        %v1264 = vld [vmem:[#allocation6 + $0x470] sm:$0xff]
        %v1265 = vld [vmem:[#allocation6 + $0x478] sm:$0xff]
        %1266 = vmatpush.msra.mxu0 %v1233
        %1267 = vmatpush.msra.mxu0 %v1232
        %1268 = vmatpush.msra.mxu0 %v1231
        %1269 = vmatpush.msra.mxu0 %v1230
        %1270 = vmatpush.msra.mxu0 %v1229
        %1271 = vmatpush.msra.mxu0 %v1228
        %1272 = vmatpush.msra.mxu0 %v1227
        %1273 = vmatpush.msra.mxu0 %v1226
        %1274 = vmatpush.msra.mxu0 %v1225
        %1275 = vmatpush.msra.mxu0 %v1224
        %1276 = vmatpush.msra.mxu0 %v1223
        %1277 = vmatpush.msra.mxu0 %v1222
        %1278 = vmatpush.msra.mxu0 %v1221
        %1279 = vmatpush.msra.mxu0 %v1220
        %1280 = vmatpush.msra.mxu0 %v1219
        %1281 = vmatpush.msra.mxu0 %v1218
        %1282 = vmatmul.f32.gmra.mxu0 %v340
        %v1283 = vpop.f32.mrf.mxu0
        %v1284 = vadd.f32 0.0, %v1283
        %1285 = vmatmul.f32.gmra.mxu0 %v341
        %v1286 = vpop.f32.mrf.mxu0
        %v1287 = vadd.f32 0.0, %v1286
        %1288 = vmatmul.f32.gmra.mxu0 %v342
        %v1289 = vpop.f32.mrf.mxu0
        %v1290 = vadd.f32 0.0, %v1289
        %1291 = vmatmul.f32.gmra.mxu0 %v343
        %v1292 = vpop.f32.mrf.mxu0
        %v1293 = vadd.f32 0.0, %v1292
        %1294 = vmatmul.f32.gmra.mxu0 %v344
        %v1295 = vpop.f32.mrf.mxu0
        %v1296 = vadd.f32 0.0, %v1295
        %1297 = vmatmul.f32.gmra.mxu0 %v345
        %v1298 = vpop.f32.mrf.mxu0
        %v1299 = vadd.f32 0.0, %v1298
        %1300 = vmatmul.f32.gmra.mxu0 %v346
        %v1301 = vpop.f32.mrf.mxu0
        %v1302 = vadd.f32 0.0, %v1301
        %1303 = vmatmul.f32.gmra.mxu0 %v347
        %v1304 = vpop.f32.mrf.mxu0
        %v1305 = vadd.f32 0.0, %v1304
        %1306 = vmatmul.f32.gmra.mxu0 %v348
        %v1307 = vpop.f32.mrf.mxu0
        %v1308 = vadd.f32 0.0, %v1307
        %1309 = vmatmul.f32.gmra.mxu0 %v349
        %v1310 = vpop.f32.mrf.mxu0
        %v1311 = vadd.f32 0.0, %v1310
        %1312 = vmatmul.f32.gmra.mxu0 %v350
        %v1313 = vpop.f32.mrf.mxu0
        %v1314 = vadd.f32 0.0, %v1313
        %1315 = vmatmul.f32.gmra.mxu0 %v351
        %v1316 = vpop.f32.mrf.mxu0
        %v1317 = vadd.f32 0.0, %v1316
        %1318 = vmatmul.f32.gmra.mxu0 %v352
        %v1319 = vpop.f32.mrf.mxu0
        %v1320 = vadd.f32 0.0, %v1319
        %1321 = vmatmul.f32.gmra.mxu0 %v353
        %v1322 = vpop.f32.mrf.mxu0
        %v1323 = vadd.f32 0.0, %v1322
        %1324 = vmatmul.f32.gmra.mxu0 %v354
        %v1325 = vpop.f32.mrf.mxu0
        %v1326 = vadd.f32 0.0, %v1325
        %1327 = vmatmul.f32.gmra.mxu0 %v355
        %v1328 = vpop.f32.mrf.mxu0
        %v1329 = vadd.f32 0.0, %v1328
        %1330 = vmatmul.f32.gmra.mxu0 %v356
        %v1331 = vpop.f32.mrf.mxu0
        %v1332 = vadd.f32 0.0, %v1331
        %1333 = vmatmul.f32.gmra.mxu0 %v357
        %v1334 = vpop.f32.mrf.mxu0
        %v1335 = vadd.f32 0.0, %v1334
        %1336 = vmatmul.f32.gmra.mxu0 %v358
        %v1337 = vpop.f32.mrf.mxu0
        %v1338 = vadd.f32 0.0, %v1337
        %1339 = vmatmul.f32.gmra.mxu0 %v359
        %v1340 = vpop.f32.mrf.mxu0
        %v1341 = vadd.f32 0.0, %v1340
        %1342 = vmatmul.f32.gmra.mxu0 %v360
        %v1343 = vpop.f32.mrf.mxu0
        %v1344 = vadd.f32 0.0, %v1343
        %1345 = vmatmul.f32.gmra.mxu0 %v361
        %v1346 = vpop.f32.mrf.mxu0
        %v1347 = vadd.f32 0.0, %v1346
        %1348 = vmatmul.f32.gmra.mxu0 %v362
        %v1349 = vpop.f32.mrf.mxu0
        %v1350 = vadd.f32 0.0, %v1349
        %1351 = vmatmul.f32.gmra.mxu0 %v363
        %v1352 = vpop.f32.mrf.mxu0
        %v1353 = vadd.f32 0.0, %v1352
        %1354 = vmatmul.f32.gmra.mxu0 %v364
        %v1355 = vpop.f32.mrf.mxu0
        %v1356 = vadd.f32 0.0, %v1355
        %1357 = vmatmul.f32.gmra.mxu0 %v365
        %v1358 = vpop.f32.mrf.mxu0
        %v1359 = vadd.f32 0.0, %v1358
        %1360 = vmatmul.f32.gmra.mxu0 %v366
        %v1361 = vpop.f32.mrf.mxu0
        %v1362 = vadd.f32 0.0, %v1361
        %1363 = vmatmul.f32.gmra.mxu0 %v367
        %v1364 = vpop.f32.mrf.mxu0
        %v1365 = vadd.f32 0.0, %v1364
        %1366 = vmatmul.f32.gmra.mxu0 %v368
        %v1367 = vpop.f32.mrf.mxu0
        %v1368 = vadd.f32 0.0, %v1367
        %1369 = vmatmul.f32.gmra.mxu0 %v369
        %v1370 = vpop.f32.mrf.mxu0
        %v1371 = vadd.f32 0.0, %v1370
        %1372 = vmatmul.f32.gmra.mxu0 %v370
        %v1373 = vpop.f32.mrf.mxu0
        %v1374 = vadd.f32 0.0, %v1373
        %1375 = vmatmul.f32.gmra.mxu0 %v371
        %v1376 = vpop.f32.mrf.mxu0
        %v1377 = vadd.f32 0.0, %v1376
        %1378 = vdwg.mxu0
        %1379 = vmatpush.msra.mxu0 %v1249
        %1380 = vmatpush.msra.mxu0 %v1248
        %1381 = vmatpush.msra.mxu0 %v1247
        %1382 = vmatpush.msra.mxu0 %v1246
        %1383 = vmatpush.msra.mxu0 %v1245
        %1384 = vmatpush.msra.mxu0 %v1244
        %1385 = vmatpush.msra.mxu0 %v1243
        %1386 = vmatpush.msra.mxu0 %v1242
        %1387 = vmatpush.msra.mxu0 %v1241
        %1388 = vmatpush.msra.mxu0 %v1240
        %1389 = vmatpush.msra.mxu0 %v1239
        %1390 = vmatpush.msra.mxu0 %v1238
        %1391 = vmatpush.msra.mxu0 %v1237
        %1392 = vmatpush.msra.mxu0 %v1236
        %1393 = vmatpush.msra.mxu0 %v1235
        %1394 = vmatpush.msra.mxu0 %v1234
        %1395 = vmatmul.f32.gmra.mxu0 %v376
        %v1396 = vpop.f32.mrf.mxu0
        %v1397 = vadd.f32 %v1284, %v1396
        %1398 = vmatmul.f32.gmra.mxu0 %v377
        %v1399 = vpop.f32.mrf.mxu0
        %v1400 = vadd.f32 %v1287, %v1399
        %1401 = vmatmul.f32.gmra.mxu0 %v378
        %v1402 = vpop.f32.mrf.mxu0
        %v1403 = vadd.f32 %v1290, %v1402
        %1404 = vmatmul.f32.gmra.mxu0 %v379
        %v1405 = vpop.f32.mrf.mxu0
        %v1406 = vadd.f32 %v1293, %v1405
        %1407 = vmatmul.f32.gmra.mxu0 %v380
        %v1408 = vpop.f32.mrf.mxu0
        %v1409 = vadd.f32 %v1296, %v1408
        %1410 = vmatmul.f32.gmra.mxu0 %v381
        %v1411 = vpop.f32.mrf.mxu0
        %v1412 = vadd.f32 %v1299, %v1411
        %1413 = vmatmul.f32.gmra.mxu0 %v382
        %v1414 = vpop.f32.mrf.mxu0
        %v1415 = vadd.f32 %v1302, %v1414
        %1416 = vmatmul.f32.gmra.mxu0 %v383
        %v1417 = vpop.f32.mrf.mxu0
        %v1418 = vadd.f32 %v1305, %v1417
        %1419 = vmatmul.f32.gmra.mxu0 %v384
        %v1420 = vpop.f32.mrf.mxu0
        %v1421 = vadd.f32 %v1308, %v1420
        %1422 = vmatmul.f32.gmra.mxu0 %v385
        %v1423 = vpop.f32.mrf.mxu0
        %v1424 = vadd.f32 %v1311, %v1423
        %1425 = vmatmul.f32.gmra.mxu0 %v386
        %v1426 = vpop.f32.mrf.mxu0
        %v1427 = vadd.f32 %v1314, %v1426
        %1428 = vmatmul.f32.gmra.mxu0 %v387
        %v1429 = vpop.f32.mrf.mxu0
        %v1430 = vadd.f32 %v1317, %v1429
        %1431 = vmatmul.f32.gmra.mxu0 %v388
        %v1432 = vpop.f32.mrf.mxu0
        %v1433 = vadd.f32 %v1320, %v1432
        %1434 = vmatmul.f32.gmra.mxu0 %v389
        %v1435 = vpop.f32.mrf.mxu0
        %v1436 = vadd.f32 %v1323, %v1435
        %1437 = vmatmul.f32.gmra.mxu0 %v390
        %v1438 = vpop.f32.mrf.mxu0
        %v1439 = vadd.f32 %v1326, %v1438
        %1440 = vmatmul.f32.gmra.mxu0 %v391
        %v1441 = vpop.f32.mrf.mxu0
        %v1442 = vadd.f32 %v1329, %v1441
        %1443 = vmatmul.f32.gmra.mxu0 %v392
        %v1444 = vpop.f32.mrf.mxu0
        %v1445 = vadd.f32 %v1332, %v1444
        %1446 = vmatmul.f32.gmra.mxu0 %v393
        %v1447 = vpop.f32.mrf.mxu0
        %v1448 = vadd.f32 %v1335, %v1447
        %1449 = vmatmul.f32.gmra.mxu0 %v394
        %v1450 = vpop.f32.mrf.mxu0
        %v1451 = vadd.f32 %v1338, %v1450
        %1452 = vmatmul.f32.gmra.mxu0 %v395
        %v1453 = vpop.f32.mrf.mxu0
        %v1454 = vadd.f32 %v1341, %v1453
        %1455 = vmatmul.f32.gmra.mxu0 %v396
        %v1456 = vpop.f32.mrf.mxu0
        %v1457 = vadd.f32 %v1344, %v1456
        %1458 = vmatmul.f32.gmra.mxu0 %v397
        %v1459 = vpop.f32.mrf.mxu0
        %v1460 = vadd.f32 %v1347, %v1459
        %1461 = vmatmul.f32.gmra.mxu0 %v398
        %v1462 = vpop.f32.mrf.mxu0
        %v1463 = vadd.f32 %v1350, %v1462
        %1464 = vmatmul.f32.gmra.mxu0 %v399
        %v1465 = vpop.f32.mrf.mxu0
        %v1466 = vadd.f32 %v1353, %v1465
        %1467 = vmatmul.f32.gmra.mxu0 %v400
        %v1468 = vpop.f32.mrf.mxu0
        %v1469 = vadd.f32 %v1356, %v1468
        %1470 = vmatmul.f32.gmra.mxu0 %v401
        %v1471 = vpop.f32.mrf.mxu0
        %v1472 = vadd.f32 %v1359, %v1471
        %1473 = vmatmul.f32.gmra.mxu0 %v402
        %v1474 = vpop.f32.mrf.mxu0
        %v1475 = vadd.f32 %v1362, %v1474
        %1476 = vmatmul.f32.gmra.mxu0 %v403
        %v1477 = vpop.f32.mrf.mxu0
        %v1478 = vadd.f32 %v1365, %v1477
        %1479 = vmatmul.f32.gmra.mxu0 %v404
        %v1480 = vpop.f32.mrf.mxu0
        %v1481 = vadd.f32 %v1368, %v1480
        %1482 = vmatmul.f32.gmra.mxu0 %v405
        %v1483 = vpop.f32.mrf.mxu0
        %v1484 = vadd.f32 %v1371, %v1483
        %1485 = vmatmul.f32.gmra.mxu0 %v406
        %v1486 = vpop.f32.mrf.mxu0
        %v1487 = vadd.f32 %v1374, %v1486
        %1488 = vmatmul.f32.gmra.mxu0 %v407
        %v1489 = vpop.f32.mrf.mxu0
        %v1490 = vadd.f32 %v1377, %v1489
        %1491 = vdwg.mxu0
        %1492 = vmatpush.msra.mxu0 %v1265
        %1493 = vmatpush.msra.mxu0 %v1264
        %1494 = vmatpush.msra.mxu0 %v1263
        %1495 = vmatpush.msra.mxu0 %v1262
        %1496 = vmatpush.msra.mxu0 %v1261
        %1497 = vmatpush.msra.mxu0 %v1260
        %1498 = vmatpush.msra.mxu0 %v1259
        %1499 = vmatpush.msra.mxu0 %v1258
        %1500 = vmatpush.msra.mxu0 %v1257
        %1501 = vmatpush.msra.mxu0 %v1256
        %1502 = vmatpush.msra.mxu0 %v1255
        %1503 = vmatpush.msra.mxu0 %v1254
        %1504 = vmatpush.msra.mxu0 %v1253
        %1505 = vmatpush.msra.mxu0 %v1252
        %1506 = vmatpush.msra.mxu0 %v1251
        %1507 = vmatpush.msra.mxu0 %v1250
        %1508 = vmatmul.f32.gmra.mxu0 %v412
        %v1509 = vpop.f32.mrf.mxu0
        %v1510 = vadd.f32 %v1397, %v1509
        %1511 = vmatmul.f32.gmra.mxu0 %v413
        %v1512 = vpop.f32.mrf.mxu0
        %v1513 = vadd.f32 %v1400, %v1512
        %1514 = vmatmul.f32.gmra.mxu0 %v414
        %v1515 = vpop.f32.mrf.mxu0
        %v1516 = vadd.f32 %v1403, %v1515
        %1517 = vmatmul.f32.gmra.mxu0 %v415
        %v1518 = vpop.f32.mrf.mxu0
        %v1519 = vadd.f32 %v1406, %v1518
        %1520 = vmatmul.f32.gmra.mxu0 %v416
        %v1521 = vpop.f32.mrf.mxu0
        %v1522 = vadd.f32 %v1409, %v1521
        %1523 = vmatmul.f32.gmra.mxu0 %v417
        %v1524 = vpop.f32.mrf.mxu0
        %v1525 = vadd.f32 %v1412, %v1524
        %1526 = vmatmul.f32.gmra.mxu0 %v418
        %v1527 = vpop.f32.mrf.mxu0
        %v1528 = vadd.f32 %v1415, %v1527
        %1529 = vmatmul.f32.gmra.mxu0 %v419
        %v1530 = vpop.f32.mrf.mxu0
        %v1531 = vadd.f32 %v1418, %v1530
        %1532 = vmatmul.f32.gmra.mxu0 %v420
        %v1533 = vpop.f32.mrf.mxu0
        %v1534 = vadd.f32 %v1421, %v1533
        %1535 = vmatmul.f32.gmra.mxu0 %v421
        %v1536 = vpop.f32.mrf.mxu0
        %v1537 = vadd.f32 %v1424, %v1536
        %1538 = vmatmul.f32.gmra.mxu0 %v422
        %v1539 = vpop.f32.mrf.mxu0
        %v1540 = vadd.f32 %v1427, %v1539
        %1541 = vmatmul.f32.gmra.mxu0 %v423
        %v1542 = vpop.f32.mrf.mxu0
        %v1543 = vadd.f32 %v1430, %v1542
        %1544 = vmatmul.f32.gmra.mxu0 %v424
        %v1545 = vpop.f32.mrf.mxu0
        %v1546 = vadd.f32 %v1433, %v1545
        %1547 = vmatmul.f32.gmra.mxu0 %v425
        %v1548 = vpop.f32.mrf.mxu0
        %v1549 = vadd.f32 %v1436, %v1548
        %1550 = vmatmul.f32.gmra.mxu0 %v426
        %v1551 = vpop.f32.mrf.mxu0
        %v1552 = vadd.f32 %v1439, %v1551
        %1553 = vmatmul.f32.gmra.mxu0 %v427
        %v1554 = vpop.f32.mrf.mxu0
        %v1555 = vadd.f32 %v1442, %v1554
        %1556 = vmatmul.f32.gmra.mxu0 %v428
        %v1557 = vpop.f32.mrf.mxu0
        %v1558 = vadd.f32 %v1445, %v1557
        %1559 = vmatmul.f32.gmra.mxu0 %v429
        %v1560 = vpop.f32.mrf.mxu0
        %v1561 = vadd.f32 %v1448, %v1560
        %1562 = vmatmul.f32.gmra.mxu0 %v430
        %v1563 = vpop.f32.mrf.mxu0
        %v1564 = vadd.f32 %v1451, %v1563
        %1565 = vmatmul.f32.gmra.mxu0 %v431
        %v1566 = vpop.f32.mrf.mxu0
        %v1567 = vadd.f32 %v1454, %v1566
        %1568 = vmatmul.f32.gmra.mxu0 %v432
        %v1569 = vpop.f32.mrf.mxu0
        %v1570 = vadd.f32 %v1457, %v1569
        %1571 = vmatmul.f32.gmra.mxu0 %v433
        %v1572 = vpop.f32.mrf.mxu0
        %v1573 = vadd.f32 %v1460, %v1572
        %1574 = vmatmul.f32.gmra.mxu0 %v434
        %v1575 = vpop.f32.mrf.mxu0
        %v1576 = vadd.f32 %v1463, %v1575
        %1577 = vmatmul.f32.gmra.mxu0 %v435
        %v1578 = vpop.f32.mrf.mxu0
        %v1579 = vadd.f32 %v1466, %v1578
        %1580 = vmatmul.f32.gmra.mxu0 %v436
        %v1581 = vpop.f32.mrf.mxu0
        %v1582 = vadd.f32 %v1469, %v1581
        %1583 = vmatmul.f32.gmra.mxu0 %v437
        %v1584 = vpop.f32.mrf.mxu0
        %v1585 = vadd.f32 %v1472, %v1584
        %1586 = vmatmul.f32.gmra.mxu0 %v438
        %v1587 = vpop.f32.mrf.mxu0
        %v1588 = vadd.f32 %v1475, %v1587
        %1589 = vmatmul.f32.gmra.mxu0 %v439
        %v1590 = vpop.f32.mrf.mxu0
        %v1591 = vadd.f32 %v1478, %v1590
        %1592 = vmatmul.f32.gmra.mxu0 %v440
        %v1593 = vpop.f32.mrf.mxu0
        %v1594 = vadd.f32 %v1481, %v1593
        %1595 = vmatmul.f32.gmra.mxu0 %v441
        %v1596 = vpop.f32.mrf.mxu0
        %v1597 = vadd.f32 %v1484, %v1596
        %1598 = vmatmul.f32.gmra.mxu0 %v442
        %v1599 = vpop.f32.mrf.mxu0
        %v1600 = vadd.f32 %v1487, %v1599
        %1601 = vmatmul.f32.gmra.mxu0 %v443
        %v1602 = vpop.f32.mrf.mxu0
        %v1603 = vadd.f32 %v1490, %v1602
        %1604 = vdwg.mxu0
        %v1605 = vadd.f32 %v1123, %v1510
        %v1606 = vadd.f32 %v1126, %v1513
        %v1607 = vadd.f32 %v1129, %v1516
        %v1608 = vadd.f32 %v1132, %v1519
        %v1609 = vadd.f32 %v1135, %v1522
        %v1610 = vadd.f32 %v1138, %v1525
        %v1611 = vadd.f32 %v1141, %v1528
        %v1612 = vadd.f32 %v1144, %v1531
        %v1613 = vadd.f32 %v1147, %v1534
        %v1614 = vadd.f32 %v1150, %v1537
        %v1615 = vadd.f32 %v1153, %v1540
        %v1616 = vadd.f32 %v1156, %v1543
        %v1617 = vadd.f32 %v1159, %v1546
        %v1618 = vadd.f32 %v1162, %v1549
        %v1619 = vadd.f32 %v1165, %v1552
        %v1620 = vadd.f32 %v1168, %v1555
        %v1621 = vadd.f32 %v1171, %v1558
        %v1622 = vadd.f32 %v1174, %v1561
        %v1623 = vadd.f32 %v1177, %v1564
        %v1624 = vadd.f32 %v1180, %v1567
        %v1625 = vadd.f32 %v1183, %v1570
        %v1626 = vadd.f32 %v1186, %v1573
        %v1627 = vadd.f32 %v1189, %v1576
        %v1628 = vadd.f32 %v1192, %v1579
        %v1629 = vadd.f32 %v1195, %v1582
        %v1630 = vadd.f32 %v1198, %v1585
        %v1631 = vadd.f32 %v1201, %v1588
        %v1632 = vadd.f32 %v1204, %v1591
        %v1633 = vadd.f32 %v1207, %v1594
        %v1634 = vadd.f32 %v1210, %v1597
        %v1635 = vadd.f32 %v1213, %v1600
        %v1636 = vadd.f32 %v1216, %v1603
        %v1637 = vadd.f32 %v1605, %v1606
        %v1638 = vadd.f32 %v1637, %v1607
        %v1639 = vadd.f32 %v1638, %v1608
        %v1640 = vadd.f32 %v1639, %v1609
        %v1641 = vadd.f32 %v1640, %v1610
        %v1642 = vadd.f32 %v1641, %v1611
        %v1643 = vadd.f32 %v1642, %v1612
        %v1644 = vadd.f32 %v1643, %v1613
        %v1645 = vadd.f32 %v1644, %v1614
        %v1646 = vadd.f32 %v1645, %v1615
        %v1647 = vadd.f32 %v1646, %v1616
        %v1648 = vadd.f32 %v1647, %v1617
        %v1649 = vadd.f32 %v1648, %v1618
        %v1650 = vadd.f32 %v1649, %v1619
        %v1651 = vadd.f32 %v1650, %v1620
        %v1652 = vadd.f32 %v1651, %v1621
        %v1653 = vadd.f32 %v1652, %v1622
        %v1654 = vadd.f32 %v1653, %v1623
        %v1655 = vadd.f32 %v1654, %v1624
        %v1656 = vadd.f32 %v1655, %v1625
        %v1657 = vadd.f32 %v1656, %v1626
        %v1658 = vadd.f32 %v1657, %v1627
        %v1659 = vadd.f32 %v1658, %v1628
        %v1660 = vadd.f32 %v1659, %v1629
        %v1661 = vadd.f32 %v1660, %v1630
        %v1662 = vadd.f32 %v1661, %v1631
        %v1663 = vadd.f32 %v1662, %v1632
        %v1664 = vadd.f32 %v1663, %v1633
        %v1665 = vadd.f32 %v1664, %v1634
        %v1666 = vadd.f32 %v1665, %v1635
        %v1667 = vadd.f32 %v1666, %v1636
        %v1668 = vrot.slane %v1667, 4
        %v1669 = vadd.f32 %v1667, %v1668
        %v1670 = vrot.slane %v1669, 2
        %v1671 = vadd.f32 %v1669, %v1670
        %v1672 = vrot.slane %v1671, 1
        %v1673 = vadd.f32 %v1671, %v1672
        %v1674 = vmul.f32 %v1673, 0.00390625
        %v1675 = vmul.f32 %v1605, %v1605
        %v1676 = vmul.f32 %v1606, %v1606
        %v1677 = vmul.f32 %v1607, %v1607
        %v1678 = vmul.f32 %v1608, %v1608
        %v1679 = vmul.f32 %v1609, %v1609
        %v1680 = vmul.f32 %v1610, %v1610
        %v1681 = vmul.f32 %v1611, %v1611
        %v1682 = vmul.f32 %v1612, %v1612
        %v1683 = vmul.f32 %v1613, %v1613
        %v1684 = vmul.f32 %v1614, %v1614
        %v1685 = vmul.f32 %v1615, %v1615
        %v1686 = vmul.f32 %v1616, %v1616
        %v1687 = vmul.f32 %v1617, %v1617
        %v1688 = vmul.f32 %v1618, %v1618
        %v1689 = vmul.f32 %v1619, %v1619
        %v1690 = vmul.f32 %v1620, %v1620
        %v1691 = vmul.f32 %v1621, %v1621
        %v1692 = vmul.f32 %v1622, %v1622
        %v1693 = vmul.f32 %v1623, %v1623
        %v1694 = vmul.f32 %v1624, %v1624
        %v1695 = vmul.f32 %v1625, %v1625
        %v1696 = vmul.f32 %v1626, %v1626
        %v1697 = vmul.f32 %v1627, %v1627
        %v1698 = vmul.f32 %v1628, %v1628
        %v1699 = vmul.f32 %v1629, %v1629
        %v1700 = vmul.f32 %v1630, %v1630
        %v1701 = vmul.f32 %v1631, %v1631
        %v1702 = vmul.f32 %v1632, %v1632
        %v1703 = vmul.f32 %v1633, %v1633
        %v1704 = vmul.f32 %v1634, %v1634
        %v1705 = vmul.f32 %v1635, %v1635
        %v1706 = vmul.f32 %v1636, %v1636
        %v1707 = vadd.f32 %v1675, %v1676
        %v1708 = vadd.f32 %v1707, %v1677
        %v1709 = vadd.f32 %v1708, %v1678
        %v1710 = vadd.f32 %v1709, %v1679
        %v1711 = vadd.f32 %v1710, %v1680
        %v1712 = vadd.f32 %v1711, %v1681
        %v1713 = vadd.f32 %v1712, %v1682
        %v1714 = vadd.f32 %v1713, %v1683
        %v1715 = vadd.f32 %v1714, %v1684
        %v1716 = vadd.f32 %v1715, %v1685
        %v1717 = vadd.f32 %v1716, %v1686
        %v1718 = vadd.f32 %v1717, %v1687
        %v1719 = vadd.f32 %v1718, %v1688
        %v1720 = vadd.f32 %v1719, %v1689
        %v1721 = vadd.f32 %v1720, %v1690
        %v1722 = vadd.f32 %v1721, %v1691
        %v1723 = vadd.f32 %v1722, %v1692
        %v1724 = vadd.f32 %v1723, %v1693
        %v1725 = vadd.f32 %v1724, %v1694
        %v1726 = vadd.f32 %v1725, %v1695
        %v1727 = vadd.f32 %v1726, %v1696
        %v1728 = vadd.f32 %v1727, %v1697
        %v1729 = vadd.f32 %v1728, %v1698
        %v1730 = vadd.f32 %v1729, %v1699
        %v1731 = vadd.f32 %v1730, %v1700
        %v1732 = vadd.f32 %v1731, %v1701
        %v1733 = vadd.f32 %v1732, %v1702
        %v1734 = vadd.f32 %v1733, %v1703
        %v1735 = vadd.f32 %v1734, %v1704
        %v1736 = vadd.f32 %v1735, %v1705
        %v1737 = vadd.f32 %v1736, %v1706
        %v1738 = vrot.slane %v1737, 4
        %v1739 = vadd.f32 %v1737, %v1738
        %v1740 = vrot.slane %v1739, 2
        %v1741 = vadd.f32 %v1739, %v1740
        %v1742 = vrot.slane %v1741, 1
        %v1743 = vadd.f32 %v1741, %v1742
        %v1744 = vmul.f32 %v1743, 0.00390625
        %v1745 = vmul.f32 %v1674, %v1674
        %v1746 = vsub.f32 %v1744, %v1745
        %v1747 = vmax.f32 %v1746, 0.0
        %v1748 = vadd.f32 %v1747, 1e-05
        %v1749 = vrsqrt.pop %v1748
        %v1750 = vmul.f32 %v1749, %v1748
        %v1751 = vmul.f32 %v1750, %v1749
        %v1752 = vmul.f32 0.5, %v1751
        %v1753 = vsub.f32 1.5, %v1752
        %v1754 = vmul.f32 %v1749, %v1753
        %vm1755 = vweird.f32 %v1748
        %vm1756 = vweird.f32 %v1749
        %vm1757 = vmor %vm1755, %vm1756
        %v1758 = vsel %vm1757, %v1749, %v1754
        %v1759 = vsub.f32 %v1605, %v1674
        %v1760 = vsub.f32 %v1606, %v1674
        %v1761 = vsub.f32 %v1607, %v1674
        %v1762 = vsub.f32 %v1608, %v1674
        %v1763 = vsub.f32 %v1609, %v1674
        %v1764 = vsub.f32 %v1610, %v1674
        %v1765 = vsub.f32 %v1611, %v1674
        %v1766 = vsub.f32 %v1612, %v1674
        %v1767 = vsub.f32 %v1613, %v1674
        %v1768 = vsub.f32 %v1614, %v1674
        %v1769 = vsub.f32 %v1615, %v1674
        %v1770 = vsub.f32 %v1616, %v1674
        %v1771 = vsub.f32 %v1617, %v1674
        %v1772 = vsub.f32 %v1618, %v1674
        %v1773 = vsub.f32 %v1619, %v1674
        %v1774 = vsub.f32 %v1620, %v1674
        %v1775 = vsub.f32 %v1621, %v1674
        %v1776 = vsub.f32 %v1622, %v1674
        %v1777 = vsub.f32 %v1623, %v1674
        %v1778 = vsub.f32 %v1624, %v1674
        %v1779 = vsub.f32 %v1625, %v1674
        %v1780 = vsub.f32 %v1626, %v1674
        %v1781 = vsub.f32 %v1627, %v1674
        %v1782 = vsub.f32 %v1628, %v1674
        %v1783 = vsub.f32 %v1629, %v1674
        %v1784 = vsub.f32 %v1630, %v1674
        %v1785 = vsub.f32 %v1631, %v1674
        %v1786 = vsub.f32 %v1632, %v1674
        %v1787 = vsub.f32 %v1633, %v1674
        %v1788 = vsub.f32 %v1634, %v1674
        %v1789 = vsub.f32 %v1635, %v1674
        %v1790 = vsub.f32 %v1636, %v1674
        %v1791 = vmul.f32 %v1759, %v1758
        %v1792 = vmul.f32 %v1760, %v1758
        %v1793 = vmul.f32 %v1761, %v1758
        %v1794 = vmul.f32 %v1762, %v1758
        %v1795 = vmul.f32 %v1763, %v1758
        %v1796 = vmul.f32 %v1764, %v1758
        %v1797 = vmul.f32 %v1765, %v1758
        %v1798 = vmul.f32 %v1766, %v1758
        %v1799 = vmul.f32 %v1767, %v1758
        %v1800 = vmul.f32 %v1768, %v1758
        %v1801 = vmul.f32 %v1769, %v1758
        %v1802 = vmul.f32 %v1770, %v1758
        %v1803 = vmul.f32 %v1771, %v1758
        %v1804 = vmul.f32 %v1772, %v1758
        %v1805 = vmul.f32 %v1773, %v1758
        %v1806 = vmul.f32 %v1774, %v1758
        %v1807 = vmul.f32 %v1775, %v1758
        %v1808 = vmul.f32 %v1776, %v1758
        %v1809 = vmul.f32 %v1777, %v1758
        %v1810 = vmul.f32 %v1778, %v1758
        %v1811 = vmul.f32 %v1779, %v1758
        %v1812 = vmul.f32 %v1780, %v1758
        %v1813 = vmul.f32 %v1781, %v1758
        %v1814 = vmul.f32 %v1782, %v1758
        %v1815 = vmul.f32 %v1783, %v1758
        %v1816 = vmul.f32 %v1784, %v1758
        %v1817 = vmul.f32 %v1785, %v1758
        %v1818 = vmul.f32 %v1786, %v1758
        %v1819 = vmul.f32 %v1787, %v1758
        %v1820 = vmul.f32 %v1788, %v1758
        %v1821 = vmul.f32 %v1789, %v1758
        %v1822 = vmul.f32 %v1790, %v1758
        %v1823 = vmax.f32 %v1791, 0.0
        %v1824 = vmax.f32 %v1792, 0.0
        %v1825 = vmax.f32 %v1793, 0.0
        %v1826 = vmax.f32 %v1794, 0.0
        %v1827 = vmax.f32 %v1795, 0.0
        %v1828 = vmax.f32 %v1796, 0.0
        %v1829 = vmax.f32 %v1797, 0.0
        %v1830 = vmax.f32 %v1798, 0.0
        %v1831 = vmax.f32 %v1799, 0.0
        %v1832 = vmax.f32 %v1800, 0.0
        %v1833 = vmax.f32 %v1801, 0.0
        %v1834 = vmax.f32 %v1802, 0.0
        %v1835 = vmax.f32 %v1803, 0.0
        %v1836 = vmax.f32 %v1804, 0.0
        %v1837 = vmax.f32 %v1805, 0.0
        %v1838 = vmax.f32 %v1806, 0.0
        %v1839 = vmax.f32 %v1807, 0.0
        %v1840 = vmax.f32 %v1808, 0.0
        %v1841 = vmax.f32 %v1809, 0.0
        %v1842 = vmax.f32 %v1810, 0.0
        %v1843 = vmax.f32 %v1811, 0.0
        %v1844 = vmax.f32 %v1812, 0.0
        %v1845 = vmax.f32 %v1813, 0.0
        %v1846 = vmax.f32 %v1814, 0.0
        %v1847 = vmax.f32 %v1815, 0.0
        %v1848 = vmax.f32 %v1816, 0.0
        %v1849 = vmax.f32 %v1817, 0.0
        %v1850 = vmax.f32 %v1818, 0.0
        %v1851 = vmax.f32 %v1819, 0.0
        %v1852 = vmax.f32 %v1820, 0.0
        %v1853 = vmax.f32 %v1821, 0.0
        %v1854 = vmax.f32 %v1822, 0.0
        %1855 = vst [vmem:[%s256 + $0x1] sm:$0xff] %v1823
        %1856 = vst [vmem:[%s256 + $0x9] sm:$0xff] %v1824
        %1857 = vst [vmem:[%s256 + $0x19] sm:$0xff] %v1825
        %1858 = vst [vmem:[%s256 + $0x21] sm:$0xff] %v1826
        %1859 = vst [vmem:[%s256 + $0x31] sm:$0xff] %v1827
        %1860 = vst [vmem:[%s256 + $0x39] sm:$0xff] %v1828
        %1861 = vst [vmem:[%s256 + $0x49] sm:$0xff] %v1829
        %1862 = vst [vmem:[%s256 + $0x51] sm:$0xff] %v1830
        %1863 = vst [vmem:[%s256 + $0x61] sm:$0xff] %v1831
        %1864 = vst [vmem:[%s256 + $0x69] sm:$0xff] %v1832
        %1865 = vst [vmem:[%s256 + $0x79] sm:$0xff] %v1833
        %1866 = vst [vmem:[%s256 + $0x81] sm:$0xff] %v1834
        %1867 = vst [vmem:[%s256 + $0x91] sm:$0xff] %v1835
        %1868 = vst [vmem:[%s256 + $0x99] sm:$0xff] %v1836
        %1869 = vst [vmem:[%s256 + $0xa9] sm:$0xff] %v1837
        %1870 = vst [vmem:[%s256 + $0xb1] sm:$0xff] %v1838
        %1871 = vst [vmem:[%s256 + $0xc1] sm:$0xff] %v1839
        %1872 = vst [vmem:[%s256 + $0xc9] sm:$0xff] %v1840
        %1873 = vst [vmem:[%s256 + $0xd9] sm:$0xff] %v1841
        %1874 = vst [vmem:[%s256 + $0xe1] sm:$0xff] %v1842
        %1875 = vst [vmem:[%s256 + $0xf1] sm:$0xff] %v1843
        %1876 = vst [vmem:[%s256 + $0xf9] sm:$0xff] %v1844
        %1877 = vst [vmem:[%s256 + $0x109] sm:$0xff] %v1845
        %1878 = vst [vmem:[%s256 + $0x111] sm:$0xff] %v1846
        %1879 = vst [vmem:[%s256 + $0x121] sm:$0xff] %v1847
        %1880 = vst [vmem:[%s256 + $0x129] sm:$0xff] %v1848
        %1881 = vst [vmem:[%s256 + $0x139] sm:$0xff] %v1849
        %1882 = vst [vmem:[%s256 + $0x141] sm:$0xff] %v1850
        %1883 = vst [vmem:[%s256 + $0x151] sm:$0xff] %v1851
        %1884 = vst [vmem:[%s256 + $0x159] sm:$0xff] %v1852
        %1885 = vst [vmem:[%s256 + $0x169] sm:$0xff] %v1853
        %1886 = vst [vmem:[%s256 + $0x171] sm:$0xff] %v1854
        %1887 = vst [vmem:[%s256 - $0x1] sm:$0x2] %v1823
        %1888 = vst [vmem:[%s256 + $0x17] sm:$0x2] %v1825
        %1889 = vst [vmem:[%s256 + $0x2f] sm:$0x2] %v1827
        %1890 = vst [vmem:[%s256 + $0x47] sm:$0x2] %v1829
        %1891 = vst [vmem:[%s256 + $0x5f] sm:$0x2] %v1831
        %1892 = vst [vmem:[%s256 + $0x77] sm:$0x2] %v1833
        %1893 = vst [vmem:[%s256 + $0x8f] sm:$0x2] %v1835
        %1894 = vst [vmem:[%s256 + $0xa7] sm:$0x2] %v1837
        %1895 = vst [vmem:[%s256 + $0xbf] sm:$0x2] %v1839
        %1896 = vst [vmem:[%s256 + $0xd7] sm:$0x2] %v1841
        %1897 = vst [vmem:[%s256 + $0xef] sm:$0x2] %v1843
        %1898 = vst [vmem:[%s256 + $0x107] sm:$0x2] %v1845
        %1899 = vst [vmem:[%s256 + $0x11f] sm:$0x2] %v1847
        %1900 = vst [vmem:[%s256 + $0x137] sm:$0x2] %v1849
        %1901 = vst [vmem:[%s256 + $0x14f] sm:$0x2] %v1851
        %1902 = vst [vmem:[%s256 + $0x167] sm:$0x2] %v1853
        %1903 = vst [vmem:[%s256 + $0xb] sm:$0x40] %v1824
        %1904 = vst [vmem:[%s256 + $0x23] sm:$0x40] %v1826
        %1905 = vst [vmem:[%s256 + $0x3b] sm:$0x40] %v1828
        %1906 = vst [vmem:[%s256 + $0x53] sm:$0x40] %v1830
        %1907 = vst [vmem:[%s256 + $0x6b] sm:$0x40] %v1832
        %1908 = vst [vmem:[%s256 + $0x83] sm:$0x40] %v1834
        %1909 = vst [vmem:[%s256 + $0x9b] sm:$0x40] %v1836
        %1910 = vst [vmem:[%s256 + $0xb3] sm:$0x40] %v1838
        %1911 = vst [vmem:[%s256 + $0xcb] sm:$0x40] %v1840
        %1912 = vst [vmem:[%s256 + $0xe3] sm:$0x40] %v1842
        %1913 = vst [vmem:[%s256 + $0xfb] sm:$0x40] %v1844
        %1914 = vst [vmem:[%s256 + $0x113] sm:$0x40] %v1846
        %1915 = vst [vmem:[%s256 + $0x12b] sm:$0x40] %v1848
        %1916 = vst [vmem:[%s256 + $0x143] sm:$0x40] %v1850
        %1917 = vst [vmem:[%s256 + $0x15b] sm:$0x40] %v1852
        %1918 = vst [vmem:[%s256 + $0x173] sm:$0x40] %v1854
        %v1919 = vld [vmem:[%s321] sm:$0xff]
        %v1920 = vld [vmem:[%s321 + $0x8] sm:$0xff]
        %v1921 = vld [vmem:[%s321 + $0x10] sm:$0x3]
        %1922 = vst [vmem:[#allocation2] sm:$0xff] %v1919
        %1923 = vst [vmem:[#allocation2 + $0x8] sm:$0xff] %v1920
        %1924 = vst [vmem:[#allocation2 + $0x10] sm:$0x3] %v1921
        %v1925 = vld [vmem:[%s328] sm:$0xff]
        %v1926 = vld [vmem:[%s328 + $0x8] sm:$0xff]
        %v1927 = vld [vmem:[%s328 + $0x10] sm:$0x3]
        %1928 = vst [vmem:[%s332] sm:$0xff] %v1925
        %1929 = vst [vmem:[%s332 + $0x8] sm:$0xff] %v1926
        %1930 = vst [vmem:[%s332 + $0x10] sm:$0x3] %v1927
        %v1931 = vld [vmem:[#allocation2] sm:$0xff]
        %v1932 = vld [vmem:[#allocation2 + $0x8] sm:$0xff]
        %v1933 = vld [vmem:[#allocation2 + $0x18] sm:$0xff]
        %v1934 = vld [vmem:[#allocation2 + $0x20] sm:$0xff]
        %v1935 = vld [vmem:[#allocation2 + $0x30] sm:$0xff]
        %v1936 = vld [vmem:[#allocation2 + $0x38] sm:$0xff]
        %v1937 = vld [vmem:[#allocation2 + $0x48] sm:$0xff]
        %v1938 = vld [vmem:[#allocation2 + $0x50] sm:$0xff]
        %v1939 = vld [vmem:[#allocation2 + $0x60] sm:$0xff]
        %v1940 = vld [vmem:[#allocation2 + $0x68] sm:$0xff]
        %v1941 = vld [vmem:[#allocation2 + $0x78] sm:$0xff]
        %v1942 = vld [vmem:[#allocation2 + $0x80] sm:$0xff]
        %v1943 = vld [vmem:[#allocation2 + $0x90] sm:$0xff]
        %v1944 = vld [vmem:[#allocation2 + $0x98] sm:$0xff]
        %v1945 = vld [vmem:[#allocation2 + $0xa8] sm:$0xff]
        %v1946 = vld [vmem:[#allocation2 + $0xb0] sm:$0xff]
        %v1947 = vld [vmem:[#allocation2 + $0xc0] sm:$0xff]
        %v1948 = vld [vmem:[#allocation2 + $0xc8] sm:$0xff]
        %v1949 = vld [vmem:[#allocation2 + $0xd8] sm:$0xff]
        %v1950 = vld [vmem:[#allocation2 + $0xe0] sm:$0xff]
        %v1951 = vld [vmem:[#allocation2 + $0xf0] sm:$0xff]
        %v1952 = vld [vmem:[#allocation2 + $0xf8] sm:$0xff]
        %v1953 = vld [vmem:[#allocation2 + $0x108] sm:$0xff]
        %v1954 = vld [vmem:[#allocation2 + $0x110] sm:$0xff]
        %v1955 = vld [vmem:[#allocation2 + $0x120] sm:$0xff]
        %v1956 = vld [vmem:[#allocation2 + $0x128] sm:$0xff]
        %v1957 = vld [vmem:[#allocation2 + $0x138] sm:$0xff]
        %v1958 = vld [vmem:[#allocation2 + $0x140] sm:$0xff]
        %v1959 = vld [vmem:[#allocation2 + $0x150] sm:$0xff]
        %v1960 = vld [vmem:[#allocation2 + $0x158] sm:$0xff]
        %v1961 = vld [vmem:[#allocation2 + $0x168] sm:$0xff]
        %v1962 = vld [vmem:[#allocation2 + $0x170] sm:$0xff]
        %v1963 = vld [vmem:[#allocation2 + $0x180] sm:$0xff]
        %v1964 = vld [vmem:[#allocation2 + $0x188] sm:$0xff]
        %v1965 = vld [vmem:[#allocation2 + $0x198] sm:$0xff]
        %v1966 = vld [vmem:[#allocation2 + $0x1a0] sm:$0xff]
        %v1967 = vld [vmem:[#allocation2 + $0x1] sm:$0xff]
        %v1968 = vld [vmem:[#allocation2 + $0x9] sm:$0xff]
        %v1969 = vld [vmem:[#allocation2 + $0x19] sm:$0xff]
        %v1970 = vld [vmem:[#allocation2 + $0x21] sm:$0xff]
        %v1971 = vld [vmem:[#allocation2 + $0x31] sm:$0xff]
        %v1972 = vld [vmem:[#allocation2 + $0x39] sm:$0xff]
        %v1973 = vld [vmem:[#allocation2 + $0x49] sm:$0xff]
        %v1974 = vld [vmem:[#allocation2 + $0x51] sm:$0xff]
        %v1975 = vld [vmem:[#allocation2 + $0x61] sm:$0xff]
        %v1976 = vld [vmem:[#allocation2 + $0x69] sm:$0xff]
        %v1977 = vld [vmem:[#allocation2 + $0x79] sm:$0xff]
        %v1978 = vld [vmem:[#allocation2 + $0x81] sm:$0xff]
        %v1979 = vld [vmem:[#allocation2 + $0x91] sm:$0xff]
        %v1980 = vld [vmem:[#allocation2 + $0x99] sm:$0xff]
        %v1981 = vld [vmem:[#allocation2 + $0xa9] sm:$0xff]
        %v1982 = vld [vmem:[#allocation2 + $0xb1] sm:$0xff]
        %v1983 = vld [vmem:[#allocation2 + $0xc1] sm:$0xff]
        %v1984 = vld [vmem:[#allocation2 + $0xc9] sm:$0xff]
        %v1985 = vld [vmem:[#allocation2 + $0xd9] sm:$0xff]
        %v1986 = vld [vmem:[#allocation2 + $0xe1] sm:$0xff]
        %v1987 = vld [vmem:[#allocation2 + $0xf1] sm:$0xff]
        %v1988 = vld [vmem:[#allocation2 + $0xf9] sm:$0xff]
        %v1989 = vld [vmem:[#allocation2 + $0x109] sm:$0xff]
        %v1990 = vld [vmem:[#allocation2 + $0x111] sm:$0xff]
        %v1991 = vld [vmem:[#allocation2 + $0x121] sm:$0xff]
        %v1992 = vld [vmem:[#allocation2 + $0x129] sm:$0xff]
        %v1993 = vld [vmem:[#allocation2 + $0x139] sm:$0xff]
        %v1994 = vld [vmem:[#allocation2 + $0x141] sm:$0xff]
        %v1995 = vld [vmem:[#allocation2 + $0x151] sm:$0xff]
        %v1996 = vld [vmem:[#allocation2 + $0x159] sm:$0xff]
        %v1997 = vld [vmem:[#allocation2 + $0x169] sm:$0xff]
        %v1998 = vld [vmem:[#allocation2 + $0x171] sm:$0xff]
        %v1999 = vld [vmem:[#allocation2 + $0x181] sm:$0xff]
        %v2000 = vld [vmem:[#allocation2 + $0x189] sm:$0xff]
        %v2001 = vld [vmem:[#allocation2 + $0x199] sm:$0xff]
        %v2002 = vld [vmem:[#allocation2 + $0x1a1] sm:$0xff]
        %v2003 = vld [vmem:[#allocation2 + $0x2] sm:$0xff]
        %v2004 = vld [vmem:[#allocation2 + $0xa] sm:$0xff]
        %v2005 = vld [vmem:[#allocation2 + $0x1a] sm:$0xff]
        %v2006 = vld [vmem:[#allocation2 + $0x22] sm:$0xff]
        %v2007 = vld [vmem:[#allocation2 + $0x32] sm:$0xff]
        %v2008 = vld [vmem:[#allocation2 + $0x3a] sm:$0xff]
        %v2009 = vld [vmem:[#allocation2 + $0x4a] sm:$0xff]
        %v2010 = vld [vmem:[#allocation2 + $0x52] sm:$0xff]
        %v2011 = vld [vmem:[#allocation2 + $0x62] sm:$0xff]
        %v2012 = vld [vmem:[#allocation2 + $0x6a] sm:$0xff]
        %v2013 = vld [vmem:[#allocation2 + $0x7a] sm:$0xff]
        %v2014 = vld [vmem:[#allocation2 + $0x82] sm:$0xff]
        %v2015 = vld [vmem:[#allocation2 + $0x92] sm:$0xff]
        %v2016 = vld [vmem:[#allocation2 + $0x9a] sm:$0xff]
        %v2017 = vld [vmem:[#allocation2 + $0xaa] sm:$0xff]
        %v2018 = vld [vmem:[#allocation2 + $0xb2] sm:$0xff]
        %v2019 = vld [vmem:[#allocation2 + $0xc2] sm:$0xff]
        %v2020 = vld [vmem:[#allocation2 + $0xca] sm:$0xff]
        %v2021 = vld [vmem:[#allocation2 + $0xda] sm:$0xff]
        %v2022 = vld [vmem:[#allocation2 + $0xe2] sm:$0xff]
        %v2023 = vld [vmem:[#allocation2 + $0xf2] sm:$0xff]
        %v2024 = vld [vmem:[#allocation2 + $0xfa] sm:$0xff]
        %v2025 = vld [vmem:[#allocation2 + $0x10a] sm:$0xff]
        %v2026 = vld [vmem:[#allocation2 + $0x112] sm:$0xff]
        %v2027 = vld [vmem:[#allocation2 + $0x122] sm:$0xff]
        %v2028 = vld [vmem:[#allocation2 + $0x12a] sm:$0xff]
        %v2029 = vld [vmem:[#allocation2 + $0x13a] sm:$0xff]
        %v2030 = vld [vmem:[#allocation2 + $0x142] sm:$0xff]
        %v2031 = vld [vmem:[#allocation2 + $0x152] sm:$0xff]
        %v2032 = vld [vmem:[#allocation2 + $0x15a] sm:$0xff]
        %v2033 = vld [vmem:[#allocation2 + $0x16a] sm:$0xff]
        %v2034 = vld [vmem:[#allocation2 + $0x172] sm:$0xff]
        %v2035 = vld [vmem:[#allocation2 + $0x182] sm:$0xff]
        %v2036 = vld [vmem:[#allocation2 + $0x18a] sm:$0xff]
        %v2037 = vld [vmem:[#allocation2 + $0x19a] sm:$0xff]
        %v2038 = vld [vmem:[#allocation2 + $0x1a2] sm:$0xff]
        %v2039 = vld [vmem:[#allocation8] sm:$0xff]
        %v2040 = vld [vmem:[#allocation8 + $0x8] sm:$0xff]
        %v2041 = vld [vmem:[#allocation8 + $0x10] sm:$0xff]
        %v2042 = vld [vmem:[#allocation8 + $0x18] sm:$0xff]
        %v2043 = vld [vmem:[#allocation8 + $0x20] sm:$0xff]
        %v2044 = vld [vmem:[#allocation8 + $0x28] sm:$0xff]
        %v2045 = vld [vmem:[#allocation8 + $0x30] sm:$0xff]
        %v2046 = vld [vmem:[#allocation8 + $0x38] sm:$0xff]
        %v2047 = vld [vmem:[#allocation8 + $0x40] sm:$0xff]
        %v2048 = vld [vmem:[#allocation8 + $0x48] sm:$0xff]
        %v2049 = vld [vmem:[#allocation8 + $0x50] sm:$0xff]
        %v2050 = vld [vmem:[#allocation8 + $0x58] sm:$0xff]
        %v2051 = vld [vmem:[#allocation8 + $0x60] sm:$0xff]
        %v2052 = vld [vmem:[#allocation8 + $0x68] sm:$0xff]
        %v2053 = vld [vmem:[#allocation8 + $0x70] sm:$0xff]
        %v2054 = vld [vmem:[#allocation8 + $0x78] sm:$0xff]
        %v2055 = vld [vmem:[#allocation8 + $0x80] sm:$0xff]
        %v2056 = vld [vmem:[#allocation8 + $0x88] sm:$0xff]
        %v2057 = vld [vmem:[#allocation8 + $0x90] sm:$0xff]
        %v2058 = vld [vmem:[#allocation8 + $0x98] sm:$0xff]
        %v2059 = vld [vmem:[#allocation8 + $0xa0] sm:$0xff]
        %v2060 = vld [vmem:[#allocation8 + $0xa8] sm:$0xff]
        %v2061 = vld [vmem:[#allocation8 + $0xb0] sm:$0xff]
        %v2062 = vld [vmem:[#allocation8 + $0xb8] sm:$0xff]
        %v2063 = vld [vmem:[#allocation8 + $0xc0] sm:$0xff]
        %v2064 = vld [vmem:[#allocation8 + $0xc8] sm:$0xff]
        %v2065 = vld [vmem:[#allocation8 + $0xd0] sm:$0xff]
        %v2066 = vld [vmem:[#allocation8 + $0xd8] sm:$0xff]
        %v2067 = vld [vmem:[#allocation8 + $0xe0] sm:$0xff]
        %v2068 = vld [vmem:[#allocation8 + $0xe8] sm:$0xff]
        %v2069 = vld [vmem:[#allocation8 + $0xf0] sm:$0xff]
        %v2070 = vld [vmem:[#allocation8 + $0xf8] sm:$0xff]
        %v2071 = vld [vmem:[#allocation8 + $0x100] sm:$0xff]
        %v2072 = vld [vmem:[#allocation8 + $0x108] sm:$0xff]
        %v2073 = vld [vmem:[#allocation8 + $0x110] sm:$0xff]
        %v2074 = vld [vmem:[#allocation8 + $0x118] sm:$0xff]
        %v2075 = vld [vmem:[#allocation8 + $0x120] sm:$0xff]
        %v2076 = vld [vmem:[#allocation8 + $0x128] sm:$0xff]
        %v2077 = vld [vmem:[#allocation8 + $0x130] sm:$0xff]
        %v2078 = vld [vmem:[#allocation8 + $0x138] sm:$0xff]
        %v2079 = vld [vmem:[#allocation8 + $0x140] sm:$0xff]
        %v2080 = vld [vmem:[#allocation8 + $0x148] sm:$0xff]
        %v2081 = vld [vmem:[#allocation8 + $0x150] sm:$0xff]
        %v2082 = vld [vmem:[#allocation8 + $0x158] sm:$0xff]
        %v2083 = vld [vmem:[#allocation8 + $0x160] sm:$0xff]
        %v2084 = vld [vmem:[#allocation8 + $0x168] sm:$0xff]
        %v2085 = vld [vmem:[#allocation8 + $0x170] sm:$0xff]
        %v2086 = vld [vmem:[#allocation8 + $0x178] sm:$0xff]
        %v2087 = vld [vmem:[#allocation8 + $0x180] sm:$0xff]
        %v2088 = vld [vmem:[#allocation8 + $0x188] sm:$0xff]
        %v2089 = vld [vmem:[#allocation8 + $0x190] sm:$0xff]
        %v2090 = vld [vmem:[#allocation8 + $0x198] sm:$0xff]
        %v2091 = vld [vmem:[#allocation8 + $0x1a0] sm:$0xff]
        %v2092 = vld [vmem:[#allocation8 + $0x1a8] sm:$0xff]
        %v2093 = vld [vmem:[#allocation8 + $0x1b0] sm:$0xff]
        %v2094 = vld [vmem:[#allocation8 + $0x1b8] sm:$0xff]
        %v2095 = vld [vmem:[#allocation8 + $0x1c0] sm:$0xff]
        %v2096 = vld [vmem:[#allocation8 + $0x1c8] sm:$0xff]
        %v2097 = vld [vmem:[#allocation8 + $0x1d0] sm:$0xff]
        %v2098 = vld [vmem:[#allocation8 + $0x1d8] sm:$0xff]
        %v2099 = vld [vmem:[#allocation8 + $0x1e0] sm:$0xff]
        %v2100 = vld [vmem:[#allocation8 + $0x1e8] sm:$0xff]
        %v2101 = vld [vmem:[#allocation8 + $0x1f0] sm:$0xff]
        %v2102 = vld [vmem:[#allocation8 + $0x1f8] sm:$0xff]
        %v2103 = vld [vmem:[#allocation8 + $0x200] sm:$0xff]
        %v2104 = vld [vmem:[#allocation8 + $0x208] sm:$0xff]
        %v2105 = vld [vmem:[#allocation8 + $0x210] sm:$0xff]
        %v2106 = vld [vmem:[#allocation8 + $0x218] sm:$0xff]
        %v2107 = vld [vmem:[#allocation8 + $0x220] sm:$0xff]
        %v2108 = vld [vmem:[#allocation8 + $0x228] sm:$0xff]
        %v2109 = vld [vmem:[#allocation8 + $0x230] sm:$0xff]
        %v2110 = vld [vmem:[#allocation8 + $0x238] sm:$0xff]
        %v2111 = vld [vmem:[#allocation8 + $0x240] sm:$0xff]
        %v2112 = vld [vmem:[#allocation8 + $0x248] sm:$0xff]
        %v2113 = vld [vmem:[#allocation8 + $0x250] sm:$0xff]
        %v2114 = vld [vmem:[#allocation8 + $0x258] sm:$0xff]
        %v2115 = vld [vmem:[#allocation8 + $0x260] sm:$0xff]
        %v2116 = vld [vmem:[#allocation8 + $0x268] sm:$0xff]
        %v2117 = vld [vmem:[#allocation8 + $0x270] sm:$0xff]
        %v2118 = vld [vmem:[#allocation8 + $0x278] sm:$0xff]
        %v2119 = vld [vmem:[#allocation8 + $0x280] sm:$0xff]
        %v2120 = vld [vmem:[#allocation8 + $0x288] sm:$0xff]
        %v2121 = vld [vmem:[#allocation8 + $0x290] sm:$0xff]
        %v2122 = vld [vmem:[#allocation8 + $0x298] sm:$0xff]
        %v2123 = vld [vmem:[#allocation8 + $0x2a0] sm:$0xff]
        %v2124 = vld [vmem:[#allocation8 + $0x2a8] sm:$0xff]
        %v2125 = vld [vmem:[#allocation8 + $0x2b0] sm:$0xff]
        %v2126 = vld [vmem:[#allocation8 + $0x2b8] sm:$0xff]
        %v2127 = vld [vmem:[#allocation8 + $0x2c0] sm:$0xff]
        %v2128 = vld [vmem:[#allocation8 + $0x2c8] sm:$0xff]
        %v2129 = vld [vmem:[#allocation8 + $0x2d0] sm:$0xff]
        %v2130 = vld [vmem:[#allocation8 + $0x2d8] sm:$0xff]
        %v2131 = vld [vmem:[#allocation8 + $0x2e0] sm:$0xff]
        %v2132 = vld [vmem:[#allocation8 + $0x2e8] sm:$0xff]
        %v2133 = vld [vmem:[#allocation8 + $0x2f0] sm:$0xff]
        %v2134 = vld [vmem:[#allocation8 + $0x2f8] sm:$0xff]
        %2135 = vmatpush.msra.mxu0 %v2102
        %2136 = vmatpush.msra.mxu0 %v2101
        %2137 = vmatpush.msra.mxu0 %v2100
        %2138 = vmatpush.msra.mxu0 %v2099
        %2139 = vmatpush.msra.mxu0 %v2098
        %2140 = vmatpush.msra.mxu0 %v2097
        %2141 = vmatpush.msra.mxu0 %v2096
        %2142 = vmatpush.msra.mxu0 %v2095
        %2143 = vmatpush.msra.mxu0 %v2094
        %2144 = vmatpush.msra.mxu0 %v2093
        %2145 = vmatpush.msra.mxu0 %v2092
        %2146 = vmatpush.msra.mxu0 %v2091
        %2147 = vmatpush.msra.mxu0 %v2090
        %2148 = vmatpush.msra.mxu0 %v2089
        %2149 = vmatpush.msra.mxu0 %v2088
        %2150 = vmatpush.msra.mxu0 %v2087
        %2151 = vmatmul.f32.gmra.mxu0 %v1933
        %v2152 = vpop.f32.mrf.mxu0
        %v2153 = vadd.f32 0.0, %v2152
        %2154 = vmatmul.f32.gmra.mxu0 %v1934
        %v2155 = vpop.f32.mrf.mxu0
        %v2156 = vadd.f32 0.0, %v2155
        %2157 = vmatmul.f32.gmra.mxu0 %v1935
        %v2158 = vpop.f32.mrf.mxu0
        %v2159 = vadd.f32 0.0, %v2158
        %2160 = vmatmul.f32.gmra.mxu0 %v1936
        %v2161 = vpop.f32.mrf.mxu0
        %v2162 = vadd.f32 0.0, %v2161
        %2163 = vmatmul.f32.gmra.mxu0 %v1937
        %v2164 = vpop.f32.mrf.mxu0
        %v2165 = vadd.f32 0.0, %v2164
        %2166 = vmatmul.f32.gmra.mxu0 %v1938
        %v2167 = vpop.f32.mrf.mxu0
        %v2168 = vadd.f32 0.0, %v2167
        %2169 = vmatmul.f32.gmra.mxu0 %v1939
        %v2170 = vpop.f32.mrf.mxu0
        %v2171 = vadd.f32 0.0, %v2170
        %2172 = vmatmul.f32.gmra.mxu0 %v1940
        %v2173 = vpop.f32.mrf.mxu0
        %v2174 = vadd.f32 0.0, %v2173
        %2175 = vmatmul.f32.gmra.mxu0 %v1941
        %v2176 = vpop.f32.mrf.mxu0
        %v2177 = vadd.f32 0.0, %v2176
        %2178 = vmatmul.f32.gmra.mxu0 %v1942
        %v2179 = vpop.f32.mrf.mxu0
        %v2180 = vadd.f32 0.0, %v2179
        %2181 = vmatmul.f32.gmra.mxu0 %v1943
        %v2182 = vpop.f32.mrf.mxu0
        %v2183 = vadd.f32 0.0, %v2182
        %2184 = vmatmul.f32.gmra.mxu0 %v1944
        %v2185 = vpop.f32.mrf.mxu0
        %v2186 = vadd.f32 0.0, %v2185
        %2187 = vmatmul.f32.gmra.mxu0 %v1945
        %v2188 = vpop.f32.mrf.mxu0
        %v2189 = vadd.f32 0.0, %v2188
        %2190 = vmatmul.f32.gmra.mxu0 %v1946
        %v2191 = vpop.f32.mrf.mxu0
        %v2192 = vadd.f32 0.0, %v2191
        %2193 = vmatmul.f32.gmra.mxu0 %v1947
        %v2194 = vpop.f32.mrf.mxu0
        %v2195 = vadd.f32 0.0, %v2194
        %2196 = vmatmul.f32.gmra.mxu0 %v1948
        %v2197 = vpop.f32.mrf.mxu0
        %v2198 = vadd.f32 0.0, %v2197
        %2199 = vmatmul.f32.gmra.mxu0 %v1949
        %v2200 = vpop.f32.mrf.mxu0
        %v2201 = vadd.f32 0.0, %v2200
        %2202 = vmatmul.f32.gmra.mxu0 %v1950
        %v2203 = vpop.f32.mrf.mxu0
        %v2204 = vadd.f32 0.0, %v2203
        %2205 = vmatmul.f32.gmra.mxu0 %v1951
        %v2206 = vpop.f32.mrf.mxu0
        %v2207 = vadd.f32 0.0, %v2206
        %2208 = vmatmul.f32.gmra.mxu0 %v1952
        %v2209 = vpop.f32.mrf.mxu0
        %v2210 = vadd.f32 0.0, %v2209
        %2211 = vmatmul.f32.gmra.mxu0 %v1953
        %v2212 = vpop.f32.mrf.mxu0
        %v2213 = vadd.f32 0.0, %v2212
        %2214 = vmatmul.f32.gmra.mxu0 %v1954
        %v2215 = vpop.f32.mrf.mxu0
        %v2216 = vadd.f32 0.0, %v2215
        %2217 = vmatmul.f32.gmra.mxu0 %v1955
        %v2218 = vpop.f32.mrf.mxu0
        %v2219 = vadd.f32 0.0, %v2218
        %2220 = vmatmul.f32.gmra.mxu0 %v1956
        %v2221 = vpop.f32.mrf.mxu0
        %v2222 = vadd.f32 0.0, %v2221
        %2223 = vmatmul.f32.gmra.mxu0 %v1957
        %v2224 = vpop.f32.mrf.mxu0
        %v2225 = vadd.f32 0.0, %v2224
        %2226 = vmatmul.f32.gmra.mxu0 %v1958
        %v2227 = vpop.f32.mrf.mxu0
        %v2228 = vadd.f32 0.0, %v2227
        %2229 = vmatmul.f32.gmra.mxu0 %v1959
        %v2230 = vpop.f32.mrf.mxu0
        %v2231 = vadd.f32 0.0, %v2230
        %2232 = vmatmul.f32.gmra.mxu0 %v1960
        %v2233 = vpop.f32.mrf.mxu0
        %v2234 = vadd.f32 0.0, %v2233
        %2235 = vmatmul.f32.gmra.mxu0 %v1961
        %v2236 = vpop.f32.mrf.mxu0
        %v2237 = vadd.f32 0.0, %v2236
        %2238 = vmatmul.f32.gmra.mxu0 %v1962
        %v2239 = vpop.f32.mrf.mxu0
        %v2240 = vadd.f32 0.0, %v2239
        %2241 = vmatmul.f32.gmra.mxu0 %v1963
        %v2242 = vpop.f32.mrf.mxu0
        %v2243 = vadd.f32 0.0, %v2242
        %2244 = vmatmul.f32.gmra.mxu0 %v1964
        %v2245 = vpop.f32.mrf.mxu0
        %v2246 = vadd.f32 0.0, %v2245
        %2247 = vdwg.mxu0
        %2248 = vmatpush.msra.mxu0 %v2118
        %2249 = vmatpush.msra.mxu0 %v2117
        %2250 = vmatpush.msra.mxu0 %v2116
        %2251 = vmatpush.msra.mxu0 %v2115
        %2252 = vmatpush.msra.mxu0 %v2114
        %2253 = vmatpush.msra.mxu0 %v2113
        %2254 = vmatpush.msra.mxu0 %v2112
        %2255 = vmatpush.msra.mxu0 %v2111
        %2256 = vmatpush.msra.mxu0 %v2110
        %2257 = vmatpush.msra.mxu0 %v2109
        %2258 = vmatpush.msra.mxu0 %v2108
        %2259 = vmatpush.msra.mxu0 %v2107
        %2260 = vmatpush.msra.mxu0 %v2106
        %2261 = vmatpush.msra.mxu0 %v2105
        %2262 = vmatpush.msra.mxu0 %v2104
        %2263 = vmatpush.msra.mxu0 %v2103
        %2264 = vmatmul.f32.gmra.mxu0 %v1969
        %v2265 = vpop.f32.mrf.mxu0
        %v2266 = vadd.f32 %v2153, %v2265
        %2267 = vmatmul.f32.gmra.mxu0 %v1970
        %v2268 = vpop.f32.mrf.mxu0
        %v2269 = vadd.f32 %v2156, %v2268
        %2270 = vmatmul.f32.gmra.mxu0 %v1971
        %v2271 = vpop.f32.mrf.mxu0
        %v2272 = vadd.f32 %v2159, %v2271
        %2273 = vmatmul.f32.gmra.mxu0 %v1972
        %v2274 = vpop.f32.mrf.mxu0
        %v2275 = vadd.f32 %v2162, %v2274
        %2276 = vmatmul.f32.gmra.mxu0 %v1973
        %v2277 = vpop.f32.mrf.mxu0
        %v2278 = vadd.f32 %v2165, %v2277
        %2279 = vmatmul.f32.gmra.mxu0 %v1974
        %v2280 = vpop.f32.mrf.mxu0
        %v2281 = vadd.f32 %v2168, %v2280
        %2282 = vmatmul.f32.gmra.mxu0 %v1975
        %v2283 = vpop.f32.mrf.mxu0
        %v2284 = vadd.f32 %v2171, %v2283
        %2285 = vmatmul.f32.gmra.mxu0 %v1976
        %v2286 = vpop.f32.mrf.mxu0
        %v2287 = vadd.f32 %v2174, %v2286
        %2288 = vmatmul.f32.gmra.mxu0 %v1977
        %v2289 = vpop.f32.mrf.mxu0
        %v2290 = vadd.f32 %v2177, %v2289
        %2291 = vmatmul.f32.gmra.mxu0 %v1978
        %v2292 = vpop.f32.mrf.mxu0
        %v2293 = vadd.f32 %v2180, %v2292
        %2294 = vmatmul.f32.gmra.mxu0 %v1979
        %v2295 = vpop.f32.mrf.mxu0
        %v2296 = vadd.f32 %v2183, %v2295
        %2297 = vmatmul.f32.gmra.mxu0 %v1980
        %v2298 = vpop.f32.mrf.mxu0
        %v2299 = vadd.f32 %v2186, %v2298
        %2300 = vmatmul.f32.gmra.mxu0 %v1981
        %v2301 = vpop.f32.mrf.mxu0
        %v2302 = vadd.f32 %v2189, %v2301
        %2303 = vmatmul.f32.gmra.mxu0 %v1982
        %v2304 = vpop.f32.mrf.mxu0
        %v2305 = vadd.f32 %v2192, %v2304
        %2306 = vmatmul.f32.gmra.mxu0 %v1983
        %v2307 = vpop.f32.mrf.mxu0
        %v2308 = vadd.f32 %v2195, %v2307
        %2309 = vmatmul.f32.gmra.mxu0 %v1984
        %v2310 = vpop.f32.mrf.mxu0
        %v2311 = vadd.f32 %v2198, %v2310
        %2312 = vmatmul.f32.gmra.mxu0 %v1985
        %v2313 = vpop.f32.mrf.mxu0
        %v2314 = vadd.f32 %v2201, %v2313
        %2315 = vmatmul.f32.gmra.mxu0 %v1986
        %v2316 = vpop.f32.mrf.mxu0
        %v2317 = vadd.f32 %v2204, %v2316
        %2318 = vmatmul.f32.gmra.mxu0 %v1987
        %v2319 = vpop.f32.mrf.mxu0
        %v2320 = vadd.f32 %v2207, %v2319
        %2321 = vmatmul.f32.gmra.mxu0 %v1988
        %v2322 = vpop.f32.mrf.mxu0
        %v2323 = vadd.f32 %v2210, %v2322
        %2324 = vmatmul.f32.gmra.mxu0 %v1989
        %v2325 = vpop.f32.mrf.mxu0
        %v2326 = vadd.f32 %v2213, %v2325
        %2327 = vmatmul.f32.gmra.mxu0 %v1990
        %v2328 = vpop.f32.mrf.mxu0
        %v2329 = vadd.f32 %v2216, %v2328
        %2330 = vmatmul.f32.gmra.mxu0 %v1991
        %v2331 = vpop.f32.mrf.mxu0
        %v2332 = vadd.f32 %v2219, %v2331
        %2333 = vmatmul.f32.gmra.mxu0 %v1992
        %v2334 = vpop.f32.mrf.mxu0
        %v2335 = vadd.f32 %v2222, %v2334
        %2336 = vmatmul.f32.gmra.mxu0 %v1993
        %v2337 = vpop.f32.mrf.mxu0
        %v2338 = vadd.f32 %v2225, %v2337
        %2339 = vmatmul.f32.gmra.mxu0 %v1994
        %v2340 = vpop.f32.mrf.mxu0
        %v2341 = vadd.f32 %v2228, %v2340
        %2342 = vmatmul.f32.gmra.mxu0 %v1995
        %v2343 = vpop.f32.mrf.mxu0
        %v2344 = vadd.f32 %v2231, %v2343
        %2345 = vmatmul.f32.gmra.mxu0 %v1996
        %v2346 = vpop.f32.mrf.mxu0
        %v2347 = vadd.f32 %v2234, %v2346
        %2348 = vmatmul.f32.gmra.mxu0 %v1997
        %v2349 = vpop.f32.mrf.mxu0
        %v2350 = vadd.f32 %v2237, %v2349
        %2351 = vmatmul.f32.gmra.mxu0 %v1998
        %v2352 = vpop.f32.mrf.mxu0
        %v2353 = vadd.f32 %v2240, %v2352
        %2354 = vmatmul.f32.gmra.mxu0 %v1999
        %v2355 = vpop.f32.mrf.mxu0
        %v2356 = vadd.f32 %v2243, %v2355
        %2357 = vmatmul.f32.gmra.mxu0 %v2000
        %v2358 = vpop.f32.mrf.mxu0
        %v2359 = vadd.f32 %v2246, %v2358
        %2360 = vdwg.mxu0
        %2361 = vmatpush.msra.mxu0 %v2134
        %2362 = vmatpush.msra.mxu0 %v2133
        %2363 = vmatpush.msra.mxu0 %v2132
        %2364 = vmatpush.msra.mxu0 %v2131
        %2365 = vmatpush.msra.mxu0 %v2130
        %2366 = vmatpush.msra.mxu0 %v2129
        %2367 = vmatpush.msra.mxu0 %v2128
        %2368 = vmatpush.msra.mxu0 %v2127
        %2369 = vmatpush.msra.mxu0 %v2126
        %2370 = vmatpush.msra.mxu0 %v2125
        %2371 = vmatpush.msra.mxu0 %v2124
        %2372 = vmatpush.msra.mxu0 %v2123
        %2373 = vmatpush.msra.mxu0 %v2122
        %2374 = vmatpush.msra.mxu0 %v2121
        %2375 = vmatpush.msra.mxu0 %v2120
        %2376 = vmatpush.msra.mxu0 %v2119
        %2377 = vmatmul.f32.gmra.mxu0 %v2005
        %v2378 = vpop.f32.mrf.mxu0
        %v2379 = vadd.f32 %v2266, %v2378
        %2380 = vmatmul.f32.gmra.mxu0 %v2006
        %v2381 = vpop.f32.mrf.mxu0
        %v2382 = vadd.f32 %v2269, %v2381
        %2383 = vmatmul.f32.gmra.mxu0 %v2007
        %v2384 = vpop.f32.mrf.mxu0
        %v2385 = vadd.f32 %v2272, %v2384
        %2386 = vmatmul.f32.gmra.mxu0 %v2008
        %v2387 = vpop.f32.mrf.mxu0
        %v2388 = vadd.f32 %v2275, %v2387
        %2389 = vmatmul.f32.gmra.mxu0 %v2009
        %v2390 = vpop.f32.mrf.mxu0
        %v2391 = vadd.f32 %v2278, %v2390
        %2392 = vmatmul.f32.gmra.mxu0 %v2010
        %v2393 = vpop.f32.mrf.mxu0
        %v2394 = vadd.f32 %v2281, %v2393
        %2395 = vmatmul.f32.gmra.mxu0 %v2011
        %v2396 = vpop.f32.mrf.mxu0
        %v2397 = vadd.f32 %v2284, %v2396
        %2398 = vmatmul.f32.gmra.mxu0 %v2012
        %v2399 = vpop.f32.mrf.mxu0
        %v2400 = vadd.f32 %v2287, %v2399
        %2401 = vmatmul.f32.gmra.mxu0 %v2013
        %v2402 = vpop.f32.mrf.mxu0
        %v2403 = vadd.f32 %v2290, %v2402
        %2404 = vmatmul.f32.gmra.mxu0 %v2014
        %v2405 = vpop.f32.mrf.mxu0
        %v2406 = vadd.f32 %v2293, %v2405
        %2407 = vmatmul.f32.gmra.mxu0 %v2015
        %v2408 = vpop.f32.mrf.mxu0
        %v2409 = vadd.f32 %v2296, %v2408
        %2410 = vmatmul.f32.gmra.mxu0 %v2016
        %v2411 = vpop.f32.mrf.mxu0
        %v2412 = vadd.f32 %v2299, %v2411
        %2413 = vmatmul.f32.gmra.mxu0 %v2017
        %v2414 = vpop.f32.mrf.mxu0
        %v2415 = vadd.f32 %v2302, %v2414
        %2416 = vmatmul.f32.gmra.mxu0 %v2018
        %v2417 = vpop.f32.mrf.mxu0
        %v2418 = vadd.f32 %v2305, %v2417
        %2419 = vmatmul.f32.gmra.mxu0 %v2019
        %v2420 = vpop.f32.mrf.mxu0
        %v2421 = vadd.f32 %v2308, %v2420
        %2422 = vmatmul.f32.gmra.mxu0 %v2020
        %v2423 = vpop.f32.mrf.mxu0
        %v2424 = vadd.f32 %v2311, %v2423
        %2425 = vmatmul.f32.gmra.mxu0 %v2021
        %v2426 = vpop.f32.mrf.mxu0
        %v2427 = vadd.f32 %v2314, %v2426
        %2428 = vmatmul.f32.gmra.mxu0 %v2022
        %v2429 = vpop.f32.mrf.mxu0
        %v2430 = vadd.f32 %v2317, %v2429
        %2431 = vmatmul.f32.gmra.mxu0 %v2023
        %v2432 = vpop.f32.mrf.mxu0
        %v2433 = vadd.f32 %v2320, %v2432
        %2434 = vmatmul.f32.gmra.mxu0 %v2024
        %v2435 = vpop.f32.mrf.mxu0
        %v2436 = vadd.f32 %v2323, %v2435
        %2437 = vmatmul.f32.gmra.mxu0 %v2025
        %v2438 = vpop.f32.mrf.mxu0
        %v2439 = vadd.f32 %v2326, %v2438
        %2440 = vmatmul.f32.gmra.mxu0 %v2026
        %v2441 = vpop.f32.mrf.mxu0
        %v2442 = vadd.f32 %v2329, %v2441
        %2443 = vmatmul.f32.gmra.mxu0 %v2027
        %v2444 = vpop.f32.mrf.mxu0
        %v2445 = vadd.f32 %v2332, %v2444
        %2446 = vmatmul.f32.gmra.mxu0 %v2028
        %v2447 = vpop.f32.mrf.mxu0
        %v2448 = vadd.f32 %v2335, %v2447
        %2449 = vmatmul.f32.gmra.mxu0 %v2029
        %v2450 = vpop.f32.mrf.mxu0
        %v2451 = vadd.f32 %v2338, %v2450
        %2452 = vmatmul.f32.gmra.mxu0 %v2030
        %v2453 = vpop.f32.mrf.mxu0
        %v2454 = vadd.f32 %v2341, %v2453
        %2455 = vmatmul.f32.gmra.mxu0 %v2031
        %v2456 = vpop.f32.mrf.mxu0
        %v2457 = vadd.f32 %v2344, %v2456
        %2458 = vmatmul.f32.gmra.mxu0 %v2032
        %v2459 = vpop.f32.mrf.mxu0
        %v2460 = vadd.f32 %v2347, %v2459
        %2461 = vmatmul.f32.gmra.mxu0 %v2033
        %v2462 = vpop.f32.mrf.mxu0
        %v2463 = vadd.f32 %v2350, %v2462
        %2464 = vmatmul.f32.gmra.mxu0 %v2034
        %v2465 = vpop.f32.mrf.mxu0
        %v2466 = vadd.f32 %v2353, %v2465
        %2467 = vmatmul.f32.gmra.mxu0 %v2035
        %v2468 = vpop.f32.mrf.mxu0
        %v2469 = vadd.f32 %v2356, %v2468
        %2470 = vmatmul.f32.gmra.mxu0 %v2036
        %v2471 = vpop.f32.mrf.mxu0
        %v2472 = vadd.f32 %v2359, %v2471
        %2473 = vdwg.mxu0
        %2474 = vmatpush.msra.mxu0 %v2054
        %2475 = vmatpush.msra.mxu0 %v2053
        %2476 = vmatpush.msra.mxu0 %v2052
        %2477 = vmatpush.msra.mxu0 %v2051
        %2478 = vmatpush.msra.mxu0 %v2050
        %2479 = vmatpush.msra.mxu0 %v2049
        %2480 = vmatpush.msra.mxu0 %v2048
        %2481 = vmatpush.msra.mxu0 %v2047
        %2482 = vmatpush.msra.mxu0 %v2046
        %2483 = vmatpush.msra.mxu0 %v2045
        %2484 = vmatpush.msra.mxu0 %v2044
        %2485 = vmatpush.msra.mxu0 %v2043
        %2486 = vmatpush.msra.mxu0 %v2042
        %2487 = vmatpush.msra.mxu0 %v2041
        %2488 = vmatpush.msra.mxu0 %v2040
        %2489 = vmatpush.msra.mxu0 %v2039
        %2490 = vmatmul.f32.gmra.mxu0 %v1931
        %v2491 = vpop.f32.mrf.mxu0
        %v2492 = vadd.f32 %v2379, %v2491
        %2493 = vmatmul.f32.gmra.mxu0 %v1932
        %v2494 = vpop.f32.mrf.mxu0
        %v2495 = vadd.f32 %v2382, %v2494
        %2496 = vmatmul.f32.gmra.mxu0 %v1933
        %v2497 = vpop.f32.mrf.mxu0
        %v2498 = vadd.f32 %v2385, %v2497
        %2499 = vmatmul.f32.gmra.mxu0 %v1934
        %v2500 = vpop.f32.mrf.mxu0
        %v2501 = vadd.f32 %v2388, %v2500
        %2502 = vmatmul.f32.gmra.mxu0 %v1935
        %v2503 = vpop.f32.mrf.mxu0
        %v2504 = vadd.f32 %v2391, %v2503
        %2505 = vmatmul.f32.gmra.mxu0 %v1936
        %v2506 = vpop.f32.mrf.mxu0
        %v2507 = vadd.f32 %v2394, %v2506
        %2508 = vmatmul.f32.gmra.mxu0 %v1937
        %v2509 = vpop.f32.mrf.mxu0
        %v2510 = vadd.f32 %v2397, %v2509
        %2511 = vmatmul.f32.gmra.mxu0 %v1938
        %v2512 = vpop.f32.mrf.mxu0
        %v2513 = vadd.f32 %v2400, %v2512
        %2514 = vmatmul.f32.gmra.mxu0 %v1939
        %v2515 = vpop.f32.mrf.mxu0
        %v2516 = vadd.f32 %v2403, %v2515
        %2517 = vmatmul.f32.gmra.mxu0 %v1940
        %v2518 = vpop.f32.mrf.mxu0
        %v2519 = vadd.f32 %v2406, %v2518
        %2520 = vmatmul.f32.gmra.mxu0 %v1941
        %v2521 = vpop.f32.mrf.mxu0
        %v2522 = vadd.f32 %v2409, %v2521
        %2523 = vmatmul.f32.gmra.mxu0 %v1942
        %v2524 = vpop.f32.mrf.mxu0
        %v2525 = vadd.f32 %v2412, %v2524
        %2526 = vmatmul.f32.gmra.mxu0 %v1943
        %v2527 = vpop.f32.mrf.mxu0
        %v2528 = vadd.f32 %v2415, %v2527
        %2529 = vmatmul.f32.gmra.mxu0 %v1944
        %v2530 = vpop.f32.mrf.mxu0
        %v2531 = vadd.f32 %v2418, %v2530
        %2532 = vmatmul.f32.gmra.mxu0 %v1945
        %v2533 = vpop.f32.mrf.mxu0
        %v2534 = vadd.f32 %v2421, %v2533
        %2535 = vmatmul.f32.gmra.mxu0 %v1946
        %v2536 = vpop.f32.mrf.mxu0
        %v2537 = vadd.f32 %v2424, %v2536
        %2538 = vmatmul.f32.gmra.mxu0 %v1947
        %v2539 = vpop.f32.mrf.mxu0
        %v2540 = vadd.f32 %v2427, %v2539
        %2541 = vmatmul.f32.gmra.mxu0 %v1948
        %v2542 = vpop.f32.mrf.mxu0
        %v2543 = vadd.f32 %v2430, %v2542
        %2544 = vmatmul.f32.gmra.mxu0 %v1949
        %v2545 = vpop.f32.mrf.mxu0
        %v2546 = vadd.f32 %v2433, %v2545
        %2547 = vmatmul.f32.gmra.mxu0 %v1950
        %v2548 = vpop.f32.mrf.mxu0
        %v2549 = vadd.f32 %v2436, %v2548
        %2550 = vmatmul.f32.gmra.mxu0 %v1951
        %v2551 = vpop.f32.mrf.mxu0
        %v2552 = vadd.f32 %v2439, %v2551
        %2553 = vmatmul.f32.gmra.mxu0 %v1952
        %v2554 = vpop.f32.mrf.mxu0
        %v2555 = vadd.f32 %v2442, %v2554
        %2556 = vmatmul.f32.gmra.mxu0 %v1953
        %v2557 = vpop.f32.mrf.mxu0
        %v2558 = vadd.f32 %v2445, %v2557
        %2559 = vmatmul.f32.gmra.mxu0 %v1954
        %v2560 = vpop.f32.mrf.mxu0
        %v2561 = vadd.f32 %v2448, %v2560
        %2562 = vmatmul.f32.gmra.mxu0 %v1955
        %v2563 = vpop.f32.mrf.mxu0
        %v2564 = vadd.f32 %v2451, %v2563
        %2565 = vmatmul.f32.gmra.mxu0 %v1956
        %v2566 = vpop.f32.mrf.mxu0
        %v2567 = vadd.f32 %v2454, %v2566
        %2568 = vmatmul.f32.gmra.mxu0 %v1957
        %v2569 = vpop.f32.mrf.mxu0
        %v2570 = vadd.f32 %v2457, %v2569
        %2571 = vmatmul.f32.gmra.mxu0 %v1958
        %v2572 = vpop.f32.mrf.mxu0
        %v2573 = vadd.f32 %v2460, %v2572
        %2574 = vmatmul.f32.gmra.mxu0 %v1959
        %v2575 = vpop.f32.mrf.mxu0
        %v2576 = vadd.f32 %v2463, %v2575
        %2577 = vmatmul.f32.gmra.mxu0 %v1960
        %v2578 = vpop.f32.mrf.mxu0
        %v2579 = vadd.f32 %v2466, %v2578
        %2580 = vmatmul.f32.gmra.mxu0 %v1961
        %v2581 = vpop.f32.mrf.mxu0
        %v2582 = vadd.f32 %v2469, %v2581
        %2583 = vmatmul.f32.gmra.mxu0 %v1962
        %v2584 = vpop.f32.mrf.mxu0
        %v2585 = vadd.f32 %v2472, %v2584
        %2586 = vdwg.mxu0
        %2587 = vmatpush.msra.mxu0 %v2070
        %2588 = vmatpush.msra.mxu0 %v2069
        %2589 = vmatpush.msra.mxu0 %v2068
        %2590 = vmatpush.msra.mxu0 %v2067
        %2591 = vmatpush.msra.mxu0 %v2066
        %2592 = vmatpush.msra.mxu0 %v2065
        %2593 = vmatpush.msra.mxu0 %v2064
        %2594 = vmatpush.msra.mxu0 %v2063
        %2595 = vmatpush.msra.mxu0 %v2062
        %2596 = vmatpush.msra.mxu0 %v2061
        %2597 = vmatpush.msra.mxu0 %v2060
        %2598 = vmatpush.msra.mxu0 %v2059
        %2599 = vmatpush.msra.mxu0 %v2058
        %2600 = vmatpush.msra.mxu0 %v2057
        %2601 = vmatpush.msra.mxu0 %v2056
        %2602 = vmatpush.msra.mxu0 %v2055
        %2603 = vmatmul.f32.gmra.mxu0 %v1967
        %v2604 = vpop.f32.mrf.mxu0
        %v2605 = vadd.f32 %v2492, %v2604
        %2606 = vmatmul.f32.gmra.mxu0 %v1968
        %v2607 = vpop.f32.mrf.mxu0
        %v2608 = vadd.f32 %v2495, %v2607
        %2609 = vmatmul.f32.gmra.mxu0 %v1969
        %v2610 = vpop.f32.mrf.mxu0
        %v2611 = vadd.f32 %v2498, %v2610
        %2612 = vmatmul.f32.gmra.mxu0 %v1970
        %v2613 = vpop.f32.mrf.mxu0
        %v2614 = vadd.f32 %v2501, %v2613
        %2615 = vmatmul.f32.gmra.mxu0 %v1971
        %v2616 = vpop.f32.mrf.mxu0
        %v2617 = vadd.f32 %v2504, %v2616
        %2618 = vmatmul.f32.gmra.mxu0 %v1972
        %v2619 = vpop.f32.mrf.mxu0
        %v2620 = vadd.f32 %v2507, %v2619
        %2621 = vmatmul.f32.gmra.mxu0 %v1973
        %v2622 = vpop.f32.mrf.mxu0
        %v2623 = vadd.f32 %v2510, %v2622
        %2624 = vmatmul.f32.gmra.mxu0 %v1974
        %v2625 = vpop.f32.mrf.mxu0
        %v2626 = vadd.f32 %v2513, %v2625
        %2627 = vmatmul.f32.gmra.mxu0 %v1975
        %v2628 = vpop.f32.mrf.mxu0
        %v2629 = vadd.f32 %v2516, %v2628
        %2630 = vmatmul.f32.gmra.mxu0 %v1976
        %v2631 = vpop.f32.mrf.mxu0
        %v2632 = vadd.f32 %v2519, %v2631
        %2633 = vmatmul.f32.gmra.mxu0 %v1977
        %v2634 = vpop.f32.mrf.mxu0
        %v2635 = vadd.f32 %v2522, %v2634
        %2636 = vmatmul.f32.gmra.mxu0 %v1978
        %v2637 = vpop.f32.mrf.mxu0
        %v2638 = vadd.f32 %v2525, %v2637
        %2639 = vmatmul.f32.gmra.mxu0 %v1979
        %v2640 = vpop.f32.mrf.mxu0
        %v2641 = vadd.f32 %v2528, %v2640
        %2642 = vmatmul.f32.gmra.mxu0 %v1980
        %v2643 = vpop.f32.mrf.mxu0
        %v2644 = vadd.f32 %v2531, %v2643
        %2645 = vmatmul.f32.gmra.mxu0 %v1981
        %v2646 = vpop.f32.mrf.mxu0
        %v2647 = vadd.f32 %v2534, %v2646
        %2648 = vmatmul.f32.gmra.mxu0 %v1982
        %v2649 = vpop.f32.mrf.mxu0
        %v2650 = vadd.f32 %v2537, %v2649
        %2651 = vmatmul.f32.gmra.mxu0 %v1983
        %v2652 = vpop.f32.mrf.mxu0
        %v2653 = vadd.f32 %v2540, %v2652
        %2654 = vmatmul.f32.gmra.mxu0 %v1984
        %v2655 = vpop.f32.mrf.mxu0
        %v2656 = vadd.f32 %v2543, %v2655
        %2657 = vmatmul.f32.gmra.mxu0 %v1985
        %v2658 = vpop.f32.mrf.mxu0
        %v2659 = vadd.f32 %v2546, %v2658
        %2660 = vmatmul.f32.gmra.mxu0 %v1986
        %v2661 = vpop.f32.mrf.mxu0
        %v2662 = vadd.f32 %v2549, %v2661
        %2663 = vmatmul.f32.gmra.mxu0 %v1987
        %v2664 = vpop.f32.mrf.mxu0
        %v2665 = vadd.f32 %v2552, %v2664
        %2666 = vmatmul.f32.gmra.mxu0 %v1988
        %v2667 = vpop.f32.mrf.mxu0
        %v2668 = vadd.f32 %v2555, %v2667
        %2669 = vmatmul.f32.gmra.mxu0 %v1989
        %v2670 = vpop.f32.mrf.mxu0
        %v2671 = vadd.f32 %v2558, %v2670
        %2672 = vmatmul.f32.gmra.mxu0 %v1990
        %v2673 = vpop.f32.mrf.mxu0
        %v2674 = vadd.f32 %v2561, %v2673
        %2675 = vmatmul.f32.gmra.mxu0 %v1991
        %v2676 = vpop.f32.mrf.mxu0
        %v2677 = vadd.f32 %v2564, %v2676
        %2678 = vmatmul.f32.gmra.mxu0 %v1992
        %v2679 = vpop.f32.mrf.mxu0
        %v2680 = vadd.f32 %v2567, %v2679
        %2681 = vmatmul.f32.gmra.mxu0 %v1993
        %v2682 = vpop.f32.mrf.mxu0
        %v2683 = vadd.f32 %v2570, %v2682
        %2684 = vmatmul.f32.gmra.mxu0 %v1994
        %v2685 = vpop.f32.mrf.mxu0
        %v2686 = vadd.f32 %v2573, %v2685
        %2687 = vmatmul.f32.gmra.mxu0 %v1995
        %v2688 = vpop.f32.mrf.mxu0
        %v2689 = vadd.f32 %v2576, %v2688
        %2690 = vmatmul.f32.gmra.mxu0 %v1996
        %v2691 = vpop.f32.mrf.mxu0
        %v2692 = vadd.f32 %v2579, %v2691
        %2693 = vmatmul.f32.gmra.mxu0 %v1997
        %v2694 = vpop.f32.mrf.mxu0
        %v2695 = vadd.f32 %v2582, %v2694
        %2696 = vmatmul.f32.gmra.mxu0 %v1998
        %v2697 = vpop.f32.mrf.mxu0
        %v2698 = vadd.f32 %v2585, %v2697
        %2699 = vdwg.mxu0
        %2700 = vmatpush.msra.mxu0 %v2086
        %2701 = vmatpush.msra.mxu0 %v2085
        %2702 = vmatpush.msra.mxu0 %v2084
        %2703 = vmatpush.msra.mxu0 %v2083
        %2704 = vmatpush.msra.mxu0 %v2082
        %2705 = vmatpush.msra.mxu0 %v2081
        %2706 = vmatpush.msra.mxu0 %v2080
        %2707 = vmatpush.msra.mxu0 %v2079
        %2708 = vmatpush.msra.mxu0 %v2078
        %2709 = vmatpush.msra.mxu0 %v2077
        %2710 = vmatpush.msra.mxu0 %v2076
        %2711 = vmatpush.msra.mxu0 %v2075
        %2712 = vmatpush.msra.mxu0 %v2074
        %2713 = vmatpush.msra.mxu0 %v2073
        %2714 = vmatpush.msra.mxu0 %v2072
        %2715 = vmatpush.msra.mxu0 %v2071
        %2716 = vmatmul.f32.gmra.mxu0 %v2003
        %v2717 = vpop.f32.mrf.mxu0
        %v2718 = vadd.f32 %v2605, %v2717
        %2719 = vmatmul.f32.gmra.mxu0 %v2004
        %v2720 = vpop.f32.mrf.mxu0
        %v2721 = vadd.f32 %v2608, %v2720
        %2722 = vmatmul.f32.gmra.mxu0 %v2005
        %v2723 = vpop.f32.mrf.mxu0
        %v2724 = vadd.f32 %v2611, %v2723
        %2725 = vmatmul.f32.gmra.mxu0 %v2006
        %v2726 = vpop.f32.mrf.mxu0
        %v2727 = vadd.f32 %v2614, %v2726
        %2728 = vmatmul.f32.gmra.mxu0 %v2007
        %v2729 = vpop.f32.mrf.mxu0
        %v2730 = vadd.f32 %v2617, %v2729
        %2731 = vmatmul.f32.gmra.mxu0 %v2008
        %v2732 = vpop.f32.mrf.mxu0
        %v2733 = vadd.f32 %v2620, %v2732
        %2734 = vmatmul.f32.gmra.mxu0 %v2009
        %v2735 = vpop.f32.mrf.mxu0
        %v2736 = vadd.f32 %v2623, %v2735
        %2737 = vmatmul.f32.gmra.mxu0 %v2010
        %v2738 = vpop.f32.mrf.mxu0
        %v2739 = vadd.f32 %v2626, %v2738
        %2740 = vmatmul.f32.gmra.mxu0 %v2011
        %v2741 = vpop.f32.mrf.mxu0
        %v2742 = vadd.f32 %v2629, %v2741
        %2743 = vmatmul.f32.gmra.mxu0 %v2012
        %v2744 = vpop.f32.mrf.mxu0
        %v2745 = vadd.f32 %v2632, %v2744
        %2746 = vmatmul.f32.gmra.mxu0 %v2013
        %v2747 = vpop.f32.mrf.mxu0
        %v2748 = vadd.f32 %v2635, %v2747
        %2749 = vmatmul.f32.gmra.mxu0 %v2014
        %v2750 = vpop.f32.mrf.mxu0
        %v2751 = vadd.f32 %v2638, %v2750
        %2752 = vmatmul.f32.gmra.mxu0 %v2015
        %v2753 = vpop.f32.mrf.mxu0
        %v2754 = vadd.f32 %v2641, %v2753
        %2755 = vmatmul.f32.gmra.mxu0 %v2016
        %v2756 = vpop.f32.mrf.mxu0
        %v2757 = vadd.f32 %v2644, %v2756
        %2758 = vmatmul.f32.gmra.mxu0 %v2017
        %v2759 = vpop.f32.mrf.mxu0
        %v2760 = vadd.f32 %v2647, %v2759
        %2761 = vmatmul.f32.gmra.mxu0 %v2018
        %v2762 = vpop.f32.mrf.mxu0
        %v2763 = vadd.f32 %v2650, %v2762
        %2764 = vmatmul.f32.gmra.mxu0 %v2019
        %v2765 = vpop.f32.mrf.mxu0
        %v2766 = vadd.f32 %v2653, %v2765
        %2767 = vmatmul.f32.gmra.mxu0 %v2020
        %v2768 = vpop.f32.mrf.mxu0
        %v2769 = vadd.f32 %v2656, %v2768
        %2770 = vmatmul.f32.gmra.mxu0 %v2021
        %v2771 = vpop.f32.mrf.mxu0
        %v2772 = vadd.f32 %v2659, %v2771
        %2773 = vmatmul.f32.gmra.mxu0 %v2022
        %v2774 = vpop.f32.mrf.mxu0
        %v2775 = vadd.f32 %v2662, %v2774
        %2776 = vmatmul.f32.gmra.mxu0 %v2023
        %v2777 = vpop.f32.mrf.mxu0
        %v2778 = vadd.f32 %v2665, %v2777
        %2779 = vmatmul.f32.gmra.mxu0 %v2024
        %v2780 = vpop.f32.mrf.mxu0
        %v2781 = vadd.f32 %v2668, %v2780
        %2782 = vmatmul.f32.gmra.mxu0 %v2025
        %v2783 = vpop.f32.mrf.mxu0
        %v2784 = vadd.f32 %v2671, %v2783
        %2785 = vmatmul.f32.gmra.mxu0 %v2026
        %v2786 = vpop.f32.mrf.mxu0
        %v2787 = vadd.f32 %v2674, %v2786
        %2788 = vmatmul.f32.gmra.mxu0 %v2027
        %v2789 = vpop.f32.mrf.mxu0
        %v2790 = vadd.f32 %v2677, %v2789
        %2791 = vmatmul.f32.gmra.mxu0 %v2028
        %v2792 = vpop.f32.mrf.mxu0
        %v2793 = vadd.f32 %v2680, %v2792
        %2794 = vmatmul.f32.gmra.mxu0 %v2029
        %v2795 = vpop.f32.mrf.mxu0
        %v2796 = vadd.f32 %v2683, %v2795
        %2797 = vmatmul.f32.gmra.mxu0 %v2030
        %v2798 = vpop.f32.mrf.mxu0
        %v2799 = vadd.f32 %v2686, %v2798
        %2800 = vmatmul.f32.gmra.mxu0 %v2031
        %v2801 = vpop.f32.mrf.mxu0
        %v2802 = vadd.f32 %v2689, %v2801
        %2803 = vmatmul.f32.gmra.mxu0 %v2032
        %v2804 = vpop.f32.mrf.mxu0
        %v2805 = vadd.f32 %v2692, %v2804
        %2806 = vmatmul.f32.gmra.mxu0 %v2033
        %v2807 = vpop.f32.mrf.mxu0
        %v2808 = vadd.f32 %v2695, %v2807
        %2809 = vmatmul.f32.gmra.mxu0 %v2034
        %v2810 = vpop.f32.mrf.mxu0
        %v2811 = vadd.f32 %v2698, %v2810
        %2812 = vdwg.mxu0
        %v2813 = vld [vmem:[#allocation8 + $0x300] sm:$0xff]
        %v2814 = vld [vmem:[#allocation8 + $0x308] sm:$0xff]
        %v2815 = vld [vmem:[#allocation8 + $0x310] sm:$0xff]
        %v2816 = vld [vmem:[#allocation8 + $0x318] sm:$0xff]
        %v2817 = vld [vmem:[#allocation8 + $0x320] sm:$0xff]
        %v2818 = vld [vmem:[#allocation8 + $0x328] sm:$0xff]
        %v2819 = vld [vmem:[#allocation8 + $0x330] sm:$0xff]
        %v2820 = vld [vmem:[#allocation8 + $0x338] sm:$0xff]
        %v2821 = vld [vmem:[#allocation8 + $0x340] sm:$0xff]
        %v2822 = vld [vmem:[#allocation8 + $0x348] sm:$0xff]
        %v2823 = vld [vmem:[#allocation8 + $0x350] sm:$0xff]
        %v2824 = vld [vmem:[#allocation8 + $0x358] sm:$0xff]
        %v2825 = vld [vmem:[#allocation8 + $0x360] sm:$0xff]
        %v2826 = vld [vmem:[#allocation8 + $0x368] sm:$0xff]
        %v2827 = vld [vmem:[#allocation8 + $0x370] sm:$0xff]
        %v2828 = vld [vmem:[#allocation8 + $0x378] sm:$0xff]
        %v2829 = vld [vmem:[#allocation8 + $0x380] sm:$0xff]
        %v2830 = vld [vmem:[#allocation8 + $0x388] sm:$0xff]
        %v2831 = vld [vmem:[#allocation8 + $0x390] sm:$0xff]
        %v2832 = vld [vmem:[#allocation8 + $0x398] sm:$0xff]
        %v2833 = vld [vmem:[#allocation8 + $0x3a0] sm:$0xff]
        %v2834 = vld [vmem:[#allocation8 + $0x3a8] sm:$0xff]
        %v2835 = vld [vmem:[#allocation8 + $0x3b0] sm:$0xff]
        %v2836 = vld [vmem:[#allocation8 + $0x3b8] sm:$0xff]
        %v2837 = vld [vmem:[#allocation8 + $0x3c0] sm:$0xff]
        %v2838 = vld [vmem:[#allocation8 + $0x3c8] sm:$0xff]
        %v2839 = vld [vmem:[#allocation8 + $0x3d0] sm:$0xff]
        %v2840 = vld [vmem:[#allocation8 + $0x3d8] sm:$0xff]
        %v2841 = vld [vmem:[#allocation8 + $0x3e0] sm:$0xff]
        %v2842 = vld [vmem:[#allocation8 + $0x3e8] sm:$0xff]
        %v2843 = vld [vmem:[#allocation8 + $0x3f0] sm:$0xff]
        %v2844 = vld [vmem:[#allocation8 + $0x3f8] sm:$0xff]
        %v2845 = vld [vmem:[#allocation8 + $0x400] sm:$0xff]
        %v2846 = vld [vmem:[#allocation8 + $0x408] sm:$0xff]
        %v2847 = vld [vmem:[#allocation8 + $0x410] sm:$0xff]
        %v2848 = vld [vmem:[#allocation8 + $0x418] sm:$0xff]
        %v2849 = vld [vmem:[#allocation8 + $0x420] sm:$0xff]
        %v2850 = vld [vmem:[#allocation8 + $0x428] sm:$0xff]
        %v2851 = vld [vmem:[#allocation8 + $0x430] sm:$0xff]
        %v2852 = vld [vmem:[#allocation8 + $0x438] sm:$0xff]
        %v2853 = vld [vmem:[#allocation8 + $0x440] sm:$0xff]
        %v2854 = vld [vmem:[#allocation8 + $0x448] sm:$0xff]
        %v2855 = vld [vmem:[#allocation8 + $0x450] sm:$0xff]
        %v2856 = vld [vmem:[#allocation8 + $0x458] sm:$0xff]
        %v2857 = vld [vmem:[#allocation8 + $0x460] sm:$0xff]
        %v2858 = vld [vmem:[#allocation8 + $0x468] sm:$0xff]
        %v2859 = vld [vmem:[#allocation8 + $0x470] sm:$0xff]
        %v2860 = vld [vmem:[#allocation8 + $0x478] sm:$0xff]
        %2861 = vmatpush.msra.mxu0 %v2828
        %2862 = vmatpush.msra.mxu0 %v2827
        %2863 = vmatpush.msra.mxu0 %v2826
        %2864 = vmatpush.msra.mxu0 %v2825
        %2865 = vmatpush.msra.mxu0 %v2824
        %2866 = vmatpush.msra.mxu0 %v2823
        %2867 = vmatpush.msra.mxu0 %v2822
        %2868 = vmatpush.msra.mxu0 %v2821
        %2869 = vmatpush.msra.mxu0 %v2820
        %2870 = vmatpush.msra.mxu0 %v2819
        %2871 = vmatpush.msra.mxu0 %v2818
        %2872 = vmatpush.msra.mxu0 %v2817
        %2873 = vmatpush.msra.mxu0 %v2816
        %2874 = vmatpush.msra.mxu0 %v2815
        %2875 = vmatpush.msra.mxu0 %v2814
        %2876 = vmatpush.msra.mxu0 %v2813
        %2877 = vmatmul.f32.gmra.mxu0 %v1935
        %v2878 = vpop.f32.mrf.mxu0
        %v2879 = vadd.f32 0.0, %v2878
        %2880 = vmatmul.f32.gmra.mxu0 %v1936
        %v2881 = vpop.f32.mrf.mxu0
        %v2882 = vadd.f32 0.0, %v2881
        %2883 = vmatmul.f32.gmra.mxu0 %v1937
        %v2884 = vpop.f32.mrf.mxu0
        %v2885 = vadd.f32 0.0, %v2884
        %2886 = vmatmul.f32.gmra.mxu0 %v1938
        %v2887 = vpop.f32.mrf.mxu0
        %v2888 = vadd.f32 0.0, %v2887
        %2889 = vmatmul.f32.gmra.mxu0 %v1939
        %v2890 = vpop.f32.mrf.mxu0
        %v2891 = vadd.f32 0.0, %v2890
        %2892 = vmatmul.f32.gmra.mxu0 %v1940
        %v2893 = vpop.f32.mrf.mxu0
        %v2894 = vadd.f32 0.0, %v2893
        %2895 = vmatmul.f32.gmra.mxu0 %v1941
        %v2896 = vpop.f32.mrf.mxu0
        %v2897 = vadd.f32 0.0, %v2896
        %2898 = vmatmul.f32.gmra.mxu0 %v1942
        %v2899 = vpop.f32.mrf.mxu0
        %v2900 = vadd.f32 0.0, %v2899
        %2901 = vmatmul.f32.gmra.mxu0 %v1943
        %v2902 = vpop.f32.mrf.mxu0
        %v2903 = vadd.f32 0.0, %v2902
        %2904 = vmatmul.f32.gmra.mxu0 %v1944
        %v2905 = vpop.f32.mrf.mxu0
        %v2906 = vadd.f32 0.0, %v2905
        %2907 = vmatmul.f32.gmra.mxu0 %v1945
        %v2908 = vpop.f32.mrf.mxu0
        %v2909 = vadd.f32 0.0, %v2908
        %2910 = vmatmul.f32.gmra.mxu0 %v1946
        %v2911 = vpop.f32.mrf.mxu0
        %v2912 = vadd.f32 0.0, %v2911
        %2913 = vmatmul.f32.gmra.mxu0 %v1947
        %v2914 = vpop.f32.mrf.mxu0
        %v2915 = vadd.f32 0.0, %v2914
        %2916 = vmatmul.f32.gmra.mxu0 %v1948
        %v2917 = vpop.f32.mrf.mxu0
        %v2918 = vadd.f32 0.0, %v2917
        %2919 = vmatmul.f32.gmra.mxu0 %v1949
        %v2920 = vpop.f32.mrf.mxu0
        %v2921 = vadd.f32 0.0, %v2920
        %2922 = vmatmul.f32.gmra.mxu0 %v1950
        %v2923 = vpop.f32.mrf.mxu0
        %v2924 = vadd.f32 0.0, %v2923
        %2925 = vmatmul.f32.gmra.mxu0 %v1951
        %v2926 = vpop.f32.mrf.mxu0
        %v2927 = vadd.f32 0.0, %v2926
        %2928 = vmatmul.f32.gmra.mxu0 %v1952
        %v2929 = vpop.f32.mrf.mxu0
        %v2930 = vadd.f32 0.0, %v2929
        %2931 = vmatmul.f32.gmra.mxu0 %v1953
        %v2932 = vpop.f32.mrf.mxu0
        %v2933 = vadd.f32 0.0, %v2932
        %2934 = vmatmul.f32.gmra.mxu0 %v1954
        %v2935 = vpop.f32.mrf.mxu0
        %v2936 = vadd.f32 0.0, %v2935
        %2937 = vmatmul.f32.gmra.mxu0 %v1955
        %v2938 = vpop.f32.mrf.mxu0
        %v2939 = vadd.f32 0.0, %v2938
        %2940 = vmatmul.f32.gmra.mxu0 %v1956
        %v2941 = vpop.f32.mrf.mxu0
        %v2942 = vadd.f32 0.0, %v2941
        %2943 = vmatmul.f32.gmra.mxu0 %v1957
        %v2944 = vpop.f32.mrf.mxu0
        %v2945 = vadd.f32 0.0, %v2944
        %2946 = vmatmul.f32.gmra.mxu0 %v1958
        %v2947 = vpop.f32.mrf.mxu0
        %v2948 = vadd.f32 0.0, %v2947
        %2949 = vmatmul.f32.gmra.mxu0 %v1959
        %v2950 = vpop.f32.mrf.mxu0
        %v2951 = vadd.f32 0.0, %v2950
        %2952 = vmatmul.f32.gmra.mxu0 %v1960
        %v2953 = vpop.f32.mrf.mxu0
        %v2954 = vadd.f32 0.0, %v2953
        %2955 = vmatmul.f32.gmra.mxu0 %v1961
        %v2956 = vpop.f32.mrf.mxu0
        %v2957 = vadd.f32 0.0, %v2956
        %2958 = vmatmul.f32.gmra.mxu0 %v1962
        %v2959 = vpop.f32.mrf.mxu0
        %v2960 = vadd.f32 0.0, %v2959
        %2961 = vmatmul.f32.gmra.mxu0 %v1963
        %v2962 = vpop.f32.mrf.mxu0
        %v2963 = vadd.f32 0.0, %v2962
        %2964 = vmatmul.f32.gmra.mxu0 %v1964
        %v2965 = vpop.f32.mrf.mxu0
        %v2966 = vadd.f32 0.0, %v2965
        %2967 = vmatmul.f32.gmra.mxu0 %v1965
        %v2968 = vpop.f32.mrf.mxu0
        %v2969 = vadd.f32 0.0, %v2968
        %2970 = vmatmul.f32.gmra.mxu0 %v1966
        %v2971 = vpop.f32.mrf.mxu0
        %v2972 = vadd.f32 0.0, %v2971
        %2973 = vdwg.mxu0
        %2974 = vmatpush.msra.mxu0 %v2844
        %2975 = vmatpush.msra.mxu0 %v2843
        %2976 = vmatpush.msra.mxu0 %v2842
        %2977 = vmatpush.msra.mxu0 %v2841
        %2978 = vmatpush.msra.mxu0 %v2840
        %2979 = vmatpush.msra.mxu0 %v2839
        %2980 = vmatpush.msra.mxu0 %v2838
        %2981 = vmatpush.msra.mxu0 %v2837
        %2982 = vmatpush.msra.mxu0 %v2836
        %2983 = vmatpush.msra.mxu0 %v2835
        %2984 = vmatpush.msra.mxu0 %v2834
        %2985 = vmatpush.msra.mxu0 %v2833
        %2986 = vmatpush.msra.mxu0 %v2832
        %2987 = vmatpush.msra.mxu0 %v2831
        %2988 = vmatpush.msra.mxu0 %v2830
        %2989 = vmatpush.msra.mxu0 %v2829
        %2990 = vmatmul.f32.gmra.mxu0 %v1971
        %v2991 = vpop.f32.mrf.mxu0
        %v2992 = vadd.f32 %v2879, %v2991
        %2993 = vmatmul.f32.gmra.mxu0 %v1972
        %v2994 = vpop.f32.mrf.mxu0
        %v2995 = vadd.f32 %v2882, %v2994
        %2996 = vmatmul.f32.gmra.mxu0 %v1973
        %v2997 = vpop.f32.mrf.mxu0
        %v2998 = vadd.f32 %v2885, %v2997
        %2999 = vmatmul.f32.gmra.mxu0 %v1974
        %v3000 = vpop.f32.mrf.mxu0
        %v3001 = vadd.f32 %v2888, %v3000
        %3002 = vmatmul.f32.gmra.mxu0 %v1975
        %v3003 = vpop.f32.mrf.mxu0
        %v3004 = vadd.f32 %v2891, %v3003
        %3005 = vmatmul.f32.gmra.mxu0 %v1976
        %v3006 = vpop.f32.mrf.mxu0
        %v3007 = vadd.f32 %v2894, %v3006
        %3008 = vmatmul.f32.gmra.mxu0 %v1977
        %v3009 = vpop.f32.mrf.mxu0
        %v3010 = vadd.f32 %v2897, %v3009
        %3011 = vmatmul.f32.gmra.mxu0 %v1978
        %v3012 = vpop.f32.mrf.mxu0
        %v3013 = vadd.f32 %v2900, %v3012
        %3014 = vmatmul.f32.gmra.mxu0 %v1979
        %v3015 = vpop.f32.mrf.mxu0
        %v3016 = vadd.f32 %v2903, %v3015
        %3017 = vmatmul.f32.gmra.mxu0 %v1980
        %v3018 = vpop.f32.mrf.mxu0
        %v3019 = vadd.f32 %v2906, %v3018
        %3020 = vmatmul.f32.gmra.mxu0 %v1981
        %v3021 = vpop.f32.mrf.mxu0
        %v3022 = vadd.f32 %v2909, %v3021
        %3023 = vmatmul.f32.gmra.mxu0 %v1982
        %v3024 = vpop.f32.mrf.mxu0
        %v3025 = vadd.f32 %v2912, %v3024
        %3026 = vmatmul.f32.gmra.mxu0 %v1983
        %v3027 = vpop.f32.mrf.mxu0
        %v3028 = vadd.f32 %v2915, %v3027
        %3029 = vmatmul.f32.gmra.mxu0 %v1984
        %v3030 = vpop.f32.mrf.mxu0
        %v3031 = vadd.f32 %v2918, %v3030
        %3032 = vmatmul.f32.gmra.mxu0 %v1985
        %v3033 = vpop.f32.mrf.mxu0
        %v3034 = vadd.f32 %v2921, %v3033
        %3035 = vmatmul.f32.gmra.mxu0 %v1986
        %v3036 = vpop.f32.mrf.mxu0
        %v3037 = vadd.f32 %v2924, %v3036
        %3038 = vmatmul.f32.gmra.mxu0 %v1987
        %v3039 = vpop.f32.mrf.mxu0
        %v3040 = vadd.f32 %v2927, %v3039
        %3041 = vmatmul.f32.gmra.mxu0 %v1988
        %v3042 = vpop.f32.mrf.mxu0
        %v3043 = vadd.f32 %v2930, %v3042
        %3044 = vmatmul.f32.gmra.mxu0 %v1989
        %v3045 = vpop.f32.mrf.mxu0
        %v3046 = vadd.f32 %v2933, %v3045
        %3047 = vmatmul.f32.gmra.mxu0 %v1990
        %v3048 = vpop.f32.mrf.mxu0
        %v3049 = vadd.f32 %v2936, %v3048
        %3050 = vmatmul.f32.gmra.mxu0 %v1991
        %v3051 = vpop.f32.mrf.mxu0
        %v3052 = vadd.f32 %v2939, %v3051
        %3053 = vmatmul.f32.gmra.mxu0 %v1992
        %v3054 = vpop.f32.mrf.mxu0
        %v3055 = vadd.f32 %v2942, %v3054
        %3056 = vmatmul.f32.gmra.mxu0 %v1993
        %v3057 = vpop.f32.mrf.mxu0
        %v3058 = vadd.f32 %v2945, %v3057
        %3059 = vmatmul.f32.gmra.mxu0 %v1994
        %v3060 = vpop.f32.mrf.mxu0
        %v3061 = vadd.f32 %v2948, %v3060
        %3062 = vmatmul.f32.gmra.mxu0 %v1995
        %v3063 = vpop.f32.mrf.mxu0
        %v3064 = vadd.f32 %v2951, %v3063
        %3065 = vmatmul.f32.gmra.mxu0 %v1996
        %v3066 = vpop.f32.mrf.mxu0
        %v3067 = vadd.f32 %v2954, %v3066
        %3068 = vmatmul.f32.gmra.mxu0 %v1997
        %v3069 = vpop.f32.mrf.mxu0
        %v3070 = vadd.f32 %v2957, %v3069
        %3071 = vmatmul.f32.gmra.mxu0 %v1998
        %v3072 = vpop.f32.mrf.mxu0
        %v3073 = vadd.f32 %v2960, %v3072
        %3074 = vmatmul.f32.gmra.mxu0 %v1999
        %v3075 = vpop.f32.mrf.mxu0
        %v3076 = vadd.f32 %v2963, %v3075
        %3077 = vmatmul.f32.gmra.mxu0 %v2000
        %v3078 = vpop.f32.mrf.mxu0
        %v3079 = vadd.f32 %v2966, %v3078
        %3080 = vmatmul.f32.gmra.mxu0 %v2001
        %v3081 = vpop.f32.mrf.mxu0
        %v3082 = vadd.f32 %v2969, %v3081
        %3083 = vmatmul.f32.gmra.mxu0 %v2002
        %v3084 = vpop.f32.mrf.mxu0
        %v3085 = vadd.f32 %v2972, %v3084
        %3086 = vdwg.mxu0
        %3087 = vmatpush.msra.mxu0 %v2860
        %3088 = vmatpush.msra.mxu0 %v2859
        %3089 = vmatpush.msra.mxu0 %v2858
        %3090 = vmatpush.msra.mxu0 %v2857
        %3091 = vmatpush.msra.mxu0 %v2856
        %3092 = vmatpush.msra.mxu0 %v2855
        %3093 = vmatpush.msra.mxu0 %v2854
        %3094 = vmatpush.msra.mxu0 %v2853
        %3095 = vmatpush.msra.mxu0 %v2852
        %3096 = vmatpush.msra.mxu0 %v2851
        %3097 = vmatpush.msra.mxu0 %v2850
        %3098 = vmatpush.msra.mxu0 %v2849
        %3099 = vmatpush.msra.mxu0 %v2848
        %3100 = vmatpush.msra.mxu0 %v2847
        %3101 = vmatpush.msra.mxu0 %v2846
        %3102 = vmatpush.msra.mxu0 %v2845
        %3103 = vmatmul.f32.gmra.mxu0 %v2007
        %v3104 = vpop.f32.mrf.mxu0
        %v3105 = vadd.f32 %v2992, %v3104
        %3106 = vmatmul.f32.gmra.mxu0 %v2008
        %v3107 = vpop.f32.mrf.mxu0
        %v3108 = vadd.f32 %v2995, %v3107
        %3109 = vmatmul.f32.gmra.mxu0 %v2009
        %v3110 = vpop.f32.mrf.mxu0
        %v3111 = vadd.f32 %v2998, %v3110
        %3112 = vmatmul.f32.gmra.mxu0 %v2010
        %v3113 = vpop.f32.mrf.mxu0
        %v3114 = vadd.f32 %v3001, %v3113
        %3115 = vmatmul.f32.gmra.mxu0 %v2011
        %v3116 = vpop.f32.mrf.mxu0
        %v3117 = vadd.f32 %v3004, %v3116
        %3118 = vmatmul.f32.gmra.mxu0 %v2012
        %v3119 = vpop.f32.mrf.mxu0
        %v3120 = vadd.f32 %v3007, %v3119
        %3121 = vmatmul.f32.gmra.mxu0 %v2013
        %v3122 = vpop.f32.mrf.mxu0
        %v3123 = vadd.f32 %v3010, %v3122
        %3124 = vmatmul.f32.gmra.mxu0 %v2014
        %v3125 = vpop.f32.mrf.mxu0
        %v3126 = vadd.f32 %v3013, %v3125
        %3127 = vmatmul.f32.gmra.mxu0 %v2015
        %v3128 = vpop.f32.mrf.mxu0
        %v3129 = vadd.f32 %v3016, %v3128
        %3130 = vmatmul.f32.gmra.mxu0 %v2016
        %v3131 = vpop.f32.mrf.mxu0
        %v3132 = vadd.f32 %v3019, %v3131
        %3133 = vmatmul.f32.gmra.mxu0 %v2017
        %v3134 = vpop.f32.mrf.mxu0
        %v3135 = vadd.f32 %v3022, %v3134
        %3136 = vmatmul.f32.gmra.mxu0 %v2018
        %v3137 = vpop.f32.mrf.mxu0
        %v3138 = vadd.f32 %v3025, %v3137
        %3139 = vmatmul.f32.gmra.mxu0 %v2019
        %v3140 = vpop.f32.mrf.mxu0
        %v3141 = vadd.f32 %v3028, %v3140
        %3142 = vmatmul.f32.gmra.mxu0 %v2020
        %v3143 = vpop.f32.mrf.mxu0
        %v3144 = vadd.f32 %v3031, %v3143
        %3145 = vmatmul.f32.gmra.mxu0 %v2021
        %v3146 = vpop.f32.mrf.mxu0
        %v3147 = vadd.f32 %v3034, %v3146
        %3148 = vmatmul.f32.gmra.mxu0 %v2022
        %v3149 = vpop.f32.mrf.mxu0
        %v3150 = vadd.f32 %v3037, %v3149
        %3151 = vmatmul.f32.gmra.mxu0 %v2023
        %v3152 = vpop.f32.mrf.mxu0
        %v3153 = vadd.f32 %v3040, %v3152
        %3154 = vmatmul.f32.gmra.mxu0 %v2024
        %v3155 = vpop.f32.mrf.mxu0
        %v3156 = vadd.f32 %v3043, %v3155
        %3157 = vmatmul.f32.gmra.mxu0 %v2025
        %v3158 = vpop.f32.mrf.mxu0
        %v3159 = vadd.f32 %v3046, %v3158
        %3160 = vmatmul.f32.gmra.mxu0 %v2026
        %v3161 = vpop.f32.mrf.mxu0
        %v3162 = vadd.f32 %v3049, %v3161
        %3163 = vmatmul.f32.gmra.mxu0 %v2027
        %v3164 = vpop.f32.mrf.mxu0
        %v3165 = vadd.f32 %v3052, %v3164
        %3166 = vmatmul.f32.gmra.mxu0 %v2028
        %v3167 = vpop.f32.mrf.mxu0
        %v3168 = vadd.f32 %v3055, %v3167
        %3169 = vmatmul.f32.gmra.mxu0 %v2029
        %v3170 = vpop.f32.mrf.mxu0
        %v3171 = vadd.f32 %v3058, %v3170
        %3172 = vmatmul.f32.gmra.mxu0 %v2030
        %v3173 = vpop.f32.mrf.mxu0
        %v3174 = vadd.f32 %v3061, %v3173
        %3175 = vmatmul.f32.gmra.mxu0 %v2031
        %v3176 = vpop.f32.mrf.mxu0
        %v3177 = vadd.f32 %v3064, %v3176
        %3178 = vmatmul.f32.gmra.mxu0 %v2032
        %v3179 = vpop.f32.mrf.mxu0
        %v3180 = vadd.f32 %v3067, %v3179
        %3181 = vmatmul.f32.gmra.mxu0 %v2033
        %v3182 = vpop.f32.mrf.mxu0
        %v3183 = vadd.f32 %v3070, %v3182
        %3184 = vmatmul.f32.gmra.mxu0 %v2034
        %v3185 = vpop.f32.mrf.mxu0
        %v3186 = vadd.f32 %v3073, %v3185
        %3187 = vmatmul.f32.gmra.mxu0 %v2035
        %v3188 = vpop.f32.mrf.mxu0
        %v3189 = vadd.f32 %v3076, %v3188
        %3190 = vmatmul.f32.gmra.mxu0 %v2036
        %v3191 = vpop.f32.mrf.mxu0
        %v3192 = vadd.f32 %v3079, %v3191
        %3193 = vmatmul.f32.gmra.mxu0 %v2037
        %v3194 = vpop.f32.mrf.mxu0
        %v3195 = vadd.f32 %v3082, %v3194
        %3196 = vmatmul.f32.gmra.mxu0 %v2038
        %v3197 = vpop.f32.mrf.mxu0
        %v3198 = vadd.f32 %v3085, %v3197
        %3199 = vdwg.mxu0
        %v3200 = vadd.f32 %v2718, %v3105
        %v3201 = vadd.f32 %v2721, %v3108
        %v3202 = vadd.f32 %v2724, %v3111
        %v3203 = vadd.f32 %v2727, %v3114
        %v3204 = vadd.f32 %v2730, %v3117
        %v3205 = vadd.f32 %v2733, %v3120
        %v3206 = vadd.f32 %v2736, %v3123
        %v3207 = vadd.f32 %v2739, %v3126
        %v3208 = vadd.f32 %v2742, %v3129
        %v3209 = vadd.f32 %v2745, %v3132
        %v3210 = vadd.f32 %v2748, %v3135
        %v3211 = vadd.f32 %v2751, %v3138
        %v3212 = vadd.f32 %v2754, %v3141
        %v3213 = vadd.f32 %v2757, %v3144
        %v3214 = vadd.f32 %v2760, %v3147
        %v3215 = vadd.f32 %v2763, %v3150
        %v3216 = vadd.f32 %v2766, %v3153
        %v3217 = vadd.f32 %v2769, %v3156
        %v3218 = vadd.f32 %v2772, %v3159
        %v3219 = vadd.f32 %v2775, %v3162
        %v3220 = vadd.f32 %v2778, %v3165
        %v3221 = vadd.f32 %v2781, %v3168
        %v3222 = vadd.f32 %v2784, %v3171
        %v3223 = vadd.f32 %v2787, %v3174
        %v3224 = vadd.f32 %v2790, %v3177
        %v3225 = vadd.f32 %v2793, %v3180
        %v3226 = vadd.f32 %v2796, %v3183
        %v3227 = vadd.f32 %v2799, %v3186
        %v3228 = vadd.f32 %v2802, %v3189
        %v3229 = vadd.f32 %v2805, %v3192
        %v3230 = vadd.f32 %v2808, %v3195
        %v3231 = vadd.f32 %v2811, %v3198
        %v3232 = vadd.f32 %v3200, %v3201
        %v3233 = vadd.f32 %v3232, %v3202
        %v3234 = vadd.f32 %v3233, %v3203
        %v3235 = vadd.f32 %v3234, %v3204
        %v3236 = vadd.f32 %v3235, %v3205
        %v3237 = vadd.f32 %v3236, %v3206
        %v3238 = vadd.f32 %v3237, %v3207
        %v3239 = vadd.f32 %v3238, %v3208
        %v3240 = vadd.f32 %v3239, %v3209
        %v3241 = vadd.f32 %v3240, %v3210
        %v3242 = vadd.f32 %v3241, %v3211
        %v3243 = vadd.f32 %v3242, %v3212
        %v3244 = vadd.f32 %v3243, %v3213
        %v3245 = vadd.f32 %v3244, %v3214
        %v3246 = vadd.f32 %v3245, %v3215
        %v3247 = vadd.f32 %v3246, %v3216
        %v3248 = vadd.f32 %v3247, %v3217
        %v3249 = vadd.f32 %v3248, %v3218
        %v3250 = vadd.f32 %v3249, %v3219
        %v3251 = vadd.f32 %v3250, %v3220
        %v3252 = vadd.f32 %v3251, %v3221
        %v3253 = vadd.f32 %v3252, %v3222
        %v3254 = vadd.f32 %v3253, %v3223
        %v3255 = vadd.f32 %v3254, %v3224
        %v3256 = vadd.f32 %v3255, %v3225
        %v3257 = vadd.f32 %v3256, %v3226
        %v3258 = vadd.f32 %v3257, %v3227
        %v3259 = vadd.f32 %v3258, %v3228
        %v3260 = vadd.f32 %v3259, %v3229
        %v3261 = vadd.f32 %v3260, %v3230
        %v3262 = vadd.f32 %v3261, %v3231
        %v3263 = vrot.slane %v3262, 4
        %v3264 = vadd.f32 %v3262, %v3263
        %v3265 = vrot.slane %v3264, 2
        %v3266 = vadd.f32 %v3264, %v3265
        %v3267 = vrot.slane %v3266, 1
        %v3268 = vadd.f32 %v3266, %v3267
        %v3269 = vmul.f32 %v3268, 0.00390625
        %v3270 = vmul.f32 %v3200, %v3200
        %v3271 = vmul.f32 %v3201, %v3201
        %v3272 = vmul.f32 %v3202, %v3202
        %v3273 = vmul.f32 %v3203, %v3203
        %v3274 = vmul.f32 %v3204, %v3204
        %v3275 = vmul.f32 %v3205, %v3205
        %v3276 = vmul.f32 %v3206, %v3206
        %v3277 = vmul.f32 %v3207, %v3207
        %v3278 = vmul.f32 %v3208, %v3208
        %v3279 = vmul.f32 %v3209, %v3209
        %v3280 = vmul.f32 %v3210, %v3210
        %v3281 = vmul.f32 %v3211, %v3211
        %v3282 = vmul.f32 %v3212, %v3212
        %v3283 = vmul.f32 %v3213, %v3213
        %v3284 = vmul.f32 %v3214, %v3214
        %v3285 = vmul.f32 %v3215, %v3215
        %v3286 = vmul.f32 %v3216, %v3216
        %v3287 = vmul.f32 %v3217, %v3217
        %v3288 = vmul.f32 %v3218, %v3218
        %v3289 = vmul.f32 %v3219, %v3219
        %v3290 = vmul.f32 %v3220, %v3220
        %v3291 = vmul.f32 %v3221, %v3221
        %v3292 = vmul.f32 %v3222, %v3222
        %v3293 = vmul.f32 %v3223, %v3223
        %v3294 = vmul.f32 %v3224, %v3224
        %v3295 = vmul.f32 %v3225, %v3225
        %v3296 = vmul.f32 %v3226, %v3226
        %v3297 = vmul.f32 %v3227, %v3227
        %v3298 = vmul.f32 %v3228, %v3228
        %v3299 = vmul.f32 %v3229, %v3229
        %v3300 = vmul.f32 %v3230, %v3230
        %v3301 = vmul.f32 %v3231, %v3231
        %v3302 = vadd.f32 %v3270, %v3271
        %v3303 = vadd.f32 %v3302, %v3272
        %v3304 = vadd.f32 %v3303, %v3273
        %v3305 = vadd.f32 %v3304, %v3274
        %v3306 = vadd.f32 %v3305, %v3275
        %v3307 = vadd.f32 %v3306, %v3276
        %v3308 = vadd.f32 %v3307, %v3277
        %v3309 = vadd.f32 %v3308, %v3278
        %v3310 = vadd.f32 %v3309, %v3279
        %v3311 = vadd.f32 %v3310, %v3280
        %v3312 = vadd.f32 %v3311, %v3281
        %v3313 = vadd.f32 %v3312, %v3282
        %v3314 = vadd.f32 %v3313, %v3283
        %v3315 = vadd.f32 %v3314, %v3284
        %v3316 = vadd.f32 %v3315, %v3285
        %v3317 = vadd.f32 %v3316, %v3286
        %v3318 = vadd.f32 %v3317, %v3287
        %v3319 = vadd.f32 %v3318, %v3288
        %v3320 = vadd.f32 %v3319, %v3289
        %v3321 = vadd.f32 %v3320, %v3290
        %v3322 = vadd.f32 %v3321, %v3291
        %v3323 = vadd.f32 %v3322, %v3292
        %v3324 = vadd.f32 %v3323, %v3293
        %v3325 = vadd.f32 %v3324, %v3294
        %v3326 = vadd.f32 %v3325, %v3295
        %v3327 = vadd.f32 %v3326, %v3296
        %v3328 = vadd.f32 %v3327, %v3297
        %v3329 = vadd.f32 %v3328, %v3298
        %v3330 = vadd.f32 %v3329, %v3299
        %v3331 = vadd.f32 %v3330, %v3300
        %v3332 = vadd.f32 %v3331, %v3301
        %v3333 = vrot.slane %v3332, 4
        %v3334 = vadd.f32 %v3332, %v3333
        %v3335 = vrot.slane %v3334, 2
        %v3336 = vadd.f32 %v3334, %v3335
        %v3337 = vrot.slane %v3336, 1
        %v3338 = vadd.f32 %v3336, %v3337
        %v3339 = vmul.f32 %v3338, 0.00390625
        %v3340 = vmul.f32 %v3269, %v3269
        %v3341 = vsub.f32 %v3339, %v3340
        %v3342 = vmax.f32 %v3341, 0.0
        %v3343 = vadd.f32 %v3342, 1e-05
        %v3344 = vrsqrt.pop %v3343
        %v3345 = vmul.f32 %v3344, %v3343
        %v3346 = vmul.f32 %v3345, %v3344
        %v3347 = vmul.f32 0.5, %v3346
        %v3348 = vsub.f32 1.5, %v3347
        %v3349 = vmul.f32 %v3344, %v3348
        %vm3350 = vweird.f32 %v3343
        %vm3351 = vweird.f32 %v3344
        %vm3352 = vmor %vm3350, %vm3351
        %v3353 = vsel %vm3352, %v3344, %v3349
        %v3354 = vsub.f32 %v3200, %v3269
        %v3355 = vsub.f32 %v3201, %v3269
        %v3356 = vsub.f32 %v3202, %v3269
        %v3357 = vsub.f32 %v3203, %v3269
        %v3358 = vsub.f32 %v3204, %v3269
        %v3359 = vsub.f32 %v3205, %v3269
        %v3360 = vsub.f32 %v3206, %v3269
        %v3361 = vsub.f32 %v3207, %v3269
        %v3362 = vsub.f32 %v3208, %v3269
        %v3363 = vsub.f32 %v3209, %v3269
        %v3364 = vsub.f32 %v3210, %v3269
        %v3365 = vsub.f32 %v3211, %v3269
        %v3366 = vsub.f32 %v3212, %v3269
        %v3367 = vsub.f32 %v3213, %v3269
        %v3368 = vsub.f32 %v3214, %v3269
        %v3369 = vsub.f32 %v3215, %v3269
        %v3370 = vsub.f32 %v3216, %v3269
        %v3371 = vsub.f32 %v3217, %v3269
        %v3372 = vsub.f32 %v3218, %v3269
        %v3373 = vsub.f32 %v3219, %v3269
        %v3374 = vsub.f32 %v3220, %v3269
        %v3375 = vsub.f32 %v3221, %v3269
        %v3376 = vsub.f32 %v3222, %v3269
        %v3377 = vsub.f32 %v3223, %v3269
        %v3378 = vsub.f32 %v3224, %v3269
        %v3379 = vsub.f32 %v3225, %v3269
        %v3380 = vsub.f32 %v3226, %v3269
        %v3381 = vsub.f32 %v3227, %v3269
        %v3382 = vsub.f32 %v3228, %v3269
        %v3383 = vsub.f32 %v3229, %v3269
        %v3384 = vsub.f32 %v3230, %v3269
        %v3385 = vsub.f32 %v3231, %v3269
        %v3386 = vmul.f32 %v3354, %v3353
        %v3387 = vmul.f32 %v3355, %v3353
        %v3388 = vmul.f32 %v3356, %v3353
        %v3389 = vmul.f32 %v3357, %v3353
        %v3390 = vmul.f32 %v3358, %v3353
        %v3391 = vmul.f32 %v3359, %v3353
        %v3392 = vmul.f32 %v3360, %v3353
        %v3393 = vmul.f32 %v3361, %v3353
        %v3394 = vmul.f32 %v3362, %v3353
        %v3395 = vmul.f32 %v3363, %v3353
        %v3396 = vmul.f32 %v3364, %v3353
        %v3397 = vmul.f32 %v3365, %v3353
        %v3398 = vmul.f32 %v3366, %v3353
        %v3399 = vmul.f32 %v3367, %v3353
        %v3400 = vmul.f32 %v3368, %v3353
        %v3401 = vmul.f32 %v3369, %v3353
        %v3402 = vmul.f32 %v3370, %v3353
        %v3403 = vmul.f32 %v3371, %v3353
        %v3404 = vmul.f32 %v3372, %v3353
        %v3405 = vmul.f32 %v3373, %v3353
        %v3406 = vmul.f32 %v3374, %v3353
        %v3407 = vmul.f32 %v3375, %v3353
        %v3408 = vmul.f32 %v3376, %v3353
        %v3409 = vmul.f32 %v3377, %v3353
        %v3410 = vmul.f32 %v3378, %v3353
        %v3411 = vmul.f32 %v3379, %v3353
        %v3412 = vmul.f32 %v3380, %v3353
        %v3413 = vmul.f32 %v3381, %v3353
        %v3414 = vmul.f32 %v3382, %v3353
        %v3415 = vmul.f32 %v3383, %v3353
        %v3416 = vmul.f32 %v3384, %v3353
        %v3417 = vmul.f32 %v3385, %v3353
        %v3418 = vadd.f32 %v224, %v3386
        %v3419 = vadd.f32 %v225, %v3387
        %v3420 = vadd.f32 %v226, %v3388
        %v3421 = vadd.f32 %v227, %v3389
        %v3422 = vadd.f32 %v228, %v3390
        %v3423 = vadd.f32 %v229, %v3391
        %v3424 = vadd.f32 %v230, %v3392
        %v3425 = vadd.f32 %v231, %v3393
        %v3426 = vadd.f32 %v232, %v3394
        %v3427 = vadd.f32 %v233, %v3395
        %v3428 = vadd.f32 %v234, %v3396
        %v3429 = vadd.f32 %v235, %v3397
        %v3430 = vadd.f32 %v236, %v3398
        %v3431 = vadd.f32 %v237, %v3399
        %v3432 = vadd.f32 %v238, %v3400
        %v3433 = vadd.f32 %v239, %v3401
        %v3434 = vadd.f32 %v240, %v3402
        %v3435 = vadd.f32 %v241, %v3403
        %v3436 = vadd.f32 %v242, %v3404
        %v3437 = vadd.f32 %v243, %v3405
        %v3438 = vadd.f32 %v244, %v3406
        %v3439 = vadd.f32 %v245, %v3407
        %v3440 = vadd.f32 %v246, %v3408
        %v3441 = vadd.f32 %v247, %v3409
        %v3442 = vadd.f32 %v248, %v3410
        %v3443 = vadd.f32 %v249, %v3411
        %v3444 = vadd.f32 %v250, %v3412
        %v3445 = vadd.f32 %v251, %v3413
        %v3446 = vadd.f32 %v252, %v3414
        %v3447 = vadd.f32 %v253, %v3415
        %v3448 = vadd.f32 %v254, %v3416
        %v3449 = vadd.f32 %v255, %v3417
        %3450 = vst [vmem:[%s223] sm:$0xff] %v3418
        %3451 = vst [vmem:[%s223 + $0x8] sm:$0xff] %v3419
        %3452 = vst [vmem:[%s223 + $0x10] sm:$0xff] %v3420
        %3453 = vst [vmem:[%s223 + $0x18] sm:$0xff] %v3421
        %3454 = vst [vmem:[%s223 + $0x20] sm:$0xff] %v3422
        %3455 = vst [vmem:[%s223 + $0x28] sm:$0xff] %v3423
        %3456 = vst [vmem:[%s223 + $0x30] sm:$0xff] %v3424
        %3457 = vst [vmem:[%s223 + $0x38] sm:$0xff] %v3425
        %3458 = vst [vmem:[%s223 + $0x40] sm:$0xff] %v3426
        %3459 = vst [vmem:[%s223 + $0x48] sm:$0xff] %v3427
        %3460 = vst [vmem:[%s223 + $0x50] sm:$0xff] %v3428
        %3461 = vst [vmem:[%s223 + $0x58] sm:$0xff] %v3429
        %3462 = vst [vmem:[%s223 + $0x60] sm:$0xff] %v3430
        %3463 = vst [vmem:[%s223 + $0x68] sm:$0xff] %v3431
        %3464 = vst [vmem:[%s223 + $0x70] sm:$0xff] %v3432
        %3465 = vst [vmem:[%s223 + $0x78] sm:$0xff] %v3433
        %3466 = vst [vmem:[%s223 + $0x80] sm:$0xff] %v3434
        %3467 = vst [vmem:[%s223 + $0x88] sm:$0xff] %v3435
        %3468 = vst [vmem:[%s223 + $0x90] sm:$0xff] %v3436
        %3469 = vst [vmem:[%s223 + $0x98] sm:$0xff] %v3437
        %3470 = vst [vmem:[%s223 + $0xa0] sm:$0xff] %v3438
        %3471 = vst [vmem:[%s223 + $0xa8] sm:$0xff] %v3439
        %3472 = vst [vmem:[%s223 + $0xb0] sm:$0xff] %v3440
        %3473 = vst [vmem:[%s223 + $0xb8] sm:$0xff] %v3441
        %3474 = vst [vmem:[%s223 + $0xc0] sm:$0xff] %v3442
        %3475 = vst [vmem:[%s223 + $0xc8] sm:$0xff] %v3443
        %3476 = vst [vmem:[%s223 + $0xd0] sm:$0xff] %v3444
        %3477 = vst [vmem:[%s223 + $0xd8] sm:$0xff] %v3445
        %3478 = vst [vmem:[%s223 + $0xe0] sm:$0xff] %v3446
        %3479 = vst [vmem:[%s223 + $0xe8] sm:$0xff] %v3447
        %3480 = vst [vmem:[%s223 + $0xf0] sm:$0xff] %v3448
        %3481 = vst [vmem:[%s223 + $0xf8] sm:$0xff] %v3449
        %s3482 = sand.u32 %s97, 1
        %s3483 = scalar_lea.sflag [#allocation5], %s3482
        %s3484 = sand.u32 %s97, 1
        %s3485 = smul.addr %s3484, 256
        %s3486 = scalar_lea.vmem [#allocation9], %s3485
        // Predicated region
        $region45: #{tpu_custom_call.1} parent=31 // pred_check
          %p3487 = pneg %p107
        $region46: #{tpu_custom_call.1} parent=31 // pred_check_branch
          %3489 = sbr.rel (%p3487) target = $region48
        $region47: #{tpu_custom_call.1} parent=31 // pred_region
          %3491 = vsyncadd %s3483, 0
          %s3492 = smul.addr %s21, 32
          %s3493 = smul.addr %s3492, 8
          %s3494 = scalar_lea.hbm %s3, %s3493
          %s3495 = sshll.u32 %s3486, 4
          %s3496 = int_to_ptr.vmem [resolvable:$true] %s3495
          %s3497 = sshll.u32 %s3494, 4
          %s3498 = int_to_ptr.hbm [resolvable:$true] %s3497
          %3503 = dma.vmem_to_hbm [thread:$0]  %s3496, 4096, %s3498, %s3483, 128, 128, 8
        $region48: #{tpu_custom_call.1} parent=31 // pred_fallthru
          _
      $region32: #{tpu_custom_call.1} parent=5 // pred_fallthru
        _
      %p3504 = scmp.le.s32.totalorder 2, %s16
      // Predicated region
      $region49: #{tpu_custom_call.1} parent=5 // pred_check
        %p3505 = pneg %p3504
      $region50: #{tpu_custom_call.1} parent=5 // pred_check_branch
        %3507 = sbr.rel (%p3505) target = $region52
      $region51: #{tpu_custom_call.1} parent=5 // pred_region
        %s3508 = ssub.s32 %s16, 2
        // Predicated region
        $region53: #{tpu_custom_call.1} parent=51 // pred_check
          %p3509 = pneg %p113
        $region54: #{tpu_custom_call.1} parent=51 // pred_check_branch
          %3511 = sbr.rel (%p3509) target = $region56
        $region55: #{tpu_custom_call.1} parent=51 // pred_region
          %s3512 = sand.u32 %s98, 1
          %s3513 = scalar_lea.sflag [#allocation5], %s3512
          %s3514 = sand.u32 %s98, 1
          %s3515 = smul.addr %s3514, 256
          %s3516 = scalar_lea.vmem [#allocation9], %s3515
          %3518 = dma.done %s3513, 4096
        $region56: #{tpu_custom_call.1} parent=51 // pred_fallthru
          _
      $region52: #{tpu_custom_call.1} parent=5 // pred_fallthru
        _
    $region6: #{tpu_custom_call.1} parent=1 // loop_footer
      %s20 = sadd.s32 1, %s16
    $region7: #{tpu_custom_call.1} parent=1 // loop_footer_branch
      %15 = sbr.rel target = $region3
    $region8: #{tpu_custom_call.1} parent=1 // loop_exit
      _
    %3519 = vsyncpa [#allocation4], 1
    %s3520 = scalar_lea.sflag [#allocation4], 1
    %3521 = vsyncpa %s3520, 1
    %3522 = vsyncpa [#allocation7], 1
    %3523 = vsyncpa [#allocation5], 1
    %s3524 = scalar_lea.sflag [#allocation5], 1
    %3525 = vsyncpa %s3524, 1

// kernel: tpu_custom_call.1
$region0: #{tpu_custom_call.1}
  #allocation0 [shape = 'u32[]', space=smem, size = 0x4, offset = 0x4, fixed_abs, tag = 'smem constant byte address 0x4 - core index']
  #allocation1 [shape = 'u32[72,128]{1,0:T(1,128)}', space=vmem, size = 0x9000, scoped, tag = 'internal scratch']
  #allocation2 [shape = 'f32[18,18,128]{2,1,0:T(8,128)}', space=vmem, size = 0x36000, scoped, tag = 'scratch operand']
  %s0 = inlined_call_operand.hbm [shape: f32[2,16,16,128], index: 0, kind: input, shape index: {}]
  %s1 = inlined_call_operand.hbm [shape: f32[1152,128], index: 1, kind: input, shape index: {}]
  %s2 = inlined_call_operand.hbm [shape: f32[1152,128], index: 2, kind: input, shape index: {}]
  %s3 = inlined_call_operand.hbm [shape: f32[2,16,16,128], index: 3, kind: output, shape index: {}]
  %s4 = sld [smem:[#allocation0]]
  $region57: #{tpu_custom_call.1} parent=0
    _
  %s6 = ssub.s32 1, %s4
  %s7 = scalar_select 0, %s6, %s4
  $region1: #{tpu_custom_call.1} parent=0
    #allocation3 [shape = 'u8[262144]{0}', space=vmem, size = 0x40000, scoped, tag = 'input window, operand 0']
    #allocation4 [shape = 's32[2]{0}', space=sflag, size = 0x8, scoped, tag = 'scoped memory for tpu_custom_call.1']
    #allocation5 [shape = 's32[2]{0}', space=sflag, size = 0x8, scoped, tag = 'scoped memory for tpu_custom_call.1']
    #allocation6 [shape = 'u8[589824]{0}', space=vmem, size = 0x90000, scoped, tag = 'input window, operand 1, single buffered']
    #allocation7 [shape = 's32[1]{0}', space=sflag, size = 0x4, scoped, tag = 'scoped memory for tpu_custom_call.1']
    #allocation8 [shape = 'u8[589824]{0}', space=vmem, size = 0x90000, scoped, tag = 'input window, operand 2, single buffered']
    #allocation9 [shape = 'u8[262144]{0}', space=vmem, size = 0x40000, scoped, tag = 'output window, operand 0']
    %8 = vsyncpa [#allocation4], 0
    %s9 = scalar_lea.sflag [#allocation4], 1
    %10 = vsyncpa %s9, 0
    %11 = vsyncpa [#allocation7], 0
    %12 = vsyncpa [#allocation5], 0
    %s13 = scalar_lea.sflag [#allocation5], 1
    %14 = vsyncpa %s13, 0
    loop: start=0, step=1, limit=4
    $region2: #{tpu_custom_call.1} parent=1 // loop_pre_header
      _
    $region3: #{tpu_custom_call.1} parent=1 // loop_header
      %s16 = sphi 0, %s20
      %p17 = scmp.ge.s32.totalorder %s16, 4
      %s26 = sphi 0, %s28
      %s29 = sphi 0, %s26
      %s30 = sphi 0, %s29
      %s46 = sphi 0, %s30
      %s50 = sphi 0, %s50
      %s52 = sphi 0, %s50
      %s53 = sphi 0, %s52
      %s67 = sphi 0, %s53
      %s71 = sphi 0, %s71
      %s73 = sphi 0, %s71
      %s74 = sphi 0, %s73
      %s88 = sphi 0, %s74
      %s94 = sphi 0, %s96
      %s97 = sphi 0, %s94
      %s98 = sphi 0, %s97
      %s114 = sphi 0, %s98
    $region4: #{tpu_custom_call.1} parent=1 // loop_header_branch
      %19 = sbr.rel (%p17) target = $region8
    $region5: #{tpu_custom_call.1} parent=1 // loop_body
      %s21 = ssub.s32 %s16, 1
      %s22 = ssub.s32 %s16, 2
      %s23 = sadd.s32 %s16, 1
      %s24 = ssub.s32 %s16, %s23
      %p25 = scmp.eq.s32.totalorder %s24, 0
      %s27 = sadd.s32 %s26, 1
      %s28 = scalar_select %p25, %s26, %s27
      %p31 = pneg %p25
      %p32 = scmp.eq.s32.totalorder %s16, 1
      %p33 = por %p31, %p32
      %p34 = scmp.ne.s32.totalorder %s26, %s29
      %p35 = scmp.eq.s32.totalorder %s16, 0
      %p36 = por %p34, %p35
      %p37 = scmp.ne.s32.totalorder %s26, %s29
      %p38 = scmp.eq.s32.totalorder %s21, 1
      %p39 = por %p37, %p38
      %p40 = scmp.ne.s32.totalorder %s29, %s30
      %p41 = scmp.eq.s32.totalorder %s21, 0
      %p42 = por %p40, %p41
      %p43 = scmp.ne.s32.totalorder %s29, %s30
      %p44 = scmp.eq.s32.totalorder %s22, 1
      %p45 = por %p43, %p44
      %p47 = scmp.ne.s32.totalorder %s30, %s46
      %p48 = scmp.eq.s32.totalorder %s22, 0
      %p49 = por %p47, %p48
      %s51 = sadd.s32 %s50, 1
      %p54 = scmp.eq.s32.totalorder %s16, 1
      %p55 = scmp.ne.s32.totalorder %s50, %s52
      %p56 = scmp.eq.s32.totalorder %s16, 0
      %p57 = por %p55, %p56
      %p58 = scmp.ne.s32.totalorder %s50, %s52
      %p59 = scmp.eq.s32.totalorder %s21, 1
      %p60 = por %p58, %p59
      %p61 = scmp.ne.s32.totalorder %s52, %s53
      %p62 = scmp.eq.s32.totalorder %s21, 0
      %p63 = por %p61, %p62
      %p64 = scmp.ne.s32.totalorder %s52, %s53
      %p65 = scmp.eq.s32.totalorder %s22, 1
      %p66 = por %p64, %p65
      %p68 = scmp.ne.s32.totalorder %s53, %s67
      %p69 = scmp.eq.s32.totalorder %s22, 0
      %p70 = por %p68, %p69
      %s72 = sadd.s32 %s71, 1
      %p75 = scmp.eq.s32.totalorder %s16, 1
      %p76 = scmp.ne.s32.totalorder %s71, %s73
      %p77 = scmp.eq.s32.totalorder %s16, 0
      %p78 = por %p76, %p77
      %p79 = scmp.ne.s32.totalorder %s71, %s73
      %p80 = scmp.eq.s32.totalorder %s21, 1
      %p81 = por %p79, %p80
      %p82 = scmp.ne.s32.totalorder %s73, %s74
      %p83 = scmp.eq.s32.totalorder %s21, 0
      %p84 = por %p82, %p83
      %p85 = scmp.ne.s32.totalorder %s73, %s74
      %p86 = scmp.eq.s32.totalorder %s22, 1
      %p87 = por %p85, %p86
      %p89 = scmp.ne.s32.totalorder %s74, %s88
      %p90 = scmp.eq.s32.totalorder %s22, 0
      %p91 = por %p89, %p90
      %s92 = ssub.s32 %s16, %s23
      %p93 = scmp.eq.s32.totalorder %s92, 0
      %s95 = sadd.s32 %s94, 1
      %s96 = scalar_select %p93, %s94, %s95
      %p99 = pneg %p93
      %p100 = scmp.eq.s32.totalorder %s16, 1
      %p101 = por %p99, %p100
      %p102 = scmp.ne.s32.totalorder %s94, %s97
      %p103 = scmp.eq.s32.totalorder %s16, 0
      %p104 = por %p102, %p103
      %p105 = scmp.ne.s32.totalorder %s94, %s97
      %p106 = scmp.eq.s32.totalorder %s21, 1
      %p107 = por %p105, %p106
      %p108 = scmp.ne.s32.totalorder %s97, %s98
      %p109 = scmp.eq.s32.totalorder %s21, 0
      %p110 = por %p108, %p109
      %p111 = scmp.ne.s32.totalorder %s97, %s98
      %p112 = scmp.eq.s32.totalorder %s22, 1
      %p113 = por %p111, %p112
      %p115 = scmp.ne.s32.totalorder %s98, %s114
      %p116 = scmp.eq.s32.totalorder %s22, 0
      %p117 = por %p115, %p116
      %p118 = scmp.le.s32.totalorder 1, %s16
      %p119 = scmp.lt.s32.totalorder %s16, 3
      %p120 = pnand %p118, %p119
      %p121 = pneg %p120
      // Predicated region
      $region9: #{tpu_custom_call.1} parent=5 // pred_check
        _
      $region10: #{tpu_custom_call.1} parent=5 // pred_check_branch
        %123 = sbr.rel (%p120) target = $region12
      $region11: #{tpu_custom_call.1} parent=5 // pred_region
        %s124 = ssub.s32 %s16, 1
        // Predicated region
        $region13: #{tpu_custom_call.1} parent=11 // pred_check
          %p125 = pneg %p63
        $region14: #{tpu_custom_call.1} parent=11 // pred_check_branch
          %127 = sbr.rel (%p125) target = $region16
        $region15: #{tpu_custom_call.1} parent=11 // pred_region
          %129 = vsyncadd [#allocation7], 0
          %s130 = sshll.u32 %s1, 4
          %s131 = int_to_ptr.hbm [resolvable:$true] %s130
          %s132 = sshll.u32 [#allocation6], 4
          %s133 = int_to_ptr.vmem [resolvable:$true] %s132
          %138 = dma.hbm_to_vmem [thread:$0]  %s131, 18432, %s133, [#allocation7], 128, 128, 8
        $region16: #{tpu_custom_call.1} parent=11 // pred_fallthru
          _
        // Predicated region
        $region17: #{tpu_custom_call.1} parent=11 // pred_check
          %p139 = pneg %p84
        $region18: #{tpu_custom_call.1} parent=11 // pred_check_branch
          %141 = sbr.rel (%p139) target = $region20
        $region19: #{tpu_custom_call.1} parent=11 // pred_region
          %143 = vsyncadd [#allocation7], 0
          %s144 = sshll.u32 %s2, 4
          %s145 = int_to_ptr.hbm [resolvable:$true] %s144
          %s146 = sshll.u32 [#allocation8], 4
          %s147 = int_to_ptr.vmem [resolvable:$true] %s146
          %152 = dma.hbm_to_vmem [thread:$0]  %s145, 18432, %s147, [#allocation7], 128, 128, 8
        $region20: #{tpu_custom_call.1} parent=11 // pred_fallthru
          _
      $region12: #{tpu_custom_call.1} parent=5 // pred_fallthru
        _
      %p153 = scmp.lt.s32.totalorder %s16, 2
      // Predicated region
      $region21: #{tpu_custom_call.1} parent=5 // pred_check
        %p154 = pneg %p153
      $region22: #{tpu_custom_call.1} parent=5 // pred_check_branch
        %156 = sbr.rel (%p154) target = $region24
      $region23: #{tpu_custom_call.1} parent=5 // pred_region
        // Predicated region
        $region25: #{tpu_custom_call.1} parent=23 // pred_check
          %p157 = pneg %p36
        $region26: #{tpu_custom_call.1} parent=23 // pred_check_branch
          %159 = sbr.rel (%p157) target = $region28
        $region27: #{tpu_custom_call.1} parent=23 // pred_region
          %s160 = sand.u32 %s26, 1
          %s161 = scalar_lea.sflag [#allocation4], %s160
          %s162 = sand.u32 %s26, 1
          %s163 = smul.addr %s162, 256
          %s164 = scalar_lea.vmem [#allocation3], %s163
          %166 = vsyncadd %s161, 0
          %s167 = smul.addr %s16, 32
          %s168 = smul.addr %s167, 8
          %s169 = scalar_lea.hbm %s0, %s168
          %s170 = sshll.u32 %s169, 4
          %s171 = int_to_ptr.hbm [resolvable:$true] %s170
          %s172 = sshll.u32 %s164, 4
          %s173 = int_to_ptr.vmem [resolvable:$true] %s172
          %178 = dma.hbm_to_vmem [thread:$0]  %s171, 4096, %s173, %s161, 128, 128, 8
        $region28: #{tpu_custom_call.1} parent=23 // pred_fallthru
          _
      $region24: #{tpu_custom_call.1} parent=5 // pred_fallthru
        _
      %p179 = scmp.le.s32.totalorder 1, %s16
      %p180 = scmp.lt.s32.totalorder %s16, 3
      %p181 = pnand %p179, %p180
      %p182 = pneg %p181
      // Predicated region
      $region29: #{tpu_custom_call.1} parent=5 // pred_check
        _
      $region30: #{tpu_custom_call.1} parent=5 // pred_check_branch
        %184 = sbr.rel (%p181) target = $region32
      $region31: #{tpu_custom_call.1} parent=5 // pred_region
        %s185 = ssub.s32 %s16, 1
        %s186 = sand.u32 %s29, 1
        %s187 = scalar_lea.sflag [#allocation4], %s186
        %s188 = sand.u32 %s29, 1
        %s189 = smul.addr %s188, 256
        %s190 = scalar_lea.vmem [#allocation3], %s189
        // Predicated region
        $region33: #{tpu_custom_call.1} parent=31 // pred_check
          %p191 = pneg %p42
        $region34: #{tpu_custom_call.1} parent=31 // pred_check_branch
          %193 = sbr.rel (%p191) target = $region36
        $region35: #{tpu_custom_call.1} parent=31 // pred_region
          %195 = dma.done %s187, 4096
        $region36: #{tpu_custom_call.1} parent=31 // pred_fallthru
          _
        // Predicated region
        $region37: #{tpu_custom_call.1} parent=31 // pred_check
          %p196 = pneg %p63
        $region38: #{tpu_custom_call.1} parent=31 // pred_check_branch
          %198 = sbr.rel (%p196) target = $region40
        $region39: #{tpu_custom_call.1} parent=31 // pred_region
          %200 = dma.done [#allocation7], 18432
        $region40: #{tpu_custom_call.1} parent=31 // pred_fallthru
          _
        // Predicated region
        $region41: #{tpu_custom_call.1} parent=31 // pred_check
          %p201 = pneg %p84
        $region42: #{tpu_custom_call.1} parent=31 // pred_check_branch
          %203 = sbr.rel (%p201) target = $region44
        $region43: #{tpu_custom_call.1} parent=31 // pred_region
          %205 = dma.done [#allocation7], 18432
        $region44: #{tpu_custom_call.1} parent=31 // pred_fallthru
          _
        %s206 = sand.u32 %s29, 1
        %s207 = scalar_lea.sflag [#allocation4], %s206
        %s208 = sand.u32 %s29, 1
        %s209 = smul.addr %s208, 256
        %s210 = scalar_lea.vmem [#allocation3], %s209
        %p211 = pneg %p42
        %p212 = pneg %p39
        %p213 = pneg %p63
        %p214 = pneg %p60
        %p215 = pneg %p84
        %p216 = pneg %p81
        %p217 = pneg %p110
        %p218 = pneg %p107
        %s219 = sand.u32 %s97, 1
        %s220 = scalar_lea.sflag [#allocation5], %s219
        %s221 = sand.u32 %s97, 1
        %s222 = smul.addr %s221, 256
        %s223 = scalar_lea.vmem [#allocation9], %s222
        %v224 = vld [vmem:[%s190] sm:$0xff]
        %v225 = vld [vmem:[%s190 + $0x8] sm:$0xff]
        %v226 = vld [vmem:[%s190 + $0x10] sm:$0xff]
        %v227 = vld [vmem:[%s190 + $0x18] sm:$0xff]
        %v228 = vld [vmem:[%s190 + $0x20] sm:$0xff]
        %v229 = vld [vmem:[%s190 + $0x28] sm:$0xff]
        %v230 = vld [vmem:[%s190 + $0x30] sm:$0xff]
        %v231 = vld [vmem:[%s190 + $0x38] sm:$0xff]
        %v232 = vld [vmem:[%s190 + $0x40] sm:$0xff]
        %v233 = vld [vmem:[%s190 + $0x48] sm:$0xff]
        %v234 = vld [vmem:[%s190 + $0x50] sm:$0xff]
        %v235 = vld [vmem:[%s190 + $0x58] sm:$0xff]
        %v236 = vld [vmem:[%s190 + $0x60] sm:$0xff]
        %v237 = vld [vmem:[%s190 + $0x68] sm:$0xff]
        %v238 = vld [vmem:[%s190 + $0x70] sm:$0xff]
        %v239 = vld [vmem:[%s190 + $0x78] sm:$0xff]
        %v240 = vld [vmem:[%s190 + $0x80] sm:$0xff]
        %v241 = vld [vmem:[%s190 + $0x88] sm:$0xff]
        %v242 = vld [vmem:[%s190 + $0x90] sm:$0xff]
        %v243 = vld [vmem:[%s190 + $0x98] sm:$0xff]
        %v244 = vld [vmem:[%s190 + $0xa0] sm:$0xff]
        %v245 = vld [vmem:[%s190 + $0xa8] sm:$0xff]
        %v246 = vld [vmem:[%s190 + $0xb0] sm:$0xff]
        %v247 = vld [vmem:[%s190 + $0xb8] sm:$0xff]
        %v248 = vld [vmem:[%s190 + $0xc0] sm:$0xff]
        %v249 = vld [vmem:[%s190 + $0xc8] sm:$0xff]
        %v250 = vld [vmem:[%s190 + $0xd0] sm:$0xff]
        %v251 = vld [vmem:[%s190 + $0xd8] sm:$0xff]
        %v252 = vld [vmem:[%s190 + $0xe0] sm:$0xff]
        %v253 = vld [vmem:[%s190 + $0xe8] sm:$0xff]
        %v254 = vld [vmem:[%s190 + $0xf0] sm:$0xff]
        %v255 = vld [vmem:[%s190 + $0xf8] sm:$0xff]
        %s256 = scalar_lea.vmem [#allocation2], 24
        %257 = vst [vmem:[%s256 + $0x1] sm:$0xff] %v224
        %258 = vst [vmem:[%s256 + $0x9] sm:$0xff] %v225
        %259 = vst [vmem:[%s256 + $0x19] sm:$0xff] %v226
        %260 = vst [vmem:[%s256 + $0x21] sm:$0xff] %v227
        %261 = vst [vmem:[%s256 + $0x31] sm:$0xff] %v228
        %262 = vst [vmem:[%s256 + $0x39] sm:$0xff] %v229
        %263 = vst [vmem:[%s256 + $0x49] sm:$0xff] %v230
        %264 = vst [vmem:[%s256 + $0x51] sm:$0xff] %v231
        %265 = vst [vmem:[%s256 + $0x61] sm:$0xff] %v232
        %266 = vst [vmem:[%s256 + $0x69] sm:$0xff] %v233
        %267 = vst [vmem:[%s256 + $0x79] sm:$0xff] %v234
        %268 = vst [vmem:[%s256 + $0x81] sm:$0xff] %v235
        %269 = vst [vmem:[%s256 + $0x91] sm:$0xff] %v236
        %270 = vst [vmem:[%s256 + $0x99] sm:$0xff] %v237
        %271 = vst [vmem:[%s256 + $0xa9] sm:$0xff] %v238
        %272 = vst [vmem:[%s256 + $0xb1] sm:$0xff] %v239
        %273 = vst [vmem:[%s256 + $0xc1] sm:$0xff] %v240
        %274 = vst [vmem:[%s256 + $0xc9] sm:$0xff] %v241
        %275 = vst [vmem:[%s256 + $0xd9] sm:$0xff] %v242
        %276 = vst [vmem:[%s256 + $0xe1] sm:$0xff] %v243
        %277 = vst [vmem:[%s256 + $0xf1] sm:$0xff] %v244
        %278 = vst [vmem:[%s256 + $0xf9] sm:$0xff] %v245
        %279 = vst [vmem:[%s256 + $0x109] sm:$0xff] %v246
        %280 = vst [vmem:[%s256 + $0x111] sm:$0xff] %v247
        %281 = vst [vmem:[%s256 + $0x121] sm:$0xff] %v248
        %282 = vst [vmem:[%s256 + $0x129] sm:$0xff] %v249
        %283 = vst [vmem:[%s256 + $0x139] sm:$0xff] %v250
        %284 = vst [vmem:[%s256 + $0x141] sm:$0xff] %v251
        %285 = vst [vmem:[%s256 + $0x151] sm:$0xff] %v252
        %286 = vst [vmem:[%s256 + $0x159] sm:$0xff] %v253
        %287 = vst [vmem:[%s256 + $0x169] sm:$0xff] %v254
        %288 = vst [vmem:[%s256 + $0x171] sm:$0xff] %v255
        %289 = vst [vmem:[%s256 - $0x1] sm:$0x2] %v224
        %290 = vst [vmem:[%s256 + $0x17] sm:$0x2] %v226
        %291 = vst [vmem:[%s256 + $0x2f] sm:$0x2] %v228
        %292 = vst [vmem:[%s256 + $0x47] sm:$0x2] %v230
        %293 = vst [vmem:[%s256 + $0x5f] sm:$0x2] %v232
        %294 = vst [vmem:[%s256 + $0x77] sm:$0x2] %v234
        %295 = vst [vmem:[%s256 + $0x8f] sm:$0x2] %v236
        %296 = vst [vmem:[%s256 + $0xa7] sm:$0x2] %v238
        %297 = vst [vmem:[%s256 + $0xbf] sm:$0x2] %v240
        %298 = vst [vmem:[%s256 + $0xd7] sm:$0x2] %v242
        %299 = vst [vmem:[%s256 + $0xef] sm:$0x2] %v244
        %300 = vst [vmem:[%s256 + $0x107] sm:$0x2] %v246
        %301 = vst [vmem:[%s256 + $0x11f] sm:$0x2] %v248
        %302 = vst [vmem:[%s256 + $0x137] sm:$0x2] %v250
        %303 = vst [vmem:[%s256 + $0x14f] sm:$0x2] %v252
        %304 = vst [vmem:[%s256 + $0x167] sm:$0x2] %v254
        %305 = vst [vmem:[%s256 + $0xb] sm:$0x40] %v225
        %306 = vst [vmem:[%s256 + $0x23] sm:$0x40] %v227
        %307 = vst [vmem:[%s256 + $0x3b] sm:$0x40] %v229
        %308 = vst [vmem:[%s256 + $0x53] sm:$0x40] %v231
        %309 = vst [vmem:[%s256 + $0x6b] sm:$0x40] %v233
        %310 = vst [vmem:[%s256 + $0x83] sm:$0x40] %v235
        %311 = vst [vmem:[%s256 + $0x9b] sm:$0x40] %v237
        %312 = vst [vmem:[%s256 + $0xb3] sm:$0x40] %v239
        %313 = vst [vmem:[%s256 + $0xcb] sm:$0x40] %v241
        %314 = vst [vmem:[%s256 + $0xe3] sm:$0x40] %v243
        %315 = vst [vmem:[%s256 + $0xfb] sm:$0x40] %v245
        %316 = vst [vmem:[%s256 + $0x113] sm:$0x40] %v247
        %317 = vst [vmem:[%s256 + $0x12b] sm:$0x40] %v249
        %318 = vst [vmem:[%s256 + $0x143] sm:$0x40] %v251
        %319 = vst [vmem:[%s256 + $0x15b] sm:$0x40] %v253
        %320 = vst [vmem:[%s256 + $0x173] sm:$0x40] %v255
        %s321 = scalar_lea.vmem [#allocation2], 48
        %v322 = vld [vmem:[%s321] sm:$0xff]
        %v323 = vld [vmem:[%s321 + $0x8] sm:$0xff]
        %v324 = vld [vmem:[%s321 + $0x10] sm:$0x3]
        %325 = vst [vmem:[#allocation2] sm:$0xff] %v322
        %326 = vst [vmem:[#allocation2 + $0x8] sm:$0xff] %v323
        %327 = vst [vmem:[#allocation2 + $0x10] sm:$0x3] %v324
        %s328 = scalar_lea.vmem [#allocation2], 360
        %v329 = vld [vmem:[%s328] sm:$0xff]
        %v330 = vld [vmem:[%s328 + $0x8] sm:$0xff]
        %v331 = vld [vmem:[%s328 + $0x10] sm:$0x3]
        %s332 = scalar_lea.vmem [#allocation2], 408
        %333 = vst [vmem:[%s332] sm:$0xff] %v329
        %334 = vst [vmem:[%s332 + $0x8] sm:$0xff] %v330
        %335 = vst [vmem:[%s332 + $0x10] sm:$0x3] %v331
        %v336 = vld [vmem:[#allocation2] sm:$0xff]
        %v337 = vld [vmem:[#allocation2 + $0x8] sm:$0xff]
        %v338 = vld [vmem:[#allocation2 + $0x18] sm:$0xff]
        %v339 = vld [vmem:[#allocation2 + $0x20] sm:$0xff]
        %v340 = vld [vmem:[#allocation2 + $0x30] sm:$0xff]
        %v341 = vld [vmem:[#allocation2 + $0x38] sm:$0xff]
        %v342 = vld [vmem:[#allocation2 + $0x48] sm:$0xff]
        %v343 = vld [vmem:[#allocation2 + $0x50] sm:$0xff]
        %v344 = vld [vmem:[#allocation2 + $0x60] sm:$0xff]
        %v345 = vld [vmem:[#allocation2 + $0x68] sm:$0xff]
        %v346 = vld [vmem:[#allocation2 + $0x78] sm:$0xff]
        %v347 = vld [vmem:[#allocation2 + $0x80] sm:$0xff]
        %v348 = vld [vmem:[#allocation2 + $0x90] sm:$0xff]
        %v349 = vld [vmem:[#allocation2 + $0x98] sm:$0xff]
        %v350 = vld [vmem:[#allocation2 + $0xa8] sm:$0xff]
        %v351 = vld [vmem:[#allocation2 + $0xb0] sm:$0xff]
        %v352 = vld [vmem:[#allocation2 + $0xc0] sm:$0xff]
        %v353 = vld [vmem:[#allocation2 + $0xc8] sm:$0xff]
        %v354 = vld [vmem:[#allocation2 + $0xd8] sm:$0xff]
        %v355 = vld [vmem:[#allocation2 + $0xe0] sm:$0xff]
        %v356 = vld [vmem:[#allocation2 + $0xf0] sm:$0xff]
        %v357 = vld [vmem:[#allocation2 + $0xf8] sm:$0xff]
        %v358 = vld [vmem:[#allocation2 + $0x108] sm:$0xff]
        %v359 = vld [vmem:[#allocation2 + $0x110] sm:$0xff]
        %v360 = vld [vmem:[#allocation2 + $0x120] sm:$0xff]
        %v361 = vld [vmem:[#allocation2 + $0x128] sm:$0xff]
        %v362 = vld [vmem:[#allocation2 + $0x138] sm:$0xff]
        %v363 = vld [vmem:[#allocation2 + $0x140] sm:$0xff]
        %v364 = vld [vmem:[#allocation2 + $0x150] sm:$0xff]
        %v365 = vld [vmem:[#allocation2 + $0x158] sm:$0xff]
        %v366 = vld [vmem:[#allocation2 + $0x168] sm:$0xff]
        %v367 = vld [vmem:[#allocation2 + $0x170] sm:$0xff]
        %v368 = vld [vmem:[#allocation2 + $0x180] sm:$0xff]
        %v369 = vld [vmem:[#allocation2 + $0x188] sm:$0xff]
        %v370 = vld [vmem:[#allocation2 + $0x198] sm:$0xff]
        %v371 = vld [vmem:[#allocation2 + $0x1a0] sm:$0xff]
        %v372 = vld [vmem:[#allocation2 + $0x1] sm:$0xff]
        %v373 = vld [vmem:[#allocation2 + $0x9] sm:$0xff]
        %v374 = vld [vmem:[#allocation2 + $0x19] sm:$0xff]
        %v375 = vld [vmem:[#allocation2 + $0x21] sm:$0xff]
        %v376 = vld [vmem:[#allocation2 + $0x31] sm:$0xff]
        %v377 = vld [vmem:[#allocation2 + $0x39] sm:$0xff]
        %v378 = vld [vmem:[#allocation2 + $0x49] sm:$0xff]
        %v379 = vld [vmem:[#allocation2 + $0x51] sm:$0xff]
        %v380 = vld [vmem:[#allocation2 + $0x61] sm:$0xff]
        %v381 = vld [vmem:[#allocation2 + $0x69] sm:$0xff]
        %v382 = vld [vmem:[#allocation2 + $0x79] sm:$0xff]
        %v383 = vld [vmem:[#allocation2 + $0x81] sm:$0xff]
        %v384 = vld [vmem:[#allocation2 + $0x91] sm:$0xff]
        %v385 = vld [vmem:[#allocation2 + $0x99] sm:$0xff]
        %v386 = vld [vmem:[#allocation2 + $0xa9] sm:$0xff]
        %v387 = vld [vmem:[#allocation2 + $0xb1] sm:$0xff]
        %v388 = vld [vmem:[#allocation2 + $0xc1] sm:$0xff]
        %v389 = vld [vmem:[#allocation2 + $0xc9] sm:$0xff]
        %v390 = vld [vmem:[#allocation2 + $0xd9] sm:$0xff]
        %v391 = vld [vmem:[#allocation2 + $0xe1] sm:$0xff]
        %v392 = vld [vmem:[#allocation2 + $0xf1] sm:$0xff]
        %v393 = vld [vmem:[#allocation2 + $0xf9] sm:$0xff]
        %v394 = vld [vmem:[#allocation2 + $0x109] sm:$0xff]
        %v395 = vld [vmem:[#allocation2 + $0x111] sm:$0xff]
        %v396 = vld [vmem:[#allocation2 + $0x121] sm:$0xff]
        %v397 = vld [vmem:[#allocation2 + $0x129] sm:$0xff]
        %v398 = vld [vmem:[#allocation2 + $0x139] sm:$0xff]
        %v399 = vld [vmem:[#allocation2 + $0x141] sm:$0xff]
        %v400 = vld [vmem:[#allocation2 + $0x151] sm:$0xff]
        %v401 = vld [vmem:[#allocation2 + $0x159] sm:$0xff]
        %v402 = vld [vmem:[#allocation2 + $0x169] sm:$0xff]
        %v403 = vld [vmem:[#allocation2 + $0x171] sm:$0xff]
        %v404 = vld [vmem:[#allocation2 + $0x181] sm:$0xff]
        %v405 = vld [vmem:[#allocation2 + $0x189] sm:$0xff]
        %v406 = vld [vmem:[#allocation2 + $0x199] sm:$0xff]
        %v407 = vld [vmem:[#allocation2 + $0x1a1] sm:$0xff]
        %v408 = vld [vmem:[#allocation2 + $0x2] sm:$0xff]
        %v409 = vld [vmem:[#allocation2 + $0xa] sm:$0xff]
        %v410 = vld [vmem:[#allocation2 + $0x1a] sm:$0xff]
        %v411 = vld [vmem:[#allocation2 + $0x22] sm:$0xff]
        %v412 = vld [vmem:[#allocation2 + $0x32] sm:$0xff]
        %v413 = vld [vmem:[#allocation2 + $0x3a] sm:$0xff]
        %v414 = vld [vmem:[#allocation2 + $0x4a] sm:$0xff]
        %v415 = vld [vmem:[#allocation2 + $0x52] sm:$0xff]
        %v416 = vld [vmem:[#allocation2 + $0x62] sm:$0xff]
        %v417 = vld [vmem:[#allocation2 + $0x6a] sm:$0xff]
        %v418 = vld [vmem:[#allocation2 + $0x7a] sm:$0xff]
        %v419 = vld [vmem:[#allocation2 + $0x82] sm:$0xff]
        %v420 = vld [vmem:[#allocation2 + $0x92] sm:$0xff]
        %v421 = vld [vmem:[#allocation2 + $0x9a] sm:$0xff]
        %v422 = vld [vmem:[#allocation2 + $0xaa] sm:$0xff]
        %v423 = vld [vmem:[#allocation2 + $0xb2] sm:$0xff]
        %v424 = vld [vmem:[#allocation2 + $0xc2] sm:$0xff]
        %v425 = vld [vmem:[#allocation2 + $0xca] sm:$0xff]
        %v426 = vld [vmem:[#allocation2 + $0xda] sm:$0xff]
        %v427 = vld [vmem:[#allocation2 + $0xe2] sm:$0xff]
        %v428 = vld [vmem:[#allocation2 + $0xf2] sm:$0xff]
        %v429 = vld [vmem:[#allocation2 + $0xfa] sm:$0xff]
        %v430 = vld [vmem:[#allocation2 + $0x10a] sm:$0xff]
        %v431 = vld [vmem:[#allocation2 + $0x112] sm:$0xff]
        %v432 = vld [vmem:[#allocation2 + $0x122] sm:$0xff]
        %v433 = vld [vmem:[#allocation2 + $0x12a] sm:$0xff]
        %v434 = vld [vmem:[#allocation2 + $0x13a] sm:$0xff]
        %v435 = vld [vmem:[#allocation2 + $0x142] sm:$0xff]
        %v436 = vld [vmem:[#allocation2 + $0x152] sm:$0xff]
        %v437 = vld [vmem:[#allocation2 + $0x15a] sm:$0xff]
        %v438 = vld [vmem:[#allocation2 + $0x16a] sm:$0xff]
        %v439 = vld [vmem:[#allocation2 + $0x172] sm:$0xff]
        %v440 = vld [vmem:[#allocation2 + $0x182] sm:$0xff]
        %v441 = vld [vmem:[#allocation2 + $0x18a] sm:$0xff]
        %v442 = vld [vmem:[#allocation2 + $0x19a] sm:$0xff]
        %v443 = vld [vmem:[#allocation2 + $0x1a2] sm:$0xff]
        %v444 = vld [vmem:[#allocation6] sm:$0xff]
        %v445 = vld [vmem:[#allocation6 + $0x8] sm:$0xff]
        %v446 = vld [vmem:[#allocation6 + $0x10] sm:$0xff]
        %v447 = vld [vmem:[#allocation6 + $0x18] sm:$0xff]
        %v448 = vld [vmem:[#allocation6 + $0x20] sm:$0xff]
        %v449 = vld [vmem:[#allocation6 + $0x28] sm:$0xff]
        %v450 = vld [vmem:[#allocation6 + $0x30] sm:$0xff]
        %v451 = vld [vmem:[#allocation6 + $0x38] sm:$0xff]
        %v452 = vld [vmem:[#allocation6 + $0x40] sm:$0xff]
        %v453 = vld [vmem:[#allocation6 + $0x48] sm:$0xff]
        %v454 = vld [vmem:[#allocation6 + $0x50] sm:$0xff]
        %v455 = vld [vmem:[#allocation6 + $0x58] sm:$0xff]
        %v456 = vld [vmem:[#allocation6 + $0x60] sm:$0xff]
        %v457 = vld [vmem:[#allocation6 + $0x68] sm:$0xff]
        %v458 = vld [vmem:[#allocation6 + $0x70] sm:$0xff]
        %v459 = vld [vmem:[#allocation6 + $0x78] sm:$0xff]
        %v460 = vld [vmem:[#allocation6 + $0x80] sm:$0xff]
        %v461 = vld [vmem:[#allocation6 + $0x88] sm:$0xff]
        %v462 = vld [vmem:[#allocation6 + $0x90] sm:$0xff]
        %v463 = vld [vmem:[#allocation6 + $0x98] sm:$0xff]
        %v464 = vld [vmem:[#allocation6 + $0xa0] sm:$0xff]
        %v465 = vld [vmem:[#allocation6 + $0xa8] sm:$0xff]
        %v466 = vld [vmem:[#allocation6 + $0xb0] sm:$0xff]
        %v467 = vld [vmem:[#allocation6 + $0xb8] sm:$0xff]
        %v468 = vld [vmem:[#allocation6 + $0xc0] sm:$0xff]
        %v469 = vld [vmem:[#allocation6 + $0xc8] sm:$0xff]
        %v470 = vld [vmem:[#allocation6 + $0xd0] sm:$0xff]
        %v471 = vld [vmem:[#allocation6 + $0xd8] sm:$0xff]
        %v472 = vld [vmem:[#allocation6 + $0xe0] sm:$0xff]
        %v473 = vld [vmem:[#allocation6 + $0xe8] sm:$0xff]
        %v474 = vld [vmem:[#allocation6 + $0xf0] sm:$0xff]
        %v475 = vld [vmem:[#allocation6 + $0xf8] sm:$0xff]
        %v476 = vld [vmem:[#allocation6 + $0x100] sm:$0xff]
        %v477 = vld [vmem:[#allocation6 + $0x108] sm:$0xff]
        %v478 = vld [vmem:[#allocation6 + $0x110] sm:$0xff]
        %v479 = vld [vmem:[#allocation6 + $0x118] sm:$0xff]
        %v480 = vld [vmem:[#allocation6 + $0x120] sm:$0xff]
        %v481 = vld [vmem:[#allocation6 + $0x128] sm:$0xff]
        %v482 = vld [vmem:[#allocation6 + $0x130] sm:$0xff]
        %v483 = vld [vmem:[#allocation6 + $0x138] sm:$0xff]
        %v484 = vld [vmem:[#allocation6 + $0x140] sm:$0xff]
        %v485 = vld [vmem:[#allocation6 + $0x148] sm:$0xff]
        %v486 = vld [vmem:[#allocation6 + $0x150] sm:$0xff]
        %v487 = vld [vmem:[#allocation6 + $0x158] sm:$0xff]
        %v488 = vld [vmem:[#allocation6 + $0x160] sm:$0xff]
        %v489 = vld [vmem:[#allocation6 + $0x168] sm:$0xff]
        %v490 = vld [vmem:[#allocation6 + $0x170] sm:$0xff]
        %v491 = vld [vmem:[#allocation6 + $0x178] sm:$0xff]
        %v492 = vld [vmem:[#allocation6 + $0x180] sm:$0xff]
        %v493 = vld [vmem:[#allocation6 + $0x188] sm:$0xff]
        %v494 = vld [vmem:[#allocation6 + $0x190] sm:$0xff]
        %v495 = vld [vmem:[#allocation6 + $0x198] sm:$0xff]
        %v496 = vld [vmem:[#allocation6 + $0x1a0] sm:$0xff]
        %v497 = vld [vmem:[#allocation6 + $0x1a8] sm:$0xff]
        %v498 = vld [vmem:[#allocation6 + $0x1b0] sm:$0xff]
        %v499 = vld [vmem:[#allocation6 + $0x1b8] sm:$0xff]
        %v500 = vld [vmem:[#allocation6 + $0x1c0] sm:$0xff]
        %v501 = vld [vmem:[#allocation6 + $0x1c8] sm:$0xff]
        %v502 = vld [vmem:[#allocation6 + $0x1d0] sm:$0xff]
        %v503 = vld [vmem:[#allocation6 + $0x1d8] sm:$0xff]
        %v504 = vld [vmem:[#allocation6 + $0x1e0] sm:$0xff]
        %v505 = vld [vmem:[#allocation6 + $0x1e8] sm:$0xff]
        %v506 = vld [vmem:[#allocation6 + $0x1f0] sm:$0xff]
        %v507 = vld [vmem:[#allocation6 + $0x1f8] sm:$0xff]
        %v508 = vld [vmem:[#allocation6 + $0x200] sm:$0xff]
        %v509 = vld [vmem:[#allocation6 + $0x208] sm:$0xff]
        %v510 = vld [vmem:[#allocation6 + $0x210] sm:$0xff]
        %v511 = vld [vmem:[#allocation6 + $0x218] sm:$0xff]
        %v512 = vld [vmem:[#allocation6 + $0x220] sm:$0xff]
        %v513 = vld [vmem:[#allocation6 + $0x228] sm:$0xff]
        %v514 = vld [vmem:[#allocation6 + $0x230] sm:$0xff]
        %v515 = vld [vmem:[#allocation6 + $0x238] sm:$0xff]
        %v516 = vld [vmem:[#allocation6 + $0x240] sm:$0xff]
        %v517 = vld [vmem:[#allocation6 + $0x248] sm:$0xff]
        %v518 = vld [vmem:[#allocation6 + $0x250] sm:$0xff]
        %v519 = vld [vmem:[#allocation6 + $0x258] sm:$0xff]
        %v520 = vld [vmem:[#allocation6 + $0x260] sm:$0xff]
        %v521 = vld [vmem:[#allocation6 + $0x268] sm:$0xff]
        %v522 = vld [vmem:[#allocation6 + $0x270] sm:$0xff]
        %v523 = vld [vmem:[#allocation6 + $0x278] sm:$0xff]
        %v524 = vld [vmem:[#allocation6 + $0x280] sm:$0xff]
        %v525 = vld [vmem:[#allocation6 + $0x288] sm:$0xff]
        %v526 = vld [vmem:[#allocation6 + $0x290] sm:$0xff]
        %v527 = vld [vmem:[#allocation6 + $0x298] sm:$0xff]
        %v528 = vld [vmem:[#allocation6 + $0x2a0] sm:$0xff]
        %v529 = vld [vmem:[#allocation6 + $0x2a8] sm:$0xff]
        %v530 = vld [vmem:[#allocation6 + $0x2b0] sm:$0xff]
        %v531 = vld [vmem:[#allocation6 + $0x2b8] sm:$0xff]
        %v532 = vld [vmem:[#allocation6 + $0x2c0] sm:$0xff]
        %v533 = vld [vmem:[#allocation6 + $0x2c8] sm:$0xff]
        %v534 = vld [vmem:[#allocation6 + $0x2d0] sm:$0xff]
        %v535 = vld [vmem:[#allocation6 + $0x2d8] sm:$0xff]
        %v536 = vld [vmem:[#allocation6 + $0x2e0] sm:$0xff]
        %v537 = vld [vmem:[#allocation6 + $0x2e8] sm:$0xff]
        %v538 = vld [vmem:[#allocation6 + $0x2f0] sm:$0xff]
        %v539 = vld [vmem:[#allocation6 + $0x2f8] sm:$0xff]
        %540 = vmatpush.msra.mxu0 %v507
        %541 = vmatpush.msra.mxu0 %v506
        %542 = vmatpush.msra.mxu0 %v505
        %543 = vmatpush.msra.mxu0 %v504
        %544 = vmatpush.msra.mxu0 %v503
        %545 = vmatpush.msra.mxu0 %v502
        %546 = vmatpush.msra.mxu0 %v501
        %547 = vmatpush.msra.mxu0 %v500
        %548 = vmatpush.msra.mxu0 %v499
        %549 = vmatpush.msra.mxu0 %v498
        %550 = vmatpush.msra.mxu0 %v497
        %551 = vmatpush.msra.mxu0 %v496
        %552 = vmatpush.msra.mxu0 %v495
        %553 = vmatpush.msra.mxu0 %v494
        %554 = vmatpush.msra.mxu0 %v493
        %555 = vmatpush.msra.mxu0 %v492
        %556 = vmatmul.f32.gmra.mxu0 %v338
        %v557 = vpop.f32.mrf.mxu0
        %v558 = vadd.f32 0.0, %v557
        %559 = vmatmul.f32.gmra.mxu0 %v339
        %v560 = vpop.f32.mrf.mxu0
        %v561 = vadd.f32 0.0, %v560
        %562 = vmatmul.f32.gmra.mxu0 %v340
        %v563 = vpop.f32.mrf.mxu0
        %v564 = vadd.f32 0.0, %v563
        %565 = vmatmul.f32.gmra.mxu0 %v341
        %v566 = vpop.f32.mrf.mxu0
        %v567 = vadd.f32 0.0, %v566
        %568 = vmatmul.f32.gmra.mxu0 %v342
        %v569 = vpop.f32.mrf.mxu0
        %v570 = vadd.f32 0.0, %v569
        %571 = vmatmul.f32.gmra.mxu0 %v343
        %v572 = vpop.f32.mrf.mxu0
        %v573 = vadd.f32 0.0, %v572
        %574 = vmatmul.f32.gmra.mxu0 %v344
        %v575 = vpop.f32.mrf.mxu0
        %v576 = vadd.f32 0.0, %v575
        %577 = vmatmul.f32.gmra.mxu0 %v345
        %v578 = vpop.f32.mrf.mxu0
        %v579 = vadd.f32 0.0, %v578
        %580 = vmatmul.f32.gmra.mxu0 %v346
        %v581 = vpop.f32.mrf.mxu0
        %v582 = vadd.f32 0.0, %v581
        %583 = vmatmul.f32.gmra.mxu0 %v347
        %v584 = vpop.f32.mrf.mxu0
        %v585 = vadd.f32 0.0, %v584
        %586 = vmatmul.f32.gmra.mxu0 %v348
        %v587 = vpop.f32.mrf.mxu0
        %v588 = vadd.f32 0.0, %v587
        %589 = vmatmul.f32.gmra.mxu0 %v349
        %v590 = vpop.f32.mrf.mxu0
        %v591 = vadd.f32 0.0, %v590
        %592 = vmatmul.f32.gmra.mxu0 %v350
        %v593 = vpop.f32.mrf.mxu0
        %v594 = vadd.f32 0.0, %v593
        %595 = vmatmul.f32.gmra.mxu0 %v351
        %v596 = vpop.f32.mrf.mxu0
        %v597 = vadd.f32 0.0, %v596
        %598 = vmatmul.f32.gmra.mxu0 %v352
        %v599 = vpop.f32.mrf.mxu0
        %v600 = vadd.f32 0.0, %v599
        %601 = vmatmul.f32.gmra.mxu0 %v353
        %v602 = vpop.f32.mrf.mxu0
        %v603 = vadd.f32 0.0, %v602
        %604 = vmatmul.f32.gmra.mxu0 %v354
        %v605 = vpop.f32.mrf.mxu0
        %v606 = vadd.f32 0.0, %v605
        %607 = vmatmul.f32.gmra.mxu0 %v355
        %v608 = vpop.f32.mrf.mxu0
        %v609 = vadd.f32 0.0, %v608
        %610 = vmatmul.f32.gmra.mxu0 %v356
        %v611 = vpop.f32.mrf.mxu0
        %v612 = vadd.f32 0.0, %v611
        %613 = vmatmul.f32.gmra.mxu0 %v357
        %v614 = vpop.f32.mrf.mxu0
        %v615 = vadd.f32 0.0, %v614
        %616 = vmatmul.f32.gmra.mxu0 %v358
        %v617 = vpop.f32.mrf.mxu0
        %v618 = vadd.f32 0.0, %v617
        %619 = vmatmul.f32.gmra.mxu0 %v359
        %v620 = vpop.f32.mrf.mxu0
        %v621 = vadd.f32 0.0, %v620
        %622 = vmatmul.f32.gmra.mxu0 %v360
        %v623 = vpop.f32.mrf.mxu0
        %v624 = vadd.f32 0.0, %v623
        %625 = vmatmul.f32.gmra.mxu0 %v361
        %v626 = vpop.f32.mrf.mxu0
        %v627 = vadd.f32 0.0, %v626
        %628 = vmatmul.f32.gmra.mxu0 %v362
        %v629 = vpop.f32.mrf.mxu0
        %v630 = vadd.f32 0.0, %v629
        %631 = vmatmul.f32.gmra.mxu0 %v363
        %v632 = vpop.f32.mrf.mxu0
        %v633 = vadd.f32 0.0, %v632
        %634 = vmatmul.f32.gmra.mxu0 %v364
        %v635 = vpop.f32.mrf.mxu0
        %v636 = vadd.f32 0.0, %v635
        %637 = vmatmul.f32.gmra.mxu0 %v365
        %v638 = vpop.f32.mrf.mxu0
        %v639 = vadd.f32 0.0, %v638
        %640 = vmatmul.f32.gmra.mxu0 %v366
        %v641 = vpop.f32.mrf.mxu0
        %v642 = vadd.f32 0.0, %v641
        %643 = vmatmul.f32.gmra.mxu0 %v367
        %v644 = vpop.f32.mrf.mxu0
        %v645 = vadd.f32 0.0, %v644
        %646 = vmatmul.f32.gmra.mxu0 %v368
        %v647 = vpop.f32.mrf.mxu0
        %v648 = vadd.f32 0.0, %v647
        %649 = vmatmul.f32.gmra.mxu0 %v369
        %v650 = vpop.f32.mrf.mxu0
        %v651 = vadd.f32 0.0, %v650
        %652 = vdwg.mxu0
        %653 = vmatpush.msra.mxu0 %v523
        %654 = vmatpush.msra.mxu0 %v522
        %655 = vmatpush.msra.mxu0 %v521
        %656 = vmatpush.msra.mxu0 %v520
        %657 = vmatpush.msra.mxu0 %v519
        %658 = vmatpush.msra.mxu0 %v518
        %659 = vmatpush.msra.mxu0 %v517
        %660 = vmatpush.msra.mxu0 %v516
        %661 = vmatpush.msra.mxu0 %v515
        %662 = vmatpush.msra.mxu0 %v514
        %663 = vmatpush.msra.mxu0 %v513
        %664 = vmatpush.msra.mxu0 %v512
        %665 = vmatpush.msra.mxu0 %v511
        %666 = vmatpush.msra.mxu0 %v510
        %667 = vmatpush.msra.mxu0 %v509
        %668 = vmatpush.msra.mxu0 %v508
        %669 = vmatmul.f32.gmra.mxu0 %v374
        %v670 = vpop.f32.mrf.mxu0
        %v671 = vadd.f32 %v558, %v670
        %672 = vmatmul.f32.gmra.mxu0 %v375
        %v673 = vpop.f32.mrf.mxu0
        %v674 = vadd.f32 %v561, %v673
        %675 = vmatmul.f32.gmra.mxu0 %v376
        %v676 = vpop.f32.mrf.mxu0
        %v677 = vadd.f32 %v564, %v676
        %678 = vmatmul.f32.gmra.mxu0 %v377
        %v679 = vpop.f32.mrf.mxu0
        %v680 = vadd.f32 %v567, %v679
        %681 = vmatmul.f32.gmra.mxu0 %v378
        %v682 = vpop.f32.mrf.mxu0
        %v683 = vadd.f32 %v570, %v682
        %684 = vmatmul.f32.gmra.mxu0 %v379
        %v685 = vpop.f32.mrf.mxu0
        %v686 = vadd.f32 %v573, %v685
        %687 = vmatmul.f32.gmra.mxu0 %v380
        %v688 = vpop.f32.mrf.mxu0
        %v689 = vadd.f32 %v576, %v688
        %690 = vmatmul.f32.gmra.mxu0 %v381
        %v691 = vpop.f32.mrf.mxu0
        %v692 = vadd.f32 %v579, %v691
        %693 = vmatmul.f32.gmra.mxu0 %v382
        %v694 = vpop.f32.mrf.mxu0
        %v695 = vadd.f32 %v582, %v694
        %696 = vmatmul.f32.gmra.mxu0 %v383
        %v697 = vpop.f32.mrf.mxu0
        %v698 = vadd.f32 %v585, %v697
        %699 = vmatmul.f32.gmra.mxu0 %v384
        %v700 = vpop.f32.mrf.mxu0
        %v701 = vadd.f32 %v588, %v700
        %702 = vmatmul.f32.gmra.mxu0 %v385
        %v703 = vpop.f32.mrf.mxu0
        %v704 = vadd.f32 %v591, %v703
        %705 = vmatmul.f32.gmra.mxu0 %v386
        %v706 = vpop.f32.mrf.mxu0
        %v707 = vadd.f32 %v594, %v706
        %708 = vmatmul.f32.gmra.mxu0 %v387
        %v709 = vpop.f32.mrf.mxu0
        %v710 = vadd.f32 %v597, %v709
        %711 = vmatmul.f32.gmra.mxu0 %v388
        %v712 = vpop.f32.mrf.mxu0
        %v713 = vadd.f32 %v600, %v712
        %714 = vmatmul.f32.gmra.mxu0 %v389
        %v715 = vpop.f32.mrf.mxu0
        %v716 = vadd.f32 %v603, %v715
        %717 = vmatmul.f32.gmra.mxu0 %v390
        %v718 = vpop.f32.mrf.mxu0
        %v719 = vadd.f32 %v606, %v718
        %720 = vmatmul.f32.gmra.mxu0 %v391
        %v721 = vpop.f32.mrf.mxu0
        %v722 = vadd.f32 %v609, %v721
        %723 = vmatmul.f32.gmra.mxu0 %v392
        %v724 = vpop.f32.mrf.mxu0
        %v725 = vadd.f32 %v612, %v724
        %726 = vmatmul.f32.gmra.mxu0 %v393
        %v727 = vpop.f32.mrf.mxu0
        %v728 = vadd.f32 %v615, %v727
        %729 = vmatmul.f32.gmra.mxu0 %v394
        %v730 = vpop.f32.mrf.mxu0
        %v731 = vadd.f32 %v618, %v730
        %732 = vmatmul.f32.gmra.mxu0 %v395
        %v733 = vpop.f32.mrf.mxu0
        %v734 = vadd.f32 %v621, %v733
        %735 = vmatmul.f32.gmra.mxu0 %v396
        %v736 = vpop.f32.mrf.mxu0
        %v737 = vadd.f32 %v624, %v736
        %738 = vmatmul.f32.gmra.mxu0 %v397
        %v739 = vpop.f32.mrf.mxu0
        %v740 = vadd.f32 %v627, %v739
        %741 = vmatmul.f32.gmra.mxu0 %v398
        %v742 = vpop.f32.mrf.mxu0
        %v743 = vadd.f32 %v630, %v742
        %744 = vmatmul.f32.gmra.mxu0 %v399
        %v745 = vpop.f32.mrf.mxu0
        %v746 = vadd.f32 %v633, %v745
        %747 = vmatmul.f32.gmra.mxu0 %v400
        %v748 = vpop.f32.mrf.mxu0
        %v749 = vadd.f32 %v636, %v748
        %750 = vmatmul.f32.gmra.mxu0 %v401
        %v751 = vpop.f32.mrf.mxu0
        %v752 = vadd.f32 %v639, %v751
        %753 = vmatmul.f32.gmra.mxu0 %v402
        %v754 = vpop.f32.mrf.mxu0
        %v755 = vadd.f32 %v642, %v754
        %756 = vmatmul.f32.gmra.mxu0 %v403
        %v757 = vpop.f32.mrf.mxu0
        %v758 = vadd.f32 %v645, %v757
        %759 = vmatmul.f32.gmra.mxu0 %v404
        %v760 = vpop.f32.mrf.mxu0
        %v761 = vadd.f32 %v648, %v760
        %762 = vmatmul.f32.gmra.mxu0 %v405
        %v763 = vpop.f32.mrf.mxu0
        %v764 = vadd.f32 %v651, %v763
        %765 = vdwg.mxu0
        %766 = vmatpush.msra.mxu0 %v539
        %767 = vmatpush.msra.mxu0 %v538
        %768 = vmatpush.msra.mxu0 %v537
        %769 = vmatpush.msra.mxu0 %v536
        %770 = vmatpush.msra.mxu0 %v535
        %771 = vmatpush.msra.mxu0 %v534
        %772 = vmatpush.msra.mxu0 %v533
        %773 = vmatpush.msra.mxu0 %v532
        %774 = vmatpush.msra.mxu0 %v531
        %775 = vmatpush.msra.mxu0 %v530
        %776 = vmatpush.msra.mxu0 %v529
        %777 = vmatpush.msra.mxu0 %v528
        %778 = vmatpush.msra.mxu0 %v527
        %779 = vmatpush.msra.mxu0 %v526
        %780 = vmatpush.msra.mxu0 %v525
        %781 = vmatpush.msra.mxu0 %v524
        %782 = vmatmul.f32.gmra.mxu0 %v410
        %v783 = vpop.f32.mrf.mxu0
        %v784 = vadd.f32 %v671, %v783
        %785 = vmatmul.f32.gmra.mxu0 %v411
        %v786 = vpop.f32.mrf.mxu0
        %v787 = vadd.f32 %v674, %v786
        %788 = vmatmul.f32.gmra.mxu0 %v412
        %v789 = vpop.f32.mrf.mxu0
        %v790 = vadd.f32 %v677, %v789
        %791 = vmatmul.f32.gmra.mxu0 %v413
        %v792 = vpop.f32.mrf.mxu0
        %v793 = vadd.f32 %v680, %v792
        %794 = vmatmul.f32.gmra.mxu0 %v414
        %v795 = vpop.f32.mrf.mxu0
        %v796 = vadd.f32 %v683, %v795
        %797 = vmatmul.f32.gmra.mxu0 %v415
        %v798 = vpop.f32.mrf.mxu0
        %v799 = vadd.f32 %v686, %v798
        %800 = vmatmul.f32.gmra.mxu0 %v416
        %v801 = vpop.f32.mrf.mxu0
        %v802 = vadd.f32 %v689, %v801
        %803 = vmatmul.f32.gmra.mxu0 %v417
        %v804 = vpop.f32.mrf.mxu0
        %v805 = vadd.f32 %v692, %v804
        %806 = vmatmul.f32.gmra.mxu0 %v418
        %v807 = vpop.f32.mrf.mxu0
        %v808 = vadd.f32 %v695, %v807
        %809 = vmatmul.f32.gmra.mxu0 %v419
        %v810 = vpop.f32.mrf.mxu0
        %v811 = vadd.f32 %v698, %v810
        %812 = vmatmul.f32.gmra.mxu0 %v420
        %v813 = vpop.f32.mrf.mxu0
        %v814 = vadd.f32 %v701, %v813
        %815 = vmatmul.f32.gmra.mxu0 %v421
        %v816 = vpop.f32.mrf.mxu0
        %v817 = vadd.f32 %v704, %v816
        %818 = vmatmul.f32.gmra.mxu0 %v422
        %v819 = vpop.f32.mrf.mxu0
        %v820 = vadd.f32 %v707, %v819
        %821 = vmatmul.f32.gmra.mxu0 %v423
        %v822 = vpop.f32.mrf.mxu0
        %v823 = vadd.f32 %v710, %v822
        %824 = vmatmul.f32.gmra.mxu0 %v424
        %v825 = vpop.f32.mrf.mxu0
        %v826 = vadd.f32 %v713, %v825
        %827 = vmatmul.f32.gmra.mxu0 %v425
        %v828 = vpop.f32.mrf.mxu0
        %v829 = vadd.f32 %v716, %v828
        %830 = vmatmul.f32.gmra.mxu0 %v426
        %v831 = vpop.f32.mrf.mxu0
        %v832 = vadd.f32 %v719, %v831
        %833 = vmatmul.f32.gmra.mxu0 %v427
        %v834 = vpop.f32.mrf.mxu0
        %v835 = vadd.f32 %v722, %v834
        %836 = vmatmul.f32.gmra.mxu0 %v428
        %v837 = vpop.f32.mrf.mxu0
        %v838 = vadd.f32 %v725, %v837
        %839 = vmatmul.f32.gmra.mxu0 %v429
        %v840 = vpop.f32.mrf.mxu0
        %v841 = vadd.f32 %v728, %v840
        %842 = vmatmul.f32.gmra.mxu0 %v430
        %v843 = vpop.f32.mrf.mxu0
        %v844 = vadd.f32 %v731, %v843
        %845 = vmatmul.f32.gmra.mxu0 %v431
        %v846 = vpop.f32.mrf.mxu0
        %v847 = vadd.f32 %v734, %v846
        %848 = vmatmul.f32.gmra.mxu0 %v432
        %v849 = vpop.f32.mrf.mxu0
        %v850 = vadd.f32 %v737, %v849
        %851 = vmatmul.f32.gmra.mxu0 %v433
        %v852 = vpop.f32.mrf.mxu0
        %v853 = vadd.f32 %v740, %v852
        %854 = vmatmul.f32.gmra.mxu0 %v434
        %v855 = vpop.f32.mrf.mxu0
        %v856 = vadd.f32 %v743, %v855
        %857 = vmatmul.f32.gmra.mxu0 %v435
        %v858 = vpop.f32.mrf.mxu0
        %v859 = vadd.f32 %v746, %v858
        %860 = vmatmul.f32.gmra.mxu0 %v436
        %v861 = vpop.f32.mrf.mxu0
        %v862 = vadd.f32 %v749, %v861
        %863 = vmatmul.f32.gmra.mxu0 %v437
        %v864 = vpop.f32.mrf.mxu0
        %v865 = vadd.f32 %v752, %v864
        %866 = vmatmul.f32.gmra.mxu0 %v438
        %v867 = vpop.f32.mrf.mxu0
        %v868 = vadd.f32 %v755, %v867
        %869 = vmatmul.f32.gmra.mxu0 %v439
        %v870 = vpop.f32.mrf.mxu0
        %v871 = vadd.f32 %v758, %v870
        %872 = vmatmul.f32.gmra.mxu0 %v440
        %v873 = vpop.f32.mrf.mxu0
        %v874 = vadd.f32 %v761, %v873
        %875 = vmatmul.f32.gmra.mxu0 %v441
        %v876 = vpop.f32.mrf.mxu0
        %v877 = vadd.f32 %v764, %v876
        %878 = vdwg.mxu0
        %879 = vmatpush.msra.mxu0 %v459
        %880 = vmatpush.msra.mxu0 %v458
        %881 = vmatpush.msra.mxu0 %v457
        %882 = vmatpush.msra.mxu0 %v456
        %883 = vmatpush.msra.mxu0 %v455
        %884 = vmatpush.msra.mxu0 %v454
        %885 = vmatpush.msra.mxu0 %v453
        %886 = vmatpush.msra.mxu0 %v452
        %887 = vmatpush.msra.mxu0 %v451
        %888 = vmatpush.msra.mxu0 %v450
        %889 = vmatpush.msra.mxu0 %v449
        %890 = vmatpush.msra.mxu0 %v448
        %891 = vmatpush.msra.mxu0 %v447
        %892 = vmatpush.msra.mxu0 %v446
        %893 = vmatpush.msra.mxu0 %v445
        %894 = vmatpush.msra.mxu0 %v444
        %895 = vmatmul.f32.gmra.mxu0 %v336
        %v896 = vpop.f32.mrf.mxu0
        %v897 = vadd.f32 %v784, %v896
        %898 = vmatmul.f32.gmra.mxu0 %v337
        %v899 = vpop.f32.mrf.mxu0
        %v900 = vadd.f32 %v787, %v899
        %901 = vmatmul.f32.gmra.mxu0 %v338
        %v902 = vpop.f32.mrf.mxu0
        %v903 = vadd.f32 %v790, %v902
        %904 = vmatmul.f32.gmra.mxu0 %v339
        %v905 = vpop.f32.mrf.mxu0
        %v906 = vadd.f32 %v793, %v905
        %907 = vmatmul.f32.gmra.mxu0 %v340
        %v908 = vpop.f32.mrf.mxu0
        %v909 = vadd.f32 %v796, %v908
        %910 = vmatmul.f32.gmra.mxu0 %v341
        %v911 = vpop.f32.mrf.mxu0
        %v912 = vadd.f32 %v799, %v911
        %913 = vmatmul.f32.gmra.mxu0 %v342
        %v914 = vpop.f32.mrf.mxu0
        %v915 = vadd.f32 %v802, %v914
        %916 = vmatmul.f32.gmra.mxu0 %v343
        %v917 = vpop.f32.mrf.mxu0
        %v918 = vadd.f32 %v805, %v917
        %919 = vmatmul.f32.gmra.mxu0 %v344
        %v920 = vpop.f32.mrf.mxu0
        %v921 = vadd.f32 %v808, %v920
        %922 = vmatmul.f32.gmra.mxu0 %v345
        %v923 = vpop.f32.mrf.mxu0
        %v924 = vadd.f32 %v811, %v923
        %925 = vmatmul.f32.gmra.mxu0 %v346
        %v926 = vpop.f32.mrf.mxu0
        %v927 = vadd.f32 %v814, %v926
        %928 = vmatmul.f32.gmra.mxu0 %v347
        %v929 = vpop.f32.mrf.mxu0
        %v930 = vadd.f32 %v817, %v929
        %931 = vmatmul.f32.gmra.mxu0 %v348
        %v932 = vpop.f32.mrf.mxu0
        %v933 = vadd.f32 %v820, %v932
        %934 = vmatmul.f32.gmra.mxu0 %v349
        %v935 = vpop.f32.mrf.mxu0
        %v936 = vadd.f32 %v823, %v935
        %937 = vmatmul.f32.gmra.mxu0 %v350
        %v938 = vpop.f32.mrf.mxu0
        %v939 = vadd.f32 %v826, %v938
        %940 = vmatmul.f32.gmra.mxu0 %v351
        %v941 = vpop.f32.mrf.mxu0
        %v942 = vadd.f32 %v829, %v941
        %943 = vmatmul.f32.gmra.mxu0 %v352
        %v944 = vpop.f32.mrf.mxu0
        %v945 = vadd.f32 %v832, %v944
        %946 = vmatmul.f32.gmra.mxu0 %v353
        %v947 = vpop.f32.mrf.mxu0
        %v948 = vadd.f32 %v835, %v947
        %949 = vmatmul.f32.gmra.mxu0 %v354
        %v950 = vpop.f32.mrf.mxu0
        %v951 = vadd.f32 %v838, %v950
        %952 = vmatmul.f32.gmra.mxu0 %v355
        %v953 = vpop.f32.mrf.mxu0
        %v954 = vadd.f32 %v841, %v953
        %955 = vmatmul.f32.gmra.mxu0 %v356
        %v956 = vpop.f32.mrf.mxu0
        %v957 = vadd.f32 %v844, %v956
        %958 = vmatmul.f32.gmra.mxu0 %v357
        %v959 = vpop.f32.mrf.mxu0
        %v960 = vadd.f32 %v847, %v959
        %961 = vmatmul.f32.gmra.mxu0 %v358
        %v962 = vpop.f32.mrf.mxu0
        %v963 = vadd.f32 %v850, %v962
        %964 = vmatmul.f32.gmra.mxu0 %v359
        %v965 = vpop.f32.mrf.mxu0
        %v966 = vadd.f32 %v853, %v965
        %967 = vmatmul.f32.gmra.mxu0 %v360
        %v968 = vpop.f32.mrf.mxu0
        %v969 = vadd.f32 %v856, %v968
        %970 = vmatmul.f32.gmra.mxu0 %v361
        %v971 = vpop.f32.mrf.mxu0
        %v972 = vadd.f32 %v859, %v971
        %973 = vmatmul.f32.gmra.mxu0 %v362
        %v974 = vpop.f32.mrf.mxu0
        %v975 = vadd.f32 %v862, %v974
        %976 = vmatmul.f32.gmra.mxu0 %v363
        %v977 = vpop.f32.mrf.mxu0
        %v978 = vadd.f32 %v865, %v977
        %979 = vmatmul.f32.gmra.mxu0 %v364
        %v980 = vpop.f32.mrf.mxu0
        %v981 = vadd.f32 %v868, %v980
        %982 = vmatmul.f32.gmra.mxu0 %v365
        %v983 = vpop.f32.mrf.mxu0
        %v984 = vadd.f32 %v871, %v983
        %985 = vmatmul.f32.gmra.mxu0 %v366
        %v986 = vpop.f32.mrf.mxu0
        %v987 = vadd.f32 %v874, %v986
        %988 = vmatmul.f32.gmra.mxu0 %v367
        %v989 = vpop.f32.mrf.mxu0
        %v990 = vadd.f32 %v877, %v989
        %991 = vdwg.mxu0
        %992 = vmatpush.msra.mxu0 %v475
        %993 = vmatpush.msra.mxu0 %v474
        %994 = vmatpush.msra.mxu0 %v473
        %995 = vmatpush.msra.mxu0 %v472
        %996 = vmatpush.msra.mxu0 %v471
        %997 = vmatpush.msra.mxu0 %v470
        %998 = vmatpush.msra.mxu0 %v469
        %999 = vmatpush.msra.mxu0 %v468
        %1000 = vmatpush.msra.mxu0 %v467
        %1001 = vmatpush.msra.mxu0 %v466
        %1002 = vmatpush.msra.mxu0 %v465
        %1003 = vmatpush.msra.mxu0 %v464
        %1004 = vmatpush.msra.mxu0 %v463
        %1005 = vmatpush.msra.mxu0 %v462
        %1006 = vmatpush.msra.mxu0 %v461
        %1007 = vmatpush.msra.mxu0 %v460
        %1008 = vmatmul.f32.gmra.mxu0 %v372
        %v1009 = vpop.f32.mrf.mxu0
        %v1010 = vadd.f32 %v897, %v1009
        %1011 = vmatmul.f32.gmra.mxu0 %v373
        %v1012 = vpop.f32.mrf.mxu0
        %v1013 = vadd.f32 %v900, %v1012
        %1014 = vmatmul.f32.gmra.mxu0 %v374
        %v1015 = vpop.f32.mrf.mxu0
        %v1016 = vadd.f32 %v903, %v1015
        %1017 = vmatmul.f32.gmra.mxu0 %v375
        %v1018 = vpop.f32.mrf.mxu0
        %v1019 = vadd.f32 %v906, %v1018
        %1020 = vmatmul.f32.gmra.mxu0 %v376
        %v1021 = vpop.f32.mrf.mxu0
        %v1022 = vadd.f32 %v909, %v1021
        %1023 = vmatmul.f32.gmra.mxu0 %v377
        %v1024 = vpop.f32.mrf.mxu0
        %v1025 = vadd.f32 %v912, %v1024
        %1026 = vmatmul.f32.gmra.mxu0 %v378
        %v1027 = vpop.f32.mrf.mxu0
        %v1028 = vadd.f32 %v915, %v1027
        %1029 = vmatmul.f32.gmra.mxu0 %v379
        %v1030 = vpop.f32.mrf.mxu0
        %v1031 = vadd.f32 %v918, %v1030
        %1032 = vmatmul.f32.gmra.mxu0 %v380
        %v1033 = vpop.f32.mrf.mxu0
        %v1034 = vadd.f32 %v921, %v1033
        %1035 = vmatmul.f32.gmra.mxu0 %v381
        %v1036 = vpop.f32.mrf.mxu0
        %v1037 = vadd.f32 %v924, %v1036
        %1038 = vmatmul.f32.gmra.mxu0 %v382
        %v1039 = vpop.f32.mrf.mxu0
        %v1040 = vadd.f32 %v927, %v1039
        %1041 = vmatmul.f32.gmra.mxu0 %v383
        %v1042 = vpop.f32.mrf.mxu0
        %v1043 = vadd.f32 %v930, %v1042
        %1044 = vmatmul.f32.gmra.mxu0 %v384
        %v1045 = vpop.f32.mrf.mxu0
        %v1046 = vadd.f32 %v933, %v1045
        %1047 = vmatmul.f32.gmra.mxu0 %v385
        %v1048 = vpop.f32.mrf.mxu0
        %v1049 = vadd.f32 %v936, %v1048
        %1050 = vmatmul.f32.gmra.mxu0 %v386
        %v1051 = vpop.f32.mrf.mxu0
        %v1052 = vadd.f32 %v939, %v1051
        %1053 = vmatmul.f32.gmra.mxu0 %v387
        %v1054 = vpop.f32.mrf.mxu0
        %v1055 = vadd.f32 %v942, %v1054
        %1056 = vmatmul.f32.gmra.mxu0 %v388
        %v1057 = vpop.f32.mrf.mxu0
        %v1058 = vadd.f32 %v945, %v1057
        %1059 = vmatmul.f32.gmra.mxu0 %v389
        %v1060 = vpop.f32.mrf.mxu0
        %v1061 = vadd.f32 %v948, %v1060
        %1062 = vmatmul.f32.gmra.mxu0 %v390
        %v1063 = vpop.f32.mrf.mxu0
        %v1064 = vadd.f32 %v951, %v1063
        %1065 = vmatmul.f32.gmra.mxu0 %v391
        %v1066 = vpop.f32.mrf.mxu0
        %v1067 = vadd.f32 %v954, %v1066
        %1068 = vmatmul.f32.gmra.mxu0 %v392
        %v1069 = vpop.f32.mrf.mxu0
        %v1070 = vadd.f32 %v957, %v1069
        %1071 = vmatmul.f32.gmra.mxu0 %v393
        %v1072 = vpop.f32.mrf.mxu0
        %v1073 = vadd.f32 %v960, %v1072
        %1074 = vmatmul.f32.gmra.mxu0 %v394
        %v1075 = vpop.f32.mrf.mxu0
        %v1076 = vadd.f32 %v963, %v1075
        %1077 = vmatmul.f32.gmra.mxu0 %v395
        %v1078 = vpop.f32.mrf.mxu0
        %v1079 = vadd.f32 %v966, %v1078
        %1080 = vmatmul.f32.gmra.mxu0 %v396
        %v1081 = vpop.f32.mrf.mxu0
        %v1082 = vadd.f32 %v969, %v1081
        %1083 = vmatmul.f32.gmra.mxu0 %v397
        %v1084 = vpop.f32.mrf.mxu0
        %v1085 = vadd.f32 %v972, %v1084
        %1086 = vmatmul.f32.gmra.mxu0 %v398
        %v1087 = vpop.f32.mrf.mxu0
        %v1088 = vadd.f32 %v975, %v1087
        %1089 = vmatmul.f32.gmra.mxu0 %v399
        %v1090 = vpop.f32.mrf.mxu0
        %v1091 = vadd.f32 %v978, %v1090
        %1092 = vmatmul.f32.gmra.mxu0 %v400
        %v1093 = vpop.f32.mrf.mxu0
        %v1094 = vadd.f32 %v981, %v1093
        %1095 = vmatmul.f32.gmra.mxu0 %v401
        %v1096 = vpop.f32.mrf.mxu0
        %v1097 = vadd.f32 %v984, %v1096
        %1098 = vmatmul.f32.gmra.mxu0 %v402
        %v1099 = vpop.f32.mrf.mxu0
        %v1100 = vadd.f32 %v987, %v1099
        %1101 = vmatmul.f32.gmra.mxu0 %v403
        %v1102 = vpop.f32.mrf.mxu0
        %v1103 = vadd.f32 %v990, %v1102
        %1104 = vdwg.mxu0
        %1105 = vmatpush.msra.mxu0 %v491
        %1106 = vmatpush.msra.mxu0 %v490
        %1107 = vmatpush.msra.mxu0 %v489
        %1108 = vmatpush.msra.mxu0 %v488
        %1109 = vmatpush.msra.mxu0 %v487
        %1110 = vmatpush.msra.mxu0 %v486
        %1111 = vmatpush.msra.mxu0 %v485
        %1112 = vmatpush.msra.mxu0 %v484
        %1113 = vmatpush.msra.mxu0 %v483
        %1114 = vmatpush.msra.mxu0 %v482
        %1115 = vmatpush.msra.mxu0 %v481
        %1116 = vmatpush.msra.mxu0 %v480
        %1117 = vmatpush.msra.mxu0 %v479
        %1118 = vmatpush.msra.mxu0 %v478
        %1119 = vmatpush.msra.mxu0 %v477
        %1120 = vmatpush.msra.mxu0 %v476
        %1121 = vmatmul.f32.gmra.mxu0 %v408
        %v1122 = vpop.f32.mrf.mxu0
        %v1123 = vadd.f32 %v1010, %v1122
        %1124 = vmatmul.f32.gmra.mxu0 %v409
        %v1125 = vpop.f32.mrf.mxu0
        %v1126 = vadd.f32 %v1013, %v1125
        %1127 = vmatmul.f32.gmra.mxu0 %v410
        %v1128 = vpop.f32.mrf.mxu0
        %v1129 = vadd.f32 %v1016, %v1128
        %1130 = vmatmul.f32.gmra.mxu0 %v411
        %v1131 = vpop.f32.mrf.mxu0
        %v1132 = vadd.f32 %v1019, %v1131
        %1133 = vmatmul.f32.gmra.mxu0 %v412
        %v1134 = vpop.f32.mrf.mxu0
        %v1135 = vadd.f32 %v1022, %v1134
        %1136 = vmatmul.f32.gmra.mxu0 %v413
        %v1137 = vpop.f32.mrf.mxu0
        %v1138 = vadd.f32 %v1025, %v1137
        %1139 = vmatmul.f32.gmra.mxu0 %v414
        %v1140 = vpop.f32.mrf.mxu0
        %v1141 = vadd.f32 %v1028, %v1140
        %1142 = vmatmul.f32.gmra.mxu0 %v415
        %v1143 = vpop.f32.mrf.mxu0
        %v1144 = vadd.f32 %v1031, %v1143
        %1145 = vmatmul.f32.gmra.mxu0 %v416
        %v1146 = vpop.f32.mrf.mxu0
        %v1147 = vadd.f32 %v1034, %v1146
        %1148 = vmatmul.f32.gmra.mxu0 %v417
        %v1149 = vpop.f32.mrf.mxu0
        %v1150 = vadd.f32 %v1037, %v1149
        %1151 = vmatmul.f32.gmra.mxu0 %v418
        %v1152 = vpop.f32.mrf.mxu0
        %v1153 = vadd.f32 %v1040, %v1152
        %1154 = vmatmul.f32.gmra.mxu0 %v419
        %v1155 = vpop.f32.mrf.mxu0
        %v1156 = vadd.f32 %v1043, %v1155
        %1157 = vmatmul.f32.gmra.mxu0 %v420
        %v1158 = vpop.f32.mrf.mxu0
        %v1159 = vadd.f32 %v1046, %v1158
        %1160 = vmatmul.f32.gmra.mxu0 %v421
        %v1161 = vpop.f32.mrf.mxu0
        %v1162 = vadd.f32 %v1049, %v1161
        %1163 = vmatmul.f32.gmra.mxu0 %v422
        %v1164 = vpop.f32.mrf.mxu0
        %v1165 = vadd.f32 %v1052, %v1164
        %1166 = vmatmul.f32.gmra.mxu0 %v423
        %v1167 = vpop.f32.mrf.mxu0
        %v1168 = vadd.f32 %v1055, %v1167
        %1169 = vmatmul.f32.gmra.mxu0 %v424
        %v1170 = vpop.f32.mrf.mxu0
        %v1171 = vadd.f32 %v1058, %v1170
        %1172 = vmatmul.f32.gmra.mxu0 %v425
        %v1173 = vpop.f32.mrf.mxu0
        %v1174 = vadd.f32 %v1061, %v1173
        %1175 = vmatmul.f32.gmra.mxu0 %v426
        %v1176 = vpop.f32.mrf.mxu0
        %v1177 = vadd.f32 %v1064, %v1176
        %1178 = vmatmul.f32.gmra.mxu0 %v427
        %v1179 = vpop.f32.mrf.mxu0
        %v1180 = vadd.f32 %v1067, %v1179
        %1181 = vmatmul.f32.gmra.mxu0 %v428
        %v1182 = vpop.f32.mrf.mxu0
        %v1183 = vadd.f32 %v1070, %v1182
        %1184 = vmatmul.f32.gmra.mxu0 %v429
        %v1185 = vpop.f32.mrf.mxu0
        %v1186 = vadd.f32 %v1073, %v1185
        %1187 = vmatmul.f32.gmra.mxu0 %v430
        %v1188 = vpop.f32.mrf.mxu0
        %v1189 = vadd.f32 %v1076, %v1188
        %1190 = vmatmul.f32.gmra.mxu0 %v431
        %v1191 = vpop.f32.mrf.mxu0
        %v1192 = vadd.f32 %v1079, %v1191
        %1193 = vmatmul.f32.gmra.mxu0 %v432
        %v1194 = vpop.f32.mrf.mxu0
        %v1195 = vadd.f32 %v1082, %v1194
        %1196 = vmatmul.f32.gmra.mxu0 %v433
        %v1197 = vpop.f32.mrf.mxu0
        %v1198 = vadd.f32 %v1085, %v1197
        %1199 = vmatmul.f32.gmra.mxu0 %v434
        %v1200 = vpop.f32.mrf.mxu0
        %v1201 = vadd.f32 %v1088, %v1200
        %1202 = vmatmul.f32.gmra.mxu0 %v435
        %v1203 = vpop.f32.mrf.mxu0
        %v1204 = vadd.f32 %v1091, %v1203
        %1205 = vmatmul.f32.gmra.mxu0 %v436
        %v1206 = vpop.f32.mrf.mxu0
        %v1207 = vadd.f32 %v1094, %v1206
        %1208 = vmatmul.f32.gmra.mxu0 %v437
        %v1209 = vpop.f32.mrf.mxu0
        %v1210 = vadd.f32 %v1097, %v1209
        %1211 = vmatmul.f32.gmra.mxu0 %v438
        %v1212 = vpop.f32.mrf.mxu0
        %v1213 = vadd.f32 %v1100, %v1212
        %1214 = vmatmul.f32.gmra.mxu0 %v439
        %v1215 = vpop.f32.mrf.mxu0
        %v1216 = vadd.f32 %v1103, %v1215
        %1217 = vdwg.mxu0
        %v1218 = vld [vmem:[#allocation6 + $0x300] sm:$0xff]
        %v1219 = vld [vmem:[#allocation6 + $0x308] sm:$0xff]
        %v1220 = vld [vmem:[#allocation6 + $0x310] sm:$0xff]
        %v1221 = vld [vmem:[#allocation6 + $0x318] sm:$0xff]
        %v1222 = vld [vmem:[#allocation6 + $0x320] sm:$0xff]
        %v1223 = vld [vmem:[#allocation6 + $0x328] sm:$0xff]
        %v1224 = vld [vmem:[#allocation6 + $0x330] sm:$0xff]
        %v1225 = vld [vmem:[#allocation6 + $0x338] sm:$0xff]
        %v1226 = vld [vmem:[#allocation6 + $0x340] sm:$0xff]
        %v1227 = vld [vmem:[#allocation6 + $0x348] sm:$0xff]
        %v1228 = vld [vmem:[#allocation6 + $0x350] sm:$0xff]
        %v1229 = vld [vmem:[#allocation6 + $0x358] sm:$0xff]
        %v1230 = vld [vmem:[#allocation6 + $0x360] sm:$0xff]
        %v1231 = vld [vmem:[#allocation6 + $0x368] sm:$0xff]
        %v1232 = vld [vmem:[#allocation6 + $0x370] sm:$0xff]
        %v1233 = vld [vmem:[#allocation6 + $0x378] sm:$0xff]
        %v1234 = vld [vmem:[#allocation6 + $0x380] sm:$0xff]
        %v1235 = vld [vmem:[#allocation6 + $0x388] sm:$0xff]
        %v1236 = vld [vmem:[#allocation6 + $0x390] sm:$0xff]
        %v1237 = vld [vmem:[#allocation6 + $0x398] sm:$0xff]
        %v1238 = vld [vmem:[#allocation6 + $0x3a0] sm:$0xff]
        %v1239 = vld [vmem:[#allocation6 + $0x3a8] sm:$0xff]
        %v1240 = vld [vmem:[#allocation6 + $0x3b0] sm:$0xff]
        %v1241 = vld [vmem:[#allocation6 + $0x3b8] sm:$0xff]
        %v1242 = vld [vmem:[#allocation6 + $0x3c0] sm:$0xff]
        %v1243 = vld [vmem:[#allocation6 + $0x3c8] sm:$0xff]
        %v1244 = vld [vmem:[#allocation6 + $0x3d0] sm:$0xff]
        %v1245 = vld [vmem:[#allocation6 + $0x3d8] sm:$0xff]
        %v1246 = vld [vmem:[#allocation6 + $0x3e0] sm:$0xff]
        %v1247 = vld [vmem:[#allocation6 + $0x3e8] sm:$0xff]
        %v1248 = vld [vmem:[#allocation6 + $0x3f0] sm:$0xff]
        %v1249 = vld [vmem:[#allocation6 + $0x3f8] sm:$0xff]
        %v1250 = vld [vmem:[#allocation6 + $0x400] sm:$0xff]
        %v1251 = vld [vmem:[#allocation6 + $0x408] sm:$0xff]
        %v1252 = vld [vmem:[#allocation6 + $0x410] sm:$0xff]
        %v1253 = vld [vmem:[#allocation6 + $0x418] sm:$0xff]
        %v1254 = vld [vmem:[#allocation6 + $0x420] sm:$0xff]
        %v1255 = vld [vmem:[#allocation6 + $0x428] sm:$0xff]
        %v1256 = vld [vmem:[#allocation6 + $0x430] sm:$0xff]
        %v1257 = vld [vmem:[#allocation6 + $0x438] sm:$0xff]
        %v1258 = vld [vmem:[#allocation6 + $0x440] sm:$0xff]
        %v1259 = vld [vmem:[#allocation6 + $0x448] sm:$0xff]
        %v1260 = vld [vmem:[#allocation6 + $0x450] sm:$0xff]
        %v1261 = vld [vmem:[#allocation6 + $0x458] sm:$0xff]
        %v1262 = vld [vmem:[#allocation6 + $0x460] sm:$0xff]
        %v1263 = vld [vmem:[#allocation6 + $0x468] sm:$0xff]
        %v1264 = vld [vmem:[#allocation6 + $0x470] sm:$0xff]
        %v1265 = vld [vmem:[#allocation6 + $0x478] sm:$0xff]
        %1266 = vmatpush.msra.mxu0 %v1233
        %1267 = vmatpush.msra.mxu0 %v1232
        %1268 = vmatpush.msra.mxu0 %v1231
        %1269 = vmatpush.msra.mxu0 %v1230
        %1270 = vmatpush.msra.mxu0 %v1229
        %1271 = vmatpush.msra.mxu0 %v1228
        %1272 = vmatpush.msra.mxu0 %v1227
        %1273 = vmatpush.msra.mxu0 %v1226
        %1274 = vmatpush.msra.mxu0 %v1225
        %1275 = vmatpush.msra.mxu0 %v1224
        %1276 = vmatpush.msra.mxu0 %v1223
        %1277 = vmatpush.msra.mxu0 %v1222
        %1278 = vmatpush.msra.mxu0 %v1221
        %1279 = vmatpush.msra.mxu0 %v1220
        %1280 = vmatpush.msra.mxu0 %v1219
        %1281 = vmatpush.msra.mxu0 %v1218
        %1282 = vmatmul.f32.gmra.mxu0 %v340
        %v1283 = vpop.f32.mrf.mxu0
        %v1284 = vadd.f32 0.0, %v1283
        %1285 = vmatmul.f32.gmra.mxu0 %v341
        %v1286 = vpop.f32.mrf.mxu0
        %v1287 = vadd.f32 0.0, %v1286
        %1288 = vmatmul.f32.gmra.mxu0 %v342
        %v1289 = vpop.f32.mrf.mxu0
        %v1290 = vadd.f32 0.0, %v1289
        %1291 = vmatmul.f32.gmra.mxu0 %v343
        %v1292 = vpop.f32.mrf.mxu0
        %v1293 = vadd.f32 0.0, %v1292
        %1294 = vmatmul.f32.gmra.mxu0 %v344
        %v1295 = vpop.f32.mrf.mxu0
        %v1296 = vadd.f32 0.0, %v1295
        %1297 = vmatmul.f32.gmra.mxu0 %v345
        %v1298 = vpop.f32.mrf.mxu0
        %v1299 = vadd.f32 0.0, %v1298
        %1300 = vmatmul.f32.gmra.mxu0 %v346
        %v1301 = vpop.f32.mrf.mxu0
        %v1302 = vadd.f32 0.0, %v1301
        %1303 = vmatmul.f32.gmra.mxu0 %v347
        %v1304 = vpop.f32.mrf.mxu0
        %v1305 = vadd.f32 0.0, %v1304
        %1306 = vmatmul.f32.gmra.mxu0 %v348
        %v1307 = vpop.f32.mrf.mxu0
        %v1308 = vadd.f32 0.0, %v1307
        %1309 = vmatmul.f32.gmra.mxu0 %v349
        %v1310 = vpop.f32.mrf.mxu0
        %v1311 = vadd.f32 0.0, %v1310
        %1312 = vmatmul.f32.gmra.mxu0 %v350
        %v1313 = vpop.f32.mrf.mxu0
        %v1314 = vadd.f32 0.0, %v1313
        %1315 = vmatmul.f32.gmra.mxu0 %v351
        %v1316 = vpop.f32.mrf.mxu0
        %v1317 = vadd.f32 0.0, %v1316
        %1318 = vmatmul.f32.gmra.mxu0 %v352
        %v1319 = vpop.f32.mrf.mxu0
        %v1320 = vadd.f32 0.0, %v1319
        %1321 = vmatmul.f32.gmra.mxu0 %v353
        %v1322 = vpop.f32.mrf.mxu0
        %v1323 = vadd.f32 0.0, %v1322
        %1324 = vmatmul.f32.gmra.mxu0 %v354
        %v1325 = vpop.f32.mrf.mxu0
        %v1326 = vadd.f32 0.0, %v1325
        %1327 = vmatmul.f32.gmra.mxu0 %v355
        %v1328 = vpop.f32.mrf.mxu0
        %v1329 = vadd.f32 0.0, %v1328
        %1330 = vmatmul.f32.gmra.mxu0 %v356
        %v1331 = vpop.f32.mrf.mxu0
        %v1332 = vadd.f32 0.0, %v1331
        %1333 = vmatmul.f32.gmra.mxu0 %v357
        %v1334 = vpop.f32.mrf.mxu0
        %v1335 = vadd.f32 0.0, %v1334
        %1336 = vmatmul.f32.gmra.mxu0 %v358
        %v1337 = vpop.f32.mrf.mxu0
        %v1338 = vadd.f32 0.0, %v1337
        %1339 = vmatmul.f32.gmra.mxu0 %v359
        %v1340 = vpop.f32.mrf.mxu0
        %v1341 = vadd.f32 0.0, %v1340
        %1342 = vmatmul.f32.gmra.mxu0 %v360
        %v1343 = vpop.f32.mrf.mxu0
        %v1344 = vadd.f32 0.0, %v1343
        %1345 = vmatmul.f32.gmra.mxu0 %v361
        %v1346 = vpop.f32.mrf.mxu0
        %v1347 = vadd.f32 0.0, %v1346
        %1348 = vmatmul.f32.gmra.mxu0 %v362
        %v1349 = vpop.f32.mrf.mxu0
        %v1350 = vadd.f32 0.0, %v1349
        %1351 = vmatmul.f32.gmra.mxu0 %v363
        %v1352 = vpop.f32.mrf.mxu0
        %v1353 = vadd.f32 0.0, %v1352
        %1354 = vmatmul.f32.gmra.mxu0 %v364
        %v1355 = vpop.f32.mrf.mxu0
        %v1356 = vadd.f32 0.0, %v1355
        %1357 = vmatmul.f32.gmra.mxu0 %v365
        %v1358 = vpop.f32.mrf.mxu0
        %v1359 = vadd.f32 0.0, %v1358
        %1360 = vmatmul.f32.gmra.mxu0 %v366
        %v1361 = vpop.f32.mrf.mxu0
        %v1362 = vadd.f32 0.0, %v1361
        %1363 = vmatmul.f32.gmra.mxu0 %v367
        %v1364 = vpop.f32.mrf.mxu0
        %v1365 = vadd.f32 0.0, %v1364
        %1366 = vmatmul.f32.gmra.mxu0 %v368
        %v1367 = vpop.f32.mrf.mxu0
        %v1368 = vadd.f32 0.0, %v1367
        %1369 = vmatmul.f32.gmra.mxu0 %v369
        %v1370 = vpop.f32.mrf.mxu0
        %v1371 = vadd.f32 0.0, %v1370
        %1372 = vmatmul.f32.gmra.mxu0 %v370
        %v1373 = vpop.f32.mrf.mxu0
        %v1374 = vadd.f32 0.0, %v1373
        %1375 = vmatmul.f32.gmra.mxu0 %v371
        %v1376 = vpop.f32.mrf.mxu0
        %v1377 = vadd.f32 0.0, %v1376
        %1378 = vdwg.mxu0
        %1379 = vmatpush.msra.mxu0 %v1249
        %1380 = vmatpush.msra.mxu0 %v1248
        %1381 = vmatpush.msra.mxu0 %v1247
        %1382 = vmatpush.msra.mxu0 %v1246
        %1383 = vmatpush.msra.mxu0 %v1245
        %1384 = vmatpush.msra.mxu0 %v1244
        %1385 = vmatpush.msra.mxu0 %v1243
        %1386 = vmatpush.msra.mxu0 %v1242
        %1387 = vmatpush.msra.mxu0 %v1241
        %1388 = vmatpush.msra.mxu0 %v1240
        %1389 = vmatpush.msra.mxu0 %v1239
        %1390 = vmatpush.msra.mxu0 %v1238
        %1391 = vmatpush.msra.mxu0 %v1237
        %1392 = vmatpush.msra.mxu0 %v1236
        %1393 = vmatpush.msra.mxu0 %v1235
        %1394 = vmatpush.msra.mxu0 %v1234
        %1395 = vmatmul.f32.gmra.mxu0 %v376
        %v1396 = vpop.f32.mrf.mxu0
        %v1397 = vadd.f32 %v1284, %v1396
        %1398 = vmatmul.f32.gmra.mxu0 %v377
        %v1399 = vpop.f32.mrf.mxu0
        %v1400 = vadd.f32 %v1287, %v1399
        %1401 = vmatmul.f32.gmra.mxu0 %v378
        %v1402 = vpop.f32.mrf.mxu0
        %v1403 = vadd.f32 %v1290, %v1402
        %1404 = vmatmul.f32.gmra.mxu0 %v379
        %v1405 = vpop.f32.mrf.mxu0
        %v1406 = vadd.f32 %v1293, %v1405
        %1407 = vmatmul.f32.gmra.mxu0 %v380
        %v1408 = vpop.f32.mrf.mxu0
        %v1409 = vadd.f32 %v1296, %v1408
        %1410 = vmatmul.f32.gmra.mxu0 %v381
        %v1411 = vpop.f32.mrf.mxu0
        %v1412 = vadd.f32 %v1299, %v1411
        %1413 = vmatmul.f32.gmra.mxu0 %v382
        %v1414 = vpop.f32.mrf.mxu0
        %v1415 = vadd.f32 %v1302, %v1414
        %1416 = vmatmul.f32.gmra.mxu0 %v383
        %v1417 = vpop.f32.mrf.mxu0
        %v1418 = vadd.f32 %v1305, %v1417
        %1419 = vmatmul.f32.gmra.mxu0 %v384
        %v1420 = vpop.f32.mrf.mxu0
        %v1421 = vadd.f32 %v1308, %v1420
        %1422 = vmatmul.f32.gmra.mxu0 %v385
        %v1423 = vpop.f32.mrf.mxu0
        %v1424 = vadd.f32 %v1311, %v1423
        %1425 = vmatmul.f32.gmra.mxu0 %v386
        %v1426 = vpop.f32.mrf.mxu0
        %v1427 = vadd.f32 %v1314, %v1426
        %1428 = vmatmul.f32.gmra.mxu0 %v387
        %v1429 = vpop.f32.mrf.mxu0
        %v1430 = vadd.f32 %v1317, %v1429
        %1431 = vmatmul.f32.gmra.mxu0 %v388
        %v1432 = vpop.f32.mrf.mxu0
        %v1433 = vadd.f32 %v1320, %v1432
        %1434 = vmatmul.f32.gmra.mxu0 %v389
        %v1435 = vpop.f32.mrf.mxu0
        %v1436 = vadd.f32 %v1323, %v1435
        %1437 = vmatmul.f32.gmra.mxu0 %v390
        %v1438 = vpop.f32.mrf.mxu0
        %v1439 = vadd.f32 %v1326, %v1438
        %1440 = vmatmul.f32.gmra.mxu0 %v391
        %v1441 = vpop.f32.mrf.mxu0
        %v1442 = vadd.f32 %v1329, %v1441
        %1443 = vmatmul.f32.gmra.mxu0 %v392
        %v1444 = vpop.f32.mrf.mxu0
        %v1445 = vadd.f32 %v1332, %v1444
        %1446 = vmatmul.f32.gmra.mxu0 %v393
        %v1447 = vpop.f32.mrf.mxu0
        %v1448 = vadd.f32 %v1335, %v1447
        %1449 = vmatmul.f32.gmra.mxu0 %v394
        %v1450 = vpop.f32.mrf.mxu0
        %v1451 = vadd.f32 %v1338, %v1450
        %1452 = vmatmul.f32.gmra.mxu0 %v395
        %v1453 = vpop.f32.mrf.mxu0
        %v1454 = vadd.f32 %v1341, %v1453
        %1455 = vmatmul.f32.gmra.mxu0 %v396
        %v1456 = vpop.f32.mrf.mxu0
        %v1457 = vadd.f32 %v1344, %v1456
        %1458 = vmatmul.f32.gmra.mxu0 %v397
        %v1459 = vpop.f32.mrf.mxu0
        %v1460 = vadd.f32 %v1347, %v1459
        %1461 = vmatmul.f32.gmra.mxu0 %v398
        %v1462 = vpop.f32.mrf.mxu0
        %v1463 = vadd.f32 %v1350, %v1462
        %1464 = vmatmul.f32.gmra.mxu0 %v399
        %v1465 = vpop.f32.mrf.mxu0
        %v1466 = vadd.f32 %v1353, %v1465
        %1467 = vmatmul.f32.gmra.mxu0 %v400
        %v1468 = vpop.f32.mrf.mxu0
        %v1469 = vadd.f32 %v1356, %v1468
        %1470 = vmatmul.f32.gmra.mxu0 %v401
        %v1471 = vpop.f32.mrf.mxu0
        %v1472 = vadd.f32 %v1359, %v1471
        %1473 = vmatmul.f32.gmra.mxu0 %v402
        %v1474 = vpop.f32.mrf.mxu0
        %v1475 = vadd.f32 %v1362, %v1474
        %1476 = vmatmul.f32.gmra.mxu0 %v403
        %v1477 = vpop.f32.mrf.mxu0
        %v1478 = vadd.f32 %v1365, %v1477
        %1479 = vmatmul.f32.gmra.mxu0 %v404
        %v1480 = vpop.f32.mrf.mxu0
        %v1481 = vadd.f32 %v1368, %v1480
        %1482 = vmatmul.f32.gmra.mxu0 %v405
        %v1483 = vpop.f32.mrf.mxu0
        %v1484 = vadd.f32 %v1371, %v1483
        %1485 = vmatmul.f32.gmra.mxu0 %v406
        %v1486 = vpop.f32.mrf.mxu0
        %v1487 = vadd.f32 %v1374, %v1486
        %1488 = vmatmul.f32.gmra.mxu0 %v407
        %v1489 = vpop.f32.mrf.mxu0
        %v1490 = vadd.f32 %v1377, %v1489
        %1491 = vdwg.mxu0
        %1492 = vmatpush.msra.mxu0 %v1265
        %1493 = vmatpush.msra.mxu0 %v1264
        %1494 = vmatpush.msra.mxu0 %v1263
        %1495 = vmatpush.msra.mxu0 %v1262
        %1496 = vmatpush.msra.mxu0 %v1261
        %1497 = vmatpush.msra.mxu0 %v1260
        %1498 = vmatpush.msra.mxu0 %v1259
        %1499 = vmatpush.msra.mxu0 %v1258
        %1500 = vmatpush.msra.mxu0 %v1257
        %1501 = vmatpush.msra.mxu0 %v1256
        %1502 = vmatpush.msra.mxu0 %v1255
        %1503 = vmatpush.msra.mxu0 %v1254
        %1504 = vmatpush.msra.mxu0 %v1253
        %1505 = vmatpush.msra.mxu0 %v1252
        %1506 = vmatpush.msra.mxu0 %v1251
        %1507 = vmatpush.msra.mxu0 %v1250
        %1508 = vmatmul.f32.gmra.mxu0 %v412
        %v1509 = vpop.f32.mrf.mxu0
        %v1510 = vadd.f32 %v1397, %v1509
        %1511 = vmatmul.f32.gmra.mxu0 %v413
        %v1512 = vpop.f32.mrf.mxu0
        %v1513 = vadd.f32 %v1400, %v1512
        %1514 = vmatmul.f32.gmra.mxu0 %v414
        %v1515 = vpop.f32.mrf.mxu0
        %v1516 = vadd.f32 %v1403, %v1515
        %1517 = vmatmul.f32.gmra.mxu0 %v415
        %v1518 = vpop.f32.mrf.mxu0
        %v1519 = vadd.f32 %v1406, %v1518
        %1520 = vmatmul.f32.gmra.mxu0 %v416
        %v1521 = vpop.f32.mrf.mxu0
        %v1522 = vadd.f32 %v1409, %v1521
        %1523 = vmatmul.f32.gmra.mxu0 %v417
        %v1524 = vpop.f32.mrf.mxu0
        %v1525 = vadd.f32 %v1412, %v1524
        %1526 = vmatmul.f32.gmra.mxu0 %v418
        %v1527 = vpop.f32.mrf.mxu0
        %v1528 = vadd.f32 %v1415, %v1527
        %1529 = vmatmul.f32.gmra.mxu0 %v419
        %v1530 = vpop.f32.mrf.mxu0
        %v1531 = vadd.f32 %v1418, %v1530
        %1532 = vmatmul.f32.gmra.mxu0 %v420
        %v1533 = vpop.f32.mrf.mxu0
        %v1534 = vadd.f32 %v1421, %v1533
        %1535 = vmatmul.f32.gmra.mxu0 %v421
        %v1536 = vpop.f32.mrf.mxu0
        %v1537 = vadd.f32 %v1424, %v1536
        %1538 = vmatmul.f32.gmra.mxu0 %v422
        %v1539 = vpop.f32.mrf.mxu0
        %v1540 = vadd.f32 %v1427, %v1539
        %1541 = vmatmul.f32.gmra.mxu0 %v423
        %v1542 = vpop.f32.mrf.mxu0
        %v1543 = vadd.f32 %v1430, %v1542
        %1544 = vmatmul.f32.gmra.mxu0 %v424
        %v1545 = vpop.f32.mrf.mxu0
        %v1546 = vadd.f32 %v1433, %v1545
        %1547 = vmatmul.f32.gmra.mxu0 %v425
        %v1548 = vpop.f32.mrf.mxu0
        %v1549 = vadd.f32 %v1436, %v1548
        %1550 = vmatmul.f32.gmra.mxu0 %v426
        %v1551 = vpop.f32.mrf.mxu0
        %v1552 = vadd.f32 %v1439, %v1551
        %1553 = vmatmul.f32.gmra.mxu0 %v427
        %v1554 = vpop.f32.mrf.mxu0
        %v1555 = vadd.f32 %v1442, %v1554
        %1556 = vmatmul.f32.gmra.mxu0 %v428
        %v1557 = vpop.f32.mrf.mxu0
        %v1558 = vadd.f32 %v1445, %v1557
        %1559 = vmatmul.f32.gmra.mxu0 %v429
        %v1560 = vpop.f32.mrf.mxu0
        %v1561 = vadd.f32 %v1448, %v1560
        %1562 = vmatmul.f32.gmra.mxu0 %v430
        %v1563 = vpop.f32.mrf.mxu0
        %v1564 = vadd.f32 %v1451, %v1563
        %1565 = vmatmul.f32.gmra.mxu0 %v431
        %v1566 = vpop.f32.mrf.mxu0
        %v1567 = vadd.f32 %v1454, %v1566
        %1568 = vmatmul.f32.gmra.mxu0 %v432
        %v1569 = vpop.f32.mrf.mxu0
        %v1570 = vadd.f32 %v1457, %v1569
        %1571 = vmatmul.f32.gmra.mxu0 %v433
        %v1572 = vpop.f32.mrf.mxu0
        %v1573 = vadd.f32 %v1460, %v1572
        %1574 = vmatmul.f32.gmra.mxu0 %v434
        %v1575 = vpop.f32.mrf.mxu0
        %v1576 = vadd.f32 %v1463, %v1575
        %1577 = vmatmul.f32.gmra.mxu0 %v435
        %v1578 = vpop.f32.mrf.mxu0
        %v1579 = vadd.f32 %v1466, %v1578
        %1580 = vmatmul.f32.gmra.mxu0 %v436
        %v1581 = vpop.f32.mrf.mxu0
        %v1582 = vadd.f32 %v1469, %v1581
        %1583 = vmatmul.f32.gmra.mxu0 %v437
        %v1584 = vpop.f32.mrf.mxu0
        %v1585 = vadd.f32 %v1472, %v1584
        %1586 = vmatmul.f32.gmra.mxu0 %v438
        %v1587 = vpop.f32.mrf.mxu0
        %v1588 = vadd.f32 %v1475, %v1587
        %1589 = vmatmul.f32.gmra.mxu0 %v439
        %v1590 = vpop.f32.mrf.mxu0
        %v1591 = vadd.f32 %v1478, %v1590
        %1592 = vmatmul.f32.gmra.mxu0 %v440
        %v1593 = vpop.f32.mrf.mxu0
        %v1594 = vadd.f32 %v1481, %v1593
        %1595 = vmatmul.f32.gmra.mxu0 %v441
        %v1596 = vpop.f32.mrf.mxu0
        %v1597 = vadd.f32 %v1484, %v1596
        %1598 = vmatmul.f32.gmra.mxu0 %v442
        %v1599 = vpop.f32.mrf.mxu0
        %v1600 = vadd.f32 %v1487, %v1599
        %1601 = vmatmul.f32.gmra.mxu0 %v443
        %v1602 = vpop.f32.mrf.mxu0
        %v1603 = vadd.f32 %v1490, %v1602
        %1604 = vdwg.mxu0
        %v1605 = vadd.f32 %v1123, %v1510
        %v1606 = vadd.f32 %v1126, %v1513
        %v1607 = vadd.f32 %v1129, %v1516
        %v1608 = vadd.f32 %v1132, %v1519
        %v1609 = vadd.f32 %v1135, %v1522
        %v1610 = vadd.f32 %v1138, %v1525
        %v1611 = vadd.f32 %v1141, %v1528
        %v1612 = vadd.f32 %v1144, %v1531
        %v1613 = vadd.f32 %v1147, %v1534
        %v1614 = vadd.f32 %v1150, %v1537
        %v1615 = vadd.f32 %v1153, %v1540
        %v1616 = vadd.f32 %v1156, %v1543
        %v1617 = vadd.f32 %v1159, %v1546
        %v1618 = vadd.f32 %v1162, %v1549
        %v1619 = vadd.f32 %v1165, %v1552
        %v1620 = vadd.f32 %v1168, %v1555
        %v1621 = vadd.f32 %v1171, %v1558
        %v1622 = vadd.f32 %v1174, %v1561
        %v1623 = vadd.f32 %v1177, %v1564
        %v1624 = vadd.f32 %v1180, %v1567
        %v1625 = vadd.f32 %v1183, %v1570
        %v1626 = vadd.f32 %v1186, %v1573
        %v1627 = vadd.f32 %v1189, %v1576
        %v1628 = vadd.f32 %v1192, %v1579
        %v1629 = vadd.f32 %v1195, %v1582
        %v1630 = vadd.f32 %v1198, %v1585
        %v1631 = vadd.f32 %v1201, %v1588
        %v1632 = vadd.f32 %v1204, %v1591
        %v1633 = vadd.f32 %v1207, %v1594
        %v1634 = vadd.f32 %v1210, %v1597
        %v1635 = vadd.f32 %v1213, %v1600
        %v1636 = vadd.f32 %v1216, %v1603
        %v1637 = vadd.f32 %v1605, %v1606
        %v1638 = vadd.f32 %v1637, %v1607
        %v1639 = vadd.f32 %v1638, %v1608
        %v1640 = vadd.f32 %v1639, %v1609
        %v1641 = vadd.f32 %v1640, %v1610
        %v1642 = vadd.f32 %v1641, %v1611
        %v1643 = vadd.f32 %v1642, %v1612
        %v1644 = vadd.f32 %v1643, %v1613
        %v1645 = vadd.f32 %v1644, %v1614
        %v1646 = vadd.f32 %v1645, %v1615
        %v1647 = vadd.f32 %v1646, %v1616
        %v1648 = vadd.f32 %v1647, %v1617
        %v1649 = vadd.f32 %v1648, %v1618
        %v1650 = vadd.f32 %v1649, %v1619
        %v1651 = vadd.f32 %v1650, %v1620
        %v1652 = vadd.f32 %v1651, %v1621
        %v1653 = vadd.f32 %v1652, %v1622
        %v1654 = vadd.f32 %v1653, %v1623
        %v1655 = vadd.f32 %v1654, %v1624
        %v1656 = vadd.f32 %v1655, %v1625
        %v1657 = vadd.f32 %v1656, %v1626
        %v1658 = vadd.f32 %v1657, %v1627
        %v1659 = vadd.f32 %v1658, %v1628
        %v1660 = vadd.f32 %v1659, %v1629
        %v1661 = vadd.f32 %v1660, %v1630
        %v1662 = vadd.f32 %v1661, %v1631
        %v1663 = vadd.f32 %v1662, %v1632
        %v1664 = vadd.f32 %v1663, %v1633
        %v1665 = vadd.f32 %v1664, %v1634
        %v1666 = vadd.f32 %v1665, %v1635
        %v1667 = vadd.f32 %v1666, %v1636
        %v1668 = vrot.slane %v1667, 4
        %v1669 = vadd.f32 %v1667, %v1668
        %v1670 = vrot.slane %v1669, 2
        %v1671 = vadd.f32 %v1669, %v1670
        %v1672 = vrot.slane %v1671, 1
        %v1673 = vadd.f32 %v1671, %v1672
        %v1674 = vmul.f32 %v1673, 0.00390625
        %v1675 = vmul.f32 %v1605, %v1605
        %v1676 = vmul.f32 %v1606, %v1606
        %v1677 = vmul.f32 %v1607, %v1607
        %v1678 = vmul.f32 %v1608, %v1608
        %v1679 = vmul.f32 %v1609, %v1609
        %v1680 = vmul.f32 %v1610, %v1610
        %v1681 = vmul.f32 %v1611, %v1611
        %v1682 = vmul.f32 %v1612, %v1612
        %v1683 = vmul.f32 %v1613, %v1613
        %v1684 = vmul.f32 %v1614, %v1614
        %v1685 = vmul.f32 %v1615, %v1615
        %v1686 = vmul.f32 %v1616, %v1616
        %v1687 = vmul.f32 %v1617, %v1617
        %v1688 = vmul.f32 %v1618, %v1618
        %v1689 = vmul.f32 %v1619, %v1619
        %v1690 = vmul.f32 %v1620, %v1620
        %v1691 = vmul.f32 %v1621, %v1621
        %v1692 = vmul.f32 %v1622, %v1622
        %v1693 = vmul.f32 %v1623, %v1623
        %v1694 = vmul.f32 %v1624, %v1624
        %v1695 = vmul.f32 %v1625, %v1625
        %v1696 = vmul.f32 %v1626, %v1626
        %v1697 = vmul.f32 %v1627, %v1627
        %v1698 = vmul.f32 %v1628, %v1628
        %v1699 = vmul.f32 %v1629, %v1629
        %v1700 = vmul.f32 %v1630, %v1630
        %v1701 = vmul.f32 %v1631, %v1631
        %v1702 = vmul.f32 %v1632, %v1632
        %v1703 = vmul.f32 %v1633, %v1633
        %v1704 = vmul.f32 %v1634, %v1634
        %v1705 = vmul.f32 %v1635, %v1635
        %v1706 = vmul.f32 %v1636, %v1636
        %v1707 = vadd.f32 %v1675, %v1676
        %v1708 = vadd.f32 %v1707, %v1677
        %v1709 = vadd.f32 %v1708, %v1678
        %v1710 = vadd.f32 %v1709, %v1679
        %v1711 = vadd.f32 %v1710, %v1680
        %v1712 = vadd.f32 %v1711, %v1681
        %v1713 = vadd.f32 %v1712, %v1682
        %v1714 = vadd.f32 %v1713, %v1683
        %v1715 = vadd.f32 %v1714, %v1684
        %v1716 = vadd.f32 %v1715, %v1685
        %v1717 = vadd.f32 %v1716, %v1686
        %v1718 = vadd.f32 %v1717, %v1687
        %v1719 = vadd.f32 %v1718, %v1688
        %v1720 = vadd.f32 %v1719, %v1689
        %v1721 = vadd.f32 %v1720, %v1690
        %v1722 = vadd.f32 %v1721, %v1691
        %v1723 = vadd.f32 %v1722, %v1692
        %v1724 = vadd.f32 %v1723, %v1693
        %v1725 = vadd.f32 %v1724, %v1694
        %v1726 = vadd.f32 %v1725, %v1695
        %v1727 = vadd.f32 %v1726, %v1696
        %v1728 = vadd.f32 %v1727, %v1697
        %v1729 = vadd.f32 %v1728, %v1698
        %v1730 = vadd.f32 %v1729, %v1699
        %v1731 = vadd.f32 %v1730, %v1700
        %v1732 = vadd.f32 %v1731, %v1701
        %v1733 = vadd.f32 %v1732, %v1702
        %v1734 = vadd.f32 %v1733, %v1703
        %v1735 = vadd.f32 %v1734, %v1704
        %v1736 = vadd.f32 %v1735, %v1705
        %v1737 = vadd.f32 %v1736, %v1706
        %v1738 = vrot.slane %v1737, 4
        %v1739 = vadd.f32 %v1737, %v1738
        %v1740 = vrot.slane %v1739, 2
        %v1741 = vadd.f32 %v1739, %v1740
        %v1742 = vrot.slane %v1741, 1
        %v1743 = vadd.f32 %v1741, %v1742
        %v1744 = vmul.f32 %v1743, 0.00390625
        %v1745 = vmul.f32 %v1674, %v1674
        %v1746 = vsub.f32 %v1744, %v1745
        %v1747 = vmax.f32 %v1746, 0.0
        %v1748 = vadd.f32 %v1747, 1e-05
        %v1749 = vrsqrt.pop %v1748
        %v1750 = vmul.f32 %v1749, %v1748
        %v1751 = vmul.f32 %v1750, %v1749
        %v1752 = vmul.f32 0.5, %v1751
        %v1753 = vsub.f32 1.5, %v1752
        %v1754 = vmul.f32 %v1749, %v1753
        %vm1755 = vweird.f32 %v1748
        %vm1756 = vweird.f32 %v1749
        %vm1757 = vmor %vm1755, %vm1756
        %v1758 = vsel %vm1757, %v1749, %v1754
        %v1759 = vsub.f32 %v1605, %v1674
        %v1760 = vsub.f32 %v1606, %v1674
        %v1761 = vsub.f32 %v1607, %v1674
        %v1762 = vsub.f32 %v1608, %v1674
        %v1763 = vsub.f32 %v1609, %v1674
        %v1764 = vsub.f32 %v1610, %v1674
        %v1765 = vsub.f32 %v1611, %v1674
        %v1766 = vsub.f32 %v1612, %v1674
        %v1767 = vsub.f32 %v1613, %v1674
        %v1768 = vsub.f32 %v1614, %v1674
        %v1769 = vsub.f32 %v1615, %v1674
        %v1770 = vsub.f32 %v1616, %v1674
        %v1771 = vsub.f32 %v1617, %v1674
        %v1772 = vsub.f32 %v1618, %v1674
        %v1773 = vsub.f32 %v1619, %v1674
        %v1774 = vsub.f32 %v1620, %v1674
        %v1775 = vsub.f32 %v1621, %v1674
        %v1776 = vsub.f32 %v1622, %v1674
        %v1777 = vsub.f32 %v1623, %v1674
        %v1778 = vsub.f32 %v1624, %v1674
        %v1779 = vsub.f32 %v1625, %v1674
        %v1780 = vsub.f32 %v1626, %v1674
        %v1781 = vsub.f32 %v1627, %v1674
        %v1782 = vsub.f32 %v1628, %v1674
        %v1783 = vsub.f32 %v1629, %v1674
        %v1784 = vsub.f32 %v1630, %v1674
        %v1785 = vsub.f32 %v1631, %v1674
        %v1786 = vsub.f32 %v1632, %v1674
        %v1787 = vsub.f32 %v1633, %v1674
        %v1788 = vsub.f32 %v1634, %v1674
        %v1789 = vsub.f32 %v1635, %v1674
        %v1790 = vsub.f32 %v1636, %v1674
        %v1791 = vmul.f32 %v1759, %v1758
        %v1792 = vmul.f32 %v1760, %v1758
        %v1793 = vmul.f32 %v1761, %v1758
        %v1794 = vmul.f32 %v1762, %v1758
        %v1795 = vmul.f32 %v1763, %v1758
        %v1796 = vmul.f32 %v1764, %v1758
        %v1797 = vmul.f32 %v1765, %v1758
        %v1798 = vmul.f32 %v1766, %v1758
        %v1799 = vmul.f32 %v1767, %v1758
        %v1800 = vmul.f32 %v1768, %v1758
        %v1801 = vmul.f32 %v1769, %v1758
        %v1802 = vmul.f32 %v1770, %v1758
        %v1803 = vmul.f32 %v1771, %v1758
        %v1804 = vmul.f32 %v1772, %v1758
        %v1805 = vmul.f32 %v1773, %v1758
        %v1806 = vmul.f32 %v1774, %v1758
        %v1807 = vmul.f32 %v1775, %v1758
        %v1808 = vmul.f32 %v1776, %v1758
        %v1809 = vmul.f32 %v1777, %v1758
        %v1810 = vmul.f32 %v1778, %v1758
        %v1811 = vmul.f32 %v1779, %v1758
        %v1812 = vmul.f32 %v1780, %v1758
        %v1813 = vmul.f32 %v1781, %v1758
        %v1814 = vmul.f32 %v1782, %v1758
        %v1815 = vmul.f32 %v1783, %v1758
        %v1816 = vmul.f32 %v1784, %v1758
        %v1817 = vmul.f32 %v1785, %v1758
        %v1818 = vmul.f32 %v1786, %v1758
        %v1819 = vmul.f32 %v1787, %v1758
        %v1820 = vmul.f32 %v1788, %v1758
        %v1821 = vmul.f32 %v1789, %v1758
        %v1822 = vmul.f32 %v1790, %v1758
        %v1823 = vmax.f32 %v1791, 0.0
        %v1824 = vmax.f32 %v1792, 0.0
        %v1825 = vmax.f32 %v1793, 0.0
        %v1826 = vmax.f32 %v1794, 0.0
        %v1827 = vmax.f32 %v1795, 0.0
        %v1828 = vmax.f32 %v1796, 0.0
        %v1829 = vmax.f32 %v1797, 0.0
        %v1830 = vmax.f32 %v1798, 0.0
        %v1831 = vmax.f32 %v1799, 0.0
        %v1832 = vmax.f32 %v1800, 0.0
        %v1833 = vmax.f32 %v1801, 0.0
        %v1834 = vmax.f32 %v1802, 0.0
        %v1835 = vmax.f32 %v1803, 0.0
        %v1836 = vmax.f32 %v1804, 0.0
        %v1837 = vmax.f32 %v1805, 0.0
        %v1838 = vmax.f32 %v1806, 0.0
        %v1839 = vmax.f32 %v1807, 0.0
        %v1840 = vmax.f32 %v1808, 0.0
        %v1841 = vmax.f32 %v1809, 0.0
        %v1842 = vmax.f32 %v1810, 0.0
        %v1843 = vmax.f32 %v1811, 0.0
        %v1844 = vmax.f32 %v1812, 0.0
        %v1845 = vmax.f32 %v1813, 0.0
        %v1846 = vmax.f32 %v1814, 0.0
        %v1847 = vmax.f32 %v1815, 0.0
        %v1848 = vmax.f32 %v1816, 0.0
        %v1849 = vmax.f32 %v1817, 0.0
        %v1850 = vmax.f32 %v1818, 0.0
        %v1851 = vmax.f32 %v1819, 0.0
        %v1852 = vmax.f32 %v1820, 0.0
        %v1853 = vmax.f32 %v1821, 0.0
        %v1854 = vmax.f32 %v1822, 0.0
        %1855 = vst [vmem:[%s256 + $0x1] sm:$0xff] %v1823
        %1856 = vst [vmem:[%s256 + $0x9] sm:$0xff] %v1824
        %1857 = vst [vmem:[%s256 + $0x19] sm:$0xff] %v1825
        %1858 = vst [vmem:[%s256 + $0x21] sm:$0xff] %v1826
        %1859 = vst [vmem:[%s256 + $0x31] sm:$0xff] %v1827
        %1860 = vst [vmem:[%s256 + $0x39] sm:$0xff] %v1828
        %1861 = vst [vmem:[%s256 + $0x49] sm:$0xff] %v1829
        %1862 = vst [vmem:[%s256 + $0x51] sm:$0xff] %v1830
        %1863 = vst [vmem:[%s256 + $0x61] sm:$0xff] %v1831
        %1864 = vst [vmem:[%s256 + $0x69] sm:$0xff] %v1832
        %1865 = vst [vmem:[%s256 + $0x79] sm:$0xff] %v1833
        %1866 = vst [vmem:[%s256 + $0x81] sm:$0xff] %v1834
        %1867 = vst [vmem:[%s256 + $0x91] sm:$0xff] %v1835
        %1868 = vst [vmem:[%s256 + $0x99] sm:$0xff] %v1836
        %1869 = vst [vmem:[%s256 + $0xa9] sm:$0xff] %v1837
        %1870 = vst [vmem:[%s256 + $0xb1] sm:$0xff] %v1838
        %1871 = vst [vmem:[%s256 + $0xc1] sm:$0xff] %v1839
        %1872 = vst [vmem:[%s256 + $0xc9] sm:$0xff] %v1840
        %1873 = vst [vmem:[%s256 + $0xd9] sm:$0xff] %v1841
        %1874 = vst [vmem:[%s256 + $0xe1] sm:$0xff] %v1842
        %1875 = vst [vmem:[%s256 + $0xf1] sm:$0xff] %v1843
        %1876 = vst [vmem:[%s256 + $0xf9] sm:$0xff] %v1844
        %1877 = vst [vmem:[%s256 + $0x109] sm:$0xff] %v1845
        %1878 = vst [vmem:[%s256 + $0x111] sm:$0xff] %v1846
        %1879 = vst [vmem:[%s256 + $0x121] sm:$0xff] %v1847
        %1880 = vst [vmem:[%s256 + $0x129] sm:$0xff] %v1848
        %1881 = vst [vmem:[%s256 + $0x139] sm:$0xff] %v1849
        %1882 = vst [vmem:[%s256 + $0x141] sm:$0xff] %v1850
        %1883 = vst [vmem:[%s256 + $0x151] sm:$0xff] %v1851
        %1884 = vst [vmem:[%s256 + $0x159] sm:$0xff] %v1852
        %1885 = vst [vmem:[%s256 + $0x169] sm:$0xff] %v1853
        %1886 = vst [vmem:[%s256 + $0x171] sm:$0xff] %v1854
        %1887 = vst [vmem:[%s256 - $0x1] sm:$0x2] %v1823
        %1888 = vst [vmem:[%s256 + $0x17] sm:$0x2] %v1825
        %1889 = vst [vmem:[%s256 + $0x2f] sm:$0x2] %v1827
        %1890 = vst [vmem:[%s256 + $0x47] sm:$0x2] %v1829
        %1891 = vst [vmem:[%s256 + $0x5f] sm:$0x2] %v1831
        %1892 = vst [vmem:[%s256 + $0x77] sm:$0x2] %v1833
        %1893 = vst [vmem:[%s256 + $0x8f] sm:$0x2] %v1835
        %1894 = vst [vmem:[%s256 + $0xa7] sm:$0x2] %v1837
        %1895 = vst [vmem:[%s256 + $0xbf] sm:$0x2] %v1839
        %1896 = vst [vmem:[%s256 + $0xd7] sm:$0x2] %v1841
        %1897 = vst [vmem:[%s256 + $0xef] sm:$0x2] %v1843
        %1898 = vst [vmem:[%s256 + $0x107] sm:$0x2] %v1845
        %1899 = vst [vmem:[%s256 + $0x11f] sm:$0x2] %v1847
        %1900 = vst [vmem:[%s256 + $0x137] sm:$0x2] %v1849
        %1901 = vst [vmem:[%s256 + $0x14f] sm:$0x2] %v1851
        %1902 = vst [vmem:[%s256 + $0x167] sm:$0x2] %v1853
        %1903 = vst [vmem:[%s256 + $0xb] sm:$0x40] %v1824
        %1904 = vst [vmem:[%s256 + $0x23] sm:$0x40] %v1826
        %1905 = vst [vmem:[%s256 + $0x3b] sm:$0x40] %v1828
        %1906 = vst [vmem:[%s256 + $0x53] sm:$0x40] %v1830
        %1907 = vst [vmem:[%s256 + $0x6b] sm:$0x40] %v1832
        %1908 = vst [vmem:[%s256 + $0x83] sm:$0x40] %v1834
        %1909 = vst [vmem:[%s256 + $0x9b] sm:$0x40] %v1836
        %1910 = vst [vmem:[%s256 + $0xb3] sm:$0x40] %v1838
        %1911 = vst [vmem:[%s256 + $0xcb] sm:$0x40] %v1840
        %1912 = vst [vmem:[%s256 + $0xe3] sm:$0x40] %v1842
        %1913 = vst [vmem:[%s256 + $0xfb] sm:$0x40] %v1844
        %1914 = vst [vmem:[%s256 + $0x113] sm:$0x40] %v1846
        %1915 = vst [vmem:[%s256 + $0x12b] sm:$0x40] %v1848
        %1916 = vst [vmem:[%s256 + $0x143] sm:$0x40] %v1850
        %1917 = vst [vmem:[%s256 + $0x15b] sm:$0x40] %v1852
        %1918 = vst [vmem:[%s256 + $0x173] sm:$0x40] %v1854
        %v1919 = vld [vmem:[%s321] sm:$0xff]
        %v1920 = vld [vmem:[%s321 + $0x8] sm:$0xff]
        %v1921 = vld [vmem:[%s321 + $0x10] sm:$0x3]
        %1922 = vst [vmem:[#allocation2] sm:$0xff] %v1919
        %1923 = vst [vmem:[#allocation2 + $0x8] sm:$0xff] %v1920
        %1924 = vst [vmem:[#allocation2 + $0x10] sm:$0x3] %v1921
        %v1925 = vld [vmem:[%s328] sm:$0xff]
        %v1926 = vld [vmem:[%s328 + $0x8] sm:$0xff]
        %v1927 = vld [vmem:[%s328 + $0x10] sm:$0x3]
        %1928 = vst [vmem:[%s332] sm:$0xff] %v1925
        %1929 = vst [vmem:[%s332 + $0x8] sm:$0xff] %v1926
        %1930 = vst [vmem:[%s332 + $0x10] sm:$0x3] %v1927
        %v1931 = vld [vmem:[#allocation2] sm:$0xff]
        %v1932 = vld [vmem:[#allocation2 + $0x8] sm:$0xff]
        %v1933 = vld [vmem:[#allocation2 + $0x18] sm:$0xff]
        %v1934 = vld [vmem:[#allocation2 + $0x20] sm:$0xff]
        %v1935 = vld [vmem:[#allocation2 + $0x30] sm:$0xff]
        %v1936 = vld [vmem:[#allocation2 + $0x38] sm:$0xff]
        %v1937 = vld [vmem:[#allocation2 + $0x48] sm:$0xff]
        %v1938 = vld [vmem:[#allocation2 + $0x50] sm:$0xff]
        %v1939 = vld [vmem:[#allocation2 + $0x60] sm:$0xff]
        %v1940 = vld [vmem:[#allocation2 + $0x68] sm:$0xff]
        %v1941 = vld [vmem:[#allocation2 + $0x78] sm:$0xff]
        %v1942 = vld [vmem:[#allocation2 + $0x80] sm:$0xff]
        %v1943 = vld [vmem:[#allocation2 + $0x90] sm:$0xff]
        %v1944 = vld [vmem:[#allocation2 + $0x98] sm:$0xff]
        %v1945 = vld [vmem:[#allocation2 + $0xa8] sm:$0xff]
        %v1946 = vld [vmem:[#allocation2 + $0xb0] sm:$0xff]
        %v1947 = vld [vmem:[#allocation2 + $0xc0] sm:$0xff]
        %v1948 = vld [vmem:[#allocation2 + $0xc8] sm:$0xff]
        %v1949 = vld [vmem:[#allocation2 + $0xd8] sm:$0xff]
        %v1950 = vld [vmem:[#allocation2 + $0xe0] sm:$0xff]
        %v1951 = vld [vmem:[#allocation2 + $0xf0] sm:$0xff]
        %v1952 = vld [vmem:[#allocation2 + $0xf8] sm:$0xff]
        %v1953 = vld [vmem:[#allocation2 + $0x108] sm:$0xff]
        %v1954 = vld [vmem:[#allocation2 + $0x110] sm:$0xff]
        %v1955 = vld [vmem:[#allocation2 + $0x120] sm:$0xff]
        %v1956 = vld [vmem:[#allocation2 + $0x128] sm:$0xff]
        %v1957 = vld [vmem:[#allocation2 + $0x138] sm:$0xff]
        %v1958 = vld [vmem:[#allocation2 + $0x140] sm:$0xff]
        %v1959 = vld [vmem:[#allocation2 + $0x150] sm:$0xff]
        %v1960 = vld [vmem:[#allocation2 + $0x158] sm:$0xff]
        %v1961 = vld [vmem:[#allocation2 + $0x168] sm:$0xff]
        %v1962 = vld [vmem:[#allocation2 + $0x170] sm:$0xff]
        %v1963 = vld [vmem:[#allocation2 + $0x180] sm:$0xff]
        %v1964 = vld [vmem:[#allocation2 + $0x188] sm:$0xff]
        %v1965 = vld [vmem:[#allocation2 + $0x198] sm:$0xff]
        %v1966 = vld [vmem:[#allocation2 + $0x1a0] sm:$0xff]
        %v1967 = vld [vmem:[#allocation2 + $0x1] sm:$0xff]
        %v1968 = vld [vmem:[#allocation2 + $0x9] sm:$0xff]
        %v1969 = vld [vmem:[#allocation2 + $0x19] sm:$0xff]
        %v1970 = vld [vmem:[#allocation2 + $0x21] sm:$0xff]
        %v1971 = vld [vmem:[#allocation2 + $0x31] sm:$0xff]
        %v1972 = vld [vmem:[#allocation2 + $0x39] sm:$0xff]
        %v1973 = vld [vmem:[#allocation2 + $0x49] sm:$0xff]
        %v1974 = vld [vmem:[#allocation2 + $0x51] sm:$0xff]
        %v1975 = vld [vmem:[#allocation2 + $0x61] sm:$0xff]
        %v1976 = vld [vmem:[#allocation2 + $0x69] sm:$0xff]
        %v1977 = vld [vmem:[#allocation2 + $0x79] sm:$0xff]
        %v1978 = vld [vmem:[#allocation2 + $0x81] sm:$0xff]
        %v1979 = vld [vmem:[#allocation2 + $0x91] sm:$0xff]
        %v1980 = vld [vmem:[#allocation2 + $0x99] sm:$0xff]
        %v1981 = vld [vmem:[#allocation2 + $0xa9] sm:$0xff]
        %v1982 = vld [vmem:[#allocation2 + $0xb1] sm:$0xff]
        %v1983 = vld [vmem:[#allocation2 + $0xc1] sm:$0xff]
        %v1984 = vld [vmem:[#allocation2 + $0xc9] sm:$0xff]
        %v1985 = vld [vmem:[#allocation2 + $0xd9] sm:$0xff]
        %v1986 = vld [vmem:[#allocation2 + $0xe1] sm:$0xff]
        %v1987 = vld [vmem:[#allocation2 + $0xf1] sm:$0xff]
        %v1988 = vld [vmem:[#allocation2 + $0xf9] sm:$0xff]
        %v1989 = vld [vmem:[#allocation2 + $0x109] sm:$0xff]
        %v1990 = vld [vmem:[#allocation2 + $0x111] sm:$0xff]
        %v1991 = vld [vmem:[#allocation2 + $0x121] sm:$0xff]
        %v1992 = vld [vmem:[#allocation2 + $0x129] sm:$0xff]
        %v1993 = vld [vmem:[#allocation2 + $0x139] sm:$0xff]
        %v1994 = vld [vmem:[#allocation2 + $0x141] sm:$0xff]
        %v1995 = vld [vmem:[#allocation2 + $0x151] sm:$0xff]
        %v1996 = vld [vmem:[#allocation2 + $0x159] sm:$0xff]
        %v1997 = vld [vmem:[#allocation2 + $0x169] sm:$0xff]
        %v1998 = vld [vmem:[#allocation2 + $0x171] sm:$0xff]
        %v1999 = vld [vmem:[#allocation2 + $0x181] sm:$0xff]
        %v2000 = vld [vmem:[#allocation2 + $0x189] sm:$0xff]
        %v2001 = vld [vmem:[#allocation2 + $0x199] sm:$0xff]
        %v2002 = vld [vmem:[#allocation2 + $0x1a1] sm:$0xff]
        %v2003 = vld [vmem:[#allocation2 + $0x2] sm:$0xff]
        %v2004 = vld [vmem:[#allocation2 + $0xa] sm:$0xff]
        %v2005 = vld [vmem:[#allocation2 + $0x1a] sm:$0xff]
        %v2006 = vld [vmem:[#allocation2 + $0x22] sm:$0xff]
        %v2007 = vld [vmem:[#allocation2 + $0x32] sm:$0xff]
        %v2008 = vld [vmem:[#allocation2 + $0x3a] sm:$0xff]
        %v2009 = vld [vmem:[#allocation2 + $0x4a] sm:$0xff]
        %v2010 = vld [vmem:[#allocation2 + $0x52] sm:$0xff]
        %v2011 = vld [vmem:[#allocation2 + $0x62] sm:$0xff]
        %v2012 = vld [vmem:[#allocation2 + $0x6a] sm:$0xff]
        %v2013 = vld [vmem:[#allocation2 + $0x7a] sm:$0xff]
        %v2014 = vld [vmem:[#allocation2 + $0x82] sm:$0xff]
        %v2015 = vld [vmem:[#allocation2 + $0x92] sm:$0xff]
        %v2016 = vld [vmem:[#allocation2 + $0x9a] sm:$0xff]
        %v2017 = vld [vmem:[#allocation2 + $0xaa] sm:$0xff]
        %v2018 = vld [vmem:[#allocation2 + $0xb2] sm:$0xff]
        %v2019 = vld [vmem:[#allocation2 + $0xc2] sm:$0xff]
        %v2020 = vld [vmem:[#allocation2 + $0xca] sm:$0xff]
        %v2021 = vld [vmem:[#allocation2 + $0xda] sm:$0xff]
        %v2022 = vld [vmem:[#allocation2 + $0xe2] sm:$0xff]
        %v2023 = vld [vmem:[#allocation2 + $0xf2] sm:$0xff]
        %v2024 = vld [vmem:[#allocation2 + $0xfa] sm:$0xff]
        %v2025 = vld [vmem:[#allocation2 + $0x10a] sm:$0xff]
        %v2026 = vld [vmem:[#allocation2 + $0x112] sm:$0xff]
        %v2027 = vld [vmem:[#allocation2 + $0x122] sm:$0xff]
        %v2028 = vld [vmem:[#allocation2 + $0x12a] sm:$0xff]
        %v2029 = vld [vmem:[#allocation2 + $0x13a] sm:$0xff]
        %v2030 = vld [vmem:[#allocation2 + $0x142] sm:$0xff]
        %v2031 = vld [vmem:[#allocation2 + $0x152] sm:$0xff]
        %v2032 = vld [vmem:[#allocation2 + $0x15a] sm:$0xff]
        %v2033 = vld [vmem:[#allocation2 + $0x16a] sm:$0xff]
        %v2034 = vld [vmem:[#allocation2 + $0x172] sm:$0xff]
        %v2035 = vld [vmem:[#allocation2 + $0x182] sm:$0xff]
        %v2036 = vld [vmem:[#allocation2 + $0x18a] sm:$0xff]
        %v2037 = vld [vmem:[#allocation2 + $0x19a] sm:$0xff]
        %v2038 = vld [vmem:[#allocation2 + $0x1a2] sm:$0xff]
        %v2039 = vld [vmem:[#allocation8] sm:$0xff]
        %v2040 = vld [vmem:[#allocation8 + $0x8] sm:$0xff]
        %v2041 = vld [vmem:[#allocation8 + $0x10] sm:$0xff]
        %v2042 = vld [vmem:[#allocation8 + $0x18] sm:$0xff]
        %v2043 = vld [vmem:[#allocation8 + $0x20] sm:$0xff]
        %v2044 = vld [vmem:[#allocation8 + $0x28] sm:$0xff]
        %v2045 = vld [vmem:[#allocation8 + $0x30] sm:$0xff]
        %v2046 = vld [vmem:[#allocation8 + $0x38] sm:$0xff]
        %v2047 = vld [vmem:[#allocation8 + $0x40] sm:$0xff]
        %v2048 = vld [vmem:[#allocation8 + $0x48] sm:$0xff]
        %v2049 = vld [vmem:[#allocation8 + $0x50] sm:$0xff]
        %v2050 = vld [vmem:[#allocation8 + $0x58] sm:$0xff]
        %v2051 = vld [vmem:[#allocation8 + $0x60] sm:$0xff]
        %v2052 = vld [vmem:[#allocation8 + $0x68] sm:$0xff]
        %v2053 = vld [vmem:[#allocation8 + $0x70] sm:$0xff]
        %v2054 = vld [vmem:[#allocation8 + $0x78] sm:$0xff]
        %v2055 = vld [vmem:[#allocation8 + $0x80] sm:$0xff]
        %v2056 = vld [vmem:[#allocation8 + $0x88] sm:$0xff]
        %v2057 = vld [vmem:[#allocation8 + $0x90] sm:$0xff]
        %v2058 = vld [vmem:[#allocation8 + $0x98] sm:$0xff]
        %v2059 = vld [vmem:[#allocation8 + $0xa0] sm:$0xff]
        %v2060 = vld [vmem:[#allocation8 + $0xa8] sm:$0xff]
        %v2061 = vld [vmem:[#allocation8 + $0xb0] sm:$0xff]
        %v2062 = vld [vmem:[#allocation8 + $0xb8] sm:$0xff]
        %v2063 = vld [vmem:[#allocation8 + $0xc0] sm:$0xff]
        %v2064 = vld [vmem:[#allocation8 + $0xc8] sm:$0xff]
        %v2065 = vld [vmem:[#allocation8 + $0xd0] sm:$0xff]
        %v2066 = vld [vmem:[#allocation8 + $0xd8] sm:$0xff]
        %v2067 = vld [vmem:[#allocation8 + $0xe0] sm:$0xff]
        %v2068 = vld [vmem:[#allocation8 + $0xe8] sm:$0xff]
        %v2069 = vld [vmem:[#allocation8 + $0xf0] sm:$0xff]
        %v2070 = vld [vmem:[#allocation8 + $0xf8] sm:$0xff]
        %v2071 = vld [vmem:[#allocation8 + $0x100] sm:$0xff]
        %v2072 = vld [vmem:[#allocation8 + $0x108] sm:$0xff]
        %v2073 = vld [vmem:[#allocation8 + $0x110] sm:$0xff]
        %v2074 = vld [vmem:[#allocation8 + $0x118] sm:$0xff]
        %v2075 = vld [vmem:[#allocation8 + $0x120] sm:$0xff]
        %v2076 = vld [vmem:[#allocation8 + $0x128] sm:$0xff]
        %v2077 = vld [vmem:[#allocation8 + $0x130] sm:$0xff]
        %v2078 = vld [vmem:[#allocation8 + $0x138] sm:$0xff]
        %v2079 = vld [vmem:[#allocation8 + $0x140] sm:$0xff]
        %v2080 = vld [vmem:[#allocation8 + $0x148] sm:$0xff]
        %v2081 = vld [vmem:[#allocation8 + $0x150] sm:$0xff]
        %v2082 = vld [vmem:[#allocation8 + $0x158] sm:$0xff]
        %v2083 = vld [vmem:[#allocation8 + $0x160] sm:$0xff]
        %v2084 = vld [vmem:[#allocation8 + $0x168] sm:$0xff]
        %v2085 = vld [vmem:[#allocation8 + $0x170] sm:$0xff]
        %v2086 = vld [vmem:[#allocation8 + $0x178] sm:$0xff]
        %v2087 = vld [vmem:[#allocation8 + $0x180] sm:$0xff]
        %v2088 = vld [vmem:[#allocation8 + $0x188] sm:$0xff]
        %v2089 = vld [vmem:[#allocation8 + $0x190] sm:$0xff]
        %v2090 = vld [vmem:[#allocation8 + $0x198] sm:$0xff]
        %v2091 = vld [vmem:[#allocation8 + $0x1a0] sm:$0xff]
        %v2092 = vld [vmem:[#allocation8 + $0x1a8] sm:$0xff]
        %v2093 = vld [vmem:[#allocation8 + $0x1b0] sm:$0xff]
        %v2094 = vld [vmem:[#allocation8 + $0x1b8] sm:$0xff]
        %v2095 = vld [vmem:[#allocation8 + $0x1c0] sm:$0xff]
        %v2096 = vld [vmem:[#allocation8 + $0x1c8] sm:$0xff]
        %v2097 = vld [vmem:[#allocation8 + $0x1d0] sm:$0xff]
        %v2098 = vld [vmem:[#allocation8 + $0x1d8] sm:$0xff]
        %v2099 = vld [vmem:[#allocation8 + $0x1e0] sm:$0xff]
        %v2100 = vld [vmem:[#allocation8 + $0x1e8] sm:$0xff]
        %v2101 = vld [vmem:[#allocation8 + $0x1f0] sm:$0xff]
        %v2102 = vld [vmem:[#allocation8 + $0x1f8] sm:$0xff]
        %v2103 = vld [vmem:[#allocation8 + $0x200] sm:$0xff]
        %v2104 = vld [vmem:[#allocation8 + $0x208] sm:$0xff]
        %v2105 = vld [vmem:[#allocation8 + $0x210] sm:$0xff]
        %v2106 = vld [vmem:[#allocation8 + $0x218] sm:$0xff]
        %v2107 = vld [vmem:[#allocation8 + $0x220] sm:$0xff]
        %v2108 = vld [vmem:[#allocation8 + $0x228] sm:$0xff]
        %v2109 = vld [vmem:[#allocation8 + $0x230] sm:$0xff]
        %v2110 = vld [vmem:[#allocation8 + $0x238] sm:$0xff]
        %v2111 = vld [vmem:[#allocation8 + $0x240] sm:$0xff]
        %v2112 = vld [vmem:[#allocation8 + $0x248] sm:$0xff]
        %v2113 = vld [vmem:[#allocation8 + $0x250] sm:$0xff]
        %v2114 = vld [vmem:[#allocation8 + $0x258] sm:$0xff]
        %v2115 = vld [vmem:[#allocation8 + $0x260] sm:$0xff]
        %v2116 = vld [vmem:[#allocation8 + $0x268] sm:$0xff]
        %v2117 = vld [vmem:[#allocation8 + $0x270] sm:$0xff]
        %v2118 = vld [vmem:[#allocation8 + $0x278] sm:$0xff]
        %v2119 = vld [vmem:[#allocation8 + $0x280] sm:$0xff]
        %v2120 = vld [vmem:[#allocation8 + $0x288] sm:$0xff]
        %v2121 = vld [vmem:[#allocation8 + $0x290] sm:$0xff]
        %v2122 = vld [vmem:[#allocation8 + $0x298] sm:$0xff]
        %v2123 = vld [vmem:[#allocation8 + $0x2a0] sm:$0xff]
        %v2124 = vld [vmem:[#allocation8 + $0x2a8] sm:$0xff]
        %v2125 = vld [vmem:[#allocation8 + $0x2b0] sm:$0xff]
        %v2126 = vld [vmem:[#allocation8 + $0x2b8] sm:$0xff]
        %v2127 = vld [vmem:[#allocation8 + $0x2c0] sm:$0xff]
        %v2128 = vld [vmem:[#allocation8 + $0x2c8] sm:$0xff]
        %v2129 = vld [vmem:[#allocation8 + $0x2d0] sm:$0xff]
        %v2130 = vld [vmem:[#allocation8 + $0x2d8] sm:$0xff]
        %v2131 = vld [vmem:[#allocation8 + $0x2e0] sm:$0xff]
        %v2132 = vld [vmem:[#allocation8 + $0x2e8] sm:$0xff]
        %v2133 = vld [vmem:[#allocation8 + $0x2f0] sm:$0xff]
        %v2134 = vld [vmem:[#allocation8 + $0x2f8] sm:$0xff]
        %2135 = vmatpush.msra.mxu0 %v2102
        %2136 = vmatpush.msra.mxu0 %v2101
        %2137 = vmatpush.msra.mxu0 %v2100
        %2138 = vmatpush.msra.mxu0 %v2099
        %2139 = vmatpush.msra.mxu0 %v2098
        %2140 = vmatpush.msra.mxu0 %v2097
        %2141 = vmatpush.msra.mxu0 %v2096
        %2142 = vmatpush.msra.mxu0 %v2095
        %2143 = vmatpush.msra.mxu0 %v2094
        %2144 = vmatpush.msra.mxu0 %v2093
        %2145 = vmatpush.msra.mxu0 %v2092
        %2146 = vmatpush.msra.mxu0 %v2091
        %2147 = vmatpush.msra.mxu0 %v2090
        %2148 = vmatpush.msra.mxu0 %v2089
        %2149 = vmatpush.msra.mxu0 %v2088
        %2150 = vmatpush.msra.mxu0 %v2087
        %2151 = vmatmul.f32.gmra.mxu0 %v1933
        %v2152 = vpop.f32.mrf.mxu0
        %v2153 = vadd.f32 0.0, %v2152
        %2154 = vmatmul.f32.gmra.mxu0 %v1934
        %v2155 = vpop.f32.mrf.mxu0
        %v2156 = vadd.f32 0.0, %v2155
        %2157 = vmatmul.f32.gmra.mxu0 %v1935
        %v2158 = vpop.f32.mrf.mxu0
        %v2159 = vadd.f32 0.0, %v2158
        %2160 = vmatmul.f32.gmra.mxu0 %v1936
        %v2161 = vpop.f32.mrf.mxu0
        %v2162 = vadd.f32 0.0, %v2161
        %2163 = vmatmul.f32.gmra.mxu0 %v1937
        %v2164 = vpop.f32.mrf.mxu0
        %v2165 = vadd.f32 0.0, %v2164
        %2166 = vmatmul.f32.gmra.mxu0 %v1938
        %v2167 = vpop.f32.mrf.mxu0
        %v2168 = vadd.f32 0.0, %v2167
        %2169 = vmatmul.f32.gmra.mxu0 %v1939
        %v2170 = vpop.f32.mrf.mxu0
        %v2171 = vadd.f32 0.0, %v2170
        %2172 = vmatmul.f32.gmra.mxu0 %v1940
        %v2173 = vpop.f32.mrf.mxu0
        %v2174 = vadd.f32 0.0, %v2173
        %2175 = vmatmul.f32.gmra.mxu0 %v1941
        %v2176 = vpop.f32.mrf.mxu0
        %v2177 = vadd.f32 0.0, %v2176
        %2178 = vmatmul.f32.gmra.mxu0 %v1942
        %v2179 = vpop.f32.mrf.mxu0
        %v2180 = vadd.f32 0.0, %v2179
        %2181 = vmatmul.f32.gmra.mxu0 %v1943
        %v2182 = vpop.f32.mrf.mxu0
        %v2183 = vadd.f32 0.0, %v2182
        %2184 = vmatmul.f32.gmra.mxu0 %v1944
        %v2185 = vpop.f32.mrf.mxu0
        %v2186 = vadd.f32 0.0, %v2185
        %2187 = vmatmul.f32.gmra.mxu0 %v1945
        %v2188 = vpop.f32.mrf.mxu0
        %v2189 = vadd.f32 0.0, %v2188
        %2190 = vmatmul.f32.gmra.mxu0 %v1946
        %v2191 = vpop.f32.mrf.mxu0
        %v2192 = vadd.f32 0.0, %v2191
        %2193 = vmatmul.f32.gmra.mxu0 %v1947
        %v2194 = vpop.f32.mrf.mxu0
        %v2195 = vadd.f32 0.0, %v2194
        %2196 = vmatmul.f32.gmra.mxu0 %v1948
        %v2197 = vpop.f32.mrf.mxu0
        %v2198 = vadd.f32 0.0, %v2197
        %2199 = vmatmul.f32.gmra.mxu0 %v1949
        %v2200 = vpop.f32.mrf.mxu0
        %v2201 = vadd.f32 0.0, %v2200
        %2202 = vmatmul.f32.gmra.mxu0 %v1950
        %v2203 = vpop.f32.mrf.mxu0
        %v2204 = vadd.f32 0.0, %v2203
        %2205 = vmatmul.f32.gmra.mxu0 %v1951
        %v2206 = vpop.f32.mrf.mxu0
        %v2207 = vadd.f32 0.0, %v2206
        %2208 = vmatmul.f32.gmra.mxu0 %v1952
        %v2209 = vpop.f32.mrf.mxu0
        %v2210 = vadd.f32 0.0, %v2209
        %2211 = vmatmul.f32.gmra.mxu0 %v1953
        %v2212 = vpop.f32.mrf.mxu0
        %v2213 = vadd.f32 0.0, %v2212
        %2214 = vmatmul.f32.gmra.mxu0 %v1954
        %v2215 = vpop.f32.mrf.mxu0
        %v2216 = vadd.f32 0.0, %v2215
        %2217 = vmatmul.f32.gmra.mxu0 %v1955
        %v2218 = vpop.f32.mrf.mxu0
        %v2219 = vadd.f32 0.0, %v2218
        %2220 = vmatmul.f32.gmra.mxu0 %v1956
        %v2221 = vpop.f32.mrf.mxu0
        %v2222 = vadd.f32 0.0, %v2221
        %2223 = vmatmul.f32.gmra.mxu0 %v1957
        %v2224 = vpop.f32.mrf.mxu0
        %v2225 = vadd.f32 0.0, %v2224
        %2226 = vmatmul.f32.gmra.mxu0 %v1958
        %v2227 = vpop.f32.mrf.mxu0
        %v2228 = vadd.f32 0.0, %v2227
        %2229 = vmatmul.f32.gmra.mxu0 %v1959
        %v2230 = vpop.f32.mrf.mxu0
        %v2231 = vadd.f32 0.0, %v2230
        %2232 = vmatmul.f32.gmra.mxu0 %v1960
        %v2233 = vpop.f32.mrf.mxu0
        %v2234 = vadd.f32 0.0, %v2233
        %2235 = vmatmul.f32.gmra.mxu0 %v1961
        %v2236 = vpop.f32.mrf.mxu0
        %v2237 = vadd.f32 0.0, %v2236
        %2238 = vmatmul.f32.gmra.mxu0 %v1962
        %v2239 = vpop.f32.mrf.mxu0
        %v2240 = vadd.f32 0.0, %v2239
        %2241 = vmatmul.f32.gmra.mxu0 %v1963
        %v2242 = vpop.f32.mrf.mxu0
        %v2243 = vadd.f32 0.0, %v2242
        %2244 = vmatmul.f32.gmra.mxu0 %v1964
        %v2245 = vpop.f32.mrf.mxu0
        %v2246 = vadd.f32 0.0, %v2245
        %2247 = vdwg.mxu0
        %2248 = vmatpush.msra.mxu0 %v2118
        %2249 = vmatpush.msra.mxu0 %v2117
        %2250 = vmatpush.msra.mxu0 %v2116
        %2251 = vmatpush.msra.mxu0 %v2115
        %2252 = vmatpush.msra.mxu0 %v2114
        %2253 = vmatpush.msra.mxu0 %v2113
        %2254 = vmatpush.msra.mxu0 %v2112
        %2255 = vmatpush.msra.mxu0 %v2111
        %2256 = vmatpush.msra.mxu0 %v2110
        %2257 = vmatpush.msra.mxu0 %v2109
        %2258 = vmatpush.msra.mxu0 %v2108
        %2259 = vmatpush.msra.mxu0 %v2107
        %2260 = vmatpush.msra.mxu0 %v2106
        %2261 = vmatpush.msra.mxu0 %v2105
        %2262 = vmatpush.msra.mxu0 %v2104
        %2263 = vmatpush.msra.mxu0 %v2103
        %2264 = vmatmul.f32.gmra.mxu0 %v1969
        %v2265 = vpop.f32.mrf.mxu0
        %v2266 = vadd.f32 %v2153, %v2265
        %2267 = vmatmul.f32.gmra.mxu0 %v1970
        %v2268 = vpop.f32.mrf.mxu0
        %v2269 = vadd.f32 %v2156, %v2268
        %2270 = vmatmul.f32.gmra.mxu0 %v1971
        %v2271 = vpop.f32.mrf.mxu0
        %v2272 = vadd.f32 %v2159, %v2271
        %2273 = vmatmul.f32.gmra.mxu0 %v1972
        %v2274 = vpop.f32.mrf.mxu0
        %v2275 = vadd.f32 %v2162, %v2274
        %2276 = vmatmul.f32.gmra.mxu0 %v1973
        %v2277 = vpop.f32.mrf.mxu0
        %v2278 = vadd.f32 %v2165, %v2277
        %2279 = vmatmul.f32.gmra.mxu0 %v1974
        %v2280 = vpop.f32.mrf.mxu0
        %v2281 = vadd.f32 %v2168, %v2280
        %2282 = vmatmul.f32.gmra.mxu0 %v1975
        %v2283 = vpop.f32.mrf.mxu0
        %v2284 = vadd.f32 %v2171, %v2283
        %2285 = vmatmul.f32.gmra.mxu0 %v1976
        %v2286 = vpop.f32.mrf.mxu0
        %v2287 = vadd.f32 %v2174, %v2286
        %2288 = vmatmul.f32.gmra.mxu0 %v1977
        %v2289 = vpop.f32.mrf.mxu0
        %v2290 = vadd.f32 %v2177, %v2289
        %2291 = vmatmul.f32.gmra.mxu0 %v1978
        %v2292 = vpop.f32.mrf.mxu0
        %v2293 = vadd.f32 %v2180, %v2292
        %2294 = vmatmul.f32.gmra.mxu0 %v1979
        %v2295 = vpop.f32.mrf.mxu0
        %v2296 = vadd.f32 %v2183, %v2295
        %2297 = vmatmul.f32.gmra.mxu0 %v1980
        %v2298 = vpop.f32.mrf.mxu0
        %v2299 = vadd.f32 %v2186, %v2298
        %2300 = vmatmul.f32.gmra.mxu0 %v1981
        %v2301 = vpop.f32.mrf.mxu0
        %v2302 = vadd.f32 %v2189, %v2301
        %2303 = vmatmul.f32.gmra.mxu0 %v1982
        %v2304 = vpop.f32.mrf.mxu0
        %v2305 = vadd.f32 %v2192, %v2304
        %2306 = vmatmul.f32.gmra.mxu0 %v1983
        %v2307 = vpop.f32.mrf.mxu0
        %v2308 = vadd.f32 %v2195, %v2307
        %2309 = vmatmul.f32.gmra.mxu0 %v1984
        %v2310 = vpop.f32.mrf.mxu0
        %v2311 = vadd.f32 %v2198, %v2310
        %2312 = vmatmul.f32.gmra.mxu0 %v1985
        %v2313 = vpop.f32.mrf.mxu0
        %v2314 = vadd.f32 %v2201, %v2313
        %2315 = vmatmul.f32.gmra.mxu0 %v1986
        %v2316 = vpop.f32.mrf.mxu0
        %v2317 = vadd.f32 %v2204, %v2316
        %2318 = vmatmul.f32.gmra.mxu0 %v1987
        %v2319 = vpop.f32.mrf.mxu0
        %v2320 = vadd.f32 %v2207, %v2319
        %2321 = vmatmul.f32.gmra.mxu0 %v1988
        %v2322 = vpop.f32.mrf.mxu0
        %v2323 = vadd.f32 %v2210, %v2322
        %2324 = vmatmul.f32.gmra.mxu0 %v1989
        %v2325 = vpop.f32.mrf.mxu0
        %v2326 = vadd.f32 %v2213, %v2325
        %2327 = vmatmul.f32.gmra.mxu0 %v1990
        %v2328 = vpop.f32.mrf.mxu0
        %v2329 = vadd.f32 %v2216, %v2328
        %2330 = vmatmul.f32.gmra.mxu0 %v1991
        %v2331 = vpop.f32.mrf.mxu0
        %v2332 = vadd.f32 %v2219, %v2331
        %2333 = vmatmul.f32.gmra.mxu0 %v1992
        %v2334 = vpop.f32.mrf.mxu0
        %v2335 = vadd.f32 %v2222, %v2334
        %2336 = vmatmul.f32.gmra.mxu0 %v1993
        %v2337 = vpop.f32.mrf.mxu0
        %v2338 = vadd.f32 %v2225, %v2337
        %2339 = vmatmul.f32.gmra.mxu0 %v1994
        %v2340 = vpop.f32.mrf.mxu0
        %v2341 = vadd.f32 %v2228, %v2340
        %2342 = vmatmul.f32.gmra.mxu0 %v1995
        %v2343 = vpop.f32.mrf.mxu0
        %v2344 = vadd.f32 %v2231, %v2343
        %2345 = vmatmul.f32.gmra.mxu0 %v1996
        %v2346 = vpop.f32.mrf.mxu0
        %v2347 = vadd.f32 %v2234, %v2346
        %2348 = vmatmul.f32.gmra.mxu0 %v1997
        %v2349 = vpop.f32.mrf.mxu0
        %v2350 = vadd.f32 %v2237, %v2349
        %2351 = vmatmul.f32.gmra.mxu0 %v1998
        %v2352 = vpop.f32.mrf.mxu0
        %v2353 = vadd.f32 %v2240, %v2352
        %2354 = vmatmul.f32.gmra.mxu0 %v1999
        %v2355 = vpop.f32.mrf.mxu0
        %v2356 = vadd.f32 %v2243, %v2355
        %2357 = vmatmul.f32.gmra.mxu0 %v2000
        %v2358 = vpop.f32.mrf.mxu0
        %v2359 = vadd.f32 %v2246, %v2358
        %2360 = vdwg.mxu0
        %2361 = vmatpush.msra.mxu0 %v2134
        %2362 = vmatpush.msra.mxu0 %v2133
        %2363 = vmatpush.msra.mxu0 %v2132
        %2364 = vmatpush.msra.mxu0 %v2131
        %2365 = vmatpush.msra.mxu0 %v2130
        %2366 = vmatpush.msra.mxu0 %v2129
        %2367 = vmatpush.msra.mxu0 %v2128
        %2368 = vmatpush.msra.mxu0 %v2127
        %2369 = vmatpush.msra.mxu0 %v2126
        %2370 = vmatpush.msra.mxu0 %v2125
        %2371 = vmatpush.msra.mxu0 %v2124
        %2372 = vmatpush.msra.mxu0 %v2123
        %2373 = vmatpush.msra.mxu0 %v2122
        %2374 = vmatpush.msra.mxu0 %v2121
        %2375 = vmatpush.msra.mxu0 %v2120
        %2376 = vmatpush.msra.mxu0 %v2119
        %2377 = vmatmul.f32.gmra.mxu0 %v2005
        %v2378 = vpop.f32.mrf.mxu0
        %v2379 = vadd.f32 %v2266, %v2378
        %2380 = vmatmul.f32.gmra.mxu0 %v2006
        %v2381 = vpop.f32.mrf.mxu0
        %v2382 = vadd.f32 %v2269, %v2381
        %2383 = vmatmul.f32.gmra.mxu0 %v2007
        %v2384 = vpop.f32.mrf.mxu0
        %v2385 = vadd.f32 %v2272, %v2384
        %2386 = vmatmul.f32.gmra.mxu0 %v2008
        %v2387 = vpop.f32.mrf.mxu0
        %v2388 = vadd.f32 %v2275, %v2387
        %2389 = vmatmul.f32.gmra.mxu0 %v2009
        %v2390 = vpop.f32.mrf.mxu0
        %v2391 = vadd.f32 %v2278, %v2390
        %2392 = vmatmul.f32.gmra.mxu0 %v2010
        %v2393 = vpop.f32.mrf.mxu0
        %v2394 = vadd.f32 %v2281, %v2393
        %2395 = vmatmul.f32.gmra.mxu0 %v2011
        %v2396 = vpop.f32.mrf.mxu0
        %v2397 = vadd.f32 %v2284, %v2396
        %2398 = vmatmul.f32.gmra.mxu0 %v2012
        %v2399 = vpop.f32.mrf.mxu0
        %v2400 = vadd.f32 %v2287, %v2399
        %2401 = vmatmul.f32.gmra.mxu0 %v2013
        %v2402 = vpop.f32.mrf.mxu0
        %v2403 = vadd.f32 %v2290, %v2402
        %2404 = vmatmul.f32.gmra.mxu0 %v2014
        %v2405 = vpop.f32.mrf.mxu0
        %v2406 = vadd.f32 %v2293, %v2405
        %2407 = vmatmul.f32.gmra.mxu0 %v2015
        %v2408 = vpop.f32.mrf.mxu0
        %v2409 = vadd.f32 %v2296, %v2408
        %2410 = vmatmul.f32.gmra.mxu0 %v2016
        %v2411 = vpop.f32.mrf.mxu0
        %v2412 = vadd.f32 %v2299, %v2411
        %2413 = vmatmul.f32.gmra.mxu0 %v2017
        %v2414 = vpop.f32.mrf.mxu0
        %v2415 = vadd.f32 %v2302, %v2414
        %2416 = vmatmul.f32.gmra.mxu0 %v2018
        %v2417 = vpop.f32.mrf.mxu0
        %v2418 = vadd.f32 %v2305, %v2417
        %2419 = vmatmul.f32.gmra.mxu0 %v2019
        %v2420 = vpop.f32.mrf.mxu0
        %v2421 = vadd.f32 %v2308, %v2420
        %2422 = vmatmul.f32.gmra.mxu0 %v2020
        %v2423 = vpop.f32.mrf.mxu0
        %v2424 = vadd.f32 %v2311, %v2423
        %2425 = vmatmul.f32.gmra.mxu0 %v2021
        %v2426 = vpop.f32.mrf.mxu0
        %v2427 = vadd.f32 %v2314, %v2426
        %2428 = vmatmul.f32.gmra.mxu0 %v2022
        %v2429 = vpop.f32.mrf.mxu0
        %v2430 = vadd.f32 %v2317, %v2429
        %2431 = vmatmul.f32.gmra.mxu0 %v2023
        %v2432 = vpop.f32.mrf.mxu0
        %v2433 = vadd.f32 %v2320, %v2432
        %2434 = vmatmul.f32.gmra.mxu0 %v2024
        %v2435 = vpop.f32.mrf.mxu0
        %v2436 = vadd.f32 %v2323, %v2435
        %2437 = vmatmul.f32.gmra.mxu0 %v2025
        %v2438 = vpop.f32.mrf.mxu0
        %v2439 = vadd.f32 %v2326, %v2438
        %2440 = vmatmul.f32.gmra.mxu0 %v2026
        %v2441 = vpop.f32.mrf.mxu0
        %v2442 = vadd.f32 %v2329, %v2441
        %2443 = vmatmul.f32.gmra.mxu0 %v2027
        %v2444 = vpop.f32.mrf.mxu0
        %v2445 = vadd.f32 %v2332, %v2444
        %2446 = vmatmul.f32.gmra.mxu0 %v2028
        %v2447 = vpop.f32.mrf.mxu0
        %v2448 = vadd.f32 %v2335, %v2447
        %2449 = vmatmul.f32.gmra.mxu0 %v2029
        %v2450 = vpop.f32.mrf.mxu0
        %v2451 = vadd.f32 %v2338, %v2450
        %2452 = vmatmul.f32.gmra.mxu0 %v2030
        %v2453 = vpop.f32.mrf.mxu0
        %v2454 = vadd.f32 %v2341, %v2453
        %2455 = vmatmul.f32.gmra.mxu0 %v2031
        %v2456 = vpop.f32.mrf.mxu0
        %v2457 = vadd.f32 %v2344, %v2456
        %2458 = vmatmul.f32.gmra.mxu0 %v2032
        %v2459 = vpop.f32.mrf.mxu0
        %v2460 = vadd.f32 %v2347, %v2459
        %2461 = vmatmul.f32.gmra.mxu0 %v2033
        %v2462 = vpop.f32.mrf.mxu0
        %v2463 = vadd.f32 %v2350, %v2462
        %2464 = vmatmul.f32.gmra.mxu0 %v2034
        %v2465 = vpop.f32.mrf.mxu0
        %v2466 = vadd.f32 %v2353, %v2465
        %2467 = vmatmul.f32.gmra.mxu0 %v2035
        %v2468 = vpop.f32.mrf.mxu0
        %v2469 = vadd.f32 %v2356, %v2468
        %2470 = vmatmul.f32.gmra.mxu0 %v2036
        %v2471 = vpop.f32.mrf.mxu0
        %v2472 = vadd.f32 %v2359, %v2471
        %2473 = vdwg.mxu0
        %2474 = vmatpush.msra.mxu0 %v2054
        %2475 = vmatpush.msra.mxu0 %v2053
        %2476 = vmatpush.msra.mxu0 %v2052
        %2477 = vmatpush.msra.mxu0 %v2051
        %2478 = vmatpush.msra.mxu0 %v2050
        %2479 = vmatpush.msra.mxu0 %v2049
        %2480 = vmatpush.msra.mxu0 %v2048
        %2481 = vmatpush.msra.mxu0 %v2047
        %2482 = vmatpush.msra.mxu0 %v2046
        %2483 = vmatpush.msra.mxu0 %v2045
        %2484 = vmatpush.msra.mxu0 %v2044
        %2485 = vmatpush.msra.mxu0 %v2043
        %2486 = vmatpush.msra.mxu0 %v2042
        %2487 = vmatpush.msra.mxu0 %v2041
        %2488 = vmatpush.msra.mxu0 %v2040
        %2489 = vmatpush.msra.mxu0 %v2039
        %2490 = vmatmul.f32.gmra.mxu0 %v1931
        %v2491 = vpop.f32.mrf.mxu0
        %v2492 = vadd.f32 %v2379, %v2491
        %2493 = vmatmul.f32.gmra.mxu0 %v1932
        %v2494 = vpop.f32.mrf.mxu0
        %v2495 = vadd.f32 %v2382, %v2494
        %2496 = vmatmul.f32.gmra.mxu0 %v1933
        %v2497 = vpop.f32.mrf.mxu0
        %v2498 = vadd.f32 %v2385, %v2497
        %2499 = vmatmul.f32.gmra.mxu0 %v1934
        %v2500 = vpop.f32.mrf.mxu0
        %v2501 = vadd.f32 %v2388, %v2500
        %2502 = vmatmul.f32.gmra.mxu0 %v1935
        %v2503 = vpop.f32.mrf.mxu0
        %v2504 = vadd.f32 %v2391, %v2503
        %2505 = vmatmul.f32.gmra.mxu0 %v1936
        %v2506 = vpop.f32.mrf.mxu0
        %v2507 = vadd.f32 %v2394, %v2506
        %2508 = vmatmul.f32.gmra.mxu0 %v1937
        %v2509 = vpop.f32.mrf.mxu0
        %v2510 = vadd.f32 %v2397, %v2509
        %2511 = vmatmul.f32.gmra.mxu0 %v1938
        %v2512 = vpop.f32.mrf.mxu0
        %v2513 = vadd.f32 %v2400, %v2512
        %2514 = vmatmul.f32.gmra.mxu0 %v1939
        %v2515 = vpop.f32.mrf.mxu0
        %v2516 = vadd.f32 %v2403, %v2515
        %2517 = vmatmul.f32.gmra.mxu0 %v1940
        %v2518 = vpop.f32.mrf.mxu0
        %v2519 = vadd.f32 %v2406, %v2518
        %2520 = vmatmul.f32.gmra.mxu0 %v1941
        %v2521 = vpop.f32.mrf.mxu0
        %v2522 = vadd.f32 %v2409, %v2521
        %2523 = vmatmul.f32.gmra.mxu0 %v1942
        %v2524 = vpop.f32.mrf.mxu0
        %v2525 = vadd.f32 %v2412, %v2524
        %2526 = vmatmul.f32.gmra.mxu0 %v1943
        %v2527 = vpop.f32.mrf.mxu0
        %v2528 = vadd.f32 %v2415, %v2527
        %2529 = vmatmul.f32.gmra.mxu0 %v1944
        %v2530 = vpop.f32.mrf.mxu0
        %v2531 = vadd.f32 %v2418, %v2530
        %2532 = vmatmul.f32.gmra.mxu0 %v1945
        %v2533 = vpop.f32.mrf.mxu0
        %v2534 = vadd.f32 %v2421, %v2533
        %2535 = vmatmul.f32.gmra.mxu0 %v1946
        %v2536 = vpop.f32.mrf.mxu0
        %v2537 = vadd.f32 %v2424, %v2536
        %2538 = vmatmul.f32.gmra.mxu0 %v1947
        %v2539 = vpop.f32.mrf.mxu0
        %v2540 = vadd.f32 %v2427, %v2539
        %2541 = vmatmul.f32.gmra.mxu0 %v1948
        %v2542 = vpop.f32.mrf.mxu0
        %v2543 = vadd.f32 %v2430, %v2542
        %2544 = vmatmul.f32.gmra.mxu0 %v1949
        %v2545 = vpop.f32.mrf.mxu0
        %v2546 = vadd.f32 %v2433, %v2545
        %2547 = vmatmul.f32.gmra.mxu0 %v1950
        %v2548 = vpop.f32.mrf.mxu0
        %v2549 = vadd.f32 %v2436, %v2548
        %2550 = vmatmul.f32.gmra.mxu0 %v1951
        %v2551 = vpop.f32.mrf.mxu0
        %v2552 = vadd.f32 %v2439, %v2551
        %2553 = vmatmul.f32.gmra.mxu0 %v1952
        %v2554 = vpop.f32.mrf.mxu0
        %v2555 = vadd.f32 %v2442, %v2554
        %2556 = vmatmul.f32.gmra.mxu0 %v1953
        %v2557 = vpop.f32.mrf.mxu0
        %v2558 = vadd.f32 %v2445, %v2557
        %2559 = vmatmul.f32.gmra.mxu0 %v1954
        %v2560 = vpop.f32.mrf.mxu0
        %v2561 = vadd.f32 %v2448, %v2560
        %2562 = vmatmul.f32.gmra.mxu0 %v1955
        %v2563 = vpop.f32.mrf.mxu0
        %v2564 = vadd.f32 %v2451, %v2563
        %2565 = vmatmul.f32.gmra.mxu0 %v1956
        %v2566 = vpop.f32.mrf.mxu0
        %v2567 = vadd.f32 %v2454, %v2566
        %2568 = vmatmul.f32.gmra.mxu0 %v1957
        %v2569 = vpop.f32.mrf.mxu0
        %v2570 = vadd.f32 %v2457, %v2569
        %2571 = vmatmul.f32.gmra.mxu0 %v1958
        %v2572 = vpop.f32.mrf.mxu0
        %v2573 = vadd.f32 %v2460, %v2572
        %2574 = vmatmul.f32.gmra.mxu0 %v1959
        %v2575 = vpop.f32.mrf.mxu0
        %v2576 = vadd.f32 %v2463, %v2575
        %2577 = vmatmul.f32.gmra.mxu0 %v1960
        %v2578 = vpop.f32.mrf.mxu0
        %v2579 = vadd.f32 %v2466, %v2578
        %2580 = vmatmul.f32.gmra.mxu0 %v1961
        %v2581 = vpop.f32.mrf.mxu0
        %v2582 = vadd.f32 %v2469, %v2581
        %2583 = vmatmul.f32.gmra.mxu0 %v1962
        %v2584 = vpop.f32.mrf.mxu0
        %v2585 = vadd.f32 %v2472, %v2584
        %2586 = vdwg.mxu0
        %2587 = vmatpush.msra.mxu0 %v2070
        %2588 = vmatpush.msra.mxu0 %v2069
        %2589 = vmatpush.msra.mxu0 %v2068
        %2590 = vmatpush.msra.mxu0 %v2067
        %2591 = vmatpush.msra.mxu0 %v2066
        %2592 = vmatpush.msra.mxu0 %v2065
        %2593 = vmatpush.msra.mxu0 %v2064
        %2594 = vmatpush.msra.mxu0 %v2063
        %2595 = vmatpush.msra.mxu0 %v2062
        %2596 = vmatpush.msra.mxu0 %v2061
        %2597 = vmatpush.msra.mxu0 %v2060
        %2598 = vmatpush.msra.mxu0 %v2059
        %2599 = vmatpush.msra.mxu0 %v2058
        %2600 = vmatpush.msra.mxu0 %v2057
        %2601 = vmatpush.msra.mxu0 %v2056
        %2602 = vmatpush.msra.mxu0 %v2055
        %2603 = vmatmul.f32.gmra.mxu0 %v1967
        %v2604 = vpop.f32.mrf.mxu0
        %v2605 = vadd.f32 %v2492, %v2604
        %2606 = vmatmul.f32.gmra.mxu0 %v1968
        %v2607 = vpop.f32.mrf.mxu0
        %v2608 = vadd.f32 %v2495, %v2607
        %2609 = vmatmul.f32.gmra.mxu0 %v1969
        %v2610 = vpop.f32.mrf.mxu0
        %v2611 = vadd.f32 %v2498, %v2610
        %2612 = vmatmul.f32.gmra.mxu0 %v1970
        %v2613 = vpop.f32.mrf.mxu0
        %v2614 = vadd.f32 %v2501, %v2613
        %2615 = vmatmul.f32.gmra.mxu0 %v1971
        %v2616 = vpop.f32.mrf.mxu0
        %v2617 = vadd.f32 %v2504, %v2616
        %2618 = vmatmul.f32.gmra.mxu0 %v1972
        %v2619 = vpop.f32.mrf.mxu0
        %v2620 = vadd.f32 %v2507, %v2619
        %2621 = vmatmul.f32.gmra.mxu0 %v1973
        %v2622 = vpop.f32.mrf.mxu0
        %v2623 = vadd.f32 %v2510, %v2622
        %2624 = vmatmul.f32.gmra.mxu0 %v1974
        %v2625 = vpop.f32.mrf.mxu0
        %v2626 = vadd.f32 %v2513, %v2625
        %2627 = vmatmul.f32.gmra.mxu0 %v1975
        %v2628 = vpop.f32.mrf.mxu0
        %v2629 = vadd.f32 %v2516, %v2628
        %2630 = vmatmul.f32.gmra.mxu0 %v1976
        %v2631 = vpop.f32.mrf.mxu0
        %v2632 = vadd.f32 %v2519, %v2631
        %2633 = vmatmul.f32.gmra.mxu0 %v1977
        %v2634 = vpop.f32.mrf.mxu0
        %v2635 = vadd.f32 %v2522, %v2634
        %2636 = vmatmul.f32.gmra.mxu0 %v1978
        %v2637 = vpop.f32.mrf.mxu0
        %v2638 = vadd.f32 %v2525, %v2637
        %2639 = vmatmul.f32.gmra.mxu0 %v1979
        %v2640 = vpop.f32.mrf.mxu0
        %v2641 = vadd.f32 %v2528, %v2640
        %2642 = vmatmul.f32.gmra.mxu0 %v1980
        %v2643 = vpop.f32.mrf.mxu0
        %v2644 = vadd.f32 %v2531, %v2643
        %2645 = vmatmul.f32.gmra.mxu0 %v1981
        %v2646 = vpop.f32.mrf.mxu0
        %v2647 = vadd.f32 %v2534, %v2646
        %2648 = vmatmul.f32.gmra.mxu0 %v1982
        %v2649 = vpop.f32.mrf.mxu0
        %v2650 = vadd.f32 %v2537, %v2649
        %2651 = vmatmul.f32.gmra.mxu0 %v1983
        %v2652 = vpop.f32.mrf.mxu0
        %v2653 = vadd.f32 %v2540, %v2652
        %2654 = vmatmul.f32.gmra.mxu0 %v1984
        %v2655 = vpop.f32.mrf.mxu0
        %v2656 = vadd.f32 %v2543, %v2655
        %2657 = vmatmul.f32.gmra.mxu0 %v1985
        %v2658 = vpop.f32.mrf.mxu0
        %v2659 = vadd.f32 %v2546, %v2658
        %2660 = vmatmul.f32.gmra.mxu0 %v1986
        %v2661 = vpop.f32.mrf.mxu0
        %v2662 = vadd.f32 %v2549, %v2661
        %2663 = vmatmul.f32.gmra.mxu0 %v1987
        %v2664 = vpop.f32.mrf.mxu0
        %v2665 = vadd.f32 %v2552, %v2664
        %2666 = vmatmul.f32.gmra.mxu0 %v1988
        %v2667 = vpop.f32.mrf.mxu0
        %v2668 = vadd.f32 %v2555, %v2667
        %2669 = vmatmul.f32.gmra.mxu0 %v1989
        %v2670 = vpop.f32.mrf.mxu0
        %v2671 = vadd.f32 %v2558, %v2670
        %2672 = vmatmul.f32.gmra.mxu0 %v1990
        %v2673 = vpop.f32.mrf.mxu0
        %v2674 = vadd.f32 %v2561, %v2673
        %2675 = vmatmul.f32.gmra.mxu0 %v1991
        %v2676 = vpop.f32.mrf.mxu0
        %v2677 = vadd.f32 %v2564, %v2676
        %2678 = vmatmul.f32.gmra.mxu0 %v1992
        %v2679 = vpop.f32.mrf.mxu0
        %v2680 = vadd.f32 %v2567, %v2679
        %2681 = vmatmul.f32.gmra.mxu0 %v1993
        %v2682 = vpop.f32.mrf.mxu0
        %v2683 = vadd.f32 %v2570, %v2682
        %2684 = vmatmul.f32.gmra.mxu0 %v1994
        %v2685 = vpop.f32.mrf.mxu0
        %v2686 = vadd.f32 %v2573, %v2685
        %2687 = vmatmul.f32.gmra.mxu0 %v1995
        %v2688 = vpop.f32.mrf.mxu0
        %v2689 = vadd.f32 %v2576, %v2688
        %2690 = vmatmul.f32.gmra.mxu0 %v1996
        %v2691 = vpop.f32.mrf.mxu0
        %v2692 = vadd.f32 %v2579, %v2691
        %2693 = vmatmul.f32.gmra.mxu0 %v1997
        %v2694 = vpop.f32.mrf.mxu0
        %v2695 = vadd.f32 %v2582, %v2694
        %2696 = vmatmul.f32.gmra.mxu0 %v1998
        %v2697 = vpop.f32.mrf.mxu0
        %v2698 = vadd.f32 %v2585, %v2697
        %2699 = vdwg.mxu0
        %2700 = vmatpush.msra.mxu0 %v2086
        %2701 = vmatpush.msra.mxu0 %v2085
        %2702 = vmatpush.msra.mxu0 %v2084
        %2703 = vmatpush.msra.mxu0 %v2083
        %2704 = vmatpush.msra.mxu0 %v2082
        %2705 = vmatpush.msra.mxu0 %v2081
        %2706 = vmatpush.msra.mxu0 %v2080
        %2707 = vmatpush.msra.mxu0 %v2079
        %2708 = vmatpush.msra.mxu0 %v2078
        %2709 = vmatpush.msra.mxu0 %v2077
        %2710 = vmatpush.msra.mxu0 %v2076
        %2711 = vmatpush.msra.mxu0 %v2075
        %2712 = vmatpush.msra.mxu0 %v2074
        %2713 = vmatpush.msra.mxu0 %v2073
        %2714 = vmatpush.msra.mxu0 %v2072
        %2715 = vmatpush.msra.mxu0 %v2071
        %2716 = vmatmul.f32.gmra.mxu0 %v2003
        %v2717 = vpop.f32.mrf.mxu0
        %v2718 = vadd.f32 %v2605, %v2717
        %2719 = vmatmul.f32.gmra.mxu0 %v2004
        %v2720 = vpop.f32.mrf.mxu0
        %v2721 = vadd.f32 %v2608, %v2720
        %2722 = vmatmul.f32.gmra.mxu0 %v2005
        %v2723 = vpop.f32.mrf.mxu0
        %v2724 = vadd.f32 %v2611, %v2723
        %2725 = vmatmul.f32.gmra.mxu0 %v2006
        %v2726 = vpop.f32.mrf.mxu0
        %v2727 = vadd.f32 %v2614, %v2726
        %2728 = vmatmul.f32.gmra.mxu0 %v2007
        %v2729 = vpop.f32.mrf.mxu0
        %v2730 = vadd.f32 %v2617, %v2729
        %2731 = vmatmul.f32.gmra.mxu0 %v2008
        %v2732 = vpop.f32.mrf.mxu0
        %v2733 = vadd.f32 %v2620, %v2732
        %2734 = vmatmul.f32.gmra.mxu0 %v2009
        %v2735 = vpop.f32.mrf.mxu0
        %v2736 = vadd.f32 %v2623, %v2735
        %2737 = vmatmul.f32.gmra.mxu0 %v2010
        %v2738 = vpop.f32.mrf.mxu0
        %v2739 = vadd.f32 %v2626, %v2738
        %2740 = vmatmul.f32.gmra.mxu0 %v2011
        %v2741 = vpop.f32.mrf.mxu0
        %v2742 = vadd.f32 %v2629, %v2741
        %2743 = vmatmul.f32.gmra.mxu0 %v2012
        %v2744 = vpop.f32.mrf.mxu0
        %v2745 = vadd.f32 %v2632, %v2744
        %2746 = vmatmul.f32.gmra.mxu0 %v2013
        %v2747 = vpop.f32.mrf.mxu0
        %v2748 = vadd.f32 %v2635, %v2747
        %2749 = vmatmul.f32.gmra.mxu0 %v2014
        %v2750 = vpop.f32.mrf.mxu0
        %v2751 = vadd.f32 %v2638, %v2750
        %2752 = vmatmul.f32.gmra.mxu0 %v2015
        %v2753 = vpop.f32.mrf.mxu0
        %v2754 = vadd.f32 %v2641, %v2753
        %2755 = vmatmul.f32.gmra.mxu0 %v2016
        %v2756 = vpop.f32.mrf.mxu0
        %v2757 = vadd.f32 %v2644, %v2756
        %2758 = vmatmul.f32.gmra.mxu0 %v2017
        %v2759 = vpop.f32.mrf.mxu0
        %v2760 = vadd.f32 %v2647, %v2759
        %2761 = vmatmul.f32.gmra.mxu0 %v2018
        %v2762 = vpop.f32.mrf.mxu0
        %v2763 = vadd.f32 %v2650, %v2762
        %2764 = vmatmul.f32.gmra.mxu0 %v2019
        %v2765 = vpop.f32.mrf.mxu0
        %v2766 = vadd.f32 %v2653, %v2765
        %2767 = vmatmul.f32.gmra.mxu0 %v2020
        %v2768 = vpop.f32.mrf.mxu0
        %v2769 = vadd.f32 %v2656, %v2768
        %2770 = vmatmul.f32.gmra.mxu0 %v2021
        %v2771 = vpop.f32.mrf.mxu0
        %v2772 = vadd.f32 %v2659, %v2771
        %2773 = vmatmul.f32.gmra.mxu0 %v2022
        %v2774 = vpop.f32.mrf.mxu0
        %v2775 = vadd.f32 %v2662, %v2774
        %2776 = vmatmul.f32.gmra.mxu0 %v2023
        %v2777 = vpop.f32.mrf.mxu0
        %v2778 = vadd.f32 %v2665, %v2777
        %2779 = vmatmul.f32.gmra.mxu0 %v2024
        %v2780 = vpop.f32.mrf.mxu0
        %v2781 = vadd.f32 %v2668, %v2780
        %2782 = vmatmul.f32.gmra.mxu0 %v2025
        %v2783 = vpop.f32.mrf.mxu0
        %v2784 = vadd.f32 %v2671, %v2783
        %2785 = vmatmul.f32.gmra.mxu0 %v2026
        %v2786 = vpop.f32.mrf.mxu0
        %v2787 = vadd.f32 %v2674, %v2786
        %2788 = vmatmul.f32.gmra.mxu0 %v2027
        %v2789 = vpop.f32.mrf.mxu0
        %v2790 = vadd.f32 %v2677, %v2789
        %2791 = vmatmul.f32.gmra.mxu0 %v2028
        %v2792 = vpop.f32.mrf.mxu0
        %v2793 = vadd.f32 %v2680, %v2792
        %2794 = vmatmul.f32.gmra.mxu0 %v2029
        %v2795 = vpop.f32.mrf.mxu0
        %v2796 = vadd.f32 %v2683, %v2795
        %2797 = vmatmul.f32.gmra.mxu0 %v2030
        %v2798 = vpop.f32.mrf.mxu0
        %v2799 = vadd.f32 %v2686, %v2798
        %2800 = vmatmul.f32.gmra.mxu0 %v2031
        %v2801 = vpop.f32.mrf.mxu0
        %v2802 = vadd.f32 %v2689, %v2801
        %2803 = vmatmul.f32.gmra.mxu0 %v2032
        %v2804 = vpop.f32.mrf.mxu0
        %v2805 = vadd.f32 %v2692, %v2804
        %2806 = vmatmul.f32.gmra.mxu0 %v2033
        %v2807 = vpop.f32.mrf.mxu0
        %v2808 = vadd.f32 %v2695, %v2807
        %2809 = vmatmul.f32.gmra.mxu0 %v2034
        %v2810 = vpop.f32.mrf.mxu0
        %v2811 = vadd.f32 %v2698, %v2810
        %2812 = vdwg.mxu0
        %v2813 = vld [vmem:[#allocation8 + $0x300] sm:$0xff]
        %v2814 = vld [vmem:[#allocation8 + $0x308] sm:$0xff]
        %v2815 = vld [vmem:[#allocation8 + $0x310] sm:$0xff]
        %v2816 = vld [vmem:[#allocation8 + $0x318] sm:$0xff]
        %v2817 = vld [vmem:[#allocation8 + $0x320] sm:$0xff]
        %v2818 = vld [vmem:[#allocation8 + $0x328] sm:$0xff]
        %v2819 = vld [vmem:[#allocation8 + $0x330] sm:$0xff]
        %v2820 = vld [vmem:[#allocation8 + $0x338] sm:$0xff]
        %v2821 = vld [vmem:[#allocation8 + $0x340] sm:$0xff]
        %v2822 = vld [vmem:[#allocation8 + $0x348] sm:$0xff]
        %v2823 = vld [vmem:[#allocation8 + $0x350] sm:$0xff]
        %v2824 = vld [vmem:[#allocation8 + $0x358] sm:$0xff]
        %v2825 = vld [vmem:[#allocation8 + $0x360] sm:$0xff]
        %v2826 = vld [vmem:[#allocation8 + $0x368] sm:$0xff]
        %v2827 = vld [vmem:[#allocation8 + $0x370] sm:$0xff]
        %v2828 = vld [vmem:[#allocation8 + $0x378] sm:$0xff]
        %v2829 = vld [vmem:[#allocation8 + $0x380] sm:$0xff]
        %v2830 = vld [vmem:[#allocation8 + $0x388] sm:$0xff]
        %v2831 = vld [vmem:[#allocation8 + $0x390] sm:$0xff]
        %v2832 = vld [vmem:[#allocation8 + $0x398] sm:$0xff]
        %v2833 = vld [vmem:[#allocation8 + $0x3a0] sm:$0xff]
        %v2834 = vld [vmem:[#allocation8 + $0x3a8] sm:$0xff]
        %v2835 = vld [vmem:[#allocation8 + $0x3b0] sm:$0xff]
        %v2836 = vld [vmem:[#allocation8 + $0x3b8] sm:$0xff]
        %v2837 = vld [vmem:[#allocation8 + $0x3c0] sm:$0xff]
        %v2838 = vld [vmem:[#allocation8 + $0x3c8] sm:$0xff]
        %v2839 = vld [vmem:[#allocation8 + $0x3d0] sm:$0xff]
        %v2840 = vld [vmem:[#allocation8 + $0x3d8] sm:$0xff]
        %v2841 = vld [vmem:[#allocation8 + $0x3e0] sm:$0xff]
        %v2842 = vld [vmem:[#allocation8 + $0x3e8] sm:$0xff]
        %v2843 = vld [vmem:[#allocation8 + $0x3f0] sm:$0xff]
        %v2844 = vld [vmem:[#allocation8 + $0x3f8] sm:$0xff]
        %v2845 = vld [vmem:[#allocation8 + $0x400] sm:$0xff]
        %v2846 = vld [vmem:[#allocation8 + $0x408] sm:$0xff]
        %v2847 = vld [vmem:[#allocation8 + $0x410] sm:$0xff]
        %v2848 = vld [vmem:[#allocation8 + $0x418] sm:$0xff]
        %v2849 = vld [vmem:[#allocation8 + $0x420] sm:$0xff]
        %v2850 = vld [vmem:[#allocation8 + $0x428] sm:$0xff]
        %v2851 = vld [vmem:[#allocation8 + $0x430] sm:$0xff]
        %v2852 = vld [vmem:[#allocation8 + $0x438] sm:$0xff]
        %v2853 = vld [vmem:[#allocation8 + $0x440] sm:$0xff]
        %v2854 = vld [vmem:[#allocation8 + $0x448] sm:$0xff]
        %v2855 = vld [vmem:[#allocation8 + $0x450] sm:$0xff]
        %v2856 = vld [vmem:[#allocation8 + $0x458] sm:$0xff]
        %v2857 = vld [vmem:[#allocation8 + $0x460] sm:$0xff]
        %v2858 = vld [vmem:[#allocation8 + $0x468] sm:$0xff]
        %v2859 = vld [vmem:[#allocation8 + $0x470] sm:$0xff]
        %v2860 = vld [vmem:[#allocation8 + $0x478] sm:$0xff]
        %2861 = vmatpush.msra.mxu0 %v2828
        %2862 = vmatpush.msra.mxu0 %v2827
        %2863 = vmatpush.msra.mxu0 %v2826
        %2864 = vmatpush.msra.mxu0 %v2825
        %2865 = vmatpush.msra.mxu0 %v2824
        %2866 = vmatpush.msra.mxu0 %v2823
        %2867 = vmatpush.msra.mxu0 %v2822
        %2868 = vmatpush.msra.mxu0 %v2821
        %2869 = vmatpush.msra.mxu0 %v2820
        %2870 = vmatpush.msra.mxu0 %v2819
        %2871 = vmatpush.msra.mxu0 %v2818
        %2872 = vmatpush.msra.mxu0 %v2817
        %2873 = vmatpush.msra.mxu0 %v2816
        %2874 = vmatpush.msra.mxu0 %v2815
        %2875 = vmatpush.msra.mxu0 %v2814
        %2876 = vmatpush.msra.mxu0 %v2813
        %2877 = vmatmul.f32.gmra.mxu0 %v1935
        %v2878 = vpop.f32.mrf.mxu0
        %v2879 = vadd.f32 0.0, %v2878
        %2880 = vmatmul.f32.gmra.mxu0 %v1936
        %v2881 = vpop.f32.mrf.mxu0
        %v2882 = vadd.f32 0.0, %v2881
        %2883 = vmatmul.f32.gmra.mxu0 %v1937
        %v2884 = vpop.f32.mrf.mxu0
        %v2885 = vadd.f32 0.0, %v2884
        %2886 = vmatmul.f32.gmra.mxu0 %v1938
        %v2887 = vpop.f32.mrf.mxu0
        %v2888 = vadd.f32 0.0, %v2887
        %2889 = vmatmul.f32.gmra.mxu0 %v1939
        %v2890 = vpop.f32.mrf.mxu0
        %v2891 = vadd.f32 0.0, %v2890
        %2892 = vmatmul.f32.gmra.mxu0 %v1940
        %v2893 = vpop.f32.mrf.mxu0
        %v2894 = vadd.f32 0.0, %v2893
        %2895 = vmatmul.f32.gmra.mxu0 %v1941
        %v2896 = vpop.f32.mrf.mxu0
        %v2897 = vadd.f32 0.0, %v2896
        %2898 = vmatmul.f32.gmra.mxu0 %v1942
        %v2899 = vpop.f32.mrf.mxu0
        %v2900 = vadd.f32 0.0, %v2899
        %2901 = vmatmul.f32.gmra.mxu0 %v1943
        %v2902 = vpop.f32.mrf.mxu0
        %v2903 = vadd.f32 0.0, %v2902
        %2904 = vmatmul.f32.gmra.mxu0 %v1944
        %v2905 = vpop.f32.mrf.mxu0
        %v2906 = vadd.f32 0.0, %v2905
        %2907 = vmatmul.f32.gmra.mxu0 %v1945
        %v2908 = vpop.f32.mrf.mxu0
        %v2909 = vadd.f32 0.0, %v2908
        %2910 = vmatmul.f32.gmra.mxu0 %v1946
        %v2911 = vpop.f32.mrf.mxu0
        %v2912 = vadd.f32 0.0, %v2911
        %2913 = vmatmul.f32.gmra.mxu0 %v1947
        %v2914 = vpop.f32.mrf.mxu0
        %v2915 = vadd.f32 0.0, %v2914
        %2916 = vmatmul.f32.gmra.mxu0 %v1948
        %v2917 = vpop.f32.mrf.mxu0
        %v2918 = vadd.f32 0.0, %v2917
        %2919 = vmatmul.f32.gmra.mxu0 %v1949
        %v2920 = vpop.f32.mrf.mxu0
        %v2921 = vadd.f32 0.0, %v2920
        %2922 = vmatmul.f32.gmra.mxu0 %v1950
        %v2923 = vpop.f32.mrf.mxu0
        %v2924 = vadd.f32 0.0, %v2923
        %2925 = vmatmul.f32.gmra.mxu0 %v1951
        %v2926 = vpop.f32.mrf.mxu0
        %v2927 = vadd.f32 0.0, %v2926
        %2928 = vmatmul.f32.gmra.mxu0 %v1952
        %v2929 = vpop.f32.mrf.mxu0
        %v2930 = vadd.f32 0.0, %v2929
        %2931 = vmatmul.f32.gmra.mxu0 %v1953
        %v2932 = vpop.f32.mrf.mxu0
        %v2933 = vadd.f32 0.0, %v2932
        %2934 = vmatmul.f32.gmra.mxu0 %v1954
        %v2935 = vpop.f32.mrf.mxu0
        %v2936 = vadd.f32 0.0, %v2935
        %2937 = vmatmul.f32.gmra.mxu0 %v1955
        %v2938 = vpop.f32.mrf.mxu0
        %v2939 = vadd.f32 0.0, %v2938
        %2940 = vmatmul.f32.gmra.mxu0 %v1956
        %v2941 = vpop.f32.mrf.mxu0
        %v2942 = vadd.f32 0.0, %v2941
        %2943 = vmatmul.f32.gmra.mxu0 %v1957
        %v2944 = vpop.f32.mrf.mxu0
        %v2945 = vadd.f32 0.0, %v2944
        %2946 = vmatmul.f32.gmra.mxu0 %v1958
        %v2947 = vpop.f32.mrf.mxu0
        %v2948 = vadd.f32 0.0, %v2947
        %2949 = vmatmul.f32.gmra.mxu0 %v1959
        %v2950 = vpop.f32.mrf.mxu0
        %v2951 = vadd.f32 0.0, %v2950
        %2952 = vmatmul.f32.gmra.mxu0 %v1960
        %v2953 = vpop.f32.mrf.mxu0
        %v2954 = vadd.f32 0.0, %v2953
        %2955 = vmatmul.f32.gmra.mxu0 %v1961
        %v2956 = vpop.f32.mrf.mxu0
        %v2957 = vadd.f32 0.0, %v2956
        %2958 = vmatmul.f32.gmra.mxu0 %v1962
        %v2959 = vpop.f32.mrf.mxu0
        %v2960 = vadd.f32 0.0, %v2959
        %2961 = vmatmul.f32.gmra.mxu0 %v1963
        %v2962 = vpop.f32.mrf.mxu0
        %v2963 = vadd.f32 0.0, %v2962
        %2964 = vmatmul.f32.gmra.mxu0 %v1964
        %v2965 = vpop.f32.mrf.mxu0
        %v2966 = vadd.f32 0.0, %v2965
        %2967 = vmatmul.f32.gmra.mxu0 %v1965
        %v2968 = vpop.f32.mrf.mxu0
        %v2969 = vadd.f32 0.0, %v2968
        %2970 = vmatmul.f32.gmra.mxu0 %v1966
        %v2971 = vpop.f32.mrf.mxu0
        %v2972 = vadd.f32 0.0, %v2971
        %2973 = vdwg.mxu0
        %2974 = vmatpush.msra.mxu0 %v2844
        %2975 = vmatpush.msra.mxu0 %v2843
        %2976 = vmatpush.msra.mxu0 %v2842
        %2977 = vmatpush.msra.mxu0 %v2841
        %2978 = vmatpush.msra.mxu0 %v2840
        %2979 = vmatpush.msra.mxu0 %v2839
        %2980 = vmatpush.msra.mxu0 %v2838
        %2981 = vmatpush.msra.mxu0 %v2837
        %2982 = vmatpush.msra.mxu0 %v2836
        %2983 = vmatpush.msra.mxu0 %v2835
        %2984 = vmatpush.msra.mxu0 %v2834
        %2985 = vmatpush.msra.mxu0 %v2833
        %2986 = vmatpush.msra.mxu0 %v2832
        %2987 = vmatpush.msra.mxu0 %v2831
        %2988 = vmatpush.msra.mxu0 %v2830
        %2989 = vmatpush.msra.mxu0 %v2829
        %2990 = vmatmul.f32.gmra.mxu0 %v1971
        %v2991 = vpop.f32.mrf.mxu0
        %v2992 = vadd.f32 %v2879, %v2991
        %2993 = vmatmul.f32.gmra.mxu0 %v1972
        %v2994 = vpop.f32.mrf.mxu0
        %v2995 = vadd.f32 %v2882, %v2994
        %2996 = vmatmul.f32.gmra.mxu0 %v1973
        %v2997 = vpop.f32.mrf.mxu0
        %v2998 = vadd.f32 %v2885, %v2997
        %2999 = vmatmul.f32.gmra.mxu0 %v1974
        %v3000 = vpop.f32.mrf.mxu0
        %v3001 = vadd.f32 %v2888, %v3000
        %3002 = vmatmul.f32.gmra.mxu0 %v1975
        %v3003 = vpop.f32.mrf.mxu0
        %v3004 = vadd.f32 %v2891, %v3003
        %3005 = vmatmul.f32.gmra.mxu0 %v1976
        %v3006 = vpop.f32.mrf.mxu0
        %v3007 = vadd.f32 %v2894, %v3006
        %3008 = vmatmul.f32.gmra.mxu0 %v1977
        %v3009 = vpop.f32.mrf.mxu0
        %v3010 = vadd.f32 %v2897, %v3009
        %3011 = vmatmul.f32.gmra.mxu0 %v1978
        %v3012 = vpop.f32.mrf.mxu0
        %v3013 = vadd.f32 %v2900, %v3012
        %3014 = vmatmul.f32.gmra.mxu0 %v1979
        %v3015 = vpop.f32.mrf.mxu0
        %v3016 = vadd.f32 %v2903, %v3015
        %3017 = vmatmul.f32.gmra.mxu0 %v1980
        %v3018 = vpop.f32.mrf.mxu0
        %v3019 = vadd.f32 %v2906, %v3018
        %3020 = vmatmul.f32.gmra.mxu0 %v1981
        %v3021 = vpop.f32.mrf.mxu0
        %v3022 = vadd.f32 %v2909, %v3021
        %3023 = vmatmul.f32.gmra.mxu0 %v1982
        %v3024 = vpop.f32.mrf.mxu0
        %v3025 = vadd.f32 %v2912, %v3024
        %3026 = vmatmul.f32.gmra.mxu0 %v1983
        %v3027 = vpop.f32.mrf.mxu0
        %v3028 = vadd.f32 %v2915, %v3027
        %3029 = vmatmul.f32.gmra.mxu0 %v1984
        %v3030 = vpop.f32.mrf.mxu0
        %v3031 = vadd.f32 %v2918, %v3030
        %3032 = vmatmul.f32.gmra.mxu0 %v1985
        %v3033 = vpop.f32.mrf.mxu0
        %v3034 = vadd.f32 %v2921, %v3033
        %3035 = vmatmul.f32.gmra.mxu0 %v1986
        %v3036 = vpop.f32.mrf.mxu0
        %v3037 = vadd.f32 %v2924, %v3036
        %3038 = vmatmul.f32.gmra.mxu0 %v1987
        %v3039 = vpop.f32.mrf.mxu0
        %v3040 = vadd.f32 %v2927, %v3039
        %3041 = vmatmul.f32.gmra.mxu0 %v1988
        %v3042 = vpop.f32.mrf.mxu0
        %v3043 = vadd.f32 %v2930, %v3042
        %3044 = vmatmul.f32.gmra.mxu0 %v1989
        %v3045 = vpop.f32.mrf.mxu0
        %v3046 = vadd.f32 %v2933, %v3045
        %3047 = vmatmul.f32.gmra.mxu0 %v1990
        %v3048 = vpop.f32.mrf.mxu0
        %v3049 = vadd.f32 %v2936, %v3048
        %3050 = vmatmul.f32.gmra.mxu0 %v1991
        %v3051 = vpop.f32.mrf.mxu0
        %v3052 = vadd.f32 %v2939, %v3051
        %3053 = vmatmul.f32.gmra.mxu0 %v1992
        %v3054 = vpop.f32.mrf.mxu0
        %v3055 = vadd.f32 %v2942, %v3054
        %3056 = vmatmul.f32.gmra.mxu0 %v1993
        %v3057 = vpop.f32.mrf.mxu0
        %v3058 = vadd.f32 %v2945, %v3057
        %3059 = vmatmul.f32.gmra.mxu0 %v1994
        %v3060 = vpop.f32.mrf.mxu0
        %v3061 = vadd.f32 %v2948, %v3060
        %3062 = vmatmul.f32.gmra.mxu0 %v1995
        %v3063 = vpop.f32.mrf.mxu0
        %v3064 = vadd.f32 %v2951, %v3063
        %3065 = vmatmul.f32.gmra.mxu0 %v1996
        %v3066 = vpop.f32.mrf.mxu0
        %v3067 = vadd.f32 %v2954, %v3066
        %3068 = vmatmul.f32.gmra.mxu0 %v1997
        %v3069 = vpop.f32.mrf.mxu0
        %v3070 = vadd.f32 %v2957, %v3069
        %3071 = vmatmul.f32.gmra.mxu0 %v1998
        %v3072 = vpop.f32.mrf.mxu0
        %v3073 = vadd.f32 %v2960, %v3072
        %3074 = vmatmul.f32.gmra.mxu0 %v1999
        %v3075 = vpop.f32.mrf.mxu0
        %v3076 = vadd.f32 %v2963, %v3075
        %3077 = vmatmul.f32.gmra.mxu0 %v2000
        %v3078 = vpop.f32.mrf.mxu0
        %v3079 = vadd.f32 %v2966, %v3078
        %3080 = vmatmul.f32.gmra.mxu0 %v2001
        %v3081 = vpop.f32.mrf.mxu0
        %v3082 = vadd.f32 %v2969, %v3081
        %3083 = vmatmul.f32.gmra.mxu0 %v2002
        %v3084 = vpop.f32.mrf.mxu0
        %v3085 = vadd.f32 %v2972, %v3084
        %3086 = vdwg.mxu0
        %3087 = vmatpush.msra.mxu0 %v2860
        %3088 = vmatpush.msra.mxu0 %v2859
        %3089 = vmatpush.msra.mxu0 %v2858
        %3090 = vmatpush.msra.mxu0 %v2857
        %3091 = vmatpush.msra.mxu0 %v2856
        %3092 = vmatpush.msra.mxu0 %v2855
        %3093 = vmatpush.msra.mxu0 %v2854
        %3094 = vmatpush.msra.mxu0 %v2853
        %3095 = vmatpush.msra.mxu0 %v2852
        %3096 = vmatpush.msra.mxu0 %v2851
        %3097 = vmatpush.msra.mxu0 %v2850
        %3098 = vmatpush.msra.mxu0 %v2849
        %3099 = vmatpush.msra.mxu0 %v2848
        %3100 = vmatpush.msra.mxu0 %v2847
        %3101 = vmatpush.msra.mxu0 %v2846
        %3102 = vmatpush.msra.mxu0 %v2845
        %3103 = vmatmul.f32.gmra.mxu0 %v2007
        %v3104 = vpop.f32.mrf.mxu0
        %v3105 = vadd.f32 %v2992, %v3104
        %3106 = vmatmul.f32.gmra.mxu0 %v2008
        %v3107 = vpop.f32.mrf.mxu0
        %v3108 = vadd.f32 %v2995, %v3107
        %3109 = vmatmul.f32.gmra.mxu0 %v2009
        %v3110 = vpop.f32.mrf.mxu0
        %v3111 = vadd.f32 %v2998, %v3110
        %3112 = vmatmul.f32.gmra.mxu0 %v2010
        %v3113 = vpop.f32.mrf.mxu0
        %v3114 = vadd.f32 %v3001, %v3113
        %3115 = vmatmul.f32.gmra.mxu0 %v2011
        %v3116 = vpop.f32.mrf.mxu0
        %v3117 = vadd.f32 %v3004, %v3116
        %3118 = vmatmul.f32.gmra.mxu0 %v2012
        %v3119 = vpop.f32.mrf.mxu0
        %v3120 = vadd.f32 %v3007, %v3119
        %3121 = vmatmul.f32.gmra.mxu0 %v2013
        %v3122 = vpop.f32.mrf.mxu0
        %v3123 = vadd.f32 %v3010, %v3122
        %3124 = vmatmul.f32.gmra.mxu0 %v2014
        %v3125 = vpop.f32.mrf.mxu0
        %v3126 = vadd.f32 %v3013, %v3125
        %3127 = vmatmul.f32.gmra.mxu0 %v2015
        %v3128 = vpop.f32.mrf.mxu0
        %v3129 = vadd.f32 %v3016, %v3128
        %3130 = vmatmul.f32.gmra.mxu0 %v2016
        %v3131 = vpop.f32.mrf.mxu0
        %v3132 = vadd.f32 %v3019, %v3131
        %3133 = vmatmul.f32.gmra.mxu0 %v2017
        %v3134 = vpop.f32.mrf.mxu0
        %v3135 = vadd.f32 %v3022, %v3134
        %3136 = vmatmul.f32.gmra.mxu0 %v2018
        %v3137 = vpop.f32.mrf.mxu0
        %v3138 = vadd.f32 %v3025, %v3137
        %3139 = vmatmul.f32.gmra.mxu0 %v2019
        %v3140 = vpop.f32.mrf.mxu0
        %v3141 = vadd.f32 %v3028, %v3140
        %3142 = vmatmul.f32.gmra.mxu0 %v2020
        %v3143 = vpop.f32.mrf.mxu0
        %v3144 = vadd.f32 %v3031, %v3143
        %3145 = vmatmul.f32.gmra.mxu0 %v2021
        %v3146 = vpop.f32.mrf.mxu0
        %v3147 = vadd.f32 %v3034, %v3146
        %3148 = vmatmul.f32.gmra.mxu0 %v2022
        %v3149 = vpop.f32.mrf.mxu0
        %v3150 = vadd.f32 %v3037, %v3149
        %3151 = vmatmul.f32.gmra.mxu0 %v2023
        %v3152 = vpop.f32.mrf.mxu0
        %v3153 = vadd.f32 %v3040, %v3152
        %3154 = vmatmul.f32.gmra.mxu0 %v2024
        %v3155 = vpop.f32.mrf.mxu0
        %v3156 = vadd.f32 %v3043, %v3155
        %3157 = vmatmul.f32.gmra.mxu0 %v2025
        %v3158 = vpop.f32.mrf.mxu0
        %v3159 = vadd.f32 %v3046, %v3158
        %3160 = vmatmul.f32.gmra.mxu0 %v2026
        %v3161 = vpop.f32.mrf.mxu0
        %v3162 = vadd.f32 %v3049, %v3161
        %3163 = vmatmul.f32.gmra.mxu0 %v2027
        %v3164 = vpop.f32.mrf.mxu0
        %v3165 = vadd.f32 %v3052, %v3164
        %3166 = vmatmul.f32.gmra.mxu0 %v2028
        %v3167 = vpop.f32.mrf.mxu0
        %v3168 = vadd.f32 %v3055, %v3167
        %3169 = vmatmul.f32.gmra.mxu0 %v2029
        %v3170 = vpop.f32.mrf.mxu0
        %v3171 = vadd.f32 %v3058, %v3170
        %3172 = vmatmul.f32.gmra.mxu0 %v2030
        %v3173 = vpop.f32.mrf.mxu0
        %v3174 = vadd.f32 %v3061, %v3173
        %3175 = vmatmul.f32.gmra.mxu0 %v2031
        %v3176 = vpop.f32.mrf.mxu0
        %v3177 = vadd.f32 %v3064, %v3176
        %3178 = vmatmul.f32.gmra.mxu0 %v2032
        %v3179 = vpop.f32.mrf.mxu0
        %v3180 = vadd.f32 %v3067, %v3179
        %3181 = vmatmul.f32.gmra.mxu0 %v2033
        %v3182 = vpop.f32.mrf.mxu0
        %v3183 = vadd.f32 %v3070, %v3182
        %3184 = vmatmul.f32.gmra.mxu0 %v2034
        %v3185 = vpop.f32.mrf.mxu0
        %v3186 = vadd.f32 %v3073, %v3185
        %3187 = vmatmul.f32.gmra.mxu0 %v2035
        %v3188 = vpop.f32.mrf.mxu0
        %v3189 = vadd.f32 %v3076, %v3188
        %3190 = vmatmul.f32.gmra.mxu0 %v2036
        %v3191 = vpop.f32.mrf.mxu0
        %v3192 = vadd.f32 %v3079, %v3191
        %3193 = vmatmul.f32.gmra.mxu0 %v2037
        %v3194 = vpop.f32.mrf.mxu0
        %v3195 = vadd.f32 %v3082, %v3194
        %3196 = vmatmul.f32.gmra.mxu0 %v2038
        %v3197 = vpop.f32.mrf.mxu0
        %v3198 = vadd.f32 %v3085, %v3197
        %3199 = vdwg.mxu0
        %v3200 = vadd.f32 %v2718, %v3105
        %v3201 = vadd.f32 %v2721, %v3108
        %v3202 = vadd.f32 %v2724, %v3111
        %v3203 = vadd.f32 %v2727, %v3114
        %v3204 = vadd.f32 %v2730, %v3117
        %v3205 = vadd.f32 %v2733, %v3120
        %v3206 = vadd.f32 %v2736, %v3123
        %v3207 = vadd.f32 %v2739, %v3126
        %v3208 = vadd.f32 %v2742, %v3129
        %v3209 = vadd.f32 %v2745, %v3132
        %v3210 = vadd.f32 %v2748, %v3135
        %v3211 = vadd.f32 %v2751, %v3138
        %v3212 = vadd.f32 %v2754, %v3141
        %v3213 = vadd.f32 %v2757, %v3144
        %v3214 = vadd.f32 %v2760, %v3147
        %v3215 = vadd.f32 %v2763, %v3150
        %v3216 = vadd.f32 %v2766, %v3153
        %v3217 = vadd.f32 %v2769, %v3156
        %v3218 = vadd.f32 %v2772, %v3159
        %v3219 = vadd.f32 %v2775, %v3162
        %v3220 = vadd.f32 %v2778, %v3165
        %v3221 = vadd.f32 %v2781, %v3168
        %v3222 = vadd.f32 %v2784, %v3171
        %v3223 = vadd.f32 %v2787, %v3174
        %v3224 = vadd.f32 %v2790, %v3177
        %v3225 = vadd.f32 %v2793, %v3180
        %v3226 = vadd.f32 %v2796, %v3183
        %v3227 = vadd.f32 %v2799, %v3186
        %v3228 = vadd.f32 %v2802, %v3189
        %v3229 = vadd.f32 %v2805, %v3192
        %v3230 = vadd.f32 %v2808, %v3195
        %v3231 = vadd.f32 %v2811, %v3198
        %v3232 = vadd.f32 %v3200, %v3201
        %v3233 = vadd.f32 %v3232, %v3202
        %v3234 = vadd.f32 %v3233, %v3203
        %v3235 = vadd.f32 %v3234, %v3204
        %v3236 = vadd.f32 %v3235, %v3205
        %v3237 = vadd.f32 %v3236, %v3206
        %v3238 = vadd.f32 %v3237, %v3207
        %v3239 = vadd.f32 %v3238, %v3208
        %v3240 = vadd.f32 %v3239, %v3209
        %v3241 = vadd.f32 %v3240, %v3210
        %v3242 = vadd.f32 %v3241, %v3211
        %v3243 = vadd.f32 %v3242, %v3212
        %v3244 = vadd.f32 %v3243, %v3213
        %v3245 = vadd.f32 %v3244, %v3214
        %v3246 = vadd.f32 %v3245, %v3215
        %v3247 = vadd.f32 %v3246, %v3216
        %v3248 = vadd.f32 %v3247, %v3217
        %v3249 = vadd.f32 %v3248, %v3218
        %v3250 = vadd.f32 %v3249, %v3219
        %v3251 = vadd.f32 %v3250, %v3220
        %v3252 = vadd.f32 %v3251, %v3221
        %v3253 = vadd.f32 %v3252, %v3222
        %v3254 = vadd.f32 %v3253, %v3223
        %v3255 = vadd.f32 %v3254, %v3224
        %v3256 = vadd.f32 %v3255, %v3225
        %v3257 = vadd.f32 %v3256, %v3226
        %v3258 = vadd.f32 %v3257, %v3227
        %v3259 = vadd.f32 %v3258, %v3228
        %v3260 = vadd.f32 %v3259, %v3229
        %v3261 = vadd.f32 %v3260, %v3230
        %v3262 = vadd.f32 %v3261, %v3231
        %v3263 = vrot.slane %v3262, 4
        %v3264 = vadd.f32 %v3262, %v3263
        %v3265 = vrot.slane %v3264, 2
        %v3266 = vadd.f32 %v3264, %v3265
        %v3267 = vrot.slane %v3266, 1
        %v3268 = vadd.f32 %v3266, %v3267
        %v3269 = vmul.f32 %v3268, 0.00390625
        %v3270 = vmul.f32 %v3200, %v3200
        %v3271 = vmul.f32 %v3201, %v3201
        %v3272 = vmul.f32 %v3202, %v3202
        %v3273 = vmul.f32 %v3203, %v3203
        %v3274 = vmul.f32 %v3204, %v3204
        %v3275 = vmul.f32 %v3205, %v3205
        %v3276 = vmul.f32 %v3206, %v3206
        %v3277 = vmul.f32 %v3207, %v3207
        %v3278 = vmul.f32 %v3208, %v3208
        %v3279 = vmul.f32 %v3209, %v3209
        %v3280 = vmul.f32 %v3210, %v3210
        %v3281 = vmul.f32 %v3211, %v3211
        %v3282 = vmul.f32 %v3212, %v3212
        %v3283 = vmul.f32 %v3213, %v3213
        %v3284 = vmul.f32 %v3214, %v3214
        %v3285 = vmul.f32 %v3215, %v3215
        %v3286 = vmul.f32 %v3216, %v3216
        %v3287 = vmul.f32 %v3217, %v3217
        %v3288 = vmul.f32 %v3218, %v3218
        %v3289 = vmul.f32 %v3219, %v3219
        %v3290 = vmul.f32 %v3220, %v3220
        %v3291 = vmul.f32 %v3221, %v3221
        %v3292 = vmul.f32 %v3222, %v3222
        %v3293 = vmul.f32 %v3223, %v3223
        %v3294 = vmul.f32 %v3224, %v3224
        %v3295 = vmul.f32 %v3225, %v3225
        %v3296 = vmul.f32 %v3226, %v3226
        %v3297 = vmul.f32 %v3227, %v3227
        %v3298 = vmul.f32 %v3228, %v3228
        %v3299 = vmul.f32 %v3229, %v3229
        %v3300 = vmul.f32 %v3230, %v3230
        %v3301 = vmul.f32 %v3231, %v3231
        %v3302 = vadd.f32 %v3270, %v3271
        %v3303 = vadd.f32 %v3302, %v3272
        %v3304 = vadd.f32 %v3303, %v3273
        %v3305 = vadd.f32 %v3304, %v3274
        %v3306 = vadd.f32 %v3305, %v3275
        %v3307 = vadd.f32 %v3306, %v3276
        %v3308 = vadd.f32 %v3307, %v3277
        %v3309 = vadd.f32 %v3308, %v3278
        %v3310 = vadd.f32 %v3309, %v3279
        %v3311 = vadd.f32 %v3310, %v3280
        %v3312 = vadd.f32 %v3311, %v3281
        %v3313 = vadd.f32 %v3312, %v3282
        %v3314 = vadd.f32 %v3313, %v3283
        %v3315 = vadd.f32 %v3314, %v3284
        %v3316 = vadd.f32 %v3315, %v3285
        %v3317 = vadd.f32 %v3316, %v3286
        %v3318 = vadd.f32 %v3317, %v3287
        %v3319 = vadd.f32 %v3318, %v3288
        %v3320 = vadd.f32 %v3319, %v3289
        %v3321 = vadd.f32 %v3320, %v3290
        %v3322 = vadd.f32 %v3321, %v3291
        %v3323 = vadd.f32 %v3322, %v3292
        %v3324 = vadd.f32 %v3323, %v3293
        %v3325 = vadd.f32 %v3324, %v3294
        %v3326 = vadd.f32 %v3325, %v3295
        %v3327 = vadd.f32 %v3326, %v3296
        %v3328 = vadd.f32 %v3327, %v3297
        %v3329 = vadd.f32 %v3328, %v3298
        %v3330 = vadd.f32 %v3329, %v3299
        %v3331 = vadd.f32 %v3330, %v3300
        %v3332 = vadd.f32 %v3331, %v3301
        %v3333 = vrot.slane %v3332, 4
        %v3334 = vadd.f32 %v3332, %v3333
        %v3335 = vrot.slane %v3334, 2
        %v3336 = vadd.f32 %v3334, %v3335
        %v3337 = vrot.slane %v3336, 1
        %v3338 = vadd.f32 %v3336, %v3337
        %v3339 = vmul.f32 %v3338, 0.00390625
        %v3340 = vmul.f32 %v3269, %v3269
        %v3341 = vsub.f32 %v3339, %v3340
        %v3342 = vmax.f32 %v3341, 0.0
        %v3343 = vadd.f32 %v3342, 1e-05
        %v3344 = vrsqrt.pop %v3343
        %v3345 = vmul.f32 %v3344, %v3343
        %v3346 = vmul.f32 %v3345, %v3344
        %v3347 = vmul.f32 0.5, %v3346
        %v3348 = vsub.f32 1.5, %v3347
        %v3349 = vmul.f32 %v3344, %v3348
        %vm3350 = vweird.f32 %v3343
        %vm3351 = vweird.f32 %v3344
        %vm3352 = vmor %vm3350, %vm3351
        %v3353 = vsel %vm3352, %v3344, %v3349
        %v3354 = vsub.f32 %v3200, %v3269
        %v3355 = vsub.f32 %v3201, %v3269
        %v3356 = vsub.f32 %v3202, %v3269
        %v3357 = vsub.f32 %v3203, %v3269
        %v3358 = vsub.f32 %v3204, %v3269
        %v3359 = vsub.f32 %v3205, %v3269
        %v3360 = vsub.f32 %v3206, %v3269
        %v3361 = vsub.f32 %v3207, %v3269
        %v3362 = vsub.f32 %v3208, %v3269
        %v3363 = vsub.f32 %v3209, %v3269
        %v3364 = vsub.f32 %v3210, %v3269
        %v3365 = vsub.f32 %v3211, %v3269
        %v3366 = vsub.f32 %v3212, %v3269
        %v3367 = vsub.f32 %v3213, %v3269
        %v3368 = vsub.f32 %v3214, %v3269
        %v3369 = vsub.f32 %v3215, %v3269
        %v3370 = vsub.f32 %v3216, %v3269
        %v3371 = vsub.f32 %v3217, %v3269
        %v3372 = vsub.f32 %v3218, %v3269
        %v3373 = vsub.f32 %v3219, %v3269
        %v3374 = vsub.f32 %v3220, %v3269
        %v3375 = vsub.f32 %v3221, %v3269
        %v3376 = vsub.f32 %v3222, %v3269
        %v3377 = vsub.f32 %v3223, %v3269
        %v3378 = vsub.f32 %v3224, %v3269
        %v3379 = vsub.f32 %v3225, %v3269
        %v3380 = vsub.f32 %v3226, %v3269
        %v3381 = vsub.f32 %v3227, %v3269
        %v3382 = vsub.f32 %v3228, %v3269
        %v3383 = vsub.f32 %v3229, %v3269
        %v3384 = vsub.f32 %v3230, %v3269
        %v3385 = vsub.f32 %v3231, %v3269
        %v3386 = vmul.f32 %v3354, %v3353
        %v3387 = vmul.f32 %v3355, %v3353
        %v3388 = vmul.f32 %v3356, %v3353
        %v3389 = vmul.f32 %v3357, %v3353
        %v3390 = vmul.f32 %v3358, %v3353
        %v3391 = vmul.f32 %v3359, %v3353
        %v3392 = vmul.f32 %v3360, %v3353
        %v3393 = vmul.f32 %v3361, %v3353
        %v3394 = vmul.f32 %v3362, %v3353
        %v3395 = vmul.f32 %v3363, %v3353
        %v3396 = vmul.f32 %v3364, %v3353
        %v3397 = vmul.f32 %v3365, %v3353
        %v3398 = vmul.f32 %v3366, %v3353
        %v3399 = vmul.f32 %v3367, %v3353
        %v3400 = vmul.f32 %v3368, %v3353
        %v3401 = vmul.f32 %v3369, %v3353
        %v3402 = vmul.f32 %v3370, %v3353
        %v3403 = vmul.f32 %v3371, %v3353
        %v3404 = vmul.f32 %v3372, %v3353
        %v3405 = vmul.f32 %v3373, %v3353
        %v3406 = vmul.f32 %v3374, %v3353
        %v3407 = vmul.f32 %v3375, %v3353
        %v3408 = vmul.f32 %v3376, %v3353
        %v3409 = vmul.f32 %v3377, %v3353
        %v3410 = vmul.f32 %v3378, %v3353
        %v3411 = vmul.f32 %v3379, %v3353
        %v3412 = vmul.f32 %v3380, %v3353
        %v3413 = vmul.f32 %v3381, %v3353
        %v3414 = vmul.f32 %v3382, %v3353
        %v3415 = vmul.f32 %v3383, %v3353
        %v3416 = vmul.f32 %v3384, %v3353
        %v3417 = vmul.f32 %v3385, %v3353
        %v3418 = vadd.f32 %v224, %v3386
        %v3419 = vadd.f32 %v225, %v3387
        %v3420 = vadd.f32 %v226, %v3388
        %v3421 = vadd.f32 %v227, %v3389
        %v3422 = vadd.f32 %v228, %v3390
        %v3423 = vadd.f32 %v229, %v3391
        %v3424 = vadd.f32 %v230, %v3392
        %v3425 = vadd.f32 %v231, %v3393
        %v3426 = vadd.f32 %v232, %v3394
        %v3427 = vadd.f32 %v233, %v3395
        %v3428 = vadd.f32 %v234, %v3396
        %v3429 = vadd.f32 %v235, %v3397
        %v3430 = vadd.f32 %v236, %v3398
        %v3431 = vadd.f32 %v237, %v3399
        %v3432 = vadd.f32 %v238, %v3400
        %v3433 = vadd.f32 %v239, %v3401
        %v3434 = vadd.f32 %v240, %v3402
        %v3435 = vadd.f32 %v241, %v3403
        %v3436 = vadd.f32 %v242, %v3404
        %v3437 = vadd.f32 %v243, %v3405
        %v3438 = vadd.f32 %v244, %v3406
        %v3439 = vadd.f32 %v245, %v3407
        %v3440 = vadd.f32 %v246, %v3408
        %v3441 = vadd.f32 %v247, %v3409
        %v3442 = vadd.f32 %v248, %v3410
        %v3443 = vadd.f32 %v249, %v3411
        %v3444 = vadd.f32 %v250, %v3412
        %v3445 = vadd.f32 %v251, %v3413
        %v3446 = vadd.f32 %v252, %v3414
        %v3447 = vadd.f32 %v253, %v3415
        %v3448 = vadd.f32 %v254, %v3416
        %v3449 = vadd.f32 %v255, %v3417
        %3450 = vst [vmem:[%s223] sm:$0xff] %v3418
        %3451 = vst [vmem:[%s223 + $0x8] sm:$0xff] %v3419
        %3452 = vst [vmem:[%s223 + $0x10] sm:$0xff] %v3420
        %3453 = vst [vmem:[%s223 + $0x18] sm:$0xff] %v3421
        %3454 = vst [vmem:[%s223 + $0x20] sm:$0xff] %v3422
        %3455 = vst [vmem:[%s223 + $0x28] sm:$0xff] %v3423
        %3456 = vst [vmem:[%s223 + $0x30] sm:$0xff] %v3424
        %3457 = vst [vmem:[%s223 + $0x38] sm:$0xff] %v3425
        %3458 = vst [vmem:[%s223 + $0x40] sm:$0xff] %v3426
        %3459 = vst [vmem:[%s223 + $0x48] sm:$0xff] %v3427
        %3460 = vst [vmem:[%s223 + $0x50] sm:$0xff] %v3428
        %3461 = vst [vmem:[%s223 + $0x58] sm:$0xff] %v3429
        %3462 = vst [vmem:[%s223 + $0x60] sm:$0xff] %v3430
        %3463 = vst [vmem:[%s223 + $0x68] sm:$0xff] %v3431
        %3464 = vst [vmem:[%s223 + $0x70] sm:$0xff] %v3432
        %3465 = vst [vmem:[%s223 + $0x78] sm:$0xff] %v3433
        %3466 = vst [vmem:[%s223 + $0x80] sm:$0xff] %v3434
        %3467 = vst [vmem:[%s223 + $0x88] sm:$0xff] %v3435
        %3468 = vst [vmem:[%s223 + $0x90] sm:$0xff] %v3436
        %3469 = vst [vmem:[%s223 + $0x98] sm:$0xff] %v3437
        %3470 = vst [vmem:[%s223 + $0xa0] sm:$0xff] %v3438
        %3471 = vst [vmem:[%s223 + $0xa8] sm:$0xff] %v3439
        %3472 = vst [vmem:[%s223 + $0xb0] sm:$0xff] %v3440
        %3473 = vst [vmem:[%s223 + $0xb8] sm:$0xff] %v3441
        %3474 = vst [vmem:[%s223 + $0xc0] sm:$0xff] %v3442
        %3475 = vst [vmem:[%s223 + $0xc8] sm:$0xff] %v3443
        %3476 = vst [vmem:[%s223 + $0xd0] sm:$0xff] %v3444
        %3477 = vst [vmem:[%s223 + $0xd8] sm:$0xff] %v3445
        %3478 = vst [vmem:[%s223 + $0xe0] sm:$0xff] %v3446
        %3479 = vst [vmem:[%s223 + $0xe8] sm:$0xff] %v3447
        %3480 = vst [vmem:[%s223 + $0xf0] sm:$0xff] %v3448
        %3481 = vst [vmem:[%s223 + $0xf8] sm:$0xff] %v3449
        %s3482 = sand.u32 %s97, 1
        %s3483 = scalar_lea.sflag [#allocation5], %s3482
        %s3484 = sand.u32 %s97, 1
        %s3485 = smul.addr %s3484, 256
        %s3486 = scalar_lea.vmem [#allocation9], %s3485
        // Predicated region
        $region45: #{tpu_custom_call.1} parent=31 // pred_check
          %p3487 = pneg %p107
        $region46: #{tpu_custom_call.1} parent=31 // pred_check_branch
          %3489 = sbr.rel (%p3487) target = $region48
        $region47: #{tpu_custom_call.1} parent=31 // pred_region
          %3491 = vsyncadd %s3483, 0
          %s3492 = smul.addr %s21, 32
          %s3493 = smul.addr %s3492, 8
          %s3494 = scalar_lea.hbm %s3, %s3493
          %s3495 = sshll.u32 %s3486, 4
          %s3496 = int_to_ptr.vmem [resolvable:$true] %s3495
          %s3497 = sshll.u32 %s3494, 4
          %s3498 = int_to_ptr.hbm [resolvable:$true] %s3497
          %3503 = dma.vmem_to_hbm [thread:$0]  %s3496, 4096, %s3498, %s3483, 128, 128, 8
        $region48: #{tpu_custom_call.1} parent=31 // pred_fallthru
          _
      $region32: #{tpu_custom_call.1} parent=5 // pred_fallthru
        _
      %p3504 = scmp.le.s32.totalorder 2, %s16
      // Predicated region
      $region49: #{tpu_custom_call.1} parent=5 // pred_check
        %p3505 = pneg %p3504
      $region50: #{tpu_custom_call.1} parent=5 // pred_check_branch
        %3507 = sbr.rel (%p3505) target = $region52
      $region51: #{tpu_custom_call.1} parent=5 // pred_region
        %s3508 = ssub.s32 %s16, 2
        // Predicated region
        $region53: #{tpu_custom_call.1} parent=51 // pred_check
          %p3509 = pneg %p113
        $region54: #{tpu_custom_call.1} parent=51 // pred_check_branch
          %3511 = sbr.rel (%p3509) target = $region56
        $region55: #{tpu_custom_call.1} parent=51 // pred_region
          %s3512 = sand.u32 %s98, 1
          %s3513 = scalar_lea.sflag [#allocation5], %s3512
          %s3514 = sand.u32 %s98, 1
          %s3515 = smul.addr %s3514, 256
          %s3516 = scalar_lea.vmem [#allocation9], %s3515
          %3518 = dma.done %s3513, 4096
        $region56: #{tpu_custom_call.1} parent=51 // pred_fallthru
          _
      $region52: #{tpu_custom_call.1} parent=5 // pred_fallthru
        _
    $region6: #{tpu_custom_call.1} parent=1 // loop_footer
      %s20 = sadd.s32 1, %s16
    $region7: #{tpu_custom_call.1} parent=1 // loop_footer_branch
      %15 = sbr.rel target = $region3
    $region8: #{tpu_custom_call.1} parent=1 // loop_exit
      _
    %3519 = vsyncpa [#allocation4], 1
    %s3520 = scalar_lea.sflag [#allocation4], 1
    %3521 = vsyncpa %s3520, 1
    %3522 = vsyncpa [#allocation7], 1
    %3523 = vsyncpa [#allocation5], 1
    %s3524 = scalar_lea.sflag [#allocation5], 1
    %3525 = vsyncpa %s3524, 1

</llo_original>
